<compile_context>
chip_gen: v7x
topology: tpu7x:2x2x1
jax: 0.10.0
libtpu: 0.0.40
codegen_flags: <defaults>
</compile_context>

<pallas_src>
import math
from functools import partial

import jax
import jax.numpy as jnp
from jax.experimental import pallas as pl
from jax.experimental.pallas import tpu as pltpu

LANES = 128              # padded channel width (lane-dense everywhere)
K_PATCH = 9 * LANES      # im2col K per conv layer (9 taps x 128 padded chans)
LRELU_SLOPE = 0.2
BN_EPS = 0.8             # nn.BatchNorm2d(co, 0.8): 2nd positional arg is eps
NEG_BIG = -1e30          # softmax mask value (exp underflows to exactly 0)


# ----------------------------------------------------------------------------
# Fused forward: builder returns a callable wrapping a single pallas_call
# ----------------------------------------------------------------------------
def _build_fused_forward(batch, channels, img_size, n_classes, code_dim):
    assert img_size % 16 == 0, "module requires img_size divisible by 16"
    ds_size = img_size // 16
    # TODO(synk): general ds_size > 1 needs the NCHW-order flatten of the last
    # activation; the fused head path below assumes ds_size == 1 (img_size=16).
    assert ds_size == 1, "fused head path implemented for ds_size == 1"
    assert 1 + n_classes + code_dim <= LANES
    assert channels <= LANES

    n_layers = 4
    S = [img_size // (2 ** i) for i in range(n_layers)]        # input spatial
    T = [s // 2 for s in S]                                    # output spatial
    HP = [s + 2 for s in S]                                    # padded spatial
    A_ROWS = [batch * hp * hp for hp in HP]                    # rows per buffer
    M = [batch * t * t for t in T]                             # matmul rows

    def kernel(img_ref, wconv_ref, bias_ref, scale_ref, shift_ref,
               whead_ref, bhead_ref, out_ref,
               a1, a2, a3, a4, p_ref):
        act = [a1, a2, a3, a4]

        # Zero-init activation buffers: establishes the conv zero-padding
        # border and the unused (padded) channel lanes.
        for a in act:
            a[...] = jnp.zeros_like(a)

        # Scatter the (N*H*W, Cin) image rows into layer-1's padded buffer.
        H = S[0]
        hp0 = HP[0]
        for n in range(batch):
            for h in range(H):
                row_vals = img_ref[pl.ds((n * H + h) * H, H), :]      # (W, Cin)
                a1[pl.ds((n * hp0 + h + 1) * hp0 + 1, H), 0:channels] = row_vals

        y = None
        for l in range(n_layers):
            t, hp = T[l], HP[l]
            m = M[l]
            a_src = act[l]

            # In-kernel im2col: gather the 9 taps into rows [0:m) of the patch
            # matrix.  Each copy is a stride-2 sublane read of t rows x 128
            # lanes from the padded activation buffer.
            for di in range(3):
                for dj in range(3):
                    tap = di * 3 + dj
                    for n in range(batch):
                        for ho in range(t):
                            base = (n * hp + 2 * ho + di) * hp + dj
                            rows = a_src[pl.ds(base, t, stride=2), :]
                            p_ref[pl.ds((n * t + ho) * t, t),
                                  tap * LANES:(tap + 1) * LANES] = rows

            # matmul (bf16 x bf16 -> f32) + bias + LeakyReLU + folded BN (eval)
            lhs = p_ref[0:m, :].astype(jnp.bfloat16)
            y = jnp.dot(lhs, wconv_ref[l], preferred_element_type=jnp.float32)
            y = y + bias_ref[l]
            y = jnp.where(y > 0, y, LRELU_SLOPE * y)
            y = y * scale_ref[l] + shift_ref[l]
            # Dropout2d(0.25) is identity at inference.

            if l + 1 < n_layers:
                # Write the (n, ho, wo) output rows into the next layer's
                # padded buffer interior (offset +1 in both spatial dims).
                hp_n = HP[l + 1]
                a_dst = act[l + 1]
                for n in range(batch):
                    for ho in range(t):
                        start = (n * t + ho) * t
                        blk = y[start:start + t, :]
                        a_dst[pl.ds((n * hp_n + ho + 1) * hp_n + 1, t), :] = blk

        # Heads: ds_size == 1 so the layer-4 output rows (batch, 128) are
        # exactly the NCHW-flattened features.  One lane-dense 128-wide matmul
        # covers adv / aux / latent; softmax only on the class columns.
        feat = y.astype(jnp.bfloat16)                               # (B, 128)
        hv = jnp.dot(feat, whead_ref[...], preferred_element_type=jnp.float32)
        hv = hv + bhead_ref[...]
        col = jax.lax.broadcasted_iota(jnp.int32, (batch, LANES), 1)
        is_cls = (col >= 1) & (col < 1 + n_classes)
        logits = jnp.where(is_cls, hv, NEG_BIG)
        mx = jnp.max(logits, axis=-1, keepdims=True)
        e = jnp.exp(logits - mx)
        ssum = jnp.sum(e, axis=-1, keepdims=True)
        sm = e * pl.reciprocal(ssum, approx=True)
        out_ref[...] = jnp.where(is_cls, sm, hv)

    scratch_shapes = [
        pltpu.VMEM((A_ROWS[0], LANES), jnp.float32),   # layer-1 padded input
        pltpu.VMEM((A_ROWS[1], LANES), jnp.float32),   # layer-2 padded input
        pltpu.VMEM((A_ROWS[2], LANES), jnp.float32),   # layer-3 padded input
        pltpu.VMEM((A_ROWS[3], LANES), jnp.float32),   # layer-4 padded input
        pltpu.VMEM((max(M), K_PATCH), jnp.float32),    # shared patch matrix
    ]

    return pl.pallas_call(
        kernel,
        out_shape=jax.ShapeDtypeStruct((batch, LANES), jnp.float32),
        scratch_shapes=scratch_shapes,
    )


# ----------------------------------------------------------------------------
# Parameter construction: raw (torch-layout) weights + packed kernel weights
# ----------------------------------------------------------------------------
def make_params(key, channels, n_classes, code_dim, img_size):
    ds_size = img_size // 16
    feat_dim = 128 * ds_size ** 2
    keys = jax.random.split(key, 16)
    ki = iter(range(16))

    cfgs = [(channels, 16, False), (16, 32, True), (32, 64, True), (64, 128, True)]
    wconv = jnp.zeros((4, K_PATCH, LANES), jnp.float32)
    bias = jnp.zeros((4, 1, LANES), jnp.float32)
    scale = jnp.ones((4, 1, LANES), jnp.float32)
    shift = jnp.zeros((4, 1, LANES), jnp.float32)
    raw_blocks = []
    for l, (ci, co, bn) in enumerate(cfgs):
        w = 0.1 * jax.random.normal(keys[next(ki)], (co, ci, 3, 3), jnp.float32)
        b = 0.1 * jax.random.normal(keys[next(ki)], (co,), jnp.float32)
        raw_blocks.append((w, b, bn))
        # torch (Co,Ci,kh,kw) -> (kh,kw,Ci,Co) -> per-tap (9,Ci,Co), placed into
        # the channel-padded (9,128,128) slot; row index = tap*128 + ci.
        w_t = jnp.transpose(w, (2, 3, 1, 0)).reshape(9, ci, co)
        w_pad = jnp.zeros((9, LANES, LANES), jnp.float32).at[:, :ci, :co].set(w_t)
        wconv = wconv.at[l].set(w_pad.reshape(K_PATCH, LANES))
        bias = bias.at[l, 0, :co].set(b)
        if bn:
            # eval BatchNorm with fresh stats: (x - 0)/sqrt(1 + eps) * 1 + 0
            scale = scale.at[l, 0, :co].set(1.0 / math.sqrt(1.0 + BN_EPS))
        # padded output channels stay exactly 0 (zero weights/bias, shift 0)

    wa = 0.1 * jax.random.normal(keys[next(ki)], (1, feat_dim), jnp.float32)
    ba = 0.1 * jax.random.normal(keys[next(ki)], (1,), jnp.float32)
    wc = 0.1 * jax.random.normal(keys[next(ki)], (n_classes, feat_dim), jnp.float32)
    bc = 0.1 * jax.random.normal(keys[next(ki)], (n_classes,), jnp.float32)
    w_lat = 0.1 * jax.random.normal(keys[next(ki)], (code_dim, feat_dim), jnp.float32)
    b_lat = 0.1 * jax.random.normal(keys[next(ki)], (code_dim,), jnp.float32)

    whead = jnp.zeros((LANES, LANES), jnp.float32)
    whead = whead.at[:feat_dim, 0:1].set(wa.T)
    whead = whead.at[:feat_dim, 1:1 + n_classes].set(wc.T)
    whead = whead.at[:feat_dim, 1 + n_classes:1 + n_classes + code_dim].set(w_lat.T)
    bhead = jnp.zeros((1, LANES), jnp.float32)
    bhead = bhead.at[0, 0].set(ba[0])
    bhead = bhead.at[0, 1:1 + n_classes].set(bc)
    bhead = bhead.at[0, 1 + n_classes:1 + n_classes + code_dim].set(b_lat)

    params = dict(wconv=wconv.astype(jnp.bfloat16), bias=bias, scale=scale,
                  shift=shift, whead=whead.astype(jnp.bfloat16), bhead=bhead)
    raw = dict(blocks=raw_blocks, wa=wa, ba=ba, wc=wc, bc=bc, wl=w_lat, bl=b_lat)
    return params, raw


# ----------------------------------------------------------------------------
# Public forward (Pallas) and a pure-JAX reference for numerics
# ----------------------------------------------------------------------------
def discriminator_forward(img_nchw, params, *, n_classes, code_dim):
    batch, channels, H, W = img_nchw.shape
    fused = _build_fused_forward(batch, channels, H, n_classes, code_dim)
    x_rows = jnp.transpose(img_nchw.astype(jnp.float32), (0, 2, 3, 1))
    x_rows = x_rows.reshape(batch * H * W, channels)
    packed = fused(x_rows, params["wconv"], params["bias"], params["scale"],
                   params["shift"], params["whead"], params["bhead"])
    validity = packed[:, 0:1]
    label = packed[:, 1:1 + n_classes]
    latent_code = packed[:, 1 + n_classes:1 + n_classes + code_dim]
    return validity, label, latent_code


def reference_forward(img_nchw, raw):
    x = jnp.transpose(img_nchw.astype(jnp.float32), (0, 2, 3, 1))
    for (w, b, bn) in raw["blocks"]:
        x = jax.lax.conv_general_dilated(
            x, jnp.transpose(w, (2, 3, 1, 0)), window_strides=(2, 2),
            padding=((1, 1), (1, 1)),
            dimension_numbers=("NHWC", "HWIO", "NHWC"))
        x = x + b
        x = jnp.where(x > 0, x, LRELU_SLOPE * x)
        if bn:
            x = x / jnp.sqrt(1.0 + BN_EPS)
    feat = jnp.transpose(x, (0, 3, 1, 2)).reshape(x.shape[0], -1)
    validity = feat @ raw["wa"].T + raw["ba"]
    label = jax.nn.softmax(feat @ raw["wc"].T + raw["bc"], axis=-1)
    latent = feat @ raw["wl"].T + raw["bl"]
    return validity, label, latent


if __name__ == "__main__":
    # Shapes consistent with the module: channels=4, img_size=16 ->
    # ds_size = 16 // 2**4 = 1, flattened feature dim = 128.
    batch, channels, img_size = 2, 4, 16
    n_classes, code_dim = 10, 2

    key = jax.random.PRNGKey(0)
    k_img, k_par = jax.random.split(key)
    img = jax.random.normal(k_img, (batch, channels, img_size, img_size),
                            jnp.float32)
    params, raw = make_params(k_par, channels, n_classes, code_dim, img_size)

    fwd = jax.jit(partial(discriminator_forward, n_classes=n_classes,
                          code_dim=code_dim))
    validity, label, latent_code = fwd(img, params)
    jax.block_until_ready((validity, label, latent_code))

    assert validity.shape == (batch, 1)
    assert label.shape == (batch, n_classes)
    assert latent_code.shape == (batch, code_dim)
    # softmax rows sum to ~1 (approx reciprocal on the EUP -> loose tolerance)
    assert bool(jnp.allclose(jnp.sum(label, axis=-1), 1.0, atol=2e-3))

    # Pure-JAX reference check (bf16 operands in the kernel -> loose tolerance)
    rv, rl, rc = reference_forward(img, raw)
    assert bool(jnp.allclose(validity, rv, atol=5e-2, rtol=5e-2))
    assert bool(jnp.allclose(label, rl, atol=5e-2, rtol=5e-2))
    assert bool(jnp.allclose(latent_code, rc, atol=5e-2, rtol=5e-2))

    print("KERNEL_OK")
</pallas_src>

<mosaic_0001>
module attributes {stable_mosaic.version = 11 : i64} {
  func.func @kernel(%arg0: memref<512x4xf32, #tpu.memory_space<vmem>>, %arg1: memref<4x1152x128xbf16, #tpu.memory_space<vmem>>, %arg2: memref<4x1x128xf32, #tpu.memory_space<vmem>>, %arg3: memref<4x1x128xf32, #tpu.memory_space<vmem>>, %arg4: memref<4x1x128xf32, #tpu.memory_space<vmem>>, %arg5: memref<128x128xbf16, #tpu.memory_space<vmem>>, %arg6: memref<1x128xf32, #tpu.memory_space<vmem>>, %arg7: memref<2x128xf32, #tpu.memory_space<vmem>>, %arg8: memref<648x128xf32, #tpu.memory_space<vmem>>, %arg9: memref<200x128xf32, #tpu.memory_space<vmem>>, %arg10: memref<72x128xf32, #tpu.memory_space<vmem>>, %arg11: memref<32x128xf32, #tpu.memory_space<vmem>>, %arg12: memref<128x1152xf32, #tpu.memory_space<vmem>>) attributes {dimension_semantics = [], scalar_prefetch = 0 : i64, scratch_operands = 5 : i64, tpu.core_type = #tpu.core_type<tc>} {
    %cst = arith.constant 0.000000e+00 : f32
    %0 = vector.broadcast %cst : f32 to vector<648x128xf32>
    %c0 = arith.constant 0 : index
    %c0_0 = arith.constant 0 : index
    %1 = vector.load %arg8[%c0, %c0_0] : memref<648x128xf32, #tpu.memory_space<vmem>>, vector<648x128xf32>
    tpu.vector_store %arg8[%c0, %c0_0], %0 {strides = array<i32>} : memref<648x128xf32, #tpu.memory_space<vmem>>, vector<648x128xf32>,
    %cst_1 = arith.constant 0.000000e+00 : f32
    %2 = vector.broadcast %cst_1 : f32 to vector<200x128xf32>
    %c0_2 = arith.constant 0 : index
    %c0_3 = arith.constant 0 : index
    %3 = vector.load %arg9[%c0_2, %c0_3] : memref<200x128xf32, #tpu.memory_space<vmem>>, vector<200x128xf32>
    tpu.vector_store %arg9[%c0_2, %c0_3], %2 {strides = array<i32>} : memref<200x128xf32, #tpu.memory_space<vmem>>, vector<200x128xf32>,
    %cst_4 = arith.constant 0.000000e+00 : f32
    %4 = vector.broadcast %cst_4 : f32 to vector<72x128xf32>
    %c0_5 = arith.constant 0 : index
    %c0_6 = arith.constant 0 : index
    %5 = vector.load %arg10[%c0_5, %c0_6] : memref<72x128xf32, #tpu.memory_space<vmem>>, vector<72x128xf32>
    tpu.vector_store %arg10[%c0_5, %c0_6], %4 {strides = array<i32>} : memref<72x128xf32, #tpu.memory_space<vmem>>, vector<72x128xf32>,
    %cst_7 = arith.constant 0.000000e+00 : f32
    %6 = vector.broadcast %cst_7 : f32 to vector<32x128xf32>
    %c0_8 = arith.constant 0 : index
    %c0_9 = arith.constant 0 : index
    %7 = vector.load %arg11[%c0_8, %c0_9] : memref<32x128xf32, #tpu.memory_space<vmem>>, vector<32x128xf32>
    tpu.vector_store %arg11[%c0_8, %c0_9], %6 {strides = array<i32>} : memref<32x128xf32, #tpu.memory_space<vmem>>, vector<32x128xf32>,
    %c0_10 = arith.constant 0 : index
    %c0_11 = arith.constant 0 : index
    %8 = vector.load %arg0[%c0_10, %c0_11] : memref<512x4xf32, #tpu.memory_space<vmem>>, vector<16x4xf32>
    %c19 = arith.constant 19 : index
    %c0_12 = arith.constant 0 : index
    %9 = vector.load %arg8[%c19, %c0_12] : memref<648x128xf32, #tpu.memory_space<vmem>>, vector<16x4xf32>
    tpu.vector_store %arg8[%c19, %c0_12], %8 {strides = array<i32>} : memref<648x128xf32, #tpu.memory_space<vmem>>, vector<16x4xf32>,
    %c16 = arith.constant 16 : index
    %c0_13 = arith.constant 0 : index
    %10 = vector.load %arg0[%c16, %c0_13] : memref<512x4xf32, #tpu.memory_space<vmem>>, vector<16x4xf32>
    %c37 = arith.constant 37 : index
    %c0_14 = arith.constant 0 : index
    %11 = vector.load %arg8[%c37, %c0_14] : memref<648x128xf32, #tpu.memory_space<vmem>>, vector<16x4xf32>
    tpu.vector_store %arg8[%c37, %c0_14], %10 {strides = array<i32>} : memref<648x128xf32, #tpu.memory_space<vmem>>, vector<16x4xf32>,
    %c32 = arith.constant 32 : index
    %c0_15 = arith.constant 0 : index
    %12 = vector.load %arg0[%c32, %c0_15] : memref<512x4xf32, #tpu.memory_space<vmem>>, vector<16x4xf32>
    %c55 = arith.constant 55 : index
    %c0_16 = arith.constant 0 : index
    %13 = vector.load %arg8[%c55, %c0_16] : memref<648x128xf32, #tpu.memory_space<vmem>>, vector<16x4xf32>
    tpu.vector_store %arg8[%c55, %c0_16], %12 {strides = array<i32>} : memref<648x128xf32, #tpu.memory_space<vmem>>, vector<16x4xf32>,
    %c48 = arith.constant 48 : index
    %c0_17 = arith.constant 0 : index
    %14 = vector.load %arg0[%c48, %c0_17] : memref<512x4xf32, #tpu.memory_space<vmem>>, vector<16x4xf32>
    %c73 = arith.constant 73 : index
    %c0_18 = arith.constant 0 : index
    %15 = vector.load %arg8[%c73, %c0_18] : memref<648x128xf32, #tpu.memory_space<vmem>>, vector<16x4xf32>
    tpu.vector_store %arg8[%c73, %c0_18], %14 {strides = array<i32>} : memref<648x128xf32, #tpu.memory_space<vmem>>, vector<16x4xf32>,
    %c64 = arith.constant 64 : index
    %c0_19 = arith.constant 0 : index
    %16 = vector.load %arg0[%c64, %c0_19] : memref<512x4xf32, #tpu.memory_space<vmem>>, vector<16x4xf32>
    %c91 = arith.constant 91 : index
    %c0_20 = arith.constant 0 : index
    %17 = vector.load %arg8[%c91, %c0_20] : memref<648x128xf32, #tpu.memory_space<vmem>>, vector<16x4xf32>
    tpu.vector_store %arg8[%c91, %c0_20], %16 {strides = array<i32>} : memref<648x128xf32, #tpu.memory_space<vmem>>, vector<16x4xf32>,
    %c80 = arith.constant 80 : index
    %c0_21 = arith.constant 0 : index
    %18 = vector.load %arg0[%c80, %c0_21] : memref<512x4xf32, #tpu.memory_space<vmem>>, vector<16x4xf32>
    %c109 = arith.constant 109 : index
    %c0_22 = arith.constant 0 : index
    %19 = vector.load %arg8[%c109, %c0_22] : memref<648x128xf32, #tpu.memory_space<vmem>>, vector<16x4xf32>
    tpu.vector_store %arg8[%c109, %c0_22], %18 {strides = array<i32>} : memref<648x128xf32, #tpu.memory_space<vmem>>, vector<16x4xf32>,
    %c96 = arith.constant 96 : index
    %c0_23 = arith.constant 0 : index
    %20 = vector.load %arg0[%c96, %c0_23] : memref<512x4xf32, #tpu.memory_space<vmem>>, vector<16x4xf32>
    %c127 = arith.constant 127 : index
    %c0_24 = arith.constant 0 : index
    %21 = vector.load %arg8[%c127, %c0_24] : memref<648x128xf32, #tpu.memory_space<vmem>>, vector<16x4xf32>
    tpu.vector_store %arg8[%c127, %c0_24], %20 {strides = array<i32>} : memref<648x128xf32, #tpu.memory_space<vmem>>, vector<16x4xf32>,
    %c112 = arith.constant 112 : index
    %c0_25 = arith.constant 0 : index
    %22 = vector.load %arg0[%c112, %c0_25] : memref<512x4xf32, #tpu.memory_space<vmem>>, vector<16x4xf32>
    %c145 = arith.constant 145 : index
    %c0_26 = arith.constant 0 : index
    %23 = vector.load %arg8[%c145, %c0_26] : memref<648x128xf32, #tpu.memory_space<vmem>>, vector<16x4xf32>
    tpu.vector_store %arg8[%c145, %c0_26], %22 {strides = array<i32>} : memref<648x128xf32, #tpu.memory_space<vmem>>, vector<16x4xf32>,
    %c128 = arith.constant 128 : index
    %c0_27 = arith.constant 0 : index
    %24 = vector.load %arg0[%c128, %c0_27] : memref<512x4xf32, #tpu.memory_space<vmem>>, vector<16x4xf32>
    %c163 = arith.constant 163 : index
    %c0_28 = arith.constant 0 : index
    %25 = vector.load %arg8[%c163, %c0_28] : memref<648x128xf32, #tpu.memory_space<vmem>>, vector<16x4xf32>
    tpu.vector_store %arg8[%c163, %c0_28], %24 {strides = array<i32>} : memref<648x128xf32, #tpu.memory_space<vmem>>, vector<16x4xf32>,
    %c144 = arith.constant 144 : index
    %c0_29 = arith.constant 0 : index
    %26 = vector.load %arg0[%c144, %c0_29] : memref<512x4xf32, #tpu.memory_space<vmem>>, vector<16x4xf32>
    %c181 = arith.constant 181 : index
    %c0_30 = arith.constant 0 : index
    %27 = vector.load %arg8[%c181, %c0_30] : memref<648x128xf32, #tpu.memory_space<vmem>>, vector<16x4xf32>
    tpu.vector_store %arg8[%c181, %c0_30], %26 {strides = array<i32>} : memref<648x128xf32, #tpu.memory_space<vmem>>, vector<16x4xf32>,
    %c160 = arith.constant 160 : index
    %c0_31 = arith.constant 0 : index
    %28 = vector.load %arg0[%c160, %c0_31] : memref<512x4xf32, #tpu.memory_space<vmem>>, vector<16x4xf32>
    %c199 = arith.constant 199 : index
    %c0_32 = arith.constant 0 : index
    %29 = vector.load %arg8[%c199, %c0_32] : memref<648x128xf32, #tpu.memory_space<vmem>>, vector<16x4xf32>
    tpu.vector_store %arg8[%c199, %c0_32], %28 {strides = array<i32>} : memref<648x128xf32, #tpu.memory_space<vmem>>, vector<16x4xf32>,
    %c176 = arith.constant 176 : index
    %c0_33 = arith.constant 0 : index
    %30 = vector.load %arg0[%c176, %c0_33] : memref<512x4xf32, #tpu.memory_space<vmem>>, vector<16x4xf32>
    %c217 = arith.constant 217 : index
    %c0_34 = arith.constant 0 : index
    %31 = vector.load %arg8[%c217, %c0_34] : memref<648x128xf32, #tpu.memory_space<vmem>>, vector<16x4xf32>
    tpu.vector_store %arg8[%c217, %c0_34], %30 {strides = array<i32>} : memref<648x128xf32, #tpu.memory_space<vmem>>, vector<16x4xf32>,
    %c192 = arith.constant 192 : index
    %c0_35 = arith.constant 0 : index
    %32 = vector.load %arg0[%c192, %c0_35] : memref<512x4xf32, #tpu.memory_space<vmem>>, vector<16x4xf32>
    %c235 = arith.constant 235 : index
    %c0_36 = arith.constant 0 : index
    %33 = vector.load %arg8[%c235, %c0_36] : memref<648x128xf32, #tpu.memory_space<vmem>>, vector<16x4xf32>
    tpu.vector_store %arg8[%c235, %c0_36], %32 {strides = array<i32>} : memref<648x128xf32, #tpu.memory_space<vmem>>, vector<16x4xf32>,
    %c208 = arith.constant 208 : index
    %c0_37 = arith.constant 0 : index
    %34 = vector.load %arg0[%c208, %c0_37] : memref<512x4xf32, #tpu.memory_space<vmem>>, vector<16x4xf32>
    %c253 = arith.constant 253 : index
    %c0_38 = arith.constant 0 : index
    %35 = vector.load %arg8[%c253, %c0_38] : memref<648x128xf32, #tpu.memory_space<vmem>>, vector<16x4xf32>
    tpu.vector_store %arg8[%c253, %c0_38], %34 {strides = array<i32>} : memref<648x128xf32, #tpu.memory_space<vmem>>, vector<16x4xf32>,
    %c224 = arith.constant 224 : index
    %c0_39 = arith.constant 0 : index
    %36 = vector.load %arg0[%c224, %c0_39] : memref<512x4xf32, #tpu.memory_space<vmem>>, vector<16x4xf32>
    %c271 = arith.constant 271 : index
    %c0_40 = arith.constant 0 : index
    %37 = vector.load %arg8[%c271, %c0_40] : memref<648x128xf32, #tpu.memory_space<vmem>>, vector<16x4xf32>
    tpu.vector_store %arg8[%c271, %c0_40], %36 {strides = array<i32>} : memref<648x128xf32, #tpu.memory_space<vmem>>, vector<16x4xf32>,
    %c240 = arith.constant 240 : index
    %c0_41 = arith.constant 0 : index
    %38 = vector.load %arg0[%c240, %c0_41] : memref<512x4xf32, #tpu.memory_space<vmem>>, vector<16x4xf32>
    %c289 = arith.constant 289 : index
    %c0_42 = arith.constant 0 : index
    %39 = vector.load %arg8[%c289, %c0_42] : memref<648x128xf32, #tpu.memory_space<vmem>>, vector<16x4xf32>
    tpu.vector_store %arg8[%c289, %c0_42], %38 {strides = array<i32>} : memref<648x128xf32, #tpu.memory_space<vmem>>, vector<16x4xf32>,
    %c256 = arith.constant 256 : index
    %c0_43 = arith.constant 0 : index
    %40 = vector.load %arg0[%c256, %c0_43] : memref<512x4xf32, #tpu.memory_space<vmem>>, vector<16x4xf32>
    %c343 = arith.constant 343 : index
    %c0_44 = arith.constant 0 : index
    %41 = vector.load %arg8[%c343, %c0_44] : memref<648x128xf32, #tpu.memory_space<vmem>>, vector<16x4xf32>
    tpu.vector_store %arg8[%c343, %c0_44], %40 {strides = array<i32>} : memref<648x128xf32, #tpu.memory_space<vmem>>, vector<16x4xf32>,
    %c272 = arith.constant 272 : index
    %c0_45 = arith.constant 0 : index
    %42 = vector.load %arg0[%c272, %c0_45] : memref<512x4xf32, #tpu.memory_space<vmem>>, vector<16x4xf32>
    %c361 = arith.constant 361 : index
    %c0_46 = arith.constant 0 : index
    %43 = vector.load %arg8[%c361, %c0_46] : memref<648x128xf32, #tpu.memory_space<vmem>>, vector<16x4xf32>
    tpu.vector_store %arg8[%c361, %c0_46], %42 {strides = array<i32>} : memref<648x128xf32, #tpu.memory_space<vmem>>, vector<16x4xf32>,
    %c288 = arith.constant 288 : index
    %c0_47 = arith.constant 0 : index
    %44 = vector.load %arg0[%c288, %c0_47] : memref<512x4xf32, #tpu.memory_space<vmem>>, vector<16x4xf32>
    %c379 = arith.constant 379 : index
    %c0_48 = arith.constant 0 : index
    %45 = vector.load %arg8[%c379, %c0_48] : memref<648x128xf32, #tpu.memory_space<vmem>>, vector<16x4xf32>
    tpu.vector_store %arg8[%c379, %c0_48], %44 {strides = array<i32>} : memref<648x128xf32, #tpu.memory_space<vmem>>, vector<16x4xf32>,
    %c304 = arith.constant 304 : index
    %c0_49 = arith.constant 0 : index
    %46 = vector.load %arg0[%c304, %c0_49] : memref<512x4xf32, #tpu.memory_space<vmem>>, vector<16x4xf32>
    %c397 = arith.constant 397 : index
    %c0_50 = arith.constant 0 : index
    %47 = vector.load %arg8[%c397, %c0_50] : memref<648x128xf32, #tpu.memory_space<vmem>>, vector<16x4xf32>
    tpu.vector_store %arg8[%c397, %c0_50], %46 {strides = array<i32>} : memref<648x128xf32, #tpu.memory_space<vmem>>, vector<16x4xf32>,
    %c320 = arith.constant 320 : index
    %c0_51 = arith.constant 0 : index
    %48 = vector.load %arg0[%c320, %c0_51] : memref<512x4xf32, #tpu.memory_space<vmem>>, vector<16x4xf32>
    %c415 = arith.constant 415 : index
    %c0_52 = arith.constant 0 : index
    %49 = vector.load %arg8[%c415, %c0_52] : memref<648x128xf32, #tpu.memory_space<vmem>>, vector<16x4xf32>
    tpu.vector_store %arg8[%c415, %c0_52], %48 {strides = array<i32>} : memref<648x128xf32, #tpu.memory_space<vmem>>, vector<16x4xf32>,
    %c336 = arith.constant 336 : index
    %c0_53 = arith.constant 0 : index
    %50 = vector.load %arg0[%c336, %c0_53] : memref<512x4xf32, #tpu.memory_space<vmem>>, vector<16x4xf32>
    %c433 = arith.constant 433 : index
    %c0_54 = arith.constant 0 : index
    %51 = vector.load %arg8[%c433, %c0_54] : memref<648x128xf32, #tpu.memory_space<vmem>>, vector<16x4xf32>
    tpu.vector_store %arg8[%c433, %c0_54], %50 {strides = array<i32>} : memref<648x128xf32, #tpu.memory_space<vmem>>, vector<16x4xf32>,
    %c352 = arith.constant 352 : index
    %c0_55 = arith.constant 0 : index
    %52 = vector.load %arg0[%c352, %c0_55] : memref<512x4xf32, #tpu.memory_space<vmem>>, vector<16x4xf32>
    %c451 = arith.constant 451 : index
    %c0_56 = arith.constant 0 : index
    %53 = vector.load %arg8[%c451, %c0_56] : memref<648x128xf32, #tpu.memory_space<vmem>>, vector<16x4xf32>
    tpu.vector_store %arg8[%c451, %c0_56], %52 {strides = array<i32>} : memref<648x128xf32, #tpu.memory_space<vmem>>, vector<16x4xf32>,
    %c368 = arith.constant 368 : index
    %c0_57 = arith.constant 0 : index
    %54 = vector.load %arg0[%c368, %c0_57] : memref<512x4xf32, #tpu.memory_space<vmem>>, vector<16x4xf32>
    %c469 = arith.constant 469 : index
    %c0_58 = arith.constant 0 : index
    %55 = vector.load %arg8[%c469, %c0_58] : memref<648x128xf32, #tpu.memory_space<vmem>>, vector<16x4xf32>
    tpu.vector_store %arg8[%c469, %c0_58], %54 {strides = array<i32>} : memref<648x128xf32, #tpu.memory_space<vmem>>, vector<16x4xf32>,
    %c384 = arith.constant 384 : index
    %c0_59 = arith.constant 0 : index
    %56 = vector.load %arg0[%c384, %c0_59] : memref<512x4xf32, #tpu.memory_space<vmem>>, vector<16x4xf32>
    %c487 = arith.constant 487 : index
    %c0_60 = arith.constant 0 : index
    %57 = vector.load %arg8[%c487, %c0_60] : memref<648x128xf32, #tpu.memory_space<vmem>>, vector<16x4xf32>
    tpu.vector_store %arg8[%c487, %c0_60], %56 {strides = array<i32>} : memref<648x128xf32, #tpu.memory_space<vmem>>, vector<16x4xf32>,
    %c400 = arith.constant 400 : index
    %c0_61 = arith.constant 0 : index
    %58 = vector.load %arg0[%c400, %c0_61] : memref<512x4xf32, #tpu.memory_space<vmem>>, vector<16x4xf32>
    %c505 = arith.constant 505 : index
    %c0_62 = arith.constant 0 : index
    %59 = vector.load %arg8[%c505, %c0_62] : memref<648x128xf32, #tpu.memory_space<vmem>>, vector<16x4xf32>
    tpu.vector_store %arg8[%c505, %c0_62], %58 {strides = array<i32>} : memref<648x128xf32, #tpu.memory_space<vmem>>, vector<16x4xf32>,
    %c416 = arith.constant 416 : index
    %c0_63 = arith.constant 0 : index
    %60 = vector.load %arg0[%c416, %c0_63] : memref<512x4xf32, #tpu.memory_space<vmem>>, vector<16x4xf32>
    %c523 = arith.constant 523 : index
    %c0_64 = arith.constant 0 : index
    %61 = vector.load %arg8[%c523, %c0_64] : memref<648x128xf32, #tpu.memory_space<vmem>>, vector<16x4xf32>
    tpu.vector_store %arg8[%c523, %c0_64], %60 {strides = array<i32>} : memref<648x128xf32, #tpu.memory_space<vmem>>, vector<16x4xf32>,
    %c432 = arith.constant 432 : index
    %c0_65 = arith.constant 0 : index
    %62 = vector.load %arg0[%c432, %c0_65] : memref<512x4xf32, #tpu.memory_space<vmem>>, vector<16x4xf32>
    %c541 = arith.constant 541 : index
    %c0_66 = arith.constant 0 : index
    %63 = vector.load %arg8[%c541, %c0_66] : memref<648x128xf32, #tpu.memory_space<vmem>>, vector<16x4xf32>
    tpu.vector_store %arg8[%c541, %c0_66], %62 {strides = array<i32>} : memref<648x128xf32, #tpu.memory_space<vmem>>, vector<16x4xf32>,
    %c448 = arith.constant 448 : index
    %c0_67 = arith.constant 0 : index
    %64 = vector.load %arg0[%c448, %c0_67] : memref<512x4xf32, #tpu.memory_space<vmem>>, vector<16x4xf32>
    %c559 = arith.constant 559 : index
    %c0_68 = arith.constant 0 : index
    %65 = vector.load %arg8[%c559, %c0_68] : memref<648x128xf32, #tpu.memory_space<vmem>>, vector<16x4xf32>
    tpu.vector_store %arg8[%c559, %c0_68], %64 {strides = array<i32>} : memref<648x128xf32, #tpu.memory_space<vmem>>, vector<16x4xf32>,
    %c464 = arith.constant 464 : index
    %c0_69 = arith.constant 0 : index
    %66 = vector.load %arg0[%c464, %c0_69] : memref<512x4xf32, #tpu.memory_space<vmem>>, vector<16x4xf32>
    %c577 = arith.constant 577 : index
    %c0_70 = arith.constant 0 : index
    %67 = vector.load %arg8[%c577, %c0_70] : memref<648x128xf32, #tpu.memory_space<vmem>>, vector<16x4xf32>
    tpu.vector_store %arg8[%c577, %c0_70], %66 {strides = array<i32>} : memref<648x128xf32, #tpu.memory_space<vmem>>, vector<16x4xf32>,
    %c480 = arith.constant 480 : index
    %c0_71 = arith.constant 0 : index
    %68 = vector.load %arg0[%c480, %c0_71] : memref<512x4xf32, #tpu.memory_space<vmem>>, vector<16x4xf32>
    %c595 = arith.constant 595 : index
    %c0_72 = arith.constant 0 : index
    %69 = vector.load %arg8[%c595, %c0_72] : memref<648x128xf32, #tpu.memory_space<vmem>>, vector<16x4xf32>
    tpu.vector_store %arg8[%c595, %c0_72], %68 {strides = array<i32>} : memref<648x128xf32, #tpu.memory_space<vmem>>, vector<16x4xf32>,
    %c496 = arith.constant 496 : index
    %c0_73 = arith.constant 0 : index
    %70 = vector.load %arg0[%c496, %c0_73] : memref<512x4xf32, #tpu.memory_space<vmem>>, vector<16x4xf32>
    %c613 = arith.constant 613 : index
    %c0_74 = arith.constant 0 : index
    %71 = vector.load %arg8[%c613, %c0_74] : memref<648x128xf32, #tpu.memory_space<vmem>>, vector<16x4xf32>
    tpu.vector_store %arg8[%c613, %c0_74], %70 {strides = array<i32>} : memref<648x128xf32, #tpu.memory_space<vmem>>, vector<16x4xf32>,
    %c0_75 = arith.constant 0 : index
    %c0_76 = arith.constant 0 : index
    %72 = tpu.strided_load %arg8[%c0_75, %c0_76] {strides = array<i32: 2, 1>} : memref<648x128xf32, #tpu.memory_space<vmem>>, vector<8x128xf32>
    %c0_77 = arith.constant 0 : index
    %c0_78 = arith.constant 0 : index
    %73 = vector.load %arg12[%c0_77, %c0_78] : memref<128x1152xf32, #tpu.memory_space<vmem>>, vector<8x128xf32>
    tpu.vector_store %arg12[%c0_77, %c0_78], %72 {strides = array<i32>} : memref<128x1152xf32, #tpu.memory_space<vmem>>, vector<8x128xf32>,
    %c36 = arith.constant 36 : index
    %c0_79 = arith.constant 0 : index
    %74 = tpu.strided_load %arg8[%c36, %c0_79] {strides = array<i32: 2, 1>} : memref<648x128xf32, #tpu.memory_space<vmem>>, vector<8x128xf32>
    %c8 = arith.constant 8 : index
    %c0_80 = arith.constant 0 : index
    %75 = vector.load %arg12[%c8, %c0_80] : memref<128x1152xf32, #tpu.memory_space<vmem>>, vector<8x128xf32>
    tpu.vector_store %arg12[%c8, %c0_80], %74 {strides = array<i32>} : memref<128x1152xf32, #tpu.memory_space<vmem>>, vector<8x128xf32>,
    %c72 = arith.constant 72 : index
    %c0_81 = arith.constant 0 : index
    %76 = tpu.strided_load %arg8[%c72, %c0_81] {strides = array<i32: 2, 1>} : memref<648x128xf32, #tpu.memory_space<vmem>>, vector<8x128xf32>
    %c16_82 = arith.constant 16 : index
    %c0_83 = arith.constant 0 : index
    %77 = vector.load %arg12[%c16_82, %c0_83] : memref<128x1152xf32, #tpu.memory_space<vmem>>, vector<8x128xf32>
    tpu.vector_store %arg12[%c16_82, %c0_83], %76 {strides = array<i32>} : memref<128x1152xf32, #tpu.memory_space<vmem>>, vector<8x128xf32>,
    %c108 = arith.constant 108 : index
    %c0_84 = arith.constant 0 : index
    %78 = tpu.strided_load %arg8[%c108, %c0_84] {strides = array<i32: 2, 1>} : memref<648x128xf32, #tpu.memory_space<vmem>>, vector<8x128xf32>
    %c24 = arith.constant 24 : index
    %c0_85 = arith.constant 0 : index
    %79 = vector.load %arg12[%c24, %c0_85] : memref<128x1152xf32, #tpu.memory_space<vmem>>, vector<8x128xf32>
    tpu.vector_store %arg12[%c24, %c0_85], %78 {strides = array<i32>} : memref<128x1152xf32, #tpu.memory_space<vmem>>, vector<8x128xf32>,
    %c144_86 = arith.constant 144 : index
    %c0_87 = arith.constant 0 : index
    %80 = tpu.strided_load %arg8[%c144_86, %c0_87] {strides = array<i32: 2, 1>} : memref<648x128xf32, #tpu.memory_space<vmem>>, vector<8x128xf32>
    %c32_88 = arith.constant 32 : index
    %c0_89 = arith.constant 0 : index
    %81 = vector.load %arg12[%c32_88, %c0_89] : memref<128x1152xf32, #tpu.memory_space<vmem>>, vector<8x128xf32>
    tpu.vector_store %arg12[%c32_88, %c0_89], %80 {strides = array<i32>} : memref<128x1152xf32, #tpu.memory_space<vmem>>, vector<8x128xf32>,
    %c180 = arith.constant 180 : index
    %c0_90 = arith.constant 0 : index
    %82 = tpu.strided_load %arg8[%c180, %c0_90] {strides = array<i32: 2, 1>} : memref<648x128xf32, #tpu.memory_space<vmem>>, vector<8x128xf32>
    %c40 = arith.constant 40 : index
    %c0_91 = arith.constant 0 : index
    %83 = vector.load %arg12[%c40, %c0_91] : memref<128x1152xf32, #tpu.memory_space<vmem>>, vector<8x128xf32>
    tpu.vector_store %arg12[%c40, %c0_91], %82 {strides = array<i32>} : memref<128x1152xf32, #tpu.memory_space<vmem>>, vector<8x128xf32>,
    %c216 = arith.constant 216 : index
    %c0_92 = arith.constant 0 : index
    %84 = tpu.strided_load %arg8[%c216, %c0_92] {strides = array<i32: 2, 1>} : memref<648x128xf32, #tpu.memory_space<vmem>>, vector<8x128xf32>
    %c48_93 = arith.constant 48 : index
    %c0_94 = arith.constant 0 : index
    %85 = vector.load %arg12[%c48_93, %c0_94] : memref<128x1152xf32, #tpu.memory_space<vmem>>, vector<8x128xf32>
    tpu.vector_store %arg12[%c48_93, %c0_94], %84 {strides = array<i32>} : memref<128x1152xf32, #tpu.memory_space<vmem>>, vector<8x128xf32>,
    %c252 = arith.constant 252 : index
    %c0_95 = arith.constant 0 : index
    %86 = tpu.strided_load %arg8[%c252, %c0_95] {strides = array<i32: 2, 1>} : memref<648x128xf32, #tpu.memory_space<vmem>>, vector<8x128xf32>
    %c56 = arith.constant 56 : index
    %c0_96 = arith.constant 0 : index
    %87 = vector.load %arg12[%c56, %c0_96] : memref<128x1152xf32, #tpu.memory_space<vmem>>, vector<8x128xf32>
    tpu.vector_store %arg12[%c56, %c0_96], %86 {strides = array<i32>} : memref<128x1152xf32, #tpu.memory_space<vmem>>, vector<8x128xf32>,
    %c324 = arith.constant 324 : index
    %c0_97 = arith.constant 0 : index
    %88 = tpu.strided_load %arg8[%c324, %c0_97] {strides = array<i32: 2, 1>} : memref<648x128xf32, #tpu.memory_space<vmem>>, vector<8x128xf32>
    %c64_98 = arith.constant 64 : index
    %c0_99 = arith.constant 0 : index
    %89 = vector.load %arg12[%c64_98, %c0_99] : memref<128x1152xf32, #tpu.memory_space<vmem>>, vector<8x128xf32>
    tpu.vector_store %arg12[%c64_98, %c0_99], %88 {strides = array<i32>} : memref<128x1152xf32, #tpu.memory_space<vmem>>, vector<8x128xf32>,
    %c360 = arith.constant 360 : index
    %c0_100 = arith.constant 0 : index
    %90 = tpu.strided_load %arg8[%c360, %c0_100] {strides = array<i32: 2, 1>} : memref<648x128xf32, #tpu.memory_space<vmem>>, vector<8x128xf32>
    %c72_101 = arith.constant 72 : index
    %c0_102 = arith.constant 0 : index
    %91 = vector.load %arg12[%c72_101, %c0_102] : memref<128x1152xf32, #tpu.memory_space<vmem>>, vector<8x128xf32>
    tpu.vector_store %arg12[%c72_101, %c0_102], %90 {strides = array<i32>} : memref<128x1152xf32, #tpu.memory_space<vmem>>, vector<8x128xf32>,
    %c396 = arith.constant 396 : index
    %c0_103 = arith.constant 0 : index
    %92 = tpu.strided_load %arg8[%c396, %c0_103] {strides = array<i32: 2, 1>} : memref<648x128xf32, #tpu.memory_space<vmem>>, vector<8x128xf32>
    %c80_104 = arith.constant 80 : index
    %c0_105 = arith.constant 0 : index
    %93 = vector.load %arg12[%c80_104, %c0_105] : memref<128x1152xf32, #tpu.memory_space<vmem>>, vector<8x128xf32>
    tpu.vector_store %arg12[%c80_104, %c0_105], %92 {strides = array<i32>} : memref<128x1152xf32, #tpu.memory_space<vmem>>, vector<8x128xf32>,
    %c432_106 = arith.constant 432 : index
    %c0_107 = arith.constant 0 : index
    %94 = tpu.strided_load %arg8[%c432_106, %c0_107] {strides = array<i32: 2, 1>} : memref<648x128xf32, #tpu.memory_space<vmem>>, vector<8x128xf32>
    %c88 = arith.constant 88 : index
    %c0_108 = arith.constant 0 : index
    %95 = vector.load %arg12[%c88, %c0_108] : memref<128x1152xf32, #tpu.memory_space<vmem>>, vector<8x128xf32>
    tpu.vector_store %arg12[%c88, %c0_108], %94 {strides = array<i32>} : memref<128x1152xf32, #tpu.memory_space<vmem>>, vector<8x128xf32>,
    %c468 = arith.constant 468 : index
    %c0_109 = arith.constant 0 : index
    %96 = tpu.strided_load %arg8[%c468, %c0_109] {strides = array<i32: 2, 1>} : memref<648x128xf32, #tpu.memory_space<vmem>>, vector<8x128xf32>
    %c96_110 = arith.constant 96 : index
    %c0_111 = arith.constant 0 : index
    %97 = vector.load %arg12[%c96_110, %c0_111] : memref<128x1152xf32, #tpu.memory_space<vmem>>, vector<8x128xf32>
    tpu.vector_store %arg12[%c96_110, %c0_111], %96 {strides = array<i32>} : memref<128x1152xf32, #tpu.memory_space<vmem>>, vector<8x128xf32>,
    %c504 = arith.constant 504 : index
    %c0_112 = arith.constant 0 : index
    %98 = tpu.strided_load %arg8[%c504, %c0_112] {strides = array<i32: 2, 1>} : memref<648x128xf32, #tpu.memory_space<vmem>>, vector<8x128xf32>
    %c104 = arith.constant 104 : index
    %c0_113 = arith.constant 0 : index
    %99 = vector.load %arg12[%c104, %c0_113] : memref<128x1152xf32, #tpu.memory_space<vmem>>, vector<8x128xf32>
    tpu.vector_store %arg12[%c104, %c0_113], %98 {strides = array<i32>} : memref<128x1152xf32, #tpu.memory_space<vmem>>, vector<8x128xf32>,
    %c540 = arith.constant 540 : index
    %c0_114 = arith.constant 0 : index
    %100 = tpu.strided_load %arg8[%c540, %c0_114] {strides = array<i32: 2, 1>} : memref<648x128xf32, #tpu.memory_space<vmem>>, vector<8x128xf32>
    %c112_115 = arith.constant 112 : index
    %c0_116 = arith.constant 0 : index
    %101 = vector.load %arg12[%c112_115, %c0_116] : memref<128x1152xf32, #tpu.memory_space<vmem>>, vector<8x128xf32>
    tpu.vector_store %arg12[%c112_115, %c0_116], %100 {strides = array<i32>} : memref<128x1152xf32, #tpu.memory_space<vmem>>, vector<8x128xf32>,
    %c576 = arith.constant 576 : index
    %c0_117 = arith.constant 0 : index
    %102 = tpu.strided_load %arg8[%c576, %c0_117] {strides = array<i32: 2, 1>} : memref<648x128xf32, #tpu.memory_space<vmem>>, vector<8x128xf32>
    %c120 = arith.constant 120 : index
    %c0_118 = arith.constant 0 : index
    %103 = vector.load %arg12[%c120, %c0_118] : memref<128x1152xf32, #tpu.memory_space<vmem>>, vector<8x128xf32>
    tpu.vector_store %arg12[%c120, %c0_118], %102 {strides = array<i32>} : memref<128x1152xf32, #tpu.memory_space<vmem>>, vector<8x128xf32>,
    %c1 = arith.constant 1 : index
    %c0_119 = arith.constant 0 : index
    %104 = tpu.strided_load %arg8[%c1, %c0_119] {strides = array<i32: 2, 1>} : memref<648x128xf32, #tpu.memory_space<vmem>>, vector<8x128xf32>
    %c0_120 = arith.constant 0 : index
    %c128_121 = arith.constant 128 : index
    %105 = vector.load %arg12[%c0_120, %c128_121] : memref<128x1152xf32, #tpu.memory_space<vmem>>, vector<8x128xf32>
    tpu.vector_store %arg12[%c0_120, %c128_121], %104 {strides = array<i32>} : memref<128x1152xf32, #tpu.memory_space<vmem>>, vector<8x128xf32>,
    %c37_122 = arith.constant 37 : index
    %c0_123 = arith.constant 0 : index
    %106 = tpu.strided_load %arg8[%c37_122, %c0_123] {strides = array<i32: 2, 1>} : memref<648x128xf32, #tpu.memory_space<vmem>>, vector<8x128xf32>
    %c8_124 = arith.constant 8 : index
    %c128_125 = arith.constant 128 : index
    %107 = vector.load %arg12[%c8_124, %c128_125] : memref<128x1152xf32, #tpu.memory_space<vmem>>, vector<8x128xf32>
    tpu.vector_store %arg12[%c8_124, %c128_125], %106 {strides = array<i32>} : memref<128x1152xf32, #tpu.memory_space<vmem>>, vector<8x128xf32>,
    %c73_126 = arith.constant 73 : index
    %c0_127 = arith.constant 0 : index
    %108 = tpu.strided_load %arg8[%c73_126, %c0_127] {strides = array<i32: 2, 1>} : memref<648x128xf32, #tpu.memory_space<vmem>>, vector<8x128xf32>
    %c16_128 = arith.constant 16 : index
    %c128_129 = arith.constant 128 : index
    %109 = vector.load %arg12[%c16_128, %c128_129] : memref<128x1152xf32, #tpu.memory_space<vmem>>, vector<8x128xf32>
    tpu.vector_store %arg12[%c16_128, %c128_129], %108 {strides = array<i32>} : memref<128x1152xf32, #tpu.memory_space<vmem>>, vector<8x128xf32>,
    %c109_130 = arith.constant 109 : index
    %c0_131 = arith.constant 0 : index
    %110 = tpu.strided_load %arg8[%c109_130, %c0_131] {strides = array<i32: 2, 1>} : memref<648x128xf32, #tpu.memory_space<vmem>>, vector<8x128xf32>
    %c24_132 = arith.constant 24 : index
    %c128_133 = arith.constant 128 : index
    %111 = vector.load %arg12[%c24_132, %c128_133] : memref<128x1152xf32, #tpu.memory_space<vmem>>, vector<8x128xf32>
    tpu.vector_store %arg12[%c24_132, %c128_133], %110 {strides = array<i32>} : memref<128x1152xf32, #tpu.memory_space<vmem>>, vector<8x128xf32>,
    %c145_134 = arith.constant 145 : index
    %c0_135 = arith.constant 0 : index
    %112 = tpu.strided_load %arg8[%c145_134, %c0_135] {strides = array<i32: 2, 1>} : memref<648x128xf32, #tpu.memory_space<vmem>>, vector<8x128xf32>
    %c32_136 = arith.constant 32 : index
    %c128_137 = arith.constant 128 : index
    %113 = vector.load %arg12[%c32_136, %c128_137] : memref<128x1152xf32, #tpu.memory_space<vmem>>, vector<8x128xf32>
    tpu.vector_store %arg12[%c32_136, %c128_137], %112 {strides = array<i32>} : memref<128x1152xf32, #tpu.memory_space<vmem>>, vector<8x128xf32>,
    %c181_138 = arith.constant 181 : index
    %c0_139 = arith.constant 0 : index
    %114 = tpu.strided_load %arg8[%c181_138, %c0_139] {strides = array<i32: 2, 1>} : memref<648x128xf32, #tpu.memory_space<vmem>>, vector<8x128xf32>
    %c40_140 = arith.constant 40 : index
    %c128_141 = arith.constant 128 : index
    %115 = vector.load %arg12[%c40_140, %c128_141] : memref<128x1152xf32, #tpu.memory_space<vmem>>, vector<8x128xf32>
    tpu.vector_store %arg12[%c40_140, %c128_141], %114 {strides = array<i32>} : memref<128x1152xf32, #tpu.memory_space<vmem>>, vector<8x128xf32>,
    %c217_142 = arith.constant 217 : index
    %c0_143 = arith.constant 0 : index
    %116 = tpu.strided_load %arg8[%c217_142, %c0_143] {strides = array<i32: 2, 1>} : memref<648x128xf32, #tpu.memory_space<vmem>>, vector<8x128xf32>
    %c48_144 = arith.constant 48 : index
    %c128_145 = arith.constant 128 : index
    %117 = vector.load %arg12[%c48_144, %c128_145] : memref<128x1152xf32, #tpu.memory_space<vmem>>, vector<8x128xf32>
    tpu.vector_store %arg12[%c48_144, %c128_145], %116 {strides = array<i32>} : memref<128x1152xf32, #tpu.memory_space<vmem>>, vector<8x128xf32>,
    %c253_146 = arith.constant 253 : index
    %c0_147 = arith.constant 0 : index
    %118 = tpu.strided_load %arg8[%c253_146, %c0_147] {strides = array<i32: 2, 1>} : memref<648x128xf32, #tpu.memory_space<vmem>>, vector<8x128xf32>
    %c56_148 = arith.constant 56 : index
    %c128_149 = arith.constant 128 : index
    %119 = vector.load %arg12[%c56_148, %c128_149] : memref<128x1152xf32, #tpu.memory_space<vmem>>, vector<8x128xf32>
    tpu.vector_store %arg12[%c56_148, %c128_149], %118 {strides = array<i32>} : memref<128x1152xf32, #tpu.memory_space<vmem>>, vector<8x128xf32>,
    %c325 = arith.constant 325 : index
    %c0_150 = arith.constant 0 : index
    %120 = tpu.strided_load %arg8[%c325, %c0_150] {strides = array<i32: 2, 1>} : memref<648x128xf32, #tpu.memory_space<vmem>>, vector<8x128xf32>
    %c64_151 = arith.constant 64 : index
    %c128_152 = arith.constant 128 : index
    %121 = vector.load %arg12[%c64_151, %c128_152] : memref<128x1152xf32, #tpu.memory_space<vmem>>, vector<8x128xf32>
    tpu.vector_store %arg12[%c64_151, %c128_152], %120 {strides = array<i32>} : memref<128x1152xf32, #tpu.memory_space<vmem>>, vector<8x128xf32>,
    %c361_153 = arith.constant 361 : index
    %c0_154 = arith.constant 0 : index
    %122 = tpu.strided_load %arg8[%c361_153, %c0_154] {strides = array<i32: 2, 1>} : memref<648x128xf32, #tpu.memory_space<vmem>>, vector<8x128xf32>
    %c72_155 = arith.constant 72 : index
    %c128_156 = arith.constant 128 : index
    %123 = vector.load %arg12[%c72_155, %c128_156] : memref<128x1152xf32, #tpu.memory_space<vmem>>, vector<8x128xf32>
    tpu.vector_store %arg12[%c72_155, %c128_156], %122 {strides = array<i32>} : memref<128x1152xf32, #tpu.memory_space<vmem>>, vector<8x128xf32>,
    %c397_157 = arith.constant 397 : index
    %c0_158 = arith.constant 0 : index
    %124 = tpu.strided_load %arg8[%c397_157, %c0_158] {strides = array<i32: 2, 1>} : memref<648x128xf32, #tpu.memory_space<vmem>>, vector<8x128xf32>
    %c80_159 = arith.constant 80 : index
    %c128_160 = arith.constant 128 : index
    %125 = vector.load %arg12[%c80_159, %c128_160] : memref<128x1152xf32, #tpu.memory_space<vmem>>, vector<8x128xf32>
    tpu.vector_store %arg12[%c80_159, %c128_160], %124 {strides = array<i32>} : memref<128x1152xf32, #tpu.memory_space<vmem>>, vector<8x128xf32>,
    %c433_161 = arith.constant 433 : index
    %c0_162 = arith.constant 0 : index
    %126 = tpu.strided_load %arg8[%c433_161, %c0_162] {strides = array<i32: 2, 1>} : memref<648x128xf32, #tpu.memory_space<vmem>>, vector<8x128xf32>
    %c88_163 = arith.constant 88 : index
    %c128_164 = arith.constant 128 : index
    %127 = vector.load %arg12[%c88_163, %c128_164] : memref<128x1152xf32, #tpu.memory_space<vmem>>, vector<8x128xf32>
    tpu.vector_store %arg12[%c88_163, %c128_164], %126 {strides = array<i32>} : memref<128x1152xf32, #tpu.memory_space<vmem>>, vector<8x128xf32>,
    %c469_165 = arith.constant 469 : index
    %c0_166 = arith.constant 0 : index
    %128 = tpu.strided_load %arg8[%c469_165, %c0_166] {strides = array<i32: 2, 1>} : memref<648x128xf32, #tpu.memory_space<vmem>>, vector<8x128xf32>
    %c96_167 = arith.constant 96 : index
    %c128_168 = arith.constant 128 : index
    %129 = vector.load %arg12[%c96_167, %c128_168] : memref<128x1152xf32, #tpu.memory_space<vmem>>, vector<8x128xf32>
    tpu.vector_store %arg12[%c96_167, %c128_168], %128 {strides = array<i32>} : memref<128x1152xf32, #tpu.memory_space<vmem>>, vector<8x128xf32>,
    %c505_169 = arith.constant 505 : index
    %c0_170 = arith.constant 0 : index
    %130 = tpu.strided_load %arg8[%c505_169, %c0_170] {strides = array<i32: 2, 1>} : memref<648x128xf32, #tpu.memory_space<vmem>>, vector<8x128xf32>
    %c104_171 = arith.constant 104 : index
    %c128_172 = arith.constant 128 : index
    %131 = vector.load %arg12[%c104_171, %c128_172] : memref<128x1152xf32, #tpu.memory_space<vmem>>, vector<8x128xf32>
    tpu.vector_store %arg12[%c104_171, %c128_172], %130 {strides = array<i32>} : memref<128x1152xf32, #tpu.memory_space<vmem>>, vector<8x128xf32>,
    %c541_173 = arith.constant 541 : index
    %c0_174 = arith.constant 0 : index
    %132 = tpu.strided_load %arg8[%c541_173, %c0_174] {strides = array<i32: 2, 1>} : memref<648x128xf32, #tpu.memory_space<vmem>>, vector<8x128xf32>
    %c112_175 = arith.constant 112 : index
    %c128_176 = arith.constant 128 : index
    %133 = vector.load %arg12[%c112_175, %c128_176] : memref<128x1152xf32, #tpu.memory_space<vmem>>, vector<8x128xf32>
    tpu.vector_store %arg12[%c112_175, %c128_176], %132 {strides = array<i32>} : memref<128x1152xf32, #tpu.memory_space<vmem>>, vector<8x128xf32>,
    %c577_177 = arith.constant 577 : index
    %c0_178 = arith.constant 0 : index
    %134 = tpu.strided_load %arg8[%c577_177, %c0_178] {strides = array<i32: 2, 1>} : memref<648x128xf32, #tpu.memory_space<vmem>>, vector<8x128xf32>
    %c120_179 = arith.constant 120 : index
    %c128_180 = arith.constant 128 : index
    %135 = vector.load %arg12[%c120_179, %c128_180] : memref<128x1152xf32, #tpu.memory_space<vmem>>, vector<8x128xf32>
    tpu.vector_store %arg12[%c120_179, %c128_180], %134 {strides = array<i32>} : memref<128x1152xf32, #tpu.memory_space<vmem>>, vector<8x128xf32>,
    %c2 = arith.constant 2 : index
    %c0_181 = arith.constant 0 : index
    %136 = tpu.strided_load %arg8[%c2, %c0_181] {strides = array<i32: 2, 1>} : memref<648x128xf32, #tpu.memory_space<vmem>>, vector<8x128xf32>
    %c0_182 = arith.constant 0 : index
    %c256_183 = arith.constant 256 : index
    %137 = vector.load %arg12[%c0_182, %c256_183] : memref<128x1152xf32, #tpu.memory_space<vmem>>, vector<8x128xf32>
    tpu.vector_store %arg12[%c0_182, %c256_183], %136 {strides = array<i32>} : memref<128x1152xf32, #tpu.memory_space<vmem>>, vector<8x128xf32>,
    %c38 = arith.constant 38 : index
    %c0_184 = arith.constant 0 : index
    %138 = tpu.strided_load %arg8[%c38, %c0_184] {strides = array<i32: 2, 1>} : memref<648x128xf32, #tpu.memory_space<vmem>>, vector<8x128xf32>
    %c8_185 = arith.constant 8 : index
    %c256_186 = arith.constant 256 : index
    %139 = vector.load %arg12[%c8_185, %c256_186] : memref<128x1152xf32, #tpu.memory_space<vmem>>, vector<8x128xf32>
    tpu.vector_store %arg12[%c8_185, %c256_186], %138 {strides = array<i32>} : memref<128x1152xf32, #tpu.memory_space<vmem>>, vector<8x128xf32>,
    %c74 = arith.constant 74 : index
    %c0_187 = arith.constant 0 : index
    %140 = tpu.strided_load %arg8[%c74, %c0_187] {strides = array<i32: 2, 1>} : memref<648x128xf32, #tpu.memory_space<vmem>>, vector<8x128xf32>
    %c16_188 = arith.constant 16 : index
    %c256_189 = arith.constant 256 : index
    %141 = vector.load %arg12[%c16_188, %c256_189] : memref<128x1152xf32, #tpu.memory_space<vmem>>, vector<8x128xf32>
    tpu.vector_store %arg12[%c16_188, %c256_189], %140 {strides = array<i32>} : memref<128x1152xf32, #tpu.memory_space<vmem>>, vector<8x128xf32>,
    %c110 = arith.constant 110 : index
    %c0_190 = arith.constant 0 : index
    %142 = tpu.strided_load %arg8[%c110, %c0_190] {strides = array<i32: 2, 1>} : memref<648x128xf32, #tpu.memory_space<vmem>>, vector<8x128xf32>
    %c24_191 = arith.constant 24 : index
    %c256_192 = arith.constant 256 : index
    %143 = vector.load %arg12[%c24_191, %c256_192] : memref<128x1152xf32, #tpu.memory_space<vmem>>, vector<8x128xf32>
    tpu.vector_store %arg12[%c24_191, %c256_192], %142 {strides = array<i32>} : memref<128x1152xf32, #tpu.memory_space<vmem>>, vector<8x128xf32>,
    %c146 = arith.constant 146 : index
    %c0_193 = arith.constant 0 : index
    %144 = tpu.strided_load %arg8[%c146, %c0_193] {strides = array<i32: 2, 1>} : memref<648x128xf32, #tpu.memory_space<vmem>>, vector<8x128xf32>
    %c32_194 = arith.constant 32 : index
    %c256_195 = arith.constant 256 : index
    %145 = vector.load %arg12[%c32_194, %c256_195] : memref<128x1152xf32, #tpu.memory_space<vmem>>, vector<8x128xf32>
    tpu.vector_store %arg12[%c32_194, %c256_195], %144 {strides = array<i32>} : memref<128x1152xf32, #tpu.memory_space<vmem>>, vector<8x128xf32>,
    %c182 = arith.constant 182 : index
    %c0_196 = arith.constant 0 : index
    %146 = tpu.strided_load %arg8[%c182, %c0_196] {strides = array<i32: 2, 1>} : memref<648x128xf32, #tpu.memory_space<vmem>>, vector<8x128xf32>
    %c40_197 = arith.constant 40 : index
    %c256_198 = arith.constant 256 : index
    %147 = vector.load %arg12[%c40_197, %c256_198] : memref<128x1152xf32, #tpu.memory_space<vmem>>, vector<8x128xf32>
    tpu.vector_store %arg12[%c40_197, %c256_198], %146 {strides = array<i32>} : memref<128x1152xf32, #tpu.memory_space<vmem>>, vector<8x128xf32>,
    %c218 = arith.constant 218 : index
    %c0_199 = arith.constant 0 : index
    %148 = tpu.strided_load %arg8[%c218, %c0_199] {strides = array<i32: 2, 1>} : memref<648x128xf32, #tpu.memory_space<vmem>>, vector<8x128xf32>
    %c48_200 = arith.constant 48 : index
    %c256_201 = arith.constant 256 : index
    %149 = vector.load %arg12[%c48_200, %c256_201] : memref<128x1152xf32, #tpu.memory_space<vmem>>, vector<8x128xf32>
    tpu.vector_store %arg12[%c48_200, %c256_201], %148 {strides = array<i32>} : memref<128x1152xf32, #tpu.memory_space<vmem>>, vector<8x128xf32>,
    %c254 = arith.constant 254 : index
    %c0_202 = arith.constant 0 : index
    %150 = tpu.strided_load %arg8[%c254, %c0_202] {strides = array<i32: 2, 1>} : memref<648x128xf32, #tpu.memory_space<vmem>>, vector<8x128xf32>
    %c56_203 = arith.constant 56 : index
    %c256_204 = arith.constant 256 : index
    %151 = vector.load %arg12[%c56_203, %c256_204] : memref<128x1152xf32, #tpu.memory_space<vmem>>, vector<8x128xf32>
    tpu.vector_store %arg12[%c56_203, %c256_204], %150 {strides = array<i32>} : memref<128x1152xf32, #tpu.memory_space<vmem>>, vector<8x128xf32>,
    %c326 = arith.constant 326 : index
    %c0_205 = arith.constant 0 : index
    %152 = tpu.strided_load %arg8[%c326, %c0_205] {strides = array<i32: 2, 1>} : memref<648x128xf32, #tpu.memory_space<vmem>>, vector<8x128xf32>
    %c64_206 = arith.constant 64 : index
    %c256_207 = arith.constant 256 : index
    %153 = vector.load %arg12[%c64_206, %c256_207] : memref<128x1152xf32, #tpu.memory_space<vmem>>, vector<8x128xf32>
    tpu.vector_store %arg12[%c64_206, %c256_207], %152 {strides = array<i32>} : memref<128x1152xf32, #tpu.memory_space<vmem>>, vector<8x128xf32>,
    %c362 = arith.constant 362 : index
    %c0_208 = arith.constant 0 : index
    %154 = tpu.strided_load %arg8[%c362, %c0_208] {strides = array<i32: 2, 1>} : memref<648x128xf32, #tpu.memory_space<vmem>>, vector<8x128xf32>
    %c72_209 = arith.constant 72 : index
    %c256_210 = arith.constant 256 : index
    %155 = vector.load %arg12[%c72_209, %c256_210] : memref<128x1152xf32, #tpu.memory_space<vmem>>, vector<8x128xf32>
    tpu.vector_store %arg12[%c72_209, %c256_210], %154 {strides = array<i32>} : memref<128x1152xf32, #tpu.memory_space<vmem>>, vector<8x128xf32>,
    %c398 = arith.constant 398 : index
    %c0_211 = arith.constant 0 : index
    %156 = tpu.strided_load %arg8[%c398, %c0_211] {strides = array<i32: 2, 1>} : memref<648x128xf32, #tpu.memory_space<vmem>>, vector<8x128xf32>
    %c80_212 = arith.constant 80 : index
    %c256_213 = arith.constant 256 : index
    %157 = vector.load %arg12[%c80_212, %c256_213] : memref<128x1152xf32, #tpu.memory_space<vmem>>, vector<8x128xf32>
    tpu.vector_store %arg12[%c80_212, %c256_213], %156 {strides = array<i32>} : memref<128x1152xf32, #tpu.memory_space<vmem>>, vector<8x128xf32>,
    %c434 = arith.constant 434 : index
    %c0_214 = arith.constant 0 : index
    %158 = tpu.strided_load %arg8[%c434, %c0_214] {strides = array<i32: 2, 1>} : memref<648x128xf32, #tpu.memory_space<vmem>>, vector<8x128xf32>
    %c88_215 = arith.constant 88 : index
    %c256_216 = arith.constant 256 : index
    %159 = vector.load %arg12[%c88_215, %c256_216] : memref<128x1152xf32, #tpu.memory_space<vmem>>, vector<8x128xf32>
    tpu.vector_store %arg12[%c88_215, %c256_216], %158 {strides = array<i32>} : memref<128x1152xf32, #tpu.memory_space<vmem>>, vector<8x128xf32>,
    %c470 = arith.constant 470 : index
    %c0_217 = arith.constant 0 : index
    %160 = tpu.strided_load %arg8[%c470, %c0_217] {strides = array<i32: 2, 1>} : memref<648x128xf32, #tpu.memory_space<vmem>>, vector<8x128xf32>
    %c96_218 = arith.constant 96 : index
    %c256_219 = arith.constant 256 : index
    %161 = vector.load %arg12[%c96_218, %c256_219] : memref<128x1152xf32, #tpu.memory_space<vmem>>, vector<8x128xf32>
    tpu.vector_store %arg12[%c96_218, %c256_219], %160 {strides = array<i32>} : memref<128x1152xf32, #tpu.memory_space<vmem>>, vector<8x128xf32>,
    %c506 = arith.constant 506 : index
    %c0_220 = arith.constant 0 : index
    %162 = tpu.strided_load %arg8[%c506, %c0_220] {strides = array<i32: 2, 1>} : memref<648x128xf32, #tpu.memory_space<vmem>>, vector<8x128xf32>
    %c104_221 = arith.constant 104 : index
    %c256_222 = arith.constant 256 : index
    %163 = vector.load %arg12[%c104_221, %c256_222] : memref<128x1152xf32, #tpu.memory_space<vmem>>, vector<8x128xf32>
    tpu.vector_store %arg12[%c104_221, %c256_222], %162 {strides = array<i32>} : memref<128x1152xf32, #tpu.memory_space<vmem>>, vector<8x128xf32>,
    %c542 = arith.constant 542 : index
    %c0_223 = arith.constant 0 : index
    %164 = tpu.strided_load %arg8[%c542, %c0_223] {strides = array<i32: 2, 1>} : memref<648x128xf32, #tpu.memory_space<vmem>>, vector<8x128xf32>
    %c112_224 = arith.constant 112 : index
    %c256_225 = arith.constant 256 : index
    %165 = vector.load %arg12[%c112_224, %c256_225] : memref<128x1152xf32, #tpu.memory_space<vmem>>, vector<8x128xf32>
    tpu.vector_store %arg12[%c112_224, %c256_225], %164 {strides = array<i32>} : memref<128x1152xf32, #tpu.memory_space<vmem>>, vector<8x128xf32>,
    %c578 = arith.constant 578 : index
    %c0_226 = arith.constant 0 : index
    %166 = tpu.strided_load %arg8[%c578, %c0_226] {strides = array<i32: 2, 1>} : memref<648x128xf32, #tpu.memory_space<vmem>>, vector<8x128xf32>
    %c120_227 = arith.constant 120 : index
    %c256_228 = arith.constant 256 : index
    %167 = vector.load %arg12[%c120_227, %c256_228] : memref<128x1152xf32, #tpu.memory_space<vmem>>, vector<8x128xf32>
    tpu.vector_store %arg12[%c120_227, %c256_228], %166 {strides = array<i32>} : memref<128x1152xf32, #tpu.memory_space<vmem>>, vector<8x128xf32>,
    %c18 = arith.constant 18 : index
    %c0_229 = arith.constant 0 : index
    %168 = tpu.strided_load %arg8[%c18, %c0_229] {strides = array<i32: 2, 1>} : memref<648x128xf32, #tpu.memory_space<vmem>>, vector<8x128xf32>
    %c0_230 = arith.constant 0 : index
    %c384_231 = arith.constant 384 : index
    %169 = vector.load %arg12[%c0_230, %c384_231] : memref<128x1152xf32, #tpu.memory_space<vmem>>, vector<8x128xf32>
    tpu.vector_store %arg12[%c0_230, %c384_231], %168 {strides = array<i32>} : memref<128x1152xf32, #tpu.memory_space<vmem>>, vector<8x128xf32>,
    %c54 = arith.constant 54 : index
    %c0_232 = arith.constant 0 : index
    %170 = tpu.strided_load %arg8[%c54, %c0_232] {strides = array<i32: 2, 1>} : memref<648x128xf32, #tpu.memory_space<vmem>>, vector<8x128xf32>
    %c8_233 = arith.constant 8 : index
    %c384_234 = arith.constant 384 : index
    %171 = vector.load %arg12[%c8_233, %c384_234] : memref<128x1152xf32, #tpu.memory_space<vmem>>, vector<8x128xf32>
    tpu.vector_store %arg12[%c8_233, %c384_234], %170 {strides = array<i32>} : memref<128x1152xf32, #tpu.memory_space<vmem>>, vector<8x128xf32>,
    %c90 = arith.constant 90 : index
    %c0_235 = arith.constant 0 : index
    %172 = tpu.strided_load %arg8[%c90, %c0_235] {strides = array<i32: 2, 1>} : memref<648x128xf32, #tpu.memory_space<vmem>>, vector<8x128xf32>
    %c16_236 = arith.constant 16 : index
    %c384_237 = arith.constant 384 : index
    %173 = vector.load %arg12[%c16_236, %c384_237] : memref<128x1152xf32, #tpu.memory_space<vmem>>, vector<8x128xf32>
    tpu.vector_store %arg12[%c16_236, %c384_237], %172 {strides = array<i32>} : memref<128x1152xf32, #tpu.memory_space<vmem>>, vector<8x128xf32>,
    %c126 = arith.constant 126 : index
    %c0_238 = arith.constant 0 : index
    %174 = tpu.strided_load %arg8[%c126, %c0_238] {strides = array<i32: 2, 1>} : memref<648x128xf32, #tpu.memory_space<vmem>>, vector<8x128xf32>
    %c24_239 = arith.constant 24 : index
    %c384_240 = arith.constant 384 : index
    %175 = vector.load %arg12[%c24_239, %c384_240] : memref<128x1152xf32, #tpu.memory_space<vmem>>, vector<8x128xf32>
    tpu.vector_store %arg12[%c24_239, %c384_240], %174 {strides = array<i32>} : memref<128x1152xf32, #tpu.memory_space<vmem>>, vector<8x128xf32>,
    %c162 = arith.constant 162 : index
    %c0_241 = arith.constant 0 : index
    %176 = tpu.strided_load %arg8[%c162, %c0_241] {strides = array<i32: 2, 1>} : memref<648x128xf32, #tpu.memory_space<vmem>>, vector<8x128xf32>
    %c32_242 = arith.constant 32 : index
    %c384_243 = arith.constant 384 : index
    %177 = vector.load %arg12[%c32_242, %c384_243] : memref<128x1152xf32, #tpu.memory_space<vmem>>, vector<8x128xf32>
    tpu.vector_store %arg12[%c32_242, %c384_243], %176 {strides = array<i32>} : memref<128x1152xf32, #tpu.memory_space<vmem>>, vector<8x128xf32>,
    %c198 = arith.constant 198 : index
    %c0_244 = arith.constant 0 : index
    %178 = tpu.strided_load %arg8[%c198, %c0_244] {strides = array<i32: 2, 1>} : memref<648x128xf32, #tpu.memory_space<vmem>>, vector<8x128xf32>
    %c40_245 = arith.constant 40 : index
    %c384_246 = arith.constant 384 : index
    %179 = vector.load %arg12[%c40_245, %c384_246] : memref<128x1152xf32, #tpu.memory_space<vmem>>, vector<8x128xf32>
    tpu.vector_store %arg12[%c40_245, %c384_246], %178 {strides = array<i32>} : memref<128x1152xf32, #tpu.memory_space<vmem>>, vector<8x128xf32>,
    %c234 = arith.constant 234 : index
    %c0_247 = arith.constant 0 : index
    %180 = tpu.strided_load %arg8[%c234, %c0_247] {strides = array<i32: 2, 1>} : memref<648x128xf32, #tpu.memory_space<vmem>>, vector<8x128xf32>
    %c48_248 = arith.constant 48 : index
    %c384_249 = arith.constant 384 : index
    %181 = vector.load %arg12[%c48_248, %c384_249] : memref<128x1152xf32, #tpu.memory_space<vmem>>, vector<8x128xf32>
    tpu.vector_store %arg12[%c48_248, %c384_249], %180 {strides = array<i32>} : memref<128x1152xf32, #tpu.memory_space<vmem>>, vector<8x128xf32>,
    %c270 = arith.constant 270 : index
    %c0_250 = arith.constant 0 : index
    %182 = tpu.strided_load %arg8[%c270, %c0_250] {strides = array<i32: 2, 1>} : memref<648x128xf32, #tpu.memory_space<vmem>>, vector<8x128xf32>
    %c56_251 = arith.constant 56 : index
    %c384_252 = arith.constant 384 : index
    %183 = vector.load %arg12[%c56_251, %c384_252] : memref<128x1152xf32, #tpu.memory_space<vmem>>, vector<8x128xf32>
    tpu.vector_store %arg12[%c56_251, %c384_252], %182 {strides = array<i32>} : memref<128x1152xf32, #tpu.memory_space<vmem>>, vector<8x128xf32>,
    %c342 = arith.constant 342 : index
    %c0_253 = arith.constant 0 : index
    %184 = tpu.strided_load %arg8[%c342, %c0_253] {strides = array<i32: 2, 1>} : memref<648x128xf32, #tpu.memory_space<vmem>>, vector<8x128xf32>
    %c64_254 = arith.constant 64 : index
    %c384_255 = arith.constant 384 : index
    %185 = vector.load %arg12[%c64_254, %c384_255] : memref<128x1152xf32, #tpu.memory_space<vmem>>, vector<8x128xf32>
    tpu.vector_store %arg12[%c64_254, %c384_255], %184 {strides = array<i32>} : memref<128x1152xf32, #tpu.memory_space<vmem>>, vector<8x128xf32>,
    %c378 = arith.constant 378 : index
    %c0_256 = arith.constant 0 : index
    %186 = tpu.strided_load %arg8[%c378, %c0_256] {strides = array<i32: 2, 1>} : memref<648x128xf32, #tpu.memory_space<vmem>>, vector<8x128xf32>
    %c72_257 = arith.constant 72 : index
    %c384_258 = arith.constant 384 : index
    %187 = vector.load %arg12[%c72_257, %c384_258] : memref<128x1152xf32, #tpu.memory_space<vmem>>, vector<8x128xf32>
    tpu.vector_store %arg12[%c72_257, %c384_258], %186 {strides = array<i32>} : memref<128x1152xf32, #tpu.memory_space<vmem>>, vector<8x128xf32>,
    %c414 = arith.constant 414 : index
    %c0_259 = arith.constant 0 : index
    %188 = tpu.strided_load %arg8[%c414, %c0_259] {strides = array<i32: 2, 1>} : memref<648x128xf32, #tpu.memory_space<vmem>>, vector<8x128xf32>
    %c80_260 = arith.constant 80 : index
    %c384_261 = arith.constant 384 : index
    %189 = vector.load %arg12[%c80_260, %c384_261] : memref<128x1152xf32, #tpu.memory_space<vmem>>, vector<8x128xf32>
    tpu.vector_store %arg12[%c80_260, %c384_261], %188 {strides = array<i32>} : memref<128x1152xf32, #tpu.memory_space<vmem>>, vector<8x128xf32>,
    %c450 = arith.constant 450 : index
    %c0_262 = arith.constant 0 : index
    %190 = tpu.strided_load %arg8[%c450, %c0_262] {strides = array<i32: 2, 1>} : memref<648x128xf32, #tpu.memory_space<vmem>>, vector<8x128xf32>
    %c88_263 = arith.constant 88 : index
    %c384_264 = arith.constant 384 : index
    %191 = vector.load %arg12[%c88_263, %c384_264] : memref<128x1152xf32, #tpu.memory_space<vmem>>, vector<8x128xf32>
    tpu.vector_store %arg12[%c88_263, %c384_264], %190 {strides = array<i32>} : memref<128x1152xf32, #tpu.memory_space<vmem>>, vector<8x128xf32>,
    %c486 = arith.constant 486 : index
    %c0_265 = arith.constant 0 : index
    %192 = tpu.strided_load %arg8[%c486, %c0_265] {strides = array<i32: 2, 1>} : memref<648x128xf32, #tpu.memory_space<vmem>>, vector<8x128xf32>
    %c96_266 = arith.constant 96 : index
    %c384_267 = arith.constant 384 : index
    %193 = vector.load %arg12[%c96_266, %c384_267] : memref<128x1152xf32, #tpu.memory_space<vmem>>, vector<8x128xf32>
    tpu.vector_store %arg12[%c96_266, %c384_267], %192 {strides = array<i32>} : memref<128x1152xf32, #tpu.memory_space<vmem>>, vector<8x128xf32>,
    %c522 = arith.constant 522 : index
    %c0_268 = arith.constant 0 : index
    %194 = tpu.strided_load %arg8[%c522, %c0_268] {strides = array<i32: 2, 1>} : memref<648x128xf32, #tpu.memory_space<vmem>>, vector<8x128xf32>
    %c104_269 = arith.constant 104 : index
    %c384_270 = arith.constant 384 : index
    %195 = vector.load %arg12[%c104_269, %c384_270] : memref<128x1152xf32, #tpu.memory_space<vmem>>, vector<8x128xf32>
    tpu.vector_store %arg12[%c104_269, %c384_270], %194 {strides = array<i32>} : memref<128x1152xf32, #tpu.memory_space<vmem>>, vector<8x128xf32>,
    %c558 = arith.constant 558 : index
    %c0_271 = arith.constant 0 : index
    %196 = tpu.strided_load %arg8[%c558, %c0_271] {strides = array<i32: 2, 1>} : memref<648x128xf32, #tpu.memory_space<vmem>>, vector<8x128xf32>
    %c112_272 = arith.constant 112 : index
    %c384_273 = arith.constant 384 : index
    %197 = vector.load %arg12[%c112_272, %c384_273] : memref<128x1152xf32, #tpu.memory_space<vmem>>, vector<8x128xf32>
    tpu.vector_store %arg12[%c112_272, %c384_273], %196 {strides = array<i32>} : memref<128x1152xf32, #tpu.memory_space<vmem>>, vector<8x128xf32>,
    %c594 = arith.constant 594 : index
    %c0_274 = arith.constant 0 : index
    %198 = tpu.strided_load %arg8[%c594, %c0_274] {strides = array<i32: 2, 1>} : memref<648x128xf32, #tpu.memory_space<vmem>>, vector<8x128xf32>
    %c120_275 = arith.constant 120 : index
    %c384_276 = arith.constant 384 : index
    %199 = vector.load %arg12[%c120_275, %c384_276] : memref<128x1152xf32, #tpu.memory_space<vmem>>, vector<8x128xf32>
    tpu.vector_store %arg12[%c120_275, %c384_276], %198 {strides = array<i32>} : memref<128x1152xf32, #tpu.memory_space<vmem>>, vector<8x128xf32>,
    %c19_277 = arith.constant 19 : index
    %c0_278 = arith.constant 0 : index
    %200 = tpu.strided_load %arg8[%c19_277, %c0_278] {strides = array<i32: 2, 1>} : memref<648x128xf32, #tpu.memory_space<vmem>>, vector<8x128xf32>
    %c0_279 = arith.constant 0 : index
    %c512 = arith.constant 512 : index
    %201 = vector.load %arg12[%c0_279, %c512] : memref<128x1152xf32, #tpu.memory_space<vmem>>, vector<8x128xf32>
    tpu.vector_store %arg12[%c0_279, %c512], %200 {strides = array<i32>} : memref<128x1152xf32, #tpu.memory_space<vmem>>, vector<8x128xf32>,
    %c55_280 = arith.constant 55 : index
    %c0_281 = arith.constant 0 : index
    %202 = tpu.strided_load %arg8[%c55_280, %c0_281] {strides = array<i32: 2, 1>} : memref<648x128xf32, #tpu.memory_space<vmem>>, vector<8x128xf32>
    %c8_282 = arith.constant 8 : index
    %c512_283 = arith.constant 512 : index
    %203 = vector.load %arg12[%c8_282, %c512_283] : memref<128x1152xf32, #tpu.memory_space<vmem>>, vector<8x128xf32>
    tpu.vector_store %arg12[%c8_282, %c512_283], %202 {strides = array<i32>} : memref<128x1152xf32, #tpu.memory_space<vmem>>, vector<8x128xf32>,
    %c91_284 = arith.constant 91 : index
    %c0_285 = arith.constant 0 : index
    %204 = tpu.strided_load %arg8[%c91_284, %c0_285] {strides = array<i32: 2, 1>} : memref<648x128xf32, #tpu.memory_space<vmem>>, vector<8x128xf32>
    %c16_286 = arith.constant 16 : index
    %c512_287 = arith.constant 512 : index
    %205 = vector.load %arg12[%c16_286, %c512_287] : memref<128x1152xf32, #tpu.memory_space<vmem>>, vector<8x128xf32>
    tpu.vector_store %arg12[%c16_286, %c512_287], %204 {strides = array<i32>} : memref<128x1152xf32, #tpu.memory_space<vmem>>, vector<8x128xf32>,
    %c127_288 = arith.constant 127 : index
    %c0_289 = arith.constant 0 : index
    %206 = tpu.strided_load %arg8[%c127_288, %c0_289] {strides = array<i32: 2, 1>} : memref<648x128xf32, #tpu.memory_space<vmem>>, vector<8x128xf32>
    %c24_290 = arith.constant 24 : index
    %c512_291 = arith.constant 512 : index
    %207 = vector.load %arg12[%c24_290, %c512_291] : memref<128x1152xf32, #tpu.memory_space<vmem>>, vector<8x128xf32>
    tpu.vector_store %arg12[%c24_290, %c512_291], %206 {strides = array<i32>} : memref<128x1152xf32, #tpu.memory_space<vmem>>, vector<8x128xf32>,
    %c163_292 = arith.constant 163 : index
    %c0_293 = arith.constant 0 : index
    %208 = tpu.strided_load %arg8[%c163_292, %c0_293] {strides = array<i32: 2, 1>} : memref<648x128xf32, #tpu.memory_space<vmem>>, vector<8x128xf32>
    %c32_294 = arith.constant 32 : index
    %c512_295 = arith.constant 512 : index
    %209 = vector.load %arg12[%c32_294, %c512_295] : memref<128x1152xf32, #tpu.memory_space<vmem>>, vector<8x128xf32>
    tpu.vector_store %arg12[%c32_294, %c512_295], %208 {strides = array<i32>} : memref<128x1152xf32, #tpu.memory_space<vmem>>, vector<8x128xf32>,
    %c199_296 = arith.constant 199 : index
    %c0_297 = arith.constant 0 : index
    %210 = tpu.strided_load %arg8[%c199_296, %c0_297] {strides = array<i32: 2, 1>} : memref<648x128xf32, #tpu.memory_space<vmem>>, vector<8x128xf32>
    %c40_298 = arith.constant 40 : index
    %c512_299 = arith.constant 512 : index
    %211 = vector.load %arg12[%c40_298, %c512_299] : memref<128x1152xf32, #tpu.memory_space<vmem>>, vector<8x128xf32>
    tpu.vector_store %arg12[%c40_298, %c512_299], %210 {strides = array<i32>} : memref<128x1152xf32, #tpu.memory_space<vmem>>, vector<8x128xf32>,
    %c235_300 = arith.constant 235 : index
    %c0_301 = arith.constant 0 : index
    %212 = tpu.strided_load %arg8[%c235_300, %c0_301] {strides = array<i32: 2, 1>} : memref<648x128xf32, #tpu.memory_space<vmem>>, vector<8x128xf32>
    %c48_302 = arith.constant 48 : index
    %c512_303 = arith.constant 512 : index
    %213 = vector.load %arg12[%c48_302, %c512_303] : memref<128x1152xf32, #tpu.memory_space<vmem>>, vector<8x128xf32>
    tpu.vector_store %arg12[%c48_302, %c512_303], %212 {strides = array<i32>} : memref<128x1152xf32, #tpu.memory_space<vmem>>, vector<8x128xf32>,
    %c271_304 = arith.constant 271 : index
    %c0_305 = arith.constant 0 : index
    %214 = tpu.strided_load %arg8[%c271_304, %c0_305] {strides = array<i32: 2, 1>} : memref<648x128xf32, #tpu.memory_space<vmem>>, vector<8x128xf32>
    %c56_306 = arith.constant 56 : index
    %c512_307 = arith.constant 512 : index
    %215 = vector.load %arg12[%c56_306, %c512_307] : memref<128x1152xf32, #tpu.memory_space<vmem>>, vector<8x128xf32>
    tpu.vector_store %arg12[%c56_306, %c512_307], %214 {strides = array<i32>} : memref<128x1152xf32, #tpu.memory_space<vmem>>, vector<8x128xf32>,
    %c343_308 = arith.constant 343 : index
    %c0_309 = arith.constant 0 : index
    %216 = tpu.strided_load %arg8[%c343_308, %c0_309] {strides = array<i32: 2, 1>} : memref<648x128xf32, #tpu.memory_space<vmem>>, vector<8x128xf32>
    %c64_310 = arith.constant 64 : index
    %c512_311 = arith.constant 512 : index
    %217 = vector.load %arg12[%c64_310, %c512_311] : memref<128x1152xf32, #tpu.memory_space<vmem>>, vector<8x128xf32>
    tpu.vector_store %arg12[%c64_310, %c512_311], %216 {strides = array<i32>} : memref<128x1152xf32, #tpu.memory_space<vmem>>, vector<8x128xf32>,
    %c379_312 = arith.constant 379 : index
    %c0_313 = arith.constant 0 : index
    %218 = tpu.strided_load %arg8[%c379_312, %c0_313] {strides = array<i32: 2, 1>} : memref<648x128xf32, #tpu.memory_space<vmem>>, vector<8x128xf32>
    %c72_314 = arith.constant 72 : index
    %c512_315 = arith.constant 512 : index
    %219 = vector.load %arg12[%c72_314, %c512_315] : memref<128x1152xf32, #tpu.memory_space<vmem>>, vector<8x128xf32>
    tpu.vector_store %arg12[%c72_314, %c512_315], %218 {strides = array<i32>} : memref<128x1152xf32, #tpu.memory_space<vmem>>, vector<8x128xf32>,
    %c415_316 = arith.constant 415 : index
    %c0_317 = arith.constant 0 : index
    %220 = tpu.strided_load %arg8[%c415_316, %c0_317] {strides = array<i32: 2, 1>} : memref<648x128xf32, #tpu.memory_space<vmem>>, vector<8x128xf32>
    %c80_318 = arith.constant 80 : index
    %c512_319 = arith.constant 512 : index
    %221 = vector.load %arg12[%c80_318, %c512_319] : memref<128x1152xf32, #tpu.memory_space<vmem>>, vector<8x128xf32>
    tpu.vector_store %arg12[%c80_318, %c512_319], %220 {strides = array<i32>} : memref<128x1152xf32, #tpu.memory_space<vmem>>, vector<8x128xf32>,
    %c451_320 = arith.constant 451 : index
    %c0_321 = arith.constant 0 : index
    %222 = tpu.strided_load %arg8[%c451_320, %c0_321] {strides = array<i32: 2, 1>} : memref<648x128xf32, #tpu.memory_space<vmem>>, vector<8x128xf32>
    %c88_322 = arith.constant 88 : index
    %c512_323 = arith.constant 512 : index
    %223 = vector.load %arg12[%c88_322, %c512_323] : memref<128x1152xf32, #tpu.memory_space<vmem>>, vector<8x128xf32>
    tpu.vector_store %arg12[%c88_322, %c512_323], %222 {strides = array<i32>} : memref<128x1152xf32, #tpu.memory_space<vmem>>, vector<8x128xf32>,
    %c487_324 = arith.constant 487 : index
    %c0_325 = arith.constant 0 : index
    %224 = tpu.strided_load %arg8[%c487_324, %c0_325] {strides = array<i32: 2, 1>} : memref<648x128xf32, #tpu.memory_space<vmem>>, vector<8x128xf32>
    %c96_326 = arith.constant 96 : index
    %c512_327 = arith.constant 512 : index
    %225 = vector.load %arg12[%c96_326, %c512_327] : memref<128x1152xf32, #tpu.memory_space<vmem>>, vector<8x128xf32>
    tpu.vector_store %arg12[%c96_326, %c512_327], %224 {strides = array<i32>} : memref<128x1152xf32, #tpu.memory_space<vmem>>, vector<8x128xf32>,
    %c523_328 = arith.constant 523 : index
    %c0_329 = arith.constant 0 : index
    %226 = tpu.strided_load %arg8[%c523_328, %c0_329] {strides = array<i32: 2, 1>} : memref<648x128xf32, #tpu.memory_space<vmem>>, vector<8x128xf32>
    %c104_330 = arith.constant 104 : index
    %c512_331 = arith.constant 512 : index
    %227 = vector.load %arg12[%c104_330, %c512_331] : memref<128x1152xf32, #tpu.memory_space<vmem>>, vector<8x128xf32>
    tpu.vector_store %arg12[%c104_330, %c512_331], %226 {strides = array<i32>} : memref<128x1152xf32, #tpu.memory_space<vmem>>, vector<8x128xf32>,
    %c559_332 = arith.constant 559 : index
    %c0_333 = arith.constant 0 : index
    %228 = tpu.strided_load %arg8[%c559_332, %c0_333] {strides = array<i32: 2, 1>} : memref<648x128xf32, #tpu.memory_space<vmem>>, vector<8x128xf32>
    %c112_334 = arith.constant 112 : index
    %c512_335 = arith.constant 512 : index
    %229 = vector.load %arg12[%c112_334, %c512_335] : memref<128x1152xf32, #tpu.memory_space<vmem>>, vector<8x128xf32>
    tpu.vector_store %arg12[%c112_334, %c512_335], %228 {strides = array<i32>} : memref<128x1152xf32, #tpu.memory_space<vmem>>, vector<8x128xf32>,
    %c595_336 = arith.constant 595 : index
    %c0_337 = arith.constant 0 : index
    %230 = tpu.strided_load %arg8[%c595_336, %c0_337] {strides = array<i32: 2, 1>} : memref<648x128xf32, #tpu.memory_space<vmem>>, vector<8x128xf32>
    %c120_338 = arith.constant 120 : index
    %c512_339 = arith.constant 512 : index
    %231 = vector.load %arg12[%c120_338, %c512_339] : memref<128x1152xf32, #tpu.memory_space<vmem>>, vector<8x128xf32>
    tpu.vector_store %arg12[%c120_338, %c512_339], %230 {strides = array<i32>} : memref<128x1152xf32, #tpu.memory_space<vmem>>, vector<8x128xf32>,
    %c20 = arith.constant 20 : index
    %c0_340 = arith.constant 0 : index
    %232 = tpu.strided_load %arg8[%c20, %c0_340] {strides = array<i32: 2, 1>} : memref<648x128xf32, #tpu.memory_space<vmem>>, vector<8x128xf32>
    %c0_341 = arith.constant 0 : index
    %c640 = arith.constant 640 : index
    %233 = vector.load %arg12[%c0_341, %c640] : memref<128x1152xf32, #tpu.memory_space<vmem>>, vector<8x128xf32>
    tpu.vector_store %arg12[%c0_341, %c640], %232 {strides = array<i32>} : memref<128x1152xf32, #tpu.memory_space<vmem>>, vector<8x128xf32>,
    %c56_342 = arith.constant 56 : index
    %c0_343 = arith.constant 0 : index
    %234 = tpu.strided_load %arg8[%c56_342, %c0_343] {strides = array<i32: 2, 1>} : memref<648x128xf32, #tpu.memory_space<vmem>>, vector<8x128xf32>
    %c8_344 = arith.constant 8 : index
    %c640_345 = arith.constant 640 : index
    %235 = vector.load %arg12[%c8_344, %c640_345] : memref<128x1152xf32, #tpu.memory_space<vmem>>, vector<8x128xf32>
    tpu.vector_store %arg12[%c8_344, %c640_345], %234 {strides = array<i32>} : memref<128x1152xf32, #tpu.memory_space<vmem>>, vector<8x128xf32>,
    %c92 = arith.constant 92 : index
    %c0_346 = arith.constant 0 : index
    %236 = tpu.strided_load %arg8[%c92, %c0_346] {strides = array<i32: 2, 1>} : memref<648x128xf32, #tpu.memory_space<vmem>>, vector<8x128xf32>
    %c16_347 = arith.constant 16 : index
    %c640_348 = arith.constant 640 : index
    %237 = vector.load %arg12[%c16_347, %c640_348] : memref<128x1152xf32, #tpu.memory_space<vmem>>, vector<8x128xf32>
    tpu.vector_store %arg12[%c16_347, %c640_348], %236 {strides = array<i32>} : memref<128x1152xf32, #tpu.memory_space<vmem>>, vector<8x128xf32>,
    %c128_349 = arith.constant 128 : index
    %c0_350 = arith.constant 0 : index
    %238 = tpu.strided_load %arg8[%c128_349, %c0_350] {strides = array<i32: 2, 1>} : memref<648x128xf32, #tpu.memory_space<vmem>>, vector<8x128xf32>
    %c24_351 = arith.constant 24 : index
    %c640_352 = arith.constant 640 : index
    %239 = vector.load %arg12[%c24_351, %c640_352] : memref<128x1152xf32, #tpu.memory_space<vmem>>, vector<8x128xf32>
    tpu.vector_store %arg12[%c24_351, %c640_352], %238 {strides = array<i32>} : memref<128x1152xf32, #tpu.memory_space<vmem>>, vector<8x128xf32>,
    %c164 = arith.constant 164 : index
    %c0_353 = arith.constant 0 : index
    %240 = tpu.strided_load %arg8[%c164, %c0_353] {strides = array<i32: 2, 1>} : memref<648x128xf32, #tpu.memory_space<vmem>>, vector<8x128xf32>
    %c32_354 = arith.constant 32 : index
    %c640_355 = arith.constant 640 : index
    %241 = vector.load %arg12[%c32_354, %c640_355] : memref<128x1152xf32, #tpu.memory_space<vmem>>, vector<8x128xf32>
    tpu.vector_store %arg12[%c32_354, %c640_355], %240 {strides = array<i32>} : memref<128x1152xf32, #tpu.memory_space<vmem>>, vector<8x128xf32>,
    %c200 = arith.constant 200 : index
    %c0_356 = arith.constant 0 : index
    %242 = tpu.strided_load %arg8[%c200, %c0_356] {strides = array<i32: 2, 1>} : memref<648x128xf32, #tpu.memory_space<vmem>>, vector<8x128xf32>
    %c40_357 = arith.constant 40 : index
    %c640_358 = arith.constant 640 : index
    %243 = vector.load %arg12[%c40_357, %c640_358] : memref<128x1152xf32, #tpu.memory_space<vmem>>, vector<8x128xf32>
    tpu.vector_store %arg12[%c40_357, %c640_358], %242 {strides = array<i32>} : memref<128x1152xf32, #tpu.memory_space<vmem>>, vector<8x128xf32>,
    %c236 = arith.constant 236 : index
    %c0_359 = arith.constant 0 : index
    %244 = tpu.strided_load %arg8[%c236, %c0_359] {strides = array<i32: 2, 1>} : memref<648x128xf32, #tpu.memory_space<vmem>>, vector<8x128xf32>
    %c48_360 = arith.constant 48 : index
    %c640_361 = arith.constant 640 : index
    %245 = vector.load %arg12[%c48_360, %c640_361] : memref<128x1152xf32, #tpu.memory_space<vmem>>, vector<8x128xf32>
    tpu.vector_store %arg12[%c48_360, %c640_361], %244 {strides = array<i32>} : memref<128x1152xf32, #tpu.memory_space<vmem>>, vector<8x128xf32>,
    %c272_362 = arith.constant 272 : index
    %c0_363 = arith.constant 0 : index
    %246 = tpu.strided_load %arg8[%c272_362, %c0_363] {strides = array<i32: 2, 1>} : memref<648x128xf32, #tpu.memory_space<vmem>>, vector<8x128xf32>
    %c56_364 = arith.constant 56 : index
    %c640_365 = arith.constant 640 : index
    %247 = vector.load %arg12[%c56_364, %c640_365] : memref<128x1152xf32, #tpu.memory_space<vmem>>, vector<8x128xf32>
    tpu.vector_store %arg12[%c56_364, %c640_365], %246 {strides = array<i32>} : memref<128x1152xf32, #tpu.memory_space<vmem>>, vector<8x128xf32>,
    %c344 = arith.constant 344 : index
    %c0_366 = arith.constant 0 : index
    %248 = tpu.strided_load %arg8[%c344, %c0_366] {strides = array<i32: 2, 1>} : memref<648x128xf32, #tpu.memory_space<vmem>>, vector<8x128xf32>
    %c64_367 = arith.constant 64 : index
    %c640_368 = arith.constant 640 : index
    %249 = vector.load %arg12[%c64_367, %c640_368] : memref<128x1152xf32, #tpu.memory_space<vmem>>, vector<8x128xf32>
    tpu.vector_store %arg12[%c64_367, %c640_368], %248 {strides = array<i32>} : memref<128x1152xf32, #tpu.memory_space<vmem>>, vector<8x128xf32>,
    %c380 = arith.constant 380 : index
    %c0_369 = arith.constant 0 : index
    %250 = tpu.strided_load %arg8[%c380, %c0_369] {strides = array<i32: 2, 1>} : memref<648x128xf32, #tpu.memory_space<vmem>>, vector<8x128xf32>
    %c72_370 = arith.constant 72 : index
    %c640_371 = arith.constant 640 : index
    %251 = vector.load %arg12[%c72_370, %c640_371] : memref<128x1152xf32, #tpu.memory_space<vmem>>, vector<8x128xf32>
    tpu.vector_store %arg12[%c72_370, %c640_371], %250 {strides = array<i32>} : memref<128x1152xf32, #tpu.memory_space<vmem>>, vector<8x128xf32>,
    %c416_372 = arith.constant 416 : index
    %c0_373 = arith.constant 0 : index
    %252 = tpu.strided_load %arg8[%c416_372, %c0_373] {strides = array<i32: 2, 1>} : memref<648x128xf32, #tpu.memory_space<vmem>>, vector<8x128xf32>
    %c80_374 = arith.constant 80 : index
    %c640_375 = arith.constant 640 : index
    %253 = vector.load %arg12[%c80_374, %c640_375] : memref<128x1152xf32, #tpu.memory_space<vmem>>, vector<8x128xf32>
    tpu.vector_store %arg12[%c80_374, %c640_375], %252 {strides = array<i32>} : memref<128x1152xf32, #tpu.memory_space<vmem>>, vector<8x128xf32>,
    %c452 = arith.constant 452 : index
    %c0_376 = arith.constant 0 : index
    %254 = tpu.strided_load %arg8[%c452, %c0_376] {strides = array<i32: 2, 1>} : memref<648x128xf32, #tpu.memory_space<vmem>>, vector<8x128xf32>
    %c88_377 = arith.constant 88 : index
    %c640_378 = arith.constant 640 : index
    %255 = vector.load %arg12[%c88_377, %c640_378] : memref<128x1152xf32, #tpu.memory_space<vmem>>, vector<8x128xf32>
    tpu.vector_store %arg12[%c88_377, %c640_378], %254 {strides = array<i32>} : memref<128x1152xf32, #tpu.memory_space<vmem>>, vector<8x128xf32>,
    %c488 = arith.constant 488 : index
    %c0_379 = arith.constant 0 : index
    %256 = tpu.strided_load %arg8[%c488, %c0_379] {strides = array<i32: 2, 1>} : memref<648x128xf32, #tpu.memory_space<vmem>>, vector<8x128xf32>
    %c96_380 = arith.constant 96 : index
    %c640_381 = arith.constant 640 : index
    %257 = vector.load %arg12[%c96_380, %c640_381] : memref<128x1152xf32, #tpu.memory_space<vmem>>, vector<8x128xf32>
    tpu.vector_store %arg12[%c96_380, %c640_381], %256 {strides = array<i32>} : memref<128x1152xf32, #tpu.memory_space<vmem>>, vector<8x128xf32>,
    %c524 = arith.constant 524 : index
    %c0_382 = arith.constant 0 : index
    %258 = tpu.strided_load %arg8[%c524, %c0_382] {strides = array<i32: 2, 1>} : memref<648x128xf32, #tpu.memory_space<vmem>>, vector<8x128xf32>
    %c104_383 = arith.constant 104 : index
    %c640_384 = arith.constant 640 : index
    %259 = vector.load %arg12[%c104_383, %c640_384] : memref<128x1152xf32, #tpu.memory_space<vmem>>, vector<8x128xf32>
    tpu.vector_store %arg12[%c104_383, %c640_384], %258 {strides = array<i32>} : memref<128x1152xf32, #tpu.memory_space<vmem>>, vector<8x128xf32>,
    %c560 = arith.constant 560 : index
    %c0_385 = arith.constant 0 : index
    %260 = tpu.strided_load %arg8[%c560, %c0_385] {strides = array<i32: 2, 1>} : memref<648x128xf32, #tpu.memory_space<vmem>>, vector<8x128xf32>
    %c112_386 = arith.constant 112 : index
    %c640_387 = arith.constant 640 : index
    %261 = vector.load %arg12[%c112_386, %c640_387] : memref<128x1152xf32, #tpu.memory_space<vmem>>, vector<8x128xf32>
    tpu.vector_store %arg12[%c112_386, %c640_387], %260 {strides = array<i32>} : memref<128x1152xf32, #tpu.memory_space<vmem>>, vector<8x128xf32>,
    %c596 = arith.constant 596 : index
    %c0_388 = arith.constant 0 : index
    %262 = tpu.strided_load %arg8[%c596, %c0_388] {strides = array<i32: 2, 1>} : memref<648x128xf32, #tpu.memory_space<vmem>>, vector<8x128xf32>
    %c120_389 = arith.constant 120 : index
    %c640_390 = arith.constant 640 : index
    %263 = vector.load %arg12[%c120_389, %c640_390] : memref<128x1152xf32, #tpu.memory_space<vmem>>, vector<8x128xf32>
    tpu.vector_store %arg12[%c120_389, %c640_390], %262 {strides = array<i32>} : memref<128x1152xf32, #tpu.memory_space<vmem>>, vector<8x128xf32>,
    %c36_391 = arith.constant 36 : index
    %c0_392 = arith.constant 0 : index
    %264 = tpu.strided_load %arg8[%c36_391, %c0_392] {strides = array<i32: 2, 1>} : memref<648x128xf32, #tpu.memory_space<vmem>>, vector<8x128xf32>
    %c0_393 = arith.constant 0 : index
    %c768 = arith.constant 768 : index
    %265 = vector.load %arg12[%c0_393, %c768] : memref<128x1152xf32, #tpu.memory_space<vmem>>, vector<8x128xf32>
    tpu.vector_store %arg12[%c0_393, %c768], %264 {strides = array<i32>} : memref<128x1152xf32, #tpu.memory_space<vmem>>, vector<8x128xf32>,
    %c72_394 = arith.constant 72 : index
    %c0_395 = arith.constant 0 : index
    %266 = tpu.strided_load %arg8[%c72_394, %c0_395] {strides = array<i32: 2, 1>} : memref<648x128xf32, #tpu.memory_space<vmem>>, vector<8x128xf32>
    %c8_396 = arith.constant 8 : index
    %c768_397 = arith.constant 768 : index
    %267 = vector.load %arg12[%c8_396, %c768_397] : memref<128x1152xf32, #tpu.memory_space<vmem>>, vector<8x128xf32>
    tpu.vector_store %arg12[%c8_396, %c768_397], %266 {strides = array<i32>} : memref<128x1152xf32, #tpu.memory_space<vmem>>, vector<8x128xf32>,
    %c108_398 = arith.constant 108 : index
    %c0_399 = arith.constant 0 : index
    %268 = tpu.strided_load %arg8[%c108_398, %c0_399] {strides = array<i32: 2, 1>} : memref<648x128xf32, #tpu.memory_space<vmem>>, vector<8x128xf32>
    %c16_400 = arith.constant 16 : index
    %c768_401 = arith.constant 768 : index
    %269 = vector.load %arg12[%c16_400, %c768_401] : memref<128x1152xf32, #tpu.memory_space<vmem>>, vector<8x128xf32>
    tpu.vector_store %arg12[%c16_400, %c768_401], %268 {strides = array<i32>} : memref<128x1152xf32, #tpu.memory_space<vmem>>, vector<8x128xf32>,
    %c144_402 = arith.constant 144 : index
    %c0_403 = arith.constant 0 : index
    %270 = tpu.strided_load %arg8[%c144_402, %c0_403] {strides = array<i32: 2, 1>} : memref<648x128xf32, #tpu.memory_space<vmem>>, vector<8x128xf32>
    %c24_404 = arith.constant 24 : index
    %c768_405 = arith.constant 768 : index
    %271 = vector.load %arg12[%c24_404, %c768_405] : memref<128x1152xf32, #tpu.memory_space<vmem>>, vector<8x128xf32>
    tpu.vector_store %arg12[%c24_404, %c768_405], %270 {strides = array<i32>} : memref<128x1152xf32, #tpu.memory_space<vmem>>, vector<8x128xf32>,
    %c180_406 = arith.constant 180 : index
    %c0_407 = arith.constant 0 : index
    %272 = tpu.strided_load %arg8[%c180_406, %c0_407] {strides = array<i32: 2, 1>} : memref<648x128xf32, #tpu.memory_space<vmem>>, vector<8x128xf32>
    %c32_408 = arith.constant 32 : index
    %c768_409 = arith.constant 768 : index
    %273 = vector.load %arg12[%c32_408, %c768_409] : memref<128x1152xf32, #tpu.memory_space<vmem>>, vector<8x128xf32>
    tpu.vector_store %arg12[%c32_408, %c768_409], %272 {strides = array<i32>} : memref<128x1152xf32, #tpu.memory_space<vmem>>, vector<8x128xf32>,
    %c216_410 = arith.constant 216 : index
    %c0_411 = arith.constant 0 : index
    %274 = tpu.strided_load %arg8[%c216_410, %c0_411] {strides = array<i32: 2, 1>} : memref<648x128xf32, #tpu.memory_space<vmem>>, vector<8x128xf32>
    %c40_412 = arith.constant 40 : index
    %c768_413 = arith.constant 768 : index
    %275 = vector.load %arg12[%c40_412, %c768_413] : memref<128x1152xf32, #tpu.memory_space<vmem>>, vector<8x128xf32>
    tpu.vector_store %arg12[%c40_412, %c768_413], %274 {strides = array<i32>} : memref<128x1152xf32, #tpu.memory_space<vmem>>, vector<8x128xf32>,
    %c252_414 = arith.constant 252 : index
    %c0_415 = arith.constant 0 : index
    %276 = tpu.strided_load %arg8[%c252_414, %c0_415] {strides = array<i32: 2, 1>} : memref<648x128xf32, #tpu.memory_space<vmem>>, vector<8x128xf32>
    %c48_416 = arith.constant 48 : index
    %c768_417 = arith.constant 768 : index
    %277 = vector.load %arg12[%c48_416, %c768_417] : memref<128x1152xf32, #tpu.memory_space<vmem>>, vector<8x128xf32>
    tpu.vector_store %arg12[%c48_416, %c768_417], %276 {strides = array<i32>} : memref<128x1152xf32, #tpu.memory_space<vmem>>, vector<8x128xf32>,
    %c288_418 = arith.constant 288 : index
    %c0_419 = arith.constant 0 : index
    %278 = tpu.strided_load %arg8[%c288_418, %c0_419] {strides = array<i32: 2, 1>} : memref<648x128xf32, #tpu.memory_space<vmem>>, vector<8x128xf32>
    %c56_420 = arith.constant 56 : index
    %c768_421 = arith.constant 768 : index
    %279 = vector.load %arg12[%c56_420, %c768_421] : memref<128x1152xf32, #tpu.memory_space<vmem>>, vector<8x128xf32>
    tpu.vector_store %arg12[%c56_420, %c768_421], %278 {strides = array<i32>} : memref<128x1152xf32, #tpu.memory_space<vmem>>, vector<8x128xf32>,
    %c360_422 = arith.constant 360 : index
    %c0_423 = arith.constant 0 : index
    %280 = tpu.strided_load %arg8[%c360_422, %c0_423] {strides = array<i32: 2, 1>} : memref<648x128xf32, #tpu.memory_space<vmem>>, vector<8x128xf32>
    %c64_424 = arith.constant 64 : index
    %c768_425 = arith.constant 768 : index
    %281 = vector.load %arg12[%c64_424, %c768_425] : memref<128x1152xf32, #tpu.memory_space<vmem>>, vector<8x128xf32>
    tpu.vector_store %arg12[%c64_424, %c768_425], %280 {strides = array<i32>} : memref<128x1152xf32, #tpu.memory_space<vmem>>, vector<8x128xf32>,
    %c396_426 = arith.constant 396 : index
    %c0_427 = arith.constant 0 : index
    %282 = tpu.strided_load %arg8[%c396_426, %c0_427] {strides = array<i32: 2, 1>} : memref<648x128xf32, #tpu.memory_space<vmem>>, vector<8x128xf32>
    %c72_428 = arith.constant 72 : index
    %c768_429 = arith.constant 768 : index
    %283 = vector.load %arg12[%c72_428, %c768_429] : memref<128x1152xf32, #tpu.memory_space<vmem>>, vector<8x128xf32>
    tpu.vector_store %arg12[%c72_428, %c768_429], %282 {strides = array<i32>} : memref<128x1152xf32, #tpu.memory_space<vmem>>, vector<8x128xf32>,
    %c432_430 = arith.constant 432 : index
    %c0_431 = arith.constant 0 : index
    %284 = tpu.strided_load %arg8[%c432_430, %c0_431] {strides = array<i32: 2, 1>} : memref<648x128xf32, #tpu.memory_space<vmem>>, vector<8x128xf32>
    %c80_432 = arith.constant 80 : index
    %c768_433 = arith.constant 768 : index
    %285 = vector.load %arg12[%c80_432, %c768_433] : memref<128x1152xf32, #tpu.memory_space<vmem>>, vector<8x128xf32>
    tpu.vector_store %arg12[%c80_432, %c768_433], %284 {strides = array<i32>} : memref<128x1152xf32, #tpu.memory_space<vmem>>, vector<8x128xf32>,
    %c468_434 = arith.constant 468 : index
    %c0_435 = arith.constant 0 : index
    %286 = tpu.strided_load %arg8[%c468_434, %c0_435] {strides = array<i32: 2, 1>} : memref<648x128xf32, #tpu.memory_space<vmem>>, vector<8x128xf32>
    %c88_436 = arith.constant 88 : index
    %c768_437 = arith.constant 768 : index
    %287 = vector.load %arg12[%c88_436, %c768_437] : memref<128x1152xf32, #tpu.memory_space<vmem>>, vector<8x128xf32>
    tpu.vector_store %arg12[%c88_436, %c768_437], %286 {strides = array<i32>} : memref<128x1152xf32, #tpu.memory_space<vmem>>, vector<8x128xf32>,
    %c504_438 = arith.constant 504 : index
    %c0_439 = arith.constant 0 : index
    %288 = tpu.strided_load %arg8[%c504_438, %c0_439] {strides = array<i32: 2, 1>} : memref<648x128xf32, #tpu.memory_space<vmem>>, vector<8x128xf32>
    %c96_440 = arith.constant 96 : index
    %c768_441 = arith.constant 768 : index
    %289 = vector.load %arg12[%c96_440, %c768_441] : memref<128x1152xf32, #tpu.memory_space<vmem>>, vector<8x128xf32>
    tpu.vector_store %arg12[%c96_440, %c768_441], %288 {strides = array<i32>} : memref<128x1152xf32, #tpu.memory_space<vmem>>, vector<8x128xf32>,
    %c540_442 = arith.constant 540 : index
    %c0_443 = arith.constant 0 : index
    %290 = tpu.strided_load %arg8[%c540_442, %c0_443] {strides = array<i32: 2, 1>} : memref<648x128xf32, #tpu.memory_space<vmem>>, vector<8x128xf32>
    %c104_444 = arith.constant 104 : index
    %c768_445 = arith.constant 768 : index
    %291 = vector.load %arg12[%c104_444, %c768_445] : memref<128x1152xf32, #tpu.memory_space<vmem>>, vector<8x128xf32>
    tpu.vector_store %arg12[%c104_444, %c768_445], %290 {strides = array<i32>} : memref<128x1152xf32, #tpu.memory_space<vmem>>, vector<8x128xf32>,
    %c576_446 = arith.constant 576 : index
    %c0_447 = arith.constant 0 : index
    %292 = tpu.strided_load %arg8[%c576_446, %c0_447] {strides = array<i32: 2, 1>} : memref<648x128xf32, #tpu.memory_space<vmem>>, vector<8x128xf32>
    %c112_448 = arith.constant 112 : index
    %c768_449 = arith.constant 768 : index
    %293 = vector.load %arg12[%c112_448, %c768_449] : memref<128x1152xf32, #tpu.memory_space<vmem>>, vector<8x128xf32>
    tpu.vector_store %arg12[%c112_448, %c768_449], %292 {strides = array<i32>} : memref<128x1152xf32, #tpu.memory_space<vmem>>, vector<8x128xf32>,
    %c612 = arith.constant 612 : index
    %c0_450 = arith.constant 0 : index
    %294 = tpu.strided_load %arg8[%c612, %c0_450] {strides = array<i32: 2, 1>} : memref<648x128xf32, #tpu.memory_space<vmem>>, vector<8x128xf32>
    %c120_451 = arith.constant 120 : index
    %c768_452 = arith.constant 768 : index
    %295 = vector.load %arg12[%c120_451, %c768_452] : memref<128x1152xf32, #tpu.memory_space<vmem>>, vector<8x128xf32>
    tpu.vector_store %arg12[%c120_451, %c768_452], %294 {strides = array<i32>} : memref<128x1152xf32, #tpu.memory_space<vmem>>, vector<8x128xf32>,
    %c37_453 = arith.constant 37 : index
    %c0_454 = arith.constant 0 : index
    %296 = tpu.strided_load %arg8[%c37_453, %c0_454] {strides = array<i32: 2, 1>} : memref<648x128xf32, #tpu.memory_space<vmem>>, vector<8x128xf32>
    %c0_455 = arith.constant 0 : index
    %c896 = arith.constant 896 : index
    %297 = vector.load %arg12[%c0_455, %c896] : memref<128x1152xf32, #tpu.memory_space<vmem>>, vector<8x128xf32>
    tpu.vector_store %arg12[%c0_455, %c896], %296 {strides = array<i32>} : memref<128x1152xf32, #tpu.memory_space<vmem>>, vector<8x128xf32>,
    %c73_456 = arith.constant 73 : index
    %c0_457 = arith.constant 0 : index
    %298 = tpu.strided_load %arg8[%c73_456, %c0_457] {strides = array<i32: 2, 1>} : memref<648x128xf32, #tpu.memory_space<vmem>>, vector<8x128xf32>
    %c8_458 = arith.constant 8 : index
    %c896_459 = arith.constant 896 : index
    %299 = vector.load %arg12[%c8_458, %c896_459] : memref<128x1152xf32, #tpu.memory_space<vmem>>, vector<8x128xf32>
    tpu.vector_store %arg12[%c8_458, %c896_459], %298 {strides = array<i32>} : memref<128x1152xf32, #tpu.memory_space<vmem>>, vector<8x128xf32>,
    %c109_460 = arith.constant 109 : index
    %c0_461 = arith.constant 0 : index
    %300 = tpu.strided_load %arg8[%c109_460, %c0_461] {strides = array<i32: 2, 1>} : memref<648x128xf32, #tpu.memory_space<vmem>>, vector<8x128xf32>
    %c16_462 = arith.constant 16 : index
    %c896_463 = arith.constant 896 : index
    %301 = vector.load %arg12[%c16_462, %c896_463] : memref<128x1152xf32, #tpu.memory_space<vmem>>, vector<8x128xf32>
    tpu.vector_store %arg12[%c16_462, %c896_463], %300 {strides = array<i32>} : memref<128x1152xf32, #tpu.memory_space<vmem>>, vector<8x128xf32>,
    %c145_464 = arith.constant 145 : index
    %c0_465 = arith.constant 0 : index
    %302 = tpu.strided_load %arg8[%c145_464, %c0_465] {strides = array<i32: 2, 1>} : memref<648x128xf32, #tpu.memory_space<vmem>>, vector<8x128xf32>
    %c24_466 = arith.constant 24 : index
    %c896_467 = arith.constant 896 : index
    %303 = vector.load %arg12[%c24_466, %c896_467] : memref<128x1152xf32, #tpu.memory_space<vmem>>, vector<8x128xf32>
    tpu.vector_store %arg12[%c24_466, %c896_467], %302 {strides = array<i32>} : memref<128x1152xf32, #tpu.memory_space<vmem>>, vector<8x128xf32>,
    %c181_468 = arith.constant 181 : index
    %c0_469 = arith.constant 0 : index
    %304 = tpu.strided_load %arg8[%c181_468, %c0_469] {strides = array<i32: 2, 1>} : memref<648x128xf32, #tpu.memory_space<vmem>>, vector<8x128xf32>
    %c32_470 = arith.constant 32 : index
    %c896_471 = arith.constant 896 : index
    %305 = vector.load %arg12[%c32_470, %c896_471] : memref<128x1152xf32, #tpu.memory_space<vmem>>, vector<8x128xf32>
    tpu.vector_store %arg12[%c32_470, %c896_471], %304 {strides = array<i32>} : memref<128x1152xf32, #tpu.memory_space<vmem>>, vector<8x128xf32>,
    %c217_472 = arith.constant 217 : index
    %c0_473 = arith.constant 0 : index
    %306 = tpu.strided_load %arg8[%c217_472, %c0_473] {strides = array<i32: 2, 1>} : memref<648x128xf32, #tpu.memory_space<vmem>>, vector<8x128xf32>
    %c40_474 = arith.constant 40 : index
    %c896_475 = arith.constant 896 : index
    %307 = vector.load %arg12[%c40_474, %c896_475] : memref<128x1152xf32, #tpu.memory_space<vmem>>, vector<8x128xf32>
    tpu.vector_store %arg12[%c40_474, %c896_475], %306 {strides = array<i32>} : memref<128x1152xf32, #tpu.memory_space<vmem>>, vector<8x128xf32>,
    %c253_476 = arith.constant 253 : index
    %c0_477 = arith.constant 0 : index
    %308 = tpu.strided_load %arg8[%c253_476, %c0_477] {strides = array<i32: 2, 1>} : memref<648x128xf32, #tpu.memory_space<vmem>>, vector<8x128xf32>
    %c48_478 = arith.constant 48 : index
    %c896_479 = arith.constant 896 : index
    %309 = vector.load %arg12[%c48_478, %c896_479] : memref<128x1152xf32, #tpu.memory_space<vmem>>, vector<8x128xf32>
    tpu.vector_store %arg12[%c48_478, %c896_479], %308 {strides = array<i32>} : memref<128x1152xf32, #tpu.memory_space<vmem>>, vector<8x128xf32>,
    %c289_480 = arith.constant 289 : index
    %c0_481 = arith.constant 0 : index
    %310 = tpu.strided_load %arg8[%c289_480, %c0_481] {strides = array<i32: 2, 1>} : memref<648x128xf32, #tpu.memory_space<vmem>>, vector<8x128xf32>
    %c56_482 = arith.constant 56 : index
    %c896_483 = arith.constant 896 : index
    %311 = vector.load %arg12[%c56_482, %c896_483] : memref<128x1152xf32, #tpu.memory_space<vmem>>, vector<8x128xf32>
    tpu.vector_store %arg12[%c56_482, %c896_483], %310 {strides = array<i32>} : memref<128x1152xf32, #tpu.memory_space<vmem>>, vector<8x128xf32>,
    %c361_484 = arith.constant 361 : index
    %c0_485 = arith.constant 0 : index
    %312 = tpu.strided_load %arg8[%c361_484, %c0_485] {strides = array<i32: 2, 1>} : memref<648x128xf32, #tpu.memory_space<vmem>>, vector<8x128xf32>
    %c64_486 = arith.constant 64 : index
    %c896_487 = arith.constant 896 : index
    %313 = vector.load %arg12[%c64_486, %c896_487] : memref<128x1152xf32, #tpu.memory_space<vmem>>, vector<8x128xf32>
    tpu.vector_store %arg12[%c64_486, %c896_487], %312 {strides = array<i32>} : memref<128x1152xf32, #tpu.memory_space<vmem>>, vector<8x128xf32>,
    %c397_488 = arith.constant 397 : index
    %c0_489 = arith.constant 0 : index
    %314 = tpu.strided_load %arg8[%c397_488, %c0_489] {strides = array<i32: 2, 1>} : memref<648x128xf32, #tpu.memory_space<vmem>>, vector<8x128xf32>
    %c72_490 = arith.constant 72 : index
    %c896_491 = arith.constant 896 : index
    %315 = vector.load %arg12[%c72_490, %c896_491] : memref<128x1152xf32, #tpu.memory_space<vmem>>, vector<8x128xf32>
    tpu.vector_store %arg12[%c72_490, %c896_491], %314 {strides = array<i32>} : memref<128x1152xf32, #tpu.memory_space<vmem>>, vector<8x128xf32>,
    %c433_492 = arith.constant 433 : index
    %c0_493 = arith.constant 0 : index
    %316 = tpu.strided_load %arg8[%c433_492, %c0_493] {strides = array<i32: 2, 1>} : memref<648x128xf32, #tpu.memory_space<vmem>>, vector<8x128xf32>
    %c80_494 = arith.constant 80 : index
    %c896_495 = arith.constant 896 : index
    %317 = vector.load %arg12[%c80_494, %c896_495] : memref<128x1152xf32, #tpu.memory_space<vmem>>, vector<8x128xf32>
    tpu.vector_store %arg12[%c80_494, %c896_495], %316 {strides = array<i32>} : memref<128x1152xf32, #tpu.memory_space<vmem>>, vector<8x128xf32>,
    %c469_496 = arith.constant 469 : index
    %c0_497 = arith.constant 0 : index
    %318 = tpu.strided_load %arg8[%c469_496, %c0_497] {strides = array<i32: 2, 1>} : memref<648x128xf32, #tpu.memory_space<vmem>>, vector<8x128xf32>
    %c88_498 = arith.constant 88 : index
    %c896_499 = arith.constant 896 : index
    %319 = vector.load %arg12[%c88_498, %c896_499] : memref<128x1152xf32, #tpu.memory_space<vmem>>, vector<8x128xf32>
    tpu.vector_store %arg12[%c88_498, %c896_499], %318 {strides = array<i32>} : memref<128x1152xf32, #tpu.memory_space<vmem>>, vector<8x128xf32>,
    %c505_500 = arith.constant 505 : index
    %c0_501 = arith.constant 0 : index
    %320 = tpu.strided_load %arg8[%c505_500, %c0_501] {strides = array<i32: 2, 1>} : memref<648x128xf32, #tpu.memory_space<vmem>>, vector<8x128xf32>
    %c96_502 = arith.constant 96 : index
    %c896_503 = arith.constant 896 : index
    %321 = vector.load %arg12[%c96_502, %c896_503] : memref<128x1152xf32, #tpu.memory_space<vmem>>, vector<8x128xf32>
    tpu.vector_store %arg12[%c96_502, %c896_503], %320 {strides = array<i32>} : memref<128x1152xf32, #tpu.memory_space<vmem>>, vector<8x128xf32>,
    %c541_504 = arith.constant 541 : index
    %c0_505 = arith.constant 0 : index
    %322 = tpu.strided_load %arg8[%c541_504, %c0_505] {strides = array<i32: 2, 1>} : memref<648x128xf32, #tpu.memory_space<vmem>>, vector<8x128xf32>
    %c104_506 = arith.constant 104 : index
    %c896_507 = arith.constant 896 : index
    %323 = vector.load %arg12[%c104_506, %c896_507] : memref<128x1152xf32, #tpu.memory_space<vmem>>, vector<8x128xf32>
    tpu.vector_store %arg12[%c104_506, %c896_507], %322 {strides = array<i32>} : memref<128x1152xf32, #tpu.memory_space<vmem>>, vector<8x128xf32>,
    %c577_508 = arith.constant 577 : index
    %c0_509 = arith.constant 0 : index
    %324 = tpu.strided_load %arg8[%c577_508, %c0_509] {strides = array<i32: 2, 1>} : memref<648x128xf32, #tpu.memory_space<vmem>>, vector<8x128xf32>
    %c112_510 = arith.constant 112 : index
    %c896_511 = arith.constant 896 : index
    %325 = vector.load %arg12[%c112_510, %c896_511] : memref<128x1152xf32, #tpu.memory_space<vmem>>, vector<8x128xf32>
    tpu.vector_store %arg12[%c112_510, %c896_511], %324 {strides = array<i32>} : memref<128x1152xf32, #tpu.memory_space<vmem>>, vector<8x128xf32>,
    %c613_512 = arith.constant 613 : index
    %c0_513 = arith.constant 0 : index
    %326 = tpu.strided_load %arg8[%c613_512, %c0_513] {strides = array<i32: 2, 1>} : memref<648x128xf32, #tpu.memory_space<vmem>>, vector<8x128xf32>
    %c120_514 = arith.constant 120 : index
    %c896_515 = arith.constant 896 : index
    %327 = vector.load %arg12[%c120_514, %c896_515] : memref<128x1152xf32, #tpu.memory_space<vmem>>, vector<8x128xf32>
    tpu.vector_store %arg12[%c120_514, %c896_515], %326 {strides = array<i32>} : memref<128x1152xf32, #tpu.memory_space<vmem>>, vector<8x128xf32>,
    %c38_516 = arith.constant 38 : index
    %c0_517 = arith.constant 0 : index
    %328 = tpu.strided_load %arg8[%c38_516, %c0_517] {strides = array<i32: 2, 1>} : memref<648x128xf32, #tpu.memory_space<vmem>>, vector<8x128xf32>
    %c0_518 = arith.constant 0 : index
    %c1024 = arith.constant 1024 : index
    %329 = vector.load %arg12[%c0_518, %c1024] : memref<128x1152xf32, #tpu.memory_space<vmem>>, vector<8x128xf32>
    tpu.vector_store %arg12[%c0_518, %c1024], %328 {strides = array<i32>} : memref<128x1152xf32, #tpu.memory_space<vmem>>, vector<8x128xf32>,
    %c74_519 = arith.constant 74 : index
    %c0_520 = arith.constant 0 : index
    %330 = tpu.strided_load %arg8[%c74_519, %c0_520] {strides = array<i32: 2, 1>} : memref<648x128xf32, #tpu.memory_space<vmem>>, vector<8x128xf32>
    %c8_521 = arith.constant 8 : index
    %c1024_522 = arith.constant 1024 : index
    %331 = vector.load %arg12[%c8_521, %c1024_522] : memref<128x1152xf32, #tpu.memory_space<vmem>>, vector<8x128xf32>
    tpu.vector_store %arg12[%c8_521, %c1024_522], %330 {strides = array<i32>} : memref<128x1152xf32, #tpu.memory_space<vmem>>, vector<8x128xf32>,
    %c110_523 = arith.constant 110 : index
    %c0_524 = arith.constant 0 : index
    %332 = tpu.strided_load %arg8[%c110_523, %c0_524] {strides = array<i32: 2, 1>} : memref<648x128xf32, #tpu.memory_space<vmem>>, vector<8x128xf32>
    %c16_525 = arith.constant 16 : index
    %c1024_526 = arith.constant 1024 : index
    %333 = vector.load %arg12[%c16_525, %c1024_526] : memref<128x1152xf32, #tpu.memory_space<vmem>>, vector<8x128xf32>
    tpu.vector_store %arg12[%c16_525, %c1024_526], %332 {strides = array<i32>} : memref<128x1152xf32, #tpu.memory_space<vmem>>, vector<8x128xf32>,
    %c146_527 = arith.constant 146 : index
    %c0_528 = arith.constant 0 : index
    %334 = tpu.strided_load %arg8[%c146_527, %c0_528] {strides = array<i32: 2, 1>} : memref<648x128xf32, #tpu.memory_space<vmem>>, vector<8x128xf32>
    %c24_529 = arith.constant 24 : index
    %c1024_530 = arith.constant 1024 : index
    %335 = vector.load %arg12[%c24_529, %c1024_530] : memref<128x1152xf32, #tpu.memory_space<vmem>>, vector<8x128xf32>
    tpu.vector_store %arg12[%c24_529, %c1024_530], %334 {strides = array<i32>} : memref<128x1152xf32, #tpu.memory_space<vmem>>, vector<8x128xf32>,
    %c182_531 = arith.constant 182 : index
    %c0_532 = arith.constant 0 : index
    %336 = tpu.strided_load %arg8[%c182_531, %c0_532] {strides = array<i32: 2, 1>} : memref<648x128xf32, #tpu.memory_space<vmem>>, vector<8x128xf32>
    %c32_533 = arith.constant 32 : index
    %c1024_534 = arith.constant 1024 : index
    %337 = vector.load %arg12[%c32_533, %c1024_534] : memref<128x1152xf32, #tpu.memory_space<vmem>>, vector<8x128xf32>
    tpu.vector_store %arg12[%c32_533, %c1024_534], %336 {strides = array<i32>} : memref<128x1152xf32, #tpu.memory_space<vmem>>, vector<8x128xf32>,
    %c218_535 = arith.constant 218 : index
    %c0_536 = arith.constant 0 : index
    %338 = tpu.strided_load %arg8[%c218_535, %c0_536] {strides = array<i32: 2, 1>} : memref<648x128xf32, #tpu.memory_space<vmem>>, vector<8x128xf32>
    %c40_537 = arith.constant 40 : index
    %c1024_538 = arith.constant 1024 : index
    %339 = vector.load %arg12[%c40_537, %c1024_538] : memref<128x1152xf32, #tpu.memory_space<vmem>>, vector<8x128xf32>
    tpu.vector_store %arg12[%c40_537, %c1024_538], %338 {strides = array<i32>} : memref<128x1152xf32, #tpu.memory_space<vmem>>, vector<8x128xf32>,
    %c254_539 = arith.constant 254 : index
    %c0_540 = arith.constant 0 : index
    %340 = tpu.strided_load %arg8[%c254_539, %c0_540] {strides = array<i32: 2, 1>} : memref<648x128xf32, #tpu.memory_space<vmem>>, vector<8x128xf32>
    %c48_541 = arith.constant 48 : index
    %c1024_542 = arith.constant 1024 : index
    %341 = vector.load %arg12[%c48_541, %c1024_542] : memref<128x1152xf32, #tpu.memory_space<vmem>>, vector<8x128xf32>
    tpu.vector_store %arg12[%c48_541, %c1024_542], %340 {strides = array<i32>} : memref<128x1152xf32, #tpu.memory_space<vmem>>, vector<8x128xf32>,
    %c290 = arith.constant 290 : index
    %c0_543 = arith.constant 0 : index
    %342 = tpu.strided_load %arg8[%c290, %c0_543] {strides = array<i32: 2, 1>} : memref<648x128xf32, #tpu.memory_space<vmem>>, vector<8x128xf32>
    %c56_544 = arith.constant 56 : index
    %c1024_545 = arith.constant 1024 : index
    %343 = vector.load %arg12[%c56_544, %c1024_545] : memref<128x1152xf32, #tpu.memory_space<vmem>>, vector<8x128xf32>
    tpu.vector_store %arg12[%c56_544, %c1024_545], %342 {strides = array<i32>} : memref<128x1152xf32, #tpu.memory_space<vmem>>, vector<8x128xf32>,
    %c362_546 = arith.constant 362 : index
    %c0_547 = arith.constant 0 : index
    %344 = tpu.strided_load %arg8[%c362_546, %c0_547] {strides = array<i32: 2, 1>} : memref<648x128xf32, #tpu.memory_space<vmem>>, vector<8x128xf32>
    %c64_548 = arith.constant 64 : index
    %c1024_549 = arith.constant 1024 : index
    %345 = vector.load %arg12[%c64_548, %c1024_549] : memref<128x1152xf32, #tpu.memory_space<vmem>>, vector<8x128xf32>
    tpu.vector_store %arg12[%c64_548, %c1024_549], %344 {strides = array<i32>} : memref<128x1152xf32, #tpu.memory_space<vmem>>, vector<8x128xf32>,
    %c398_550 = arith.constant 398 : index
    %c0_551 = arith.constant 0 : index
    %346 = tpu.strided_load %arg8[%c398_550, %c0_551] {strides = array<i32: 2, 1>} : memref<648x128xf32, #tpu.memory_space<vmem>>, vector<8x128xf32>
    %c72_552 = arith.constant 72 : index
    %c1024_553 = arith.constant 1024 : index
    %347 = vector.load %arg12[%c72_552, %c1024_553] : memref<128x1152xf32, #tpu.memory_space<vmem>>, vector<8x128xf32>
    tpu.vector_store %arg12[%c72_552, %c1024_553], %346 {strides = array<i32>} : memref<128x1152xf32, #tpu.memory_space<vmem>>, vector<8x128xf32>,
    %c434_554 = arith.constant 434 : index
    %c0_555 = arith.constant 0 : index
    %348 = tpu.strided_load %arg8[%c434_554, %c0_555] {strides = array<i32: 2, 1>} : memref<648x128xf32, #tpu.memory_space<vmem>>, vector<8x128xf32>
    %c80_556 = arith.constant 80 : index
    %c1024_557 = arith.constant 1024 : index
    %349 = vector.load %arg12[%c80_556, %c1024_557] : memref<128x1152xf32, #tpu.memory_space<vmem>>, vector<8x128xf32>
    tpu.vector_store %arg12[%c80_556, %c1024_557], %348 {strides = array<i32>} : memref<128x1152xf32, #tpu.memory_space<vmem>>, vector<8x128xf32>,
    %c470_558 = arith.constant 470 : index
    %c0_559 = arith.constant 0 : index
    %350 = tpu.strided_load %arg8[%c470_558, %c0_559] {strides = array<i32: 2, 1>} : memref<648x128xf32, #tpu.memory_space<vmem>>, vector<8x128xf32>
    %c88_560 = arith.constant 88 : index
    %c1024_561 = arith.constant 1024 : index
    %351 = vector.load %arg12[%c88_560, %c1024_561] : memref<128x1152xf32, #tpu.memory_space<vmem>>, vector<8x128xf32>
    tpu.vector_store %arg12[%c88_560, %c1024_561], %350 {strides = array<i32>} : memref<128x1152xf32, #tpu.memory_space<vmem>>, vector<8x128xf32>,
    %c506_562 = arith.constant 506 : index
    %c0_563 = arith.constant 0 : index
    %352 = tpu.strided_load %arg8[%c506_562, %c0_563] {strides = array<i32: 2, 1>} : memref<648x128xf32, #tpu.memory_space<vmem>>, vector<8x128xf32>
    %c96_564 = arith.constant 96 : index
    %c1024_565 = arith.constant 1024 : index
    %353 = vector.load %arg12[%c96_564, %c1024_565] : memref<128x1152xf32, #tpu.memory_space<vmem>>, vector<8x128xf32>
    tpu.vector_store %arg12[%c96_564, %c1024_565], %352 {strides = array<i32>} : memref<128x1152xf32, #tpu.memory_space<vmem>>, vector<8x128xf32>,
    %c542_566 = arith.constant 542 : index
    %c0_567 = arith.constant 0 : index
    %354 = tpu.strided_load %arg8[%c542_566, %c0_567] {strides = array<i32: 2, 1>} : memref<648x128xf32, #tpu.memory_space<vmem>>, vector<8x128xf32>
    %c104_568 = arith.constant 104 : index
    %c1024_569 = arith.constant 1024 : index
    %355 = vector.load %arg12[%c104_568, %c1024_569] : memref<128x1152xf32, #tpu.memory_space<vmem>>, vector<8x128xf32>
    tpu.vector_store %arg12[%c104_568, %c1024_569], %354 {strides = array<i32>} : memref<128x1152xf32, #tpu.memory_space<vmem>>, vector<8x128xf32>,
    %c578_570 = arith.constant 578 : index
    %c0_571 = arith.constant 0 : index
    %356 = tpu.strided_load %arg8[%c578_570, %c0_571] {strides = array<i32: 2, 1>} : memref<648x128xf32, #tpu.memory_space<vmem>>, vector<8x128xf32>
    %c112_572 = arith.constant 112 : index
    %c1024_573 = arith.constant 1024 : index
    %357 = vector.load %arg12[%c112_572, %c1024_573] : memref<128x1152xf32, #tpu.memory_space<vmem>>, vector<8x128xf32>
    tpu.vector_store %arg12[%c112_572, %c1024_573], %356 {strides = array<i32>} : memref<128x1152xf32, #tpu.memory_space<vmem>>, vector<8x128xf32>,
    %c614 = arith.constant 614 : index
    %c0_574 = arith.constant 0 : index
    %358 = tpu.strided_load %arg8[%c614, %c0_574] {strides = array<i32: 2, 1>} : memref<648x128xf32, #tpu.memory_space<vmem>>, vector<8x128xf32>
    %c120_575 = arith.constant 120 : index
    %c1024_576 = arith.constant 1024 : index
    %359 = vector.load %arg12[%c120_575, %c1024_576] : memref<128x1152xf32, #tpu.memory_space<vmem>>, vector<8x128xf32>
    tpu.vector_store %arg12[%c120_575, %c1024_576], %358 {strides = array<i32>} : memref<128x1152xf32, #tpu.memory_space<vmem>>, vector<8x128xf32>,
    %c0_577 = arith.constant 0 : index
    %c0_578 = arith.constant 0 : index
    %360 = vector.load %arg12[%c0_577, %c0_578] : memref<128x1152xf32, #tpu.memory_space<vmem>>, vector<128x1152xf32>
    %361 = arith.truncf %360 : vector<128x1152xf32> to vector<128x1152xbf16>
    %c0_579 = arith.constant 0 : index
    %c0_580 = arith.constant 0 : index
    %c0_581 = arith.constant 0 : index
    %362 = vector.load %arg1[%c0_579, %c0_580, %c0_581] : memref<4x1152x128xbf16, #tpu.memory_space<vmem>>, vector<1x1152x128xbf16>
    %363 = vector.shape_cast %362 : vector<1x1152x128xbf16> to vector<1152x128xbf16>
    %cst_582 = arith.constant dense<0.000000e+00> : vector<128x128xf32>
    %364 = tpu.matmul %361, %363, %cst_582 {dimension_numbers = #tpu.dot_dimension_numbers<[1], [0], [0], [1], [0, 0, 1, 1], [], []>} : vector<128x1152xbf16>, vector<1152x128xbf16>, vector<128x128xf32> -> vector<128x128xf32>
    %c0_583 = arith.constant 0 : index
    %c0_584 = arith.constant 0 : index
    %c0_585 = arith.constant 0 : index
    %365 = vector.load %arg2[%c0_583, %c0_584, %c0_585] : memref<4x1x128xf32, #tpu.memory_space<vmem>>, vector<1x1x128xf32>
    %366 = vector.shape_cast %365 : vector<1x1x128xf32> to vector<1x128xf32>
    %367 = vector.broadcast %366 : vector<1x128xf32> to vector<128x128xf32>
    %368 = arith.addf %364, %367 : vector<128x128xf32>
    %cst_586 = arith.constant 0.000000e+00 : f32
    %369 = vector.broadcast %cst_586 : f32 to vector<128x128xf32>
    %370 = arith.cmpf ogt, %368, %369 : vector<128x128xf32>
    %cst_587 = arith.constant 2.000000e-01 : f32
    %371 = vector.broadcast %cst_587 : f32 to vector<128x128xf32>
    %372 = arith.mulf %371, %368 : vector<128x128xf32>
    %373 = arith.select %370, %368, %372 : vector<128x128xi1>, vector<128x128xf32>
    %c0_588 = arith.constant 0 : index
    %c0_589 = arith.constant 0 : index
    %c0_590 = arith.constant 0 : index
    %374 = vector.load %arg3[%c0_588, %c0_589, %c0_590] : memref<4x1x128xf32, #tpu.memory_space<vmem>>, vector<1x1x128xf32>
    %375 = vector.shape_cast %374 : vector<1x1x128xf32> to vector<1x128xf32>
    %376 = vector.broadcast %375 : vector<1x128xf32> to vector<128x128xf32>
    %377 = arith.mulf %373, %376 : vector<128x128xf32>
    %c0_591 = arith.constant 0 : index
    %c0_592 = arith.constant 0 : index
    %c0_593 = arith.constant 0 : index
    %378 = vector.load %arg4[%c0_591, %c0_592, %c0_593] : memref<4x1x128xf32, #tpu.memory_space<vmem>>, vector<1x1x128xf32>
    %379 = vector.shape_cast %378 : vector<1x1x128xf32> to vector<1x128xf32>
    %380 = vector.broadcast %379 : vector<1x128xf32> to vector<128x128xf32>
    %381 = arith.addf %377, %380 : vector<128x128xf32>
    %382 = vector.extract_strided_slice %381 {offsets = [0, 0], sizes = [8, 128], strides = [1, 1]} : vector<128x128xf32> to vector<8x128xf32>
    %c11 = arith.constant 11 : index
    %c0_594 = arith.constant 0 : index
    %383 = vector.load %arg9[%c11, %c0_594] : memref<200x128xf32, #tpu.memory_space<vmem>>, vector<8x128xf32>
    tpu.vector_store %arg9[%c11, %c0_594], %382 {strides = array<i32>} : memref<200x128xf32, #tpu.memory_space<vmem>>, vector<8x128xf32>,
    %384 = vector.extract_strided_slice %381 {offsets = [8, 0], sizes = [8, 128], strides = [1, 1]} : vector<128x128xf32> to vector<8x128xf32>
    %c21 = arith.constant 21 : index
    %c0_595 = arith.constant 0 : index
    %385 = vector.load %arg9[%c21, %c0_595] : memref<200x128xf32, #tpu.memory_space<vmem>>, vector<8x128xf32>
    tpu.vector_store %arg9[%c21, %c0_595], %384 {strides = array<i32>} : memref<200x128xf32, #tpu.memory_space<vmem>>, vector<8x128xf32>,
    %386 = vector.extract_strided_slice %381 {offsets = [16, 0], sizes = [8, 128], strides = [1, 1]} : vector<128x128xf32> to vector<8x128xf32>
    %c31 = arith.constant 31 : index
    %c0_596 = arith.constant 0 : index
    %387 = vector.load %arg9[%c31, %c0_596] : memref<200x128xf32, #tpu.memory_space<vmem>>, vector<8x128xf32>
    tpu.vector_store %arg9[%c31, %c0_596], %386 {strides = array<i32>} : memref<200x128xf32, #tpu.memory_space<vmem>>, vector<8x128xf32>,
    %388 = vector.extract_strided_slice %381 {offsets = [24, 0], sizes = [8, 128], strides = [1, 1]} : vector<128x128xf32> to vector<8x128xf32>
    %c41 = arith.constant 41 : index
    %c0_597 = arith.constant 0 : index
    %389 = vector.load %arg9[%c41, %c0_597] : memref<200x128xf32, #tpu.memory_space<vmem>>, vector<8x128xf32>
    tpu.vector_store %arg9[%c41, %c0_597], %388 {strides = array<i32>} : memref<200x128xf32, #tpu.memory_space<vmem>>, vector<8x128xf32>,
    %390 = vector.extract_strided_slice %381 {offsets = [32, 0], sizes = [8, 128], strides = [1, 1]} : vector<128x128xf32> to vector<8x128xf32>
    %c51 = arith.constant 51 : index
    %c0_598 = arith.constant 0 : index
    %391 = vector.load %arg9[%c51, %c0_598] : memref<200x128xf32, #tpu.memory_space<vmem>>, vector<8x128xf32>
    tpu.vector_store %arg9[%c51, %c0_598], %390 {strides = array<i32>} : memref<200x128xf32, #tpu.memory_space<vmem>>, vector<8x128xf32>,
    %392 = vector.extract_strided_slice %381 {offsets = [40, 0], sizes = [8, 128], strides = [1, 1]} : vector<128x128xf32> to vector<8x128xf32>
    %c61 = arith.constant 61 : index
    %c0_599 = arith.constant 0 : index
    %393 = vector.load %arg9[%c61, %c0_599] : memref<200x128xf32, #tpu.memory_space<vmem>>, vector<8x128xf32>
    tpu.vector_store %arg9[%c61, %c0_599], %392 {strides = array<i32>} : memref<200x128xf32, #tpu.memory_space<vmem>>, vector<8x128xf32>,
    %394 = vector.extract_strided_slice %381 {offsets = [48, 0], sizes = [8, 128], strides = [1, 1]} : vector<128x128xf32> to vector<8x128xf32>
    %c71 = arith.constant 71 : index
    %c0_600 = arith.constant 0 : index
    %395 = vector.load %arg9[%c71, %c0_600] : memref<200x128xf32, #tpu.memory_space<vmem>>, vector<8x128xf32>
    tpu.vector_store %arg9[%c71, %c0_600], %394 {strides = array<i32>} : memref<200x128xf32, #tpu.memory_space<vmem>>, vector<8x128xf32>,
    %396 = vector.extract_strided_slice %381 {offsets = [56, 0], sizes = [8, 128], strides = [1, 1]} : vector<128x128xf32> to vector<8x128xf32>
    %c81 = arith.constant 81 : index
    %c0_601 = arith.constant 0 : index
    %397 = vector.load %arg9[%c81, %c0_601] : memref<200x128xf32, #tpu.memory_space<vmem>>, vector<8x128xf32>
    tpu.vector_store %arg9[%c81, %c0_601], %396 {strides = array<i32>} : memref<200x128xf32, #tpu.memory_space<vmem>>, vector<8x128xf32>,
    %398 = vector.extract_strided_slice %381 {offsets = [64, 0], sizes = [8, 128], strides = [1, 1]} : vector<128x128xf32> to vector<8x128xf32>
    %c111 = arith.constant 111 : index
    %c0_602 = arith.constant 0 : index
    %399 = vector.load %arg9[%c111, %c0_602] : memref<200x128xf32, #tpu.memory_space<vmem>>, vector<8x128xf32>
    tpu.vector_store %arg9[%c111, %c0_602], %398 {strides = array<i32>} : memref<200x128xf32, #tpu.memory_space<vmem>>, vector<8x128xf32>,
    %400 = vector.extract_strided_slice %381 {offsets = [72, 0], sizes = [8, 128], strides = [1, 1]} : vector<128x128xf32> to vector<8x128xf32>
    %c121 = arith.constant 121 : index
    %c0_603 = arith.constant 0 : index
    %401 = vector.load %arg9[%c121, %c0_603] : memref<200x128xf32, #tpu.memory_space<vmem>>, vector<8x128xf32>
    tpu.vector_store %arg9[%c121, %c0_603], %400 {strides = array<i32>} : memref<200x128xf32, #tpu.memory_space<vmem>>, vector<8x128xf32>,
    %402 = vector.extract_strided_slice %381 {offsets = [80, 0], sizes = [8, 128], strides = [1, 1]} : vector<128x128xf32> to vector<8x128xf32>
    %c131 = arith.constant 131 : index
    %c0_604 = arith.constant 0 : index
    %403 = vector.load %arg9[%c131, %c0_604] : memref<200x128xf32, #tpu.memory_space<vmem>>, vector<8x128xf32>
    tpu.vector_store %arg9[%c131, %c0_604], %402 {strides = array<i32>} : memref<200x128xf32, #tpu.memory_space<vmem>>, vector<8x128xf32>,
    %404 = vector.extract_strided_slice %381 {offsets = [88, 0], sizes = [8, 128], strides = [1, 1]} : vector<128x128xf32> to vector<8x128xf32>
    %c141 = arith.constant 141 : index
    %c0_605 = arith.constant 0 : index
    %405 = vector.load %arg9[%c141, %c0_605] : memref<200x128xf32, #tpu.memory_space<vmem>>, vector<8x128xf32>
    tpu.vector_store %arg9[%c141, %c0_605], %404 {strides = array<i32>} : memref<200x128xf32, #tpu.memory_space<vmem>>, vector<8x128xf32>,
    %406 = vector.extract_strided_slice %381 {offsets = [96, 0], sizes = [8, 128], strides = [1, 1]} : vector<128x128xf32> to vector<8x128xf32>
    %c151 = arith.constant 151 : index
    %c0_606 = arith.constant 0 : index
    %407 = vector.load %arg9[%c151, %c0_606] : memref<200x128xf32, #tpu.memory_space<vmem>>, vector<8x128xf32>
    tpu.vector_store %arg9[%c151, %c0_606], %406 {strides = array<i32>} : memref<200x128xf32, #tpu.memory_space<vmem>>, vector<8x128xf32>,
    %408 = vector.extract_strided_slice %381 {offsets = [104, 0], sizes = [8, 128], strides = [1, 1]} : vector<128x128xf32> to vector<8x128xf32>
    %c161 = arith.constant 161 : index
    %c0_607 = arith.constant 0 : index
    %409 = vector.load %arg9[%c161, %c0_607] : memref<200x128xf32, #tpu.memory_space<vmem>>, vector<8x128xf32>
    tpu.vector_store %arg9[%c161, %c0_607], %408 {strides = array<i32>} : memref<200x128xf32, #tpu.memory_space<vmem>>, vector<8x128xf32>,
    %410 = vector.extract_strided_slice %381 {offsets = [112, 0], sizes = [8, 128], strides = [1, 1]} : vector<128x128xf32> to vector<8x128xf32>
    %c171 = arith.constant 171 : index
    %c0_608 = arith.constant 0 : index
    %411 = vector.load %arg9[%c171, %c0_608] : memref<200x128xf32, #tpu.memory_space<vmem>>, vector<8x128xf32>
    tpu.vector_store %arg9[%c171, %c0_608], %410 {strides = array<i32>} : memref<200x128xf32, #tpu.memory_space<vmem>>, vector<8x128xf32>,
    %412 = vector.extract_strided_slice %381 {offsets = [120, 0], sizes = [8, 128], strides = [1, 1]} : vector<128x128xf32> to vector<8x128xf32>
    %c181_609 = arith.constant 181 : index
    %c0_610 = arith.constant 0 : index
    %413 = vector.load %arg9[%c181_609, %c0_610] : memref<200x128xf32, #tpu.memory_space<vmem>>, vector<8x128xf32>
    tpu.vector_store %arg9[%c181_609, %c0_610], %412 {strides = array<i32>} : memref<200x128xf32, #tpu.memory_space<vmem>>, vector<8x128xf32>,
    %c0_611 = arith.constant 0 : index
    %c0_612 = arith.constant 0 : index
    %414 = tpu.strided_load %arg9[%c0_611, %c0_612] {strides = array<i32: 2, 1>} : memref<200x128xf32, #tpu.memory_space<vmem>>, vector<4x128xf32>
    %c0_613 = arith.constant 0 : index
    %c0_614 = arith.constant 0 : index
    %415 = vector.load %arg12[%c0_613, %c0_614] : memref<128x1152xf32, #tpu.memory_space<vmem>>, vector<4x128xf32>
    tpu.vector_store %arg12[%c0_613, %c0_614], %414 {strides = array<i32>} : memref<128x1152xf32, #tpu.memory_space<vmem>>, vector<4x128xf32>,
    %c20_615 = arith.constant 20 : index
    %c0_616 = arith.constant 0 : index
    %416 = tpu.strided_load %arg9[%c20_615, %c0_616] {strides = array<i32: 2, 1>} : memref<200x128xf32, #tpu.memory_space<vmem>>, vector<4x128xf32>
    %c4 = arith.constant 4 : index
    %c0_617 = arith.constant 0 : index
    %417 = vector.load %arg12[%c4, %c0_617] : memref<128x1152xf32, #tpu.memory_space<vmem>>, vector<4x128xf32>
    tpu.vector_store %arg12[%c4, %c0_617], %416 {strides = array<i32>} : memref<128x1152xf32, #tpu.memory_space<vmem>>, vector<4x128xf32>,
    %c40_618 = arith.constant 40 : index
    %c0_619 = arith.constant 0 : index
    %418 = tpu.strided_load %arg9[%c40_618, %c0_619] {strides = array<i32: 2, 1>} : memref<200x128xf32, #tpu.memory_space<vmem>>, vector<4x128xf32>
    %c8_620 = arith.constant 8 : index
    %c0_621 = arith.constant 0 : index
    %419 = vector.load %arg12[%c8_620, %c0_621] : memref<128x1152xf32, #tpu.memory_space<vmem>>, vector<4x128xf32>
    tpu.vector_store %arg12[%c8_620, %c0_621], %418 {strides = array<i32>} : memref<128x1152xf32, #tpu.memory_space<vmem>>, vector<4x128xf32>,
    %c60 = arith.constant 60 : index
    %c0_622 = arith.constant 0 : index
    %420 = tpu.strided_load %arg9[%c60, %c0_622] {strides = array<i32: 2, 1>} : memref<200x128xf32, #tpu.memory_space<vmem>>, vector<4x128xf32>
    %c12 = arith.constant 12 : index
    %c0_623 = arith.constant 0 : index
    %421 = vector.load %arg12[%c12, %c0_623] : memref<128x1152xf32, #tpu.memory_space<vmem>>, vector<4x128xf32>
    tpu.vector_store %arg12[%c12, %c0_623], %420 {strides = array<i32>} : memref<128x1152xf32, #tpu.memory_space<vmem>>, vector<4x128xf32>,
    %c100 = arith.constant 100 : index
    %c0_624 = arith.constant 0 : index
    %422 = tpu.strided_load %arg9[%c100, %c0_624] {strides = array<i32: 2, 1>} : memref<200x128xf32, #tpu.memory_space<vmem>>, vector<4x128xf32>
    %c16_625 = arith.constant 16 : index
    %c0_626 = arith.constant 0 : index
    %423 = vector.load %arg12[%c16_625, %c0_626] : memref<128x1152xf32, #tpu.memory_space<vmem>>, vector<4x128xf32>
    tpu.vector_store %arg12[%c16_625, %c0_626], %422 {strides = array<i32>} : memref<128x1152xf32, #tpu.memory_space<vmem>>, vector<4x128xf32>,
    %c120_627 = arith.constant 120 : index
    %c0_628 = arith.constant 0 : index
    %424 = tpu.strided_load %arg9[%c120_627, %c0_628] {strides = array<i32: 2, 1>} : memref<200x128xf32, #tpu.memory_space<vmem>>, vector<4x128xf32>
    %c20_629 = arith.constant 20 : index
    %c0_630 = arith.constant 0 : index
    %425 = vector.load %arg12[%c20_629, %c0_630] : memref<128x1152xf32, #tpu.memory_space<vmem>>, vector<4x128xf32>
    tpu.vector_store %arg12[%c20_629, %c0_630], %424 {strides = array<i32>} : memref<128x1152xf32, #tpu.memory_space<vmem>>, vector<4x128xf32>,
    %c140 = arith.constant 140 : index
    %c0_631 = arith.constant 0 : index
    %426 = tpu.strided_load %arg9[%c140, %c0_631] {strides = array<i32: 2, 1>} : memref<200x128xf32, #tpu.memory_space<vmem>>, vector<4x128xf32>
    %c24_632 = arith.constant 24 : index
    %c0_633 = arith.constant 0 : index
    %427 = vector.load %arg12[%c24_632, %c0_633] : memref<128x1152xf32, #tpu.memory_space<vmem>>, vector<4x128xf32>
    tpu.vector_store %arg12[%c24_632, %c0_633], %426 {strides = array<i32>} : memref<128x1152xf32, #tpu.memory_space<vmem>>, vector<4x128xf32>,
    %c160_634 = arith.constant 160 : index
    %c0_635 = arith.constant 0 : index
    %428 = tpu.strided_load %arg9[%c160_634, %c0_635] {strides = array<i32: 2, 1>} : memref<200x128xf32, #tpu.memory_space<vmem>>, vector<4x128xf32>
    %c28 = arith.constant 28 : index
    %c0_636 = arith.constant 0 : index
    %429 = vector.load %arg12[%c28, %c0_636] : memref<128x1152xf32, #tpu.memory_space<vmem>>, vector<4x128xf32>
    tpu.vector_store %arg12[%c28, %c0_636], %428 {strides = array<i32>} : memref<128x1152xf32, #tpu.memory_space<vmem>>, vector<4x128xf32>,
    %c1_637 = arith.constant 1 : index
    %c0_638 = arith.constant 0 : index
    %430 = tpu.strided_load %arg9[%c1_637, %c0_638] {strides = array<i32: 2, 1>} : memref<200x128xf32, #tpu.memory_space<vmem>>, vector<4x128xf32>
    %c0_639 = arith.constant 0 : index
    %c128_640 = arith.constant 128 : index
    %431 = vector.load %arg12[%c0_639, %c128_640] : memref<128x1152xf32, #tpu.memory_space<vmem>>, vector<4x128xf32>
    tpu.vector_store %arg12[%c0_639, %c128_640], %430 {strides = array<i32>} : memref<128x1152xf32, #tpu.memory_space<vmem>>, vector<4x128xf32>,
    %c21_641 = arith.constant 21 : index
    %c0_642 = arith.constant 0 : index
    %432 = tpu.strided_load %arg9[%c21_641, %c0_642] {strides = array<i32: 2, 1>} : memref<200x128xf32, #tpu.memory_space<vmem>>, vector<4x128xf32>
    %c4_643 = arith.constant 4 : index
    %c128_644 = arith.constant 128 : index
    %433 = vector.load %arg12[%c4_643, %c128_644] : memref<128x1152xf32, #tpu.memory_space<vmem>>, vector<4x128xf32>
    tpu.vector_store %arg12[%c4_643, %c128_644], %432 {strides = array<i32>} : memref<128x1152xf32, #tpu.memory_space<vmem>>, vector<4x128xf32>,
    %c41_645 = arith.constant 41 : index
    %c0_646 = arith.constant 0 : index
    %434 = tpu.strided_load %arg9[%c41_645, %c0_646] {strides = array<i32: 2, 1>} : memref<200x128xf32, #tpu.memory_space<vmem>>, vector<4x128xf32>
    %c8_647 = arith.constant 8 : index
    %c128_648 = arith.constant 128 : index
    %435 = vector.load %arg12[%c8_647, %c128_648] : memref<128x1152xf32, #tpu.memory_space<vmem>>, vector<4x128xf32>
    tpu.vector_store %arg12[%c8_647, %c128_648], %434 {strides = array<i32>} : memref<128x1152xf32, #tpu.memory_space<vmem>>, vector<4x128xf32>,
    %c61_649 = arith.constant 61 : index
    %c0_650 = arith.constant 0 : index
    %436 = tpu.strided_load %arg9[%c61_649, %c0_650] {strides = array<i32: 2, 1>} : memref<200x128xf32, #tpu.memory_space<vmem>>, vector<4x128xf32>
    %c12_651 = arith.constant 12 : index
    %c128_652 = arith.constant 128 : index
    %437 = vector.load %arg12[%c12_651, %c128_652] : memref<128x1152xf32, #tpu.memory_space<vmem>>, vector<4x128xf32>
    tpu.vector_store %arg12[%c12_651, %c128_652], %436 {strides = array<i32>} : memref<128x1152xf32, #tpu.memory_space<vmem>>, vector<4x128xf32>,
    %c101 = arith.constant 101 : index
    %c0_653 = arith.constant 0 : index
    %438 = tpu.strided_load %arg9[%c101, %c0_653] {strides = array<i32: 2, 1>} : memref<200x128xf32, #tpu.memory_space<vmem>>, vector<4x128xf32>
    %c16_654 = arith.constant 16 : index
    %c128_655 = arith.constant 128 : index
    %439 = vector.load %arg12[%c16_654, %c128_655] : memref<128x1152xf32, #tpu.memory_space<vmem>>, vector<4x128xf32>
    tpu.vector_store %arg12[%c16_654, %c128_655], %438 {strides = array<i32>} : memref<128x1152xf32, #tpu.memory_space<vmem>>, vector<4x128xf32>,
    %c121_656 = arith.constant 121 : index
    %c0_657 = arith.constant 0 : index
    %440 = tpu.strided_load %arg9[%c121_656, %c0_657] {strides = array<i32: 2, 1>} : memref<200x128xf32, #tpu.memory_space<vmem>>, vector<4x128xf32>
    %c20_658 = arith.constant 20 : index
    %c128_659 = arith.constant 128 : index
    %441 = vector.load %arg12[%c20_658, %c128_659] : memref<128x1152xf32, #tpu.memory_space<vmem>>, vector<4x128xf32>
    tpu.vector_store %arg12[%c20_658, %c128_659], %440 {strides = array<i32>} : memref<128x1152xf32, #tpu.memory_space<vmem>>, vector<4x128xf32>,
    %c141_660 = arith.constant 141 : index
    %c0_661 = arith.constant 0 : index
    %442 = tpu.strided_load %arg9[%c141_660, %c0_661] {strides = array<i32: 2, 1>} : memref<200x128xf32, #tpu.memory_space<vmem>>, vector<4x128xf32>
    %c24_662 = arith.constant 24 : index
    %c128_663 = arith.constant 128 : index
    %443 = vector.load %arg12[%c24_662, %c128_663] : memref<128x1152xf32, #tpu.memory_space<vmem>>, vector<4x128xf32>
    tpu.vector_store %arg12[%c24_662, %c128_663], %442 {strides = array<i32>} : memref<128x1152xf32, #tpu.memory_space<vmem>>, vector<4x128xf32>,
    %c161_664 = arith.constant 161 : index
    %c0_665 = arith.constant 0 : index
    %444 = tpu.strided_load %arg9[%c161_664, %c0_665] {strides = array<i32: 2, 1>} : memref<200x128xf32, #tpu.memory_space<vmem>>, vector<4x128xf32>
    %c28_666 = arith.constant 28 : index
    %c128_667 = arith.constant 128 : index
    %445 = vector.load %arg12[%c28_666, %c128_667] : memref<128x1152xf32, #tpu.memory_space<vmem>>, vector<4x128xf32>
    tpu.vector_store %arg12[%c28_666, %c128_667], %444 {strides = array<i32>} : memref<128x1152xf32, #tpu.memory_space<vmem>>, vector<4x128xf32>,
    %c2_668 = arith.constant 2 : index
    %c0_669 = arith.constant 0 : index
    %446 = tpu.strided_load %arg9[%c2_668, %c0_669] {strides = array<i32: 2, 1>} : memref<200x128xf32, #tpu.memory_space<vmem>>, vector<4x128xf32>
    %c0_670 = arith.constant 0 : index
    %c256_671 = arith.constant 256 : index
    %447 = vector.load %arg12[%c0_670, %c256_671] : memref<128x1152xf32, #tpu.memory_space<vmem>>, vector<4x128xf32>
    tpu.vector_store %arg12[%c0_670, %c256_671], %446 {strides = array<i32>} : memref<128x1152xf32, #tpu.memory_space<vmem>>, vector<4x128xf32>,
    %c22 = arith.constant 22 : index
    %c0_672 = arith.constant 0 : index
    %448 = tpu.strided_load %arg9[%c22, %c0_672] {strides = array<i32: 2, 1>} : memref<200x128xf32, #tpu.memory_space<vmem>>, vector<4x128xf32>
    %c4_673 = arith.constant 4 : index
    %c256_674 = arith.constant 256 : index
    %449 = vector.load %arg12[%c4_673, %c256_674] : memref<128x1152xf32, #tpu.memory_space<vmem>>, vector<4x128xf32>
    tpu.vector_store %arg12[%c4_673, %c256_674], %448 {strides = array<i32>} : memref<128x1152xf32, #tpu.memory_space<vmem>>, vector<4x128xf32>,
    %c42 = arith.constant 42 : index
    %c0_675 = arith.constant 0 : index
    %450 = tpu.strided_load %arg9[%c42, %c0_675] {strides = array<i32: 2, 1>} : memref<200x128xf32, #tpu.memory_space<vmem>>, vector<4x128xf32>
    %c8_676 = arith.constant 8 : index
    %c256_677 = arith.constant 256 : index
    %451 = vector.load %arg12[%c8_676, %c256_677] : memref<128x1152xf32, #tpu.memory_space<vmem>>, vector<4x128xf32>
    tpu.vector_store %arg12[%c8_676, %c256_677], %450 {strides = array<i32>} : memref<128x1152xf32, #tpu.memory_space<vmem>>, vector<4x128xf32>,
    %c62 = arith.constant 62 : index
    %c0_678 = arith.constant 0 : index
    %452 = tpu.strided_load %arg9[%c62, %c0_678] {strides = array<i32: 2, 1>} : memref<200x128xf32, #tpu.memory_space<vmem>>, vector<4x128xf32>
    %c12_679 = arith.constant 12 : index
    %c256_680 = arith.constant 256 : index
    %453 = vector.load %arg12[%c12_679, %c256_680] : memref<128x1152xf32, #tpu.memory_space<vmem>>, vector<4x128xf32>
    tpu.vector_store %arg12[%c12_679, %c256_680], %452 {strides = array<i32>} : memref<128x1152xf32, #tpu.memory_space<vmem>>, vector<4x128xf32>,
    %c102 = arith.constant 102 : index
    %c0_681 = arith.constant 0 : index
    %454 = tpu.strided_load %arg9[%c102, %c0_681] {strides = array<i32: 2, 1>} : memref<200x128xf32, #tpu.memory_space<vmem>>, vector<4x128xf32>
    %c16_682 = arith.constant 16 : index
    %c256_683 = arith.constant 256 : index
    %455 = vector.load %arg12[%c16_682, %c256_683] : memref<128x1152xf32, #tpu.memory_space<vmem>>, vector<4x128xf32>
    tpu.vector_store %arg12[%c16_682, %c256_683], %454 {strides = array<i32>} : memref<128x1152xf32, #tpu.memory_space<vmem>>, vector<4x128xf32>,
    %c122 = arith.constant 122 : index
    %c0_684 = arith.constant 0 : index
    %456 = tpu.strided_load %arg9[%c122, %c0_684] {strides = array<i32: 2, 1>} : memref<200x128xf32, #tpu.memory_space<vmem>>, vector<4x128xf32>
    %c20_685 = arith.constant 20 : index
    %c256_686 = arith.constant 256 : index
    %457 = vector.load %arg12[%c20_685, %c256_686] : memref<128x1152xf32, #tpu.memory_space<vmem>>, vector<4x128xf32>
    tpu.vector_store %arg12[%c20_685, %c256_686], %456 {strides = array<i32>} : memref<128x1152xf32, #tpu.memory_space<vmem>>, vector<4x128xf32>,
    %c142 = arith.constant 142 : index
    %c0_687 = arith.constant 0 : index
    %458 = tpu.strided_load %arg9[%c142, %c0_687] {strides = array<i32: 2, 1>} : memref<200x128xf32, #tpu.memory_space<vmem>>, vector<4x128xf32>
    %c24_688 = arith.constant 24 : index
    %c256_689 = arith.constant 256 : index
    %459 = vector.load %arg12[%c24_688, %c256_689] : memref<128x1152xf32, #tpu.memory_space<vmem>>, vector<4x128xf32>
    tpu.vector_store %arg12[%c24_688, %c256_689], %458 {strides = array<i32>} : memref<128x1152xf32, #tpu.memory_space<vmem>>, vector<4x128xf32>,
    %c162_690 = arith.constant 162 : index
    %c0_691 = arith.constant 0 : index
    %460 = tpu.strided_load %arg9[%c162_690, %c0_691] {strides = array<i32: 2, 1>} : memref<200x128xf32, #tpu.memory_space<vmem>>, vector<4x128xf32>
    %c28_692 = arith.constant 28 : index
    %c256_693 = arith.constant 256 : index
    %461 = vector.load %arg12[%c28_692, %c256_693] : memref<128x1152xf32, #tpu.memory_space<vmem>>, vector<4x128xf32>
    tpu.vector_store %arg12[%c28_692, %c256_693], %460 {strides = array<i32>} : memref<128x1152xf32, #tpu.memory_space<vmem>>, vector<4x128xf32>,
    %c10 = arith.constant 10 : index
    %c0_694 = arith.constant 0 : index
    %462 = tpu.strided_load %arg9[%c10, %c0_694] {strides = array<i32: 2, 1>} : memref<200x128xf32, #tpu.memory_space<vmem>>, vector<4x128xf32>
    %c0_695 = arith.constant 0 : index
    %c384_696 = arith.constant 384 : index
    %463 = vector.load %arg12[%c0_695, %c384_696] : memref<128x1152xf32, #tpu.memory_space<vmem>>, vector<4x128xf32>
    tpu.vector_store %arg12[%c0_695, %c384_696], %462 {strides = array<i32>} : memref<128x1152xf32, #tpu.memory_space<vmem>>, vector<4x128xf32>,
    %c30 = arith.constant 30 : index
    %c0_697 = arith.constant 0 : index
    %464 = tpu.strided_load %arg9[%c30, %c0_697] {strides = array<i32: 2, 1>} : memref<200x128xf32, #tpu.memory_space<vmem>>, vector<4x128xf32>
    %c4_698 = arith.constant 4 : index
    %c384_699 = arith.constant 384 : index
    %465 = vector.load %arg12[%c4_698, %c384_699] : memref<128x1152xf32, #tpu.memory_space<vmem>>, vector<4x128xf32>
    tpu.vector_store %arg12[%c4_698, %c384_699], %464 {strides = array<i32>} : memref<128x1152xf32, #tpu.memory_space<vmem>>, vector<4x128xf32>,
    %c50 = arith.constant 50 : index
    %c0_700 = arith.constant 0 : index
    %466 = tpu.strided_load %arg9[%c50, %c0_700] {strides = array<i32: 2, 1>} : memref<200x128xf32, #tpu.memory_space<vmem>>, vector<4x128xf32>
    %c8_701 = arith.constant 8 : index
    %c384_702 = arith.constant 384 : index
    %467 = vector.load %arg12[%c8_701, %c384_702] : memref<128x1152xf32, #tpu.memory_space<vmem>>, vector<4x128xf32>
    tpu.vector_store %arg12[%c8_701, %c384_702], %466 {strides = array<i32>} : memref<128x1152xf32, #tpu.memory_space<vmem>>, vector<4x128xf32>,
    %c70 = arith.constant 70 : index
    %c0_703 = arith.constant 0 : index
    %468 = tpu.strided_load %arg9[%c70, %c0_703] {strides = array<i32: 2, 1>} : memref<200x128xf32, #tpu.memory_space<vmem>>, vector<4x128xf32>
    %c12_704 = arith.constant 12 : index
    %c384_705 = arith.constant 384 : index
    %469 = vector.load %arg12[%c12_704, %c384_705] : memref<128x1152xf32, #tpu.memory_space<vmem>>, vector<4x128xf32>
    tpu.vector_store %arg12[%c12_704, %c384_705], %468 {strides = array<i32>} : memref<128x1152xf32, #tpu.memory_space<vmem>>, vector<4x128xf32>,
    %c110_706 = arith.constant 110 : index
    %c0_707 = arith.constant 0 : index
    %470 = tpu.strided_load %arg9[%c110_706, %c0_707] {strides = array<i32: 2, 1>} : memref<200x128xf32, #tpu.memory_space<vmem>>, vector<4x128xf32>
    %c16_708 = arith.constant 16 : index
    %c384_709 = arith.constant 384 : index
    %471 = vector.load %arg12[%c16_708, %c384_709] : memref<128x1152xf32, #tpu.memory_space<vmem>>, vector<4x128xf32>
    tpu.vector_store %arg12[%c16_708, %c384_709], %470 {strides = array<i32>} : memref<128x1152xf32, #tpu.memory_space<vmem>>, vector<4x128xf32>,
    %c130 = arith.constant 130 : index
    %c0_710 = arith.constant 0 : index
    %472 = tpu.strided_load %arg9[%c130, %c0_710] {strides = array<i32: 2, 1>} : memref<200x128xf32, #tpu.memory_space<vmem>>, vector<4x128xf32>
    %c20_711 = arith.constant 20 : index
    %c384_712 = arith.constant 384 : index
    %473 = vector.load %arg12[%c20_711, %c384_712] : memref<128x1152xf32, #tpu.memory_space<vmem>>, vector<4x128xf32>
    tpu.vector_store %arg12[%c20_711, %c384_712], %472 {strides = array<i32>} : memref<128x1152xf32, #tpu.memory_space<vmem>>, vector<4x128xf32>,
    %c150 = arith.constant 150 : index
    %c0_713 = arith.constant 0 : index
    %474 = tpu.strided_load %arg9[%c150, %c0_713] {strides = array<i32: 2, 1>} : memref<200x128xf32, #tpu.memory_space<vmem>>, vector<4x128xf32>
    %c24_714 = arith.constant 24 : index
    %c384_715 = arith.constant 384 : index
    %475 = vector.load %arg12[%c24_714, %c384_715] : memref<128x1152xf32, #tpu.memory_space<vmem>>, vector<4x128xf32>
    tpu.vector_store %arg12[%c24_714, %c384_715], %474 {strides = array<i32>} : memref<128x1152xf32, #tpu.memory_space<vmem>>, vector<4x128xf32>,
    %c170 = arith.constant 170 : index
    %c0_716 = arith.constant 0 : index
    %476 = tpu.strided_load %arg9[%c170, %c0_716] {strides = array<i32: 2, 1>} : memref<200x128xf32, #tpu.memory_space<vmem>>, vector<4x128xf32>
    %c28_717 = arith.constant 28 : index
    %c384_718 = arith.constant 384 : index
    %477 = vector.load %arg12[%c28_717, %c384_718] : memref<128x1152xf32, #tpu.memory_space<vmem>>, vector<4x128xf32>
    tpu.vector_store %arg12[%c28_717, %c384_718], %476 {strides = array<i32>} : memref<128x1152xf32, #tpu.memory_space<vmem>>, vector<4x128xf32>,
    %c11_719 = arith.constant 11 : index
    %c0_720 = arith.constant 0 : index
    %478 = tpu.strided_load %arg9[%c11_719, %c0_720] {strides = array<i32: 2, 1>} : memref<200x128xf32, #tpu.memory_space<vmem>>, vector<4x128xf32>
    %c0_721 = arith.constant 0 : index
    %c512_722 = arith.constant 512 : index
    %479 = vector.load %arg12[%c0_721, %c512_722] : memref<128x1152xf32, #tpu.memory_space<vmem>>, vector<4x128xf32>
    tpu.vector_store %arg12[%c0_721, %c512_722], %478 {strides = array<i32>} : memref<128x1152xf32, #tpu.memory_space<vmem>>, vector<4x128xf32>,
    %c31_723 = arith.constant 31 : index
    %c0_724 = arith.constant 0 : index
    %480 = tpu.strided_load %arg9[%c31_723, %c0_724] {strides = array<i32: 2, 1>} : memref<200x128xf32, #tpu.memory_space<vmem>>, vector<4x128xf32>
    %c4_725 = arith.constant 4 : index
    %c512_726 = arith.constant 512 : index
    %481 = vector.load %arg12[%c4_725, %c512_726] : memref<128x1152xf32, #tpu.memory_space<vmem>>, vector<4x128xf32>
    tpu.vector_store %arg12[%c4_725, %c512_726], %480 {strides = array<i32>} : memref<128x1152xf32, #tpu.memory_space<vmem>>, vector<4x128xf32>,
    %c51_727 = arith.constant 51 : index
    %c0_728 = arith.constant 0 : index
    %482 = tpu.strided_load %arg9[%c51_727, %c0_728] {strides = array<i32: 2, 1>} : memref<200x128xf32, #tpu.memory_space<vmem>>, vector<4x128xf32>
    %c8_729 = arith.constant 8 : index
    %c512_730 = arith.constant 512 : index
    %483 = vector.load %arg12[%c8_729, %c512_730] : memref<128x1152xf32, #tpu.memory_space<vmem>>, vector<4x128xf32>
    tpu.vector_store %arg12[%c8_729, %c512_730], %482 {strides = array<i32>} : memref<128x1152xf32, #tpu.memory_space<vmem>>, vector<4x128xf32>,
    %c71_731 = arith.constant 71 : index
    %c0_732 = arith.constant 0 : index
    %484 = tpu.strided_load %arg9[%c71_731, %c0_732] {strides = array<i32: 2, 1>} : memref<200x128xf32, #tpu.memory_space<vmem>>, vector<4x128xf32>
    %c12_733 = arith.constant 12 : index
    %c512_734 = arith.constant 512 : index
    %485 = vector.load %arg12[%c12_733, %c512_734] : memref<128x1152xf32, #tpu.memory_space<vmem>>, vector<4x128xf32>
    tpu.vector_store %arg12[%c12_733, %c512_734], %484 {strides = array<i32>} : memref<128x1152xf32, #tpu.memory_space<vmem>>, vector<4x128xf32>,
    %c111_735 = arith.constant 111 : index
    %c0_736 = arith.constant 0 : index
    %486 = tpu.strided_load %arg9[%c111_735, %c0_736] {strides = array<i32: 2, 1>} : memref<200x128xf32, #tpu.memory_space<vmem>>, vector<4x128xf32>
    %c16_737 = arith.constant 16 : index
    %c512_738 = arith.constant 512 : index
    %487 = vector.load %arg12[%c16_737, %c512_738] : memref<128x1152xf32, #tpu.memory_space<vmem>>, vector<4x128xf32>
    tpu.vector_store %arg12[%c16_737, %c512_738], %486 {strides = array<i32>} : memref<128x1152xf32, #tpu.memory_space<vmem>>, vector<4x128xf32>,
    %c131_739 = arith.constant 131 : index
    %c0_740 = arith.constant 0 : index
    %488 = tpu.strided_load %arg9[%c131_739, %c0_740] {strides = array<i32: 2, 1>} : memref<200x128xf32, #tpu.memory_space<vmem>>, vector<4x128xf32>
    %c20_741 = arith.constant 20 : index
    %c512_742 = arith.constant 512 : index
    %489 = vector.load %arg12[%c20_741, %c512_742] : memref<128x1152xf32, #tpu.memory_space<vmem>>, vector<4x128xf32>
    tpu.vector_store %arg12[%c20_741, %c512_742], %488 {strides = array<i32>} : memref<128x1152xf32, #tpu.memory_space<vmem>>, vector<4x128xf32>,
    %c151_743 = arith.constant 151 : index
    %c0_744 = arith.constant 0 : index
    %490 = tpu.strided_load %arg9[%c151_743, %c0_744] {strides = array<i32: 2, 1>} : memref<200x128xf32, #tpu.memory_space<vmem>>, vector<4x128xf32>
    %c24_745 = arith.constant 24 : index
    %c512_746 = arith.constant 512 : index
    %491 = vector.load %arg12[%c24_745, %c512_746] : memref<128x1152xf32, #tpu.memory_space<vmem>>, vector<4x128xf32>
    tpu.vector_store %arg12[%c24_745, %c512_746], %490 {strides = array<i32>} : memref<128x1152xf32, #tpu.memory_space<vmem>>, vector<4x128xf32>,
    %c171_747 = arith.constant 171 : index
    %c0_748 = arith.constant 0 : index
    %492 = tpu.strided_load %arg9[%c171_747, %c0_748] {strides = array<i32: 2, 1>} : memref<200x128xf32, #tpu.memory_space<vmem>>, vector<4x128xf32>
    %c28_749 = arith.constant 28 : index
    %c512_750 = arith.constant 512 : index
    %493 = vector.load %arg12[%c28_749, %c512_750] : memref<128x1152xf32, #tpu.memory_space<vmem>>, vector<4x128xf32>
    tpu.vector_store %arg12[%c28_749, %c512_750], %492 {strides = array<i32>} : memref<128x1152xf32, #tpu.memory_space<vmem>>, vector<4x128xf32>,
    %c12_751 = arith.constant 12 : index
    %c0_752 = arith.constant 0 : index
    %494 = tpu.strided_load %arg9[%c12_751, %c0_752] {strides = array<i32: 2, 1>} : memref<200x128xf32, #tpu.memory_space<vmem>>, vector<4x128xf32>
    %c0_753 = arith.constant 0 : index
    %c640_754 = arith.constant 640 : index
    %495 = vector.load %arg12[%c0_753, %c640_754] : memref<128x1152xf32, #tpu.memory_space<vmem>>, vector<4x128xf32>
    tpu.vector_store %arg12[%c0_753, %c640_754], %494 {strides = array<i32>} : memref<128x1152xf32, #tpu.memory_space<vmem>>, vector<4x128xf32>,
    %c32_755 = arith.constant 32 : index
    %c0_756 = arith.constant 0 : index
    %496 = tpu.strided_load %arg9[%c32_755, %c0_756] {strides = array<i32: 2, 1>} : memref<200x128xf32, #tpu.memory_space<vmem>>, vector<4x128xf32>
    %c4_757 = arith.constant 4 : index
    %c640_758 = arith.constant 640 : index
    %497 = vector.load %arg12[%c4_757, %c640_758] : memref<128x1152xf32, #tpu.memory_space<vmem>>, vector<4x128xf32>
    tpu.vector_store %arg12[%c4_757, %c640_758], %496 {strides = array<i32>} : memref<128x1152xf32, #tpu.memory_space<vmem>>, vector<4x128xf32>,
    %c52 = arith.constant 52 : index
    %c0_759 = arith.constant 0 : index
    %498 = tpu.strided_load %arg9[%c52, %c0_759] {strides = array<i32: 2, 1>} : memref<200x128xf32, #tpu.memory_space<vmem>>, vector<4x128xf32>
    %c8_760 = arith.constant 8 : index
    %c640_761 = arith.constant 640 : index
    %499 = vector.load %arg12[%c8_760, %c640_761] : memref<128x1152xf32, #tpu.memory_space<vmem>>, vector<4x128xf32>
    tpu.vector_store %arg12[%c8_760, %c640_761], %498 {strides = array<i32>} : memref<128x1152xf32, #tpu.memory_space<vmem>>, vector<4x128xf32>,
    %c72_762 = arith.constant 72 : index
    %c0_763 = arith.constant 0 : index
    %500 = tpu.strided_load %arg9[%c72_762, %c0_763] {strides = array<i32: 2, 1>} : memref<200x128xf32, #tpu.memory_space<vmem>>, vector<4x128xf32>
    %c12_764 = arith.constant 12 : index
    %c640_765 = arith.constant 640 : index
    %501 = vector.load %arg12[%c12_764, %c640_765] : memref<128x1152xf32, #tpu.memory_space<vmem>>, vector<4x128xf32>
    tpu.vector_store %arg12[%c12_764, %c640_765], %500 {strides = array<i32>} : memref<128x1152xf32, #tpu.memory_space<vmem>>, vector<4x128xf32>,
    %c112_766 = arith.constant 112 : index
    %c0_767 = arith.constant 0 : index
    %502 = tpu.strided_load %arg9[%c112_766, %c0_767] {strides = array<i32: 2, 1>} : memref<200x128xf32, #tpu.memory_space<vmem>>, vector<4x128xf32>
    %c16_768 = arith.constant 16 : index
    %c640_769 = arith.constant 640 : index
    %503 = vector.load %arg12[%c16_768, %c640_769] : memref<128x1152xf32, #tpu.memory_space<vmem>>, vector<4x128xf32>
    tpu.vector_store %arg12[%c16_768, %c640_769], %502 {strides = array<i32>} : memref<128x1152xf32, #tpu.memory_space<vmem>>, vector<4x128xf32>,
    %c132 = arith.constant 132 : index
    %c0_770 = arith.constant 0 : index
    %504 = tpu.strided_load %arg9[%c132, %c0_770] {strides = array<i32: 2, 1>} : memref<200x128xf32, #tpu.memory_space<vmem>>, vector<4x128xf32>
    %c20_771 = arith.constant 20 : index
    %c640_772 = arith.constant 640 : index
    %505 = vector.load %arg12[%c20_771, %c640_772] : memref<128x1152xf32, #tpu.memory_space<vmem>>, vector<4x128xf32>
    tpu.vector_store %arg12[%c20_771, %c640_772], %504 {strides = array<i32>} : memref<128x1152xf32, #tpu.memory_space<vmem>>, vector<4x128xf32>,
    %c152 = arith.constant 152 : index
    %c0_773 = arith.constant 0 : index
    %506 = tpu.strided_load %arg9[%c152, %c0_773] {strides = array<i32: 2, 1>} : memref<200x128xf32, #tpu.memory_space<vmem>>, vector<4x128xf32>
    %c24_774 = arith.constant 24 : index
    %c640_775 = arith.constant 640 : index
    %507 = vector.load %arg12[%c24_774, %c640_775] : memref<128x1152xf32, #tpu.memory_space<vmem>>, vector<4x128xf32>
    tpu.vector_store %arg12[%c24_774, %c640_775], %506 {strides = array<i32>} : memref<128x1152xf32, #tpu.memory_space<vmem>>, vector<4x128xf32>,
    %c172 = arith.constant 172 : index
    %c0_776 = arith.constant 0 : index
    %508 = tpu.strided_load %arg9[%c172, %c0_776] {strides = array<i32: 2, 1>} : memref<200x128xf32, #tpu.memory_space<vmem>>, vector<4x128xf32>
    %c28_777 = arith.constant 28 : index
    %c640_778 = arith.constant 640 : index
    %509 = vector.load %arg12[%c28_777, %c640_778] : memref<128x1152xf32, #tpu.memory_space<vmem>>, vector<4x128xf32>
    tpu.vector_store %arg12[%c28_777, %c640_778], %508 {strides = array<i32>} : memref<128x1152xf32, #tpu.memory_space<vmem>>, vector<4x128xf32>,
    %c20_779 = arith.constant 20 : index
    %c0_780 = arith.constant 0 : index
    %510 = tpu.strided_load %arg9[%c20_779, %c0_780] {strides = array<i32: 2, 1>} : memref<200x128xf32, #tpu.memory_space<vmem>>, vector<4x128xf32>
    %c0_781 = arith.constant 0 : index
    %c768_782 = arith.constant 768 : index
    %511 = vector.load %arg12[%c0_781, %c768_782] : memref<128x1152xf32, #tpu.memory_space<vmem>>, vector<4x128xf32>
    tpu.vector_store %arg12[%c0_781, %c768_782], %510 {strides = array<i32>} : memref<128x1152xf32, #tpu.memory_space<vmem>>, vector<4x128xf32>,
    %c40_783 = arith.constant 40 : index
    %c0_784 = arith.constant 0 : index
    %512 = tpu.strided_load %arg9[%c40_783, %c0_784] {strides = array<i32: 2, 1>} : memref<200x128xf32, #tpu.memory_space<vmem>>, vector<4x128xf32>
    %c4_785 = arith.constant 4 : index
    %c768_786 = arith.constant 768 : index
    %513 = vector.load %arg12[%c4_785, %c768_786] : memref<128x1152xf32, #tpu.memory_space<vmem>>, vector<4x128xf32>
    tpu.vector_store %arg12[%c4_785, %c768_786], %512 {strides = array<i32>} : memref<128x1152xf32, #tpu.memory_space<vmem>>, vector<4x128xf32>,
    %c60_787 = arith.constant 60 : index
    %c0_788 = arith.constant 0 : index
    %514 = tpu.strided_load %arg9[%c60_787, %c0_788] {strides = array<i32: 2, 1>} : memref<200x128xf32, #tpu.memory_space<vmem>>, vector<4x128xf32>
    %c8_789 = arith.constant 8 : index
    %c768_790 = arith.constant 768 : index
    %515 = vector.load %arg12[%c8_789, %c768_790] : memref<128x1152xf32, #tpu.memory_space<vmem>>, vector<4x128xf32>
    tpu.vector_store %arg12[%c8_789, %c768_790], %514 {strides = array<i32>} : memref<128x1152xf32, #tpu.memory_space<vmem>>, vector<4x128xf32>,
    %c80_791 = arith.constant 80 : index
    %c0_792 = arith.constant 0 : index
    %516 = tpu.strided_load %arg9[%c80_791, %c0_792] {strides = array<i32: 2, 1>} : memref<200x128xf32, #tpu.memory_space<vmem>>, vector<4x128xf32>
    %c12_793 = arith.constant 12 : index
    %c768_794 = arith.constant 768 : index
    %517 = vector.load %arg12[%c12_793, %c768_794] : memref<128x1152xf32, #tpu.memory_space<vmem>>, vector<4x128xf32>
    tpu.vector_store %arg12[%c12_793, %c768_794], %516 {strides = array<i32>} : memref<128x1152xf32, #tpu.memory_space<vmem>>, vector<4x128xf32>,
    %c120_795 = arith.constant 120 : index
    %c0_796 = arith.constant 0 : index
    %518 = tpu.strided_load %arg9[%c120_795, %c0_796] {strides = array<i32: 2, 1>} : memref<200x128xf32, #tpu.memory_space<vmem>>, vector<4x128xf32>
    %c16_797 = arith.constant 16 : index
    %c768_798 = arith.constant 768 : index
    %519 = vector.load %arg12[%c16_797, %c768_798] : memref<128x1152xf32, #tpu.memory_space<vmem>>, vector<4x128xf32>
    tpu.vector_store %arg12[%c16_797, %c768_798], %518 {strides = array<i32>} : memref<128x1152xf32, #tpu.memory_space<vmem>>, vector<4x128xf32>,
    %c140_799 = arith.constant 140 : index
    %c0_800 = arith.constant 0 : index
    %520 = tpu.strided_load %arg9[%c140_799, %c0_800] {strides = array<i32: 2, 1>} : memref<200x128xf32, #tpu.memory_space<vmem>>, vector<4x128xf32>
    %c20_801 = arith.constant 20 : index
    %c768_802 = arith.constant 768 : index
    %521 = vector.load %arg12[%c20_801, %c768_802] : memref<128x1152xf32, #tpu.memory_space<vmem>>, vector<4x128xf32>
    tpu.vector_store %arg12[%c20_801, %c768_802], %520 {strides = array<i32>} : memref<128x1152xf32, #tpu.memory_space<vmem>>, vector<4x128xf32>,
    %c160_803 = arith.constant 160 : index
    %c0_804 = arith.constant 0 : index
    %522 = tpu.strided_load %arg9[%c160_803, %c0_804] {strides = array<i32: 2, 1>} : memref<200x128xf32, #tpu.memory_space<vmem>>, vector<4x128xf32>
    %c24_805 = arith.constant 24 : index
    %c768_806 = arith.constant 768 : index
    %523 = vector.load %arg12[%c24_805, %c768_806] : memref<128x1152xf32, #tpu.memory_space<vmem>>, vector<4x128xf32>
    tpu.vector_store %arg12[%c24_805, %c768_806], %522 {strides = array<i32>} : memref<128x1152xf32, #tpu.memory_space<vmem>>, vector<4x128xf32>,
    %c180_807 = arith.constant 180 : index
    %c0_808 = arith.constant 0 : index
    %524 = tpu.strided_load %arg9[%c180_807, %c0_808] {strides = array<i32: 2, 1>} : memref<200x128xf32, #tpu.memory_space<vmem>>, vector<4x128xf32>
    %c28_809 = arith.constant 28 : index
    %c768_810 = arith.constant 768 : index
    %525 = vector.load %arg12[%c28_809, %c768_810] : memref<128x1152xf32, #tpu.memory_space<vmem>>, vector<4x128xf32>
    tpu.vector_store %arg12[%c28_809, %c768_810], %524 {strides = array<i32>} : memref<128x1152xf32, #tpu.memory_space<vmem>>, vector<4x128xf32>,
    %c21_811 = arith.constant 21 : index
    %c0_812 = arith.constant 0 : index
    %526 = tpu.strided_load %arg9[%c21_811, %c0_812] {strides = array<i32: 2, 1>} : memref<200x128xf32, #tpu.memory_space<vmem>>, vector<4x128xf32>
    %c0_813 = arith.constant 0 : index
    %c896_814 = arith.constant 896 : index
    %527 = vector.load %arg12[%c0_813, %c896_814] : memref<128x1152xf32, #tpu.memory_space<vmem>>, vector<4x128xf32>
    tpu.vector_store %arg12[%c0_813, %c896_814], %526 {strides = array<i32>} : memref<128x1152xf32, #tpu.memory_space<vmem>>, vector<4x128xf32>,
    %c41_815 = arith.constant 41 : index
    %c0_816 = arith.constant 0 : index
    %528 = tpu.strided_load %arg9[%c41_815, %c0_816] {strides = array<i32: 2, 1>} : memref<200x128xf32, #tpu.memory_space<vmem>>, vector<4x128xf32>
    %c4_817 = arith.constant 4 : index
    %c896_818 = arith.constant 896 : index
    %529 = vector.load %arg12[%c4_817, %c896_818] : memref<128x1152xf32, #tpu.memory_space<vmem>>, vector<4x128xf32>
    tpu.vector_store %arg12[%c4_817, %c896_818], %528 {strides = array<i32>} : memref<128x1152xf32, #tpu.memory_space<vmem>>, vector<4x128xf32>,
    %c61_819 = arith.constant 61 : index
    %c0_820 = arith.constant 0 : index
    %530 = tpu.strided_load %arg9[%c61_819, %c0_820] {strides = array<i32: 2, 1>} : memref<200x128xf32, #tpu.memory_space<vmem>>, vector<4x128xf32>
    %c8_821 = arith.constant 8 : index
    %c896_822 = arith.constant 896 : index
    %531 = vector.load %arg12[%c8_821, %c896_822] : memref<128x1152xf32, #tpu.memory_space<vmem>>, vector<4x128xf32>
    tpu.vector_store %arg12[%c8_821, %c896_822], %530 {strides = array<i32>} : memref<128x1152xf32, #tpu.memory_space<vmem>>, vector<4x128xf32>,
    %c81_823 = arith.constant 81 : index
    %c0_824 = arith.constant 0 : index
    %532 = tpu.strided_load %arg9[%c81_823, %c0_824] {strides = array<i32: 2, 1>} : memref<200x128xf32, #tpu.memory_space<vmem>>, vector<4x128xf32>
    %c12_825 = arith.constant 12 : index
    %c896_826 = arith.constant 896 : index
    %533 = vector.load %arg12[%c12_825, %c896_826] : memref<128x1152xf32, #tpu.memory_space<vmem>>, vector<4x128xf32>
    tpu.vector_store %arg12[%c12_825, %c896_826], %532 {strides = array<i32>} : memref<128x1152xf32, #tpu.memory_space<vmem>>, vector<4x128xf32>,
    %c121_827 = arith.constant 121 : index
    %c0_828 = arith.constant 0 : index
    %534 = tpu.strided_load %arg9[%c121_827, %c0_828] {strides = array<i32: 2, 1>} : memref<200x128xf32, #tpu.memory_space<vmem>>, vector<4x128xf32>
    %c16_829 = arith.constant 16 : index
    %c896_830 = arith.constant 896 : index
    %535 = vector.load %arg12[%c16_829, %c896_830] : memref<128x1152xf32, #tpu.memory_space<vmem>>, vector<4x128xf32>
    tpu.vector_store %arg12[%c16_829, %c896_830], %534 {strides = array<i32>} : memref<128x1152xf32, #tpu.memory_space<vmem>>, vector<4x128xf32>,
    %c141_831 = arith.constant 141 : index
    %c0_832 = arith.constant 0 : index
    %536 = tpu.strided_load %arg9[%c141_831, %c0_832] {strides = array<i32: 2, 1>} : memref<200x128xf32, #tpu.memory_space<vmem>>, vector<4x128xf32>
    %c20_833 = arith.constant 20 : index
    %c896_834 = arith.constant 896 : index
    %537 = vector.load %arg12[%c20_833, %c896_834] : memref<128x1152xf32, #tpu.memory_space<vmem>>, vector<4x128xf32>
    tpu.vector_store %arg12[%c20_833, %c896_834], %536 {strides = array<i32>} : memref<128x1152xf32, #tpu.memory_space<vmem>>, vector<4x128xf32>,
    %c161_835 = arith.constant 161 : index
    %c0_836 = arith.constant 0 : index
    %538 = tpu.strided_load %arg9[%c161_835, %c0_836] {strides = array<i32: 2, 1>} : memref<200x128xf32, #tpu.memory_space<vmem>>, vector<4x128xf32>
    %c24_837 = arith.constant 24 : index
    %c896_838 = arith.constant 896 : index
    %539 = vector.load %arg12[%c24_837, %c896_838] : memref<128x1152xf32, #tpu.memory_space<vmem>>, vector<4x128xf32>
    tpu.vector_store %arg12[%c24_837, %c896_838], %538 {strides = array<i32>} : memref<128x1152xf32, #tpu.memory_space<vmem>>, vector<4x128xf32>,
    %c181_839 = arith.constant 181 : index
    %c0_840 = arith.constant 0 : index
    %540 = tpu.strided_load %arg9[%c181_839, %c0_840] {strides = array<i32: 2, 1>} : memref<200x128xf32, #tpu.memory_space<vmem>>, vector<4x128xf32>
    %c28_841 = arith.constant 28 : index
    %c896_842 = arith.constant 896 : index
    %541 = vector.load %arg12[%c28_841, %c896_842] : memref<128x1152xf32, #tpu.memory_space<vmem>>, vector<4x128xf32>
    tpu.vector_store %arg12[%c28_841, %c896_842], %540 {strides = array<i32>} : memref<128x1152xf32, #tpu.memory_space<vmem>>, vector<4x128xf32>,
    %c22_843 = arith.constant 22 : index
    %c0_844 = arith.constant 0 : index
    %542 = tpu.strided_load %arg9[%c22_843, %c0_844] {strides = array<i32: 2, 1>} : memref<200x128xf32, #tpu.memory_space<vmem>>, vector<4x128xf32>
    %c0_845 = arith.constant 0 : index
    %c1024_846 = arith.constant 1024 : index
    %543 = vector.load %arg12[%c0_845, %c1024_846] : memref<128x1152xf32, #tpu.memory_space<vmem>>, vector<4x128xf32>
    tpu.vector_store %arg12[%c0_845, %c1024_846], %542 {strides = array<i32>} : memref<128x1152xf32, #tpu.memory_space<vmem>>, vector<4x128xf32>,
    %c42_847 = arith.constant 42 : index
    %c0_848 = arith.constant 0 : index
    %544 = tpu.strided_load %arg9[%c42_847, %c0_848] {strides = array<i32: 2, 1>} : memref<200x128xf32, #tpu.memory_space<vmem>>, vector<4x128xf32>
    %c4_849 = arith.constant 4 : index
    %c1024_850 = arith.constant 1024 : index
    %545 = vector.load %arg12[%c4_849, %c1024_850] : memref<128x1152xf32, #tpu.memory_space<vmem>>, vector<4x128xf32>
    tpu.vector_store %arg12[%c4_849, %c1024_850], %544 {strides = array<i32>} : memref<128x1152xf32, #tpu.memory_space<vmem>>, vector<4x128xf32>,
    %c62_851 = arith.constant 62 : index
    %c0_852 = arith.constant 0 : index
    %546 = tpu.strided_load %arg9[%c62_851, %c0_852] {strides = array<i32: 2, 1>} : memref<200x128xf32, #tpu.memory_space<vmem>>, vector<4x128xf32>
    %c8_853 = arith.constant 8 : index
    %c1024_854 = arith.constant 1024 : index
    %547 = vector.load %arg12[%c8_853, %c1024_854] : memref<128x1152xf32, #tpu.memory_space<vmem>>, vector<4x128xf32>
    tpu.vector_store %arg12[%c8_853, %c1024_854], %546 {strides = array<i32>} : memref<128x1152xf32, #tpu.memory_space<vmem>>, vector<4x128xf32>,
    %c82 = arith.constant 82 : index
    %c0_855 = arith.constant 0 : index
    %548 = tpu.strided_load %arg9[%c82, %c0_855] {strides = array<i32: 2, 1>} : memref<200x128xf32, #tpu.memory_space<vmem>>, vector<4x128xf32>
    %c12_856 = arith.constant 12 : index
    %c1024_857 = arith.constant 1024 : index
    %549 = vector.load %arg12[%c12_856, %c1024_857] : memref<128x1152xf32, #tpu.memory_space<vmem>>, vector<4x128xf32>
    tpu.vector_store %arg12[%c12_856, %c1024_857], %548 {strides = array<i32>} : memref<128x1152xf32, #tpu.memory_space<vmem>>, vector<4x128xf32>,
    %c122_858 = arith.constant 122 : index
    %c0_859 = arith.constant 0 : index
    %550 = tpu.strided_load %arg9[%c122_858, %c0_859] {strides = array<i32: 2, 1>} : memref<200x128xf32, #tpu.memory_space<vmem>>, vector<4x128xf32>
    %c16_860 = arith.constant 16 : index
    %c1024_861 = arith.constant 1024 : index
    %551 = vector.load %arg12[%c16_860, %c1024_861] : memref<128x1152xf32, #tpu.memory_space<vmem>>, vector<4x128xf32>
    tpu.vector_store %arg12[%c16_860, %c1024_861], %550 {strides = array<i32>} : memref<128x1152xf32, #tpu.memory_space<vmem>>, vector<4x128xf32>,
    %c142_862 = arith.constant 142 : index
    %c0_863 = arith.constant 0 : index
    %552 = tpu.strided_load %arg9[%c142_862, %c0_863] {strides = array<i32: 2, 1>} : memref<200x128xf32, #tpu.memory_space<vmem>>, vector<4x128xf32>
    %c20_864 = arith.constant 20 : index
    %c1024_865 = arith.constant 1024 : index
    %553 = vector.load %arg12[%c20_864, %c1024_865] : memref<128x1152xf32, #tpu.memory_space<vmem>>, vector<4x128xf32>
    tpu.vector_store %arg12[%c20_864, %c1024_865], %552 {strides = array<i32>} : memref<128x1152xf32, #tpu.memory_space<vmem>>, vector<4x128xf32>,
    %c162_866 = arith.constant 162 : index
    %c0_867 = arith.constant 0 : index
    %554 = tpu.strided_load %arg9[%c162_866, %c0_867] {strides = array<i32: 2, 1>} : memref<200x128xf32, #tpu.memory_space<vmem>>, vector<4x128xf32>
    %c24_868 = arith.constant 24 : index
    %c1024_869 = arith.constant 1024 : index
    %555 = vector.load %arg12[%c24_868, %c1024_869] : memref<128x1152xf32, #tpu.memory_space<vmem>>, vector<4x128xf32>
    tpu.vector_store %arg12[%c24_868, %c1024_869], %554 {strides = array<i32>} : memref<128x1152xf32, #tpu.memory_space<vmem>>, vector<4x128xf32>,
    %c182_870 = arith.constant 182 : index
    %c0_871 = arith.constant 0 : index
    %556 = tpu.strided_load %arg9[%c182_870, %c0_871] {strides = array<i32: 2, 1>} : memref<200x128xf32, #tpu.memory_space<vmem>>, vector<4x128xf32>
    %c28_872 = arith.constant 28 : index
    %c1024_873 = arith.constant 1024 : index
    %557 = vector.load %arg12[%c28_872, %c1024_873] : memref<128x1152xf32, #tpu.memory_space<vmem>>, vector<4x128xf32>
    tpu.vector_store %arg12[%c28_872, %c1024_873], %556 {strides = array<i32>} : memref<128x1152xf32, #tpu.memory_space<vmem>>, vector<4x128xf32>,
    %c0_874 = arith.constant 0 : index
    %c0_875 = arith.constant 0 : index
    %558 = vector.load %arg12[%c0_874, %c0_875] : memref<128x1152xf32, #tpu.memory_space<vmem>>, vector<32x1152xf32>
    %559 = arith.truncf %558 : vector<32x1152xf32> to vector<32x1152xbf16>
    %c1_876 = arith.constant 1 : index
    %c0_877 = arith.constant 0 : index
    %c0_878 = arith.constant 0 : index
    %560 = vector.load %arg1[%c1_876, %c0_877, %c0_878] : memref<4x1152x128xbf16, #tpu.memory_space<vmem>>, vector<1x1152x128xbf16>
    %561 = vector.shape_cast %560 : vector<1x1152x128xbf16> to vector<1152x128xbf16>
    %cst_879 = arith.constant dense<0.000000e+00> : vector<32x128xf32>
    %562 = tpu.matmul %559, %561, %cst_879 {dimension_numbers = #tpu.dot_dimension_numbers<[1], [0], [0], [1], [0, 0, 1, 1], [], []>} : vector<32x1152xbf16>, vector<1152x128xbf16>, vector<32x128xf32> -> vector<32x128xf32>
    %c1_880 = arith.constant 1 : index
    %c0_881 = arith.constant 0 : index
    %c0_882 = arith.constant 0 : index
    %563 = vector.load %arg2[%c1_880, %c0_881, %c0_882] : memref<4x1x128xf32, #tpu.memory_space<vmem>>, vector<1x1x128xf32>
    %564 = vector.shape_cast %563 : vector<1x1x128xf32> to vector<1x128xf32>
    %565 = vector.broadcast %564 : vector<1x128xf32> to vector<32x128xf32>
    %566 = arith.addf %562, %565 : vector<32x128xf32>
    %cst_883 = arith.constant 0.000000e+00 : f32
    %567 = vector.broadcast %cst_883 : f32 to vector<32x128xf32>
    %568 = arith.cmpf ogt, %566, %567 : vector<32x128xf32>
    %cst_884 = arith.constant 2.000000e-01 : f32
    %569 = vector.broadcast %cst_884 : f32 to vector<32x128xf32>
    %570 = arith.mulf %569, %566 : vector<32x128xf32>
    %571 = arith.select %568, %566, %570 : vector<32x128xi1>, vector<32x128xf32>
    %c1_885 = arith.constant 1 : index
    %c0_886 = arith.constant 0 : index
    %c0_887 = arith.constant 0 : index
    %572 = vector.load %arg3[%c1_885, %c0_886, %c0_887] : memref<4x1x128xf32, #tpu.memory_space<vmem>>, vector<1x1x128xf32>
    %573 = vector.shape_cast %572 : vector<1x1x128xf32> to vector<1x128xf32>
    %574 = vector.broadcast %573 : vector<1x128xf32> to vector<32x128xf32>
    %575 = arith.mulf %571, %574 : vector<32x128xf32>
    %c1_888 = arith.constant 1 : index
    %c0_889 = arith.constant 0 : index
    %c0_890 = arith.constant 0 : index
    %576 = vector.load %arg4[%c1_888, %c0_889, %c0_890] : memref<4x1x128xf32, #tpu.memory_space<vmem>>, vector<1x1x128xf32>
    %577 = vector.shape_cast %576 : vector<1x1x128xf32> to vector<1x128xf32>
    %578 = vector.broadcast %577 : vector<1x128xf32> to vector<32x128xf32>
    %579 = arith.addf %575, %578 : vector<32x128xf32>
    %580 = vector.extract_strided_slice %579 {offsets = [0, 0], sizes = [4, 128], strides = [1, 1]} : vector<32x128xf32> to vector<4x128xf32>
    %c7 = arith.constant 7 : index
    %c0_891 = arith.constant 0 : index
    %581 = vector.load %arg10[%c7, %c0_891] : memref<72x128xf32, #tpu.memory_space<vmem>>, vector<4x128xf32>
    tpu.vector_store %arg10[%c7, %c0_891], %580 {strides = array<i32>} : memref<72x128xf32, #tpu.memory_space<vmem>>, vector<4x128xf32>,
    %582 = vector.extract_strided_slice %579 {offsets = [4, 0], sizes = [4, 128], strides = [1, 1]} : vector<32x128xf32> to vector<4x128xf32>
    %c13 = arith.constant 13 : index
    %c0_892 = arith.constant 0 : index
    %583 = vector.load %arg10[%c13, %c0_892] : memref<72x128xf32, #tpu.memory_space<vmem>>, vector<4x128xf32>
    tpu.vector_store %arg10[%c13, %c0_892], %582 {strides = array<i32>} : memref<72x128xf32, #tpu.memory_space<vmem>>, vector<4x128xf32>,
    %584 = vector.extract_strided_slice %579 {offsets = [8, 0], sizes = [4, 128], strides = [1, 1]} : vector<32x128xf32> to vector<4x128xf32>
    %c19_893 = arith.constant 19 : index
    %c0_894 = arith.constant 0 : index
    %585 = vector.load %arg10[%c19_893, %c0_894] : memref<72x128xf32, #tpu.memory_space<vmem>>, vector<4x128xf32>
    tpu.vector_store %arg10[%c19_893, %c0_894], %584 {strides = array<i32>} : memref<72x128xf32, #tpu.memory_space<vmem>>, vector<4x128xf32>,
    %586 = vector.extract_strided_slice %579 {offsets = [12, 0], sizes = [4, 128], strides = [1, 1]} : vector<32x128xf32> to vector<4x128xf32>
    %c25 = arith.constant 25 : index
    %c0_895 = arith.constant 0 : index
    %587 = vector.load %arg10[%c25, %c0_895] : memref<72x128xf32, #tpu.memory_space<vmem>>, vector<4x128xf32>
    tpu.vector_store %arg10[%c25, %c0_895], %586 {strides = array<i32>} : memref<72x128xf32, #tpu.memory_space<vmem>>, vector<4x128xf32>,
    %588 = vector.extract_strided_slice %579 {offsets = [16, 0], sizes = [4, 128], strides = [1, 1]} : vector<32x128xf32> to vector<4x128xf32>
    %c43 = arith.constant 43 : index
    %c0_896 = arith.constant 0 : index
    %589 = vector.load %arg10[%c43, %c0_896] : memref<72x128xf32, #tpu.memory_space<vmem>>, vector<4x128xf32>
    tpu.vector_store %arg10[%c43, %c0_896], %588 {strides = array<i32>} : memref<72x128xf32, #tpu.memory_space<vmem>>, vector<4x128xf32>,
    %590 = vector.extract_strided_slice %579 {offsets = [20, 0], sizes = [4, 128], strides = [1, 1]} : vector<32x128xf32> to vector<4x128xf32>
    %c49 = arith.constant 49 : index
    %c0_897 = arith.constant 0 : index
    %591 = vector.load %arg10[%c49, %c0_897] : memref<72x128xf32, #tpu.memory_space<vmem>>, vector<4x128xf32>
    tpu.vector_store %arg10[%c49, %c0_897], %590 {strides = array<i32>} : memref<72x128xf32, #tpu.memory_space<vmem>>, vector<4x128xf32>,
    %592 = vector.extract_strided_slice %579 {offsets = [24, 0], sizes = [4, 128], strides = [1, 1]} : vector<32x128xf32> to vector<4x128xf32>
    %c55_898 = arith.constant 55 : index
    %c0_899 = arith.constant 0 : index
    %593 = vector.load %arg10[%c55_898, %c0_899] : memref<72x128xf32, #tpu.memory_space<vmem>>, vector<4x128xf32>
    tpu.vector_store %arg10[%c55_898, %c0_899], %592 {strides = array<i32>} : memref<72x128xf32, #tpu.memory_space<vmem>>, vector<4x128xf32>,
    %594 = vector.extract_strided_slice %579 {offsets = [28, 0], sizes = [4, 128], strides = [1, 1]} : vector<32x128xf32> to vector<4x128xf32>
    %c61_900 = arith.constant 61 : index
    %c0_901 = arith.constant 0 : index
    %595 = vector.load %arg10[%c61_900, %c0_901] : memref<72x128xf32, #tpu.memory_space<vmem>>, vector<4x128xf32>
    tpu.vector_store %arg10[%c61_900, %c0_901], %594 {strides = array<i32>} : memref<72x128xf32, #tpu.memory_space<vmem>>, vector<4x128xf32>,
    %c0_902 = arith.constant 0 : index
    %c0_903 = arith.constant 0 : index
    %596 = tpu.strided_load %arg10[%c0_902, %c0_903] {strides = array<i32: 2, 1>} : memref<72x128xf32, #tpu.memory_space<vmem>>, vector<2x128xf32>
    %c0_904 = arith.constant 0 : index
    %c0_905 = arith.constant 0 : index
    %597 = vector.load %arg12[%c0_904, %c0_905] : memref<128x1152xf32, #tpu.memory_space<vmem>>, vector<2x128xf32>
    tpu.vector_store %arg12[%c0_904, %c0_905], %596 {strides = array<i32>} : memref<128x1152xf32, #tpu.memory_space<vmem>>, vector<2x128xf32>,
    %c12_906 = arith.constant 12 : index
    %c0_907 = arith.constant 0 : index
    %598 = tpu.strided_load %arg10[%c12_906, %c0_907] {strides = array<i32: 2, 1>} : memref<72x128xf32, #tpu.memory_space<vmem>>, vector<2x128xf32>
    %c2_908 = arith.constant 2 : index
    %c0_909 = arith.constant 0 : index
    %599 = vector.load %arg12[%c2_908, %c0_909] : memref<128x1152xf32, #tpu.memory_space<vmem>>, vector<2x128xf32>
    tpu.vector_store %arg12[%c2_908, %c0_909], %598 {strides = array<i32>} : memref<128x1152xf32, #tpu.memory_space<vmem>>, vector<2x128xf32>,
    %c36_910 = arith.constant 36 : index
    %c0_911 = arith.constant 0 : index
    %600 = tpu.strided_load %arg10[%c36_910, %c0_911] {strides = array<i32: 2, 1>} : memref<72x128xf32, #tpu.memory_space<vmem>>, vector<2x128xf32>
    %c4_912 = arith.constant 4 : index
    %c0_913 = arith.constant 0 : index
    %601 = vector.load %arg12[%c4_912, %c0_913] : memref<128x1152xf32, #tpu.memory_space<vmem>>, vector<2x128xf32>
    tpu.vector_store %arg12[%c4_912, %c0_913], %600 {strides = array<i32>} : memref<128x1152xf32, #tpu.memory_space<vmem>>, vector<2x128xf32>,
    %c48_914 = arith.constant 48 : index
    %c0_915 = arith.constant 0 : index
    %602 = tpu.strided_load %arg10[%c48_914, %c0_915] {strides = array<i32: 2, 1>} : memref<72x128xf32, #tpu.memory_space<vmem>>, vector<2x128xf32>
    %c6 = arith.constant 6 : index
    %c0_916 = arith.constant 0 : index
    %603 = vector.load %arg12[%c6, %c0_916] : memref<128x1152xf32, #tpu.memory_space<vmem>>, vector<2x128xf32>
    tpu.vector_store %arg12[%c6, %c0_916], %602 {strides = array<i32>} : memref<128x1152xf32, #tpu.memory_space<vmem>>, vector<2x128xf32>,
    %c1_917 = arith.constant 1 : index
    %c0_918 = arith.constant 0 : index
    %604 = tpu.strided_load %arg10[%c1_917, %c0_918] {strides = array<i32: 2, 1>} : memref<72x128xf32, #tpu.memory_space<vmem>>, vector<2x128xf32>
    %c0_919 = arith.constant 0 : index
    %c128_920 = arith.constant 128 : index
    %605 = vector.load %arg12[%c0_919, %c128_920] : memref<128x1152xf32, #tpu.memory_space<vmem>>, vector<2x128xf32>
    tpu.vector_store %arg12[%c0_919, %c128_920], %604 {strides = array<i32>} : memref<128x1152xf32, #tpu.memory_space<vmem>>, vector<2x128xf32>,
    %c13_921 = arith.constant 13 : index
    %c0_922 = arith.constant 0 : index
    %606 = tpu.strided_load %arg10[%c13_921, %c0_922] {strides = array<i32: 2, 1>} : memref<72x128xf32, #tpu.memory_space<vmem>>, vector<2x128xf32>
    %c2_923 = arith.constant 2 : index
    %c128_924 = arith.constant 128 : index
    %607 = vector.load %arg12[%c2_923, %c128_924] : memref<128x1152xf32, #tpu.memory_space<vmem>>, vector<2x128xf32>
    tpu.vector_store %arg12[%c2_923, %c128_924], %606 {strides = array<i32>} : memref<128x1152xf32, #tpu.memory_space<vmem>>, vector<2x128xf32>,
    %c37_925 = arith.constant 37 : index
    %c0_926 = arith.constant 0 : index
    %608 = tpu.strided_load %arg10[%c37_925, %c0_926] {strides = array<i32: 2, 1>} : memref<72x128xf32, #tpu.memory_space<vmem>>, vector<2x128xf32>
    %c4_927 = arith.constant 4 : index
    %c128_928 = arith.constant 128 : index
    %609 = vector.load %arg12[%c4_927, %c128_928] : memref<128x1152xf32, #tpu.memory_space<vmem>>, vector<2x128xf32>
    tpu.vector_store %arg12[%c4_927, %c128_928], %608 {strides = array<i32>} : memref<128x1152xf32, #tpu.memory_space<vmem>>, vector<2x128xf32>,
    %c49_929 = arith.constant 49 : index
    %c0_930 = arith.constant 0 : index
    %610 = tpu.strided_load %arg10[%c49_929, %c0_930] {strides = array<i32: 2, 1>} : memref<72x128xf32, #tpu.memory_space<vmem>>, vector<2x128xf32>
    %c6_931 = arith.constant 6 : index
    %c128_932 = arith.constant 128 : index
    %611 = vector.load %arg12[%c6_931, %c128_932] : memref<128x1152xf32, #tpu.memory_space<vmem>>, vector<2x128xf32>
    tpu.vector_store %arg12[%c6_931, %c128_932], %610 {strides = array<i32>} : memref<128x1152xf32, #tpu.memory_space<vmem>>, vector<2x128xf32>,
    %c2_933 = arith.constant 2 : index
    %c0_934 = arith.constant 0 : index
    %612 = tpu.strided_load %arg10[%c2_933, %c0_934] {strides = array<i32: 2, 1>} : memref<72x128xf32, #tpu.memory_space<vmem>>, vector<2x128xf32>
    %c0_935 = arith.constant 0 : index
    %c256_936 = arith.constant 256 : index
    %613 = vector.load %arg12[%c0_935, %c256_936] : memref<128x1152xf32, #tpu.memory_space<vmem>>, vector<2x128xf32>
    tpu.vector_store %arg12[%c0_935, %c256_936], %612 {strides = array<i32>} : memref<128x1152xf32, #tpu.memory_space<vmem>>, vector<2x128xf32>,
    %c14 = arith.constant 14 : index
    %c0_937 = arith.constant 0 : index
    %614 = tpu.strided_load %arg10[%c14, %c0_937] {strides = array<i32: 2, 1>} : memref<72x128xf32, #tpu.memory_space<vmem>>, vector<2x128xf32>
    %c2_938 = arith.constant 2 : index
    %c256_939 = arith.constant 256 : index
    %615 = vector.load %arg12[%c2_938, %c256_939] : memref<128x1152xf32, #tpu.memory_space<vmem>>, vector<2x128xf32>
    tpu.vector_store %arg12[%c2_938, %c256_939], %614 {strides = array<i32>} : memref<128x1152xf32, #tpu.memory_space<vmem>>, vector<2x128xf32>,
    %c38_940 = arith.constant 38 : index
    %c0_941 = arith.constant 0 : index
    %616 = tpu.strided_load %arg10[%c38_940, %c0_941] {strides = array<i32: 2, 1>} : memref<72x128xf32, #tpu.memory_space<vmem>>, vector<2x128xf32>
    %c4_942 = arith.constant 4 : index
    %c256_943 = arith.constant 256 : index
    %617 = vector.load %arg12[%c4_942, %c256_943] : memref<128x1152xf32, #tpu.memory_space<vmem>>, vector<2x128xf32>
    tpu.vector_store %arg12[%c4_942, %c256_943], %616 {strides = array<i32>} : memref<128x1152xf32, #tpu.memory_space<vmem>>, vector<2x128xf32>,
    %c50_944 = arith.constant 50 : index
    %c0_945 = arith.constant 0 : index
    %618 = tpu.strided_load %arg10[%c50_944, %c0_945] {strides = array<i32: 2, 1>} : memref<72x128xf32, #tpu.memory_space<vmem>>, vector<2x128xf32>
    %c6_946 = arith.constant 6 : index
    %c256_947 = arith.constant 256 : index
    %619 = vector.load %arg12[%c6_946, %c256_947] : memref<128x1152xf32, #tpu.memory_space<vmem>>, vector<2x128xf32>
    tpu.vector_store %arg12[%c6_946, %c256_947], %618 {strides = array<i32>} : memref<128x1152xf32, #tpu.memory_space<vmem>>, vector<2x128xf32>,
    %c6_948 = arith.constant 6 : index
    %c0_949 = arith.constant 0 : index
    %620 = tpu.strided_load %arg10[%c6_948, %c0_949] {strides = array<i32: 2, 1>} : memref<72x128xf32, #tpu.memory_space<vmem>>, vector<2x128xf32>
    %c0_950 = arith.constant 0 : index
    %c384_951 = arith.constant 384 : index
    %621 = vector.load %arg12[%c0_950, %c384_951] : memref<128x1152xf32, #tpu.memory_space<vmem>>, vector<2x128xf32>
    tpu.vector_store %arg12[%c0_950, %c384_951], %620 {strides = array<i32>} : memref<128x1152xf32, #tpu.memory_space<vmem>>, vector<2x128xf32>,
    %c18_952 = arith.constant 18 : index
    %c0_953 = arith.constant 0 : index
    %622 = tpu.strided_load %arg10[%c18_952, %c0_953] {strides = array<i32: 2, 1>} : memref<72x128xf32, #tpu.memory_space<vmem>>, vector<2x128xf32>
    %c2_954 = arith.constant 2 : index
    %c384_955 = arith.constant 384 : index
    %623 = vector.load %arg12[%c2_954, %c384_955] : memref<128x1152xf32, #tpu.memory_space<vmem>>, vector<2x128xf32>
    tpu.vector_store %arg12[%c2_954, %c384_955], %622 {strides = array<i32>} : memref<128x1152xf32, #tpu.memory_space<vmem>>, vector<2x128xf32>,
    %c42_956 = arith.constant 42 : index
    %c0_957 = arith.constant 0 : index
    %624 = tpu.strided_load %arg10[%c42_956, %c0_957] {strides = array<i32: 2, 1>} : memref<72x128xf32, #tpu.memory_space<vmem>>, vector<2x128xf32>
    %c4_958 = arith.constant 4 : index
    %c384_959 = arith.constant 384 : index
    %625 = vector.load %arg12[%c4_958, %c384_959] : memref<128x1152xf32, #tpu.memory_space<vmem>>, vector<2x128xf32>
    tpu.vector_store %arg12[%c4_958, %c384_959], %624 {strides = array<i32>} : memref<128x1152xf32, #tpu.memory_space<vmem>>, vector<2x128xf32>,
    %c54_960 = arith.constant 54 : index
    %c0_961 = arith.constant 0 : index
    %626 = tpu.strided_load %arg10[%c54_960, %c0_961] {strides = array<i32: 2, 1>} : memref<72x128xf32, #tpu.memory_space<vmem>>, vector<2x128xf32>
    %c6_962 = arith.constant 6 : index
    %c384_963 = arith.constant 384 : index
    %627 = vector.load %arg12[%c6_962, %c384_963] : memref<128x1152xf32, #tpu.memory_space<vmem>>, vector<2x128xf32>
    tpu.vector_store %arg12[%c6_962, %c384_963], %626 {strides = array<i32>} : memref<128x1152xf32, #tpu.memory_space<vmem>>, vector<2x128xf32>,
    %c7_964 = arith.constant 7 : index
    %c0_965 = arith.constant 0 : index
    %628 = tpu.strided_load %arg10[%c7_964, %c0_965] {strides = array<i32: 2, 1>} : memref<72x128xf32, #tpu.memory_space<vmem>>, vector<2x128xf32>
    %c0_966 = arith.constant 0 : index
    %c512_967 = arith.constant 512 : index
    %629 = vector.load %arg12[%c0_966, %c512_967] : memref<128x1152xf32, #tpu.memory_space<vmem>>, vector<2x128xf32>
    tpu.vector_store %arg12[%c0_966, %c512_967], %628 {strides = array<i32>} : memref<128x1152xf32, #tpu.memory_space<vmem>>, vector<2x128xf32>,
    %c19_968 = arith.constant 19 : index
    %c0_969 = arith.constant 0 : index
    %630 = tpu.strided_load %arg10[%c19_968, %c0_969] {strides = array<i32: 2, 1>} : memref<72x128xf32, #tpu.memory_space<vmem>>, vector<2x128xf32>
    %c2_970 = arith.constant 2 : index
    %c512_971 = arith.constant 512 : index
    %631 = vector.load %arg12[%c2_970, %c512_971] : memref<128x1152xf32, #tpu.memory_space<vmem>>, vector<2x128xf32>
    tpu.vector_store %arg12[%c2_970, %c512_971], %630 {strides = array<i32>} : memref<128x1152xf32, #tpu.memory_space<vmem>>, vector<2x128xf32>,
    %c43_972 = arith.constant 43 : index
    %c0_973 = arith.constant 0 : index
    %632 = tpu.strided_load %arg10[%c43_972, %c0_973] {strides = array<i32: 2, 1>} : memref<72x128xf32, #tpu.memory_space<vmem>>, vector<2x128xf32>
    %c4_974 = arith.constant 4 : index
    %c512_975 = arith.constant 512 : index
    %633 = vector.load %arg12[%c4_974, %c512_975] : memref<128x1152xf32, #tpu.memory_space<vmem>>, vector<2x128xf32>
    tpu.vector_store %arg12[%c4_974, %c512_975], %632 {strides = array<i32>} : memref<128x1152xf32, #tpu.memory_space<vmem>>, vector<2x128xf32>,
    %c55_976 = arith.constant 55 : index
    %c0_977 = arith.constant 0 : index
    %634 = tpu.strided_load %arg10[%c55_976, %c0_977] {strides = array<i32: 2, 1>} : memref<72x128xf32, #tpu.memory_space<vmem>>, vector<2x128xf32>
    %c6_978 = arith.constant 6 : index
    %c512_979 = arith.constant 512 : index
    %635 = vector.load %arg12[%c6_978, %c512_979] : memref<128x1152xf32, #tpu.memory_space<vmem>>, vector<2x128xf32>
    tpu.vector_store %arg12[%c6_978, %c512_979], %634 {strides = array<i32>} : memref<128x1152xf32, #tpu.memory_space<vmem>>, vector<2x128xf32>,
    %c8_980 = arith.constant 8 : index
    %c0_981 = arith.constant 0 : index
    %636 = tpu.strided_load %arg10[%c8_980, %c0_981] {strides = array<i32: 2, 1>} : memref<72x128xf32, #tpu.memory_space<vmem>>, vector<2x128xf32>
    %c0_982 = arith.constant 0 : index
    %c640_983 = arith.constant 640 : index
    %637 = vector.load %arg12[%c0_982, %c640_983] : memref<128x1152xf32, #tpu.memory_space<vmem>>, vector<2x128xf32>
    tpu.vector_store %arg12[%c0_982, %c640_983], %636 {strides = array<i32>} : memref<128x1152xf32, #tpu.memory_space<vmem>>, vector<2x128xf32>,
    %c20_984 = arith.constant 20 : index
    %c0_985 = arith.constant 0 : index
    %638 = tpu.strided_load %arg10[%c20_984, %c0_985] {strides = array<i32: 2, 1>} : memref<72x128xf32, #tpu.memory_space<vmem>>, vector<2x128xf32>
    %c2_986 = arith.constant 2 : index
    %c640_987 = arith.constant 640 : index
    %639 = vector.load %arg12[%c2_986, %c640_987] : memref<128x1152xf32, #tpu.memory_space<vmem>>, vector<2x128xf32>
    tpu.vector_store %arg12[%c2_986, %c640_987], %638 {strides = array<i32>} : memref<128x1152xf32, #tpu.memory_space<vmem>>, vector<2x128xf32>,
    %c44 = arith.constant 44 : index
    %c0_988 = arith.constant 0 : index
    %640 = tpu.strided_load %arg10[%c44, %c0_988] {strides = array<i32: 2, 1>} : memref<72x128xf32, #tpu.memory_space<vmem>>, vector<2x128xf32>
    %c4_989 = arith.constant 4 : index
    %c640_990 = arith.constant 640 : index
    %641 = vector.load %arg12[%c4_989, %c640_990] : memref<128x1152xf32, #tpu.memory_space<vmem>>, vector<2x128xf32>
    tpu.vector_store %arg12[%c4_989, %c640_990], %640 {strides = array<i32>} : memref<128x1152xf32, #tpu.memory_space<vmem>>, vector<2x128xf32>,
    %c56_991 = arith.constant 56 : index
    %c0_992 = arith.constant 0 : index
    %642 = tpu.strided_load %arg10[%c56_991, %c0_992] {strides = array<i32: 2, 1>} : memref<72x128xf32, #tpu.memory_space<vmem>>, vector<2x128xf32>
    %c6_993 = arith.constant 6 : index
    %c640_994 = arith.constant 640 : index
    %643 = vector.load %arg12[%c6_993, %c640_994] : memref<128x1152xf32, #tpu.memory_space<vmem>>, vector<2x128xf32>
    tpu.vector_store %arg12[%c6_993, %c640_994], %642 {strides = array<i32>} : memref<128x1152xf32, #tpu.memory_space<vmem>>, vector<2x128xf32>,
    %c12_995 = arith.constant 12 : index
    %c0_996 = arith.constant 0 : index
    %644 = tpu.strided_load %arg10[%c12_995, %c0_996] {strides = array<i32: 2, 1>} : memref<72x128xf32, #tpu.memory_space<vmem>>, vector<2x128xf32>
    %c0_997 = arith.constant 0 : index
    %c768_998 = arith.constant 768 : index
    %645 = vector.load %arg12[%c0_997, %c768_998] : memref<128x1152xf32, #tpu.memory_space<vmem>>, vector<2x128xf32>
    tpu.vector_store %arg12[%c0_997, %c768_998], %644 {strides = array<i32>} : memref<128x1152xf32, #tpu.memory_space<vmem>>, vector<2x128xf32>,
    %c24_999 = arith.constant 24 : index
    %c0_1000 = arith.constant 0 : index
    %646 = tpu.strided_load %arg10[%c24_999, %c0_1000] {strides = array<i32: 2, 1>} : memref<72x128xf32, #tpu.memory_space<vmem>>, vector<2x128xf32>
    %c2_1001 = arith.constant 2 : index
    %c768_1002 = arith.constant 768 : index
    %647 = vector.load %arg12[%c2_1001, %c768_1002] : memref<128x1152xf32, #tpu.memory_space<vmem>>, vector<2x128xf32>
    tpu.vector_store %arg12[%c2_1001, %c768_1002], %646 {strides = array<i32>} : memref<128x1152xf32, #tpu.memory_space<vmem>>, vector<2x128xf32>,
    %c48_1003 = arith.constant 48 : index
    %c0_1004 = arith.constant 0 : index
    %648 = tpu.strided_load %arg10[%c48_1003, %c0_1004] {strides = array<i32: 2, 1>} : memref<72x128xf32, #tpu.memory_space<vmem>>, vector<2x128xf32>
    %c4_1005 = arith.constant 4 : index
    %c768_1006 = arith.constant 768 : index
    %649 = vector.load %arg12[%c4_1005, %c768_1006] : memref<128x1152xf32, #tpu.memory_space<vmem>>, vector<2x128xf32>
    tpu.vector_store %arg12[%c4_1005, %c768_1006], %648 {strides = array<i32>} : memref<128x1152xf32, #tpu.memory_space<vmem>>, vector<2x128xf32>,
    %c60_1007 = arith.constant 60 : index
    %c0_1008 = arith.constant 0 : index
    %650 = tpu.strided_load %arg10[%c60_1007, %c0_1008] {strides = array<i32: 2, 1>} : memref<72x128xf32, #tpu.memory_space<vmem>>, vector<2x128xf32>
    %c6_1009 = arith.constant 6 : index
    %c768_1010 = arith.constant 768 : index
    %651 = vector.load %arg12[%c6_1009, %c768_1010] : memref<128x1152xf32, #tpu.memory_space<vmem>>, vector<2x128xf32>
    tpu.vector_store %arg12[%c6_1009, %c768_1010], %650 {strides = array<i32>} : memref<128x1152xf32, #tpu.memory_space<vmem>>, vector<2x128xf32>,
    %c13_1011 = arith.constant 13 : index
    %c0_1012 = arith.constant 0 : index
    %652 = tpu.strided_load %arg10[%c13_1011, %c0_1012] {strides = array<i32: 2, 1>} : memref<72x128xf32, #tpu.memory_space<vmem>>, vector<2x128xf32>
    %c0_1013 = arith.constant 0 : index
    %c896_1014 = arith.constant 896 : index
    %653 = vector.load %arg12[%c0_1013, %c896_1014] : memref<128x1152xf32, #tpu.memory_space<vmem>>, vector<2x128xf32>
    tpu.vector_store %arg12[%c0_1013, %c896_1014], %652 {strides = array<i32>} : memref<128x1152xf32, #tpu.memory_space<vmem>>, vector<2x128xf32>,
    %c25_1015 = arith.constant 25 : index
    %c0_1016 = arith.constant 0 : index
    %654 = tpu.strided_load %arg10[%c25_1015, %c0_1016] {strides = array<i32: 2, 1>} : memref<72x128xf32, #tpu.memory_space<vmem>>, vector<2x128xf32>
    %c2_1017 = arith.constant 2 : index
    %c896_1018 = arith.constant 896 : index
    %655 = vector.load %arg12[%c2_1017, %c896_1018] : memref<128x1152xf32, #tpu.memory_space<vmem>>, vector<2x128xf32>
    tpu.vector_store %arg12[%c2_1017, %c896_1018], %654 {strides = array<i32>} : memref<128x1152xf32, #tpu.memory_space<vmem>>, vector<2x128xf32>,
    %c49_1019 = arith.constant 49 : index
    %c0_1020 = arith.constant 0 : index
    %656 = tpu.strided_load %arg10[%c49_1019, %c0_1020] {strides = array<i32: 2, 1>} : memref<72x128xf32, #tpu.memory_space<vmem>>, vector<2x128xf32>
    %c4_1021 = arith.constant 4 : index
    %c896_1022 = arith.constant 896 : index
    %657 = vector.load %arg12[%c4_1021, %c896_1022] : memref<128x1152xf32, #tpu.memory_space<vmem>>, vector<2x128xf32>
    tpu.vector_store %arg12[%c4_1021, %c896_1022], %656 {strides = array<i32>} : memref<128x1152xf32, #tpu.memory_space<vmem>>, vector<2x128xf32>,
    %c61_1023 = arith.constant 61 : index
    %c0_1024 = arith.constant 0 : index
    %658 = tpu.strided_load %arg10[%c61_1023, %c0_1024] {strides = array<i32: 2, 1>} : memref<72x128xf32, #tpu.memory_space<vmem>>, vector<2x128xf32>
    %c6_1025 = arith.constant 6 : index
    %c896_1026 = arith.constant 896 : index
    %659 = vector.load %arg12[%c6_1025, %c896_1026] : memref<128x1152xf32, #tpu.memory_space<vmem>>, vector<2x128xf32>
    tpu.vector_store %arg12[%c6_1025, %c896_1026], %658 {strides = array<i32>} : memref<128x1152xf32, #tpu.memory_space<vmem>>, vector<2x128xf32>,
    %c14_1027 = arith.constant 14 : index
    %c0_1028 = arith.constant 0 : index
    %660 = tpu.strided_load %arg10[%c14_1027, %c0_1028] {strides = array<i32: 2, 1>} : memref<72x128xf32, #tpu.memory_space<vmem>>, vector<2x128xf32>
    %c0_1029 = arith.constant 0 : index
    %c1024_1030 = arith.constant 1024 : index
    %661 = vector.load %arg12[%c0_1029, %c1024_1030] : memref<128x1152xf32, #tpu.memory_space<vmem>>, vector<2x128xf32>
    tpu.vector_store %arg12[%c0_1029, %c1024_1030], %660 {strides = array<i32>} : memref<128x1152xf32, #tpu.memory_space<vmem>>, vector<2x128xf32>,
    %c26 = arith.constant 26 : index
    %c0_1031 = arith.constant 0 : index
    %662 = tpu.strided_load %arg10[%c26, %c0_1031] {strides = array<i32: 2, 1>} : memref<72x128xf32, #tpu.memory_space<vmem>>, vector<2x128xf32>
    %c2_1032 = arith.constant 2 : index
    %c1024_1033 = arith.constant 1024 : index
    %663 = vector.load %arg12[%c2_1032, %c1024_1033] : memref<128x1152xf32, #tpu.memory_space<vmem>>, vector<2x128xf32>
    tpu.vector_store %arg12[%c2_1032, %c1024_1033], %662 {strides = array<i32>} : memref<128x1152xf32, #tpu.memory_space<vmem>>, vector<2x128xf32>,
    %c50_1034 = arith.constant 50 : index
    %c0_1035 = arith.constant 0 : index
    %664 = tpu.strided_load %arg10[%c50_1034, %c0_1035] {strides = array<i32: 2, 1>} : memref<72x128xf32, #tpu.memory_space<vmem>>, vector<2x128xf32>
    %c4_1036 = arith.constant 4 : index
    %c1024_1037 = arith.constant 1024 : index
    %665 = vector.load %arg12[%c4_1036, %c1024_1037] : memref<128x1152xf32, #tpu.memory_space<vmem>>, vector<2x128xf32>
    tpu.vector_store %arg12[%c4_1036, %c1024_1037], %664 {strides = array<i32>} : memref<128x1152xf32, #tpu.memory_space<vmem>>, vector<2x128xf32>,
    %c62_1038 = arith.constant 62 : index
    %c0_1039 = arith.constant 0 : index
    %666 = tpu.strided_load %arg10[%c62_1038, %c0_1039] {strides = array<i32: 2, 1>} : memref<72x128xf32, #tpu.memory_space<vmem>>, vector<2x128xf32>
    %c6_1040 = arith.constant 6 : index
    %c1024_1041 = arith.constant 1024 : index
    %667 = vector.load %arg12[%c6_1040, %c1024_1041] : memref<128x1152xf32, #tpu.memory_space<vmem>>, vector<2x128xf32>
    tpu.vector_store %arg12[%c6_1040, %c1024_1041], %666 {strides = array<i32>} : memref<128x1152xf32, #tpu.memory_space<vmem>>, vector<2x128xf32>,
    %c0_1042 = arith.constant 0 : index
    %c0_1043 = arith.constant 0 : index
    %668 = vector.load %arg12[%c0_1042, %c0_1043] : memref<128x1152xf32, #tpu.memory_space<vmem>>, vector<8x1152xf32>
    %669 = arith.truncf %668 : vector<8x1152xf32> to vector<8x1152xbf16>
    %c2_1044 = arith.constant 2 : index
    %c0_1045 = arith.constant 0 : index
    %c0_1046 = arith.constant 0 : index
    %670 = vector.load %arg1[%c2_1044, %c0_1045, %c0_1046] : memref<4x1152x128xbf16, #tpu.memory_space<vmem>>, vector<1x1152x128xbf16>
    %671 = vector.shape_cast %670 : vector<1x1152x128xbf16> to vector<1152x128xbf16>
    %cst_1047 = arith.constant dense<0.000000e+00> : vector<8x128xf32>
    %672 = tpu.matmul %669, %671, %cst_1047 {dimension_numbers = #tpu.dot_dimension_numbers<[1], [0], [0], [1], [0, 0, 1, 1], [], []>} : vector<8x1152xbf16>, vector<1152x128xbf16>, vector<8x128xf32> -> vector<8x128xf32>
    %c2_1048 = arith.constant 2 : index
    %c0_1049 = arith.constant 0 : index
    %c0_1050 = arith.constant 0 : index
    %673 = vector.load %arg2[%c2_1048, %c0_1049, %c0_1050] : memref<4x1x128xf32, #tpu.memory_space<vmem>>, vector<1x1x128xf32>
    %674 = vector.shape_cast %673 : vector<1x1x128xf32> to vector<1x128xf32>
    %675 = vector.broadcast %674 : vector<1x128xf32> to vector<8x128xf32>
    %676 = arith.addf %672, %675 : vector<8x128xf32>
    %cst_1051 = arith.constant 0.000000e+00 : f32
    %677 = vector.broadcast %cst_1051 : f32 to vector<8x128xf32>
    %678 = arith.cmpf ogt, %676, %677 : vector<8x128xf32>
    %cst_1052 = arith.constant 2.000000e-01 : f32
    %679 = vector.broadcast %cst_1052 : f32 to vector<8x128xf32>
    %680 = arith.mulf %679, %676 : vector<8x128xf32>
    %681 = arith.select %678, %676, %680 : vector<8x128xi1>, vector<8x128xf32>
    %c2_1053 = arith.constant 2 : index
    %c0_1054 = arith.constant 0 : index
    %c0_1055 = arith.constant 0 : index
    %682 = vector.load %arg3[%c2_1053, %c0_1054, %c0_1055] : memref<4x1x128xf32, #tpu.memory_space<vmem>>, vector<1x1x128xf32>
    %683 = vector.shape_cast %682 : vector<1x1x128xf32> to vector<1x128xf32>
    %684 = vector.broadcast %683 : vector<1x128xf32> to vector<8x128xf32>
    %685 = arith.mulf %681, %684 : vector<8x128xf32>
    %c2_1056 = arith.constant 2 : index
    %c0_1057 = arith.constant 0 : index
    %c0_1058 = arith.constant 0 : index
    %686 = vector.load %arg4[%c2_1056, %c0_1057, %c0_1058] : memref<4x1x128xf32, #tpu.memory_space<vmem>>, vector<1x1x128xf32>
    %687 = vector.shape_cast %686 : vector<1x1x128xf32> to vector<1x128xf32>
    %688 = vector.broadcast %687 : vector<1x128xf32> to vector<8x128xf32>
    %689 = arith.addf %685, %688 : vector<8x128xf32>
    %690 = vector.extract_strided_slice %689 {offsets = [0, 0], sizes = [2, 128], strides = [1, 1]} : vector<8x128xf32> to vector<2x128xf32>
    %c5 = arith.constant 5 : index
    %c0_1059 = arith.constant 0 : index
    %691 = vector.load %arg11[%c5, %c0_1059] : memref<32x128xf32, #tpu.memory_space<vmem>>, vector<2x128xf32>
    tpu.vector_store %arg11[%c5, %c0_1059], %690 {strides = array<i32>} : memref<32x128xf32, #tpu.memory_space<vmem>>, vector<2x128xf32>,
    %692 = vector.extract_strided_slice %689 {offsets = [2, 0], sizes = [2, 128], strides = [1, 1]} : vector<8x128xf32> to vector<2x128xf32>
    %c9 = arith.constant 9 : index
    %c0_1060 = arith.constant 0 : index
    %693 = vector.load %arg11[%c9, %c0_1060] : memref<32x128xf32, #tpu.memory_space<vmem>>, vector<2x128xf32>
    tpu.vector_store %arg11[%c9, %c0_1060], %692 {strides = array<i32>} : memref<32x128xf32, #tpu.memory_space<vmem>>, vector<2x128xf32>,
    %694 = vector.extract_strided_slice %689 {offsets = [4, 0], sizes = [2, 128], strides = [1, 1]} : vector<8x128xf32> to vector<2x128xf32>
    %c21_1061 = arith.constant 21 : index
    %c0_1062 = arith.constant 0 : index
    %695 = vector.load %arg11[%c21_1061, %c0_1062] : memref<32x128xf32, #tpu.memory_space<vmem>>, vector<2x128xf32>
    tpu.vector_store %arg11[%c21_1061, %c0_1062], %694 {strides = array<i32>} : memref<32x128xf32, #tpu.memory_space<vmem>>, vector<2x128xf32>,
    %696 = vector.extract_strided_slice %689 {offsets = [6, 0], sizes = [2, 128], strides = [1, 1]} : vector<8x128xf32> to vector<2x128xf32>
    %c25_1063 = arith.constant 25 : index
    %c0_1064 = arith.constant 0 : index
    %697 = vector.load %arg11[%c25_1063, %c0_1064] : memref<32x128xf32, #tpu.memory_space<vmem>>, vector<2x128xf32>
    tpu.vector_store %arg11[%c25_1063, %c0_1064], %696 {strides = array<i32>} : memref<32x128xf32, #tpu.memory_space<vmem>>, vector<2x128xf32>,
    %c0_1065 = arith.constant 0 : index
    %c0_1066 = arith.constant 0 : index
    %698 = tpu.strided_load %arg11[%c0_1065, %c0_1066] {strides = array<i32: 2, 1>} : memref<32x128xf32, #tpu.memory_space<vmem>>, vector<1x128xf32>
    %c0_1067 = arith.constant 0 : index
    %c0_1068 = arith.constant 0 : index
    %699 = vector.load %arg12[%c0_1067, %c0_1068] : memref<128x1152xf32, #tpu.memory_space<vmem>>, vector<1x128xf32>
    tpu.vector_store %arg12[%c0_1067, %c0_1068], %698 {strides = array<i32>} : memref<128x1152xf32, #tpu.memory_space<vmem>>, vector<1x128xf32>,
    %c16_1069 = arith.constant 16 : index
    %c0_1070 = arith.constant 0 : index
    %700 = tpu.strided_load %arg11[%c16_1069, %c0_1070] {strides = array<i32: 2, 1>} : memref<32x128xf32, #tpu.memory_space<vmem>>, vector<1x128xf32>
    %c1_1071 = arith.constant 1 : index
    %c0_1072 = arith.constant 0 : index
    %701 = vector.load %arg12[%c1_1071, %c0_1072] : memref<128x1152xf32, #tpu.memory_space<vmem>>, vector<1x128xf32>
    tpu.vector_store %arg12[%c1_1071, %c0_1072], %700 {strides = array<i32>} : memref<128x1152xf32, #tpu.memory_space<vmem>>, vector<1x128xf32>,
    %c1_1073 = arith.constant 1 : index
    %c0_1074 = arith.constant 0 : index
    %702 = tpu.strided_load %arg11[%c1_1073, %c0_1074] {strides = array<i32: 2, 1>} : memref<32x128xf32, #tpu.memory_space<vmem>>, vector<1x128xf32>
    %c0_1075 = arith.constant 0 : index
    %c128_1076 = arith.constant 128 : index
    %703 = vector.load %arg12[%c0_1075, %c128_1076] : memref<128x1152xf32, #tpu.memory_space<vmem>>, vector<1x128xf32>
    tpu.vector_store %arg12[%c0_1075, %c128_1076], %702 {strides = array<i32>} : memref<128x1152xf32, #tpu.memory_space<vmem>>, vector<1x128xf32>,
    %c17 = arith.constant 17 : index
    %c0_1077 = arith.constant 0 : index
    %704 = tpu.strided_load %arg11[%c17, %c0_1077] {strides = array<i32: 2, 1>} : memref<32x128xf32, #tpu.memory_space<vmem>>, vector<1x128xf32>
    %c1_1078 = arith.constant 1 : index
    %c128_1079 = arith.constant 128 : index
    %705 = vector.load %arg12[%c1_1078, %c128_1079] : memref<128x1152xf32, #tpu.memory_space<vmem>>, vector<1x128xf32>
    tpu.vector_store %arg12[%c1_1078, %c128_1079], %704 {strides = array<i32>} : memref<128x1152xf32, #tpu.memory_space<vmem>>, vector<1x128xf32>,
    %c2_1080 = arith.constant 2 : index
    %c0_1081 = arith.constant 0 : index
    %706 = tpu.strided_load %arg11[%c2_1080, %c0_1081] {strides = array<i32: 2, 1>} : memref<32x128xf32, #tpu.memory_space<vmem>>, vector<1x128xf32>
    %c0_1082 = arith.constant 0 : index
    %c256_1083 = arith.constant 256 : index
    %707 = vector.load %arg12[%c0_1082, %c256_1083] : memref<128x1152xf32, #tpu.memory_space<vmem>>, vector<1x128xf32>
    tpu.vector_store %arg12[%c0_1082, %c256_1083], %706 {strides = array<i32>} : memref<128x1152xf32, #tpu.memory_space<vmem>>, vector<1x128xf32>,
    %c18_1084 = arith.constant 18 : index
    %c0_1085 = arith.constant 0 : index
    %708 = tpu.strided_load %arg11[%c18_1084, %c0_1085] {strides = array<i32: 2, 1>} : memref<32x128xf32, #tpu.memory_space<vmem>>, vector<1x128xf32>
    %c1_1086 = arith.constant 1 : index
    %c256_1087 = arith.constant 256 : index
    %709 = vector.load %arg12[%c1_1086, %c256_1087] : memref<128x1152xf32, #tpu.memory_space<vmem>>, vector<1x128xf32>
    tpu.vector_store %arg12[%c1_1086, %c256_1087], %708 {strides = array<i32>} : memref<128x1152xf32, #tpu.memory_space<vmem>>, vector<1x128xf32>,
    %c4_1088 = arith.constant 4 : index
    %c0_1089 = arith.constant 0 : index
    %710 = tpu.strided_load %arg11[%c4_1088, %c0_1089] {strides = array<i32: 2, 1>} : memref<32x128xf32, #tpu.memory_space<vmem>>, vector<1x128xf32>
    %c0_1090 = arith.constant 0 : index
    %c384_1091 = arith.constant 384 : index
    %711 = vector.load %arg12[%c0_1090, %c384_1091] : memref<128x1152xf32, #tpu.memory_space<vmem>>, vector<1x128xf32>
    tpu.vector_store %arg12[%c0_1090, %c384_1091], %710 {strides = array<i32>} : memref<128x1152xf32, #tpu.memory_space<vmem>>, vector<1x128xf32>,
    %c20_1092 = arith.constant 20 : index
    %c0_1093 = arith.constant 0 : index
    %712 = tpu.strided_load %arg11[%c20_1092, %c0_1093] {strides = array<i32: 2, 1>} : memref<32x128xf32, #tpu.memory_space<vmem>>, vector<1x128xf32>
    %c1_1094 = arith.constant 1 : index
    %c384_1095 = arith.constant 384 : index
    %713 = vector.load %arg12[%c1_1094, %c384_1095] : memref<128x1152xf32, #tpu.memory_space<vmem>>, vector<1x128xf32>
    tpu.vector_store %arg12[%c1_1094, %c384_1095], %712 {strides = array<i32>} : memref<128x1152xf32, #tpu.memory_space<vmem>>, vector<1x128xf32>,
    %c5_1096 = arith.constant 5 : index
    %c0_1097 = arith.constant 0 : index
    %714 = tpu.strided_load %arg11[%c5_1096, %c0_1097] {strides = array<i32: 2, 1>} : memref<32x128xf32, #tpu.memory_space<vmem>>, vector<1x128xf32>
    %c0_1098 = arith.constant 0 : index
    %c512_1099 = arith.constant 512 : index
    %715 = vector.load %arg12[%c0_1098, %c512_1099] : memref<128x1152xf32, #tpu.memory_space<vmem>>, vector<1x128xf32>
    tpu.vector_store %arg12[%c0_1098, %c512_1099], %714 {strides = array<i32>} : memref<128x1152xf32, #tpu.memory_space<vmem>>, vector<1x128xf32>,
    %c21_1100 = arith.constant 21 : index
    %c0_1101 = arith.constant 0 : index
    %716 = tpu.strided_load %arg11[%c21_1100, %c0_1101] {strides = array<i32: 2, 1>} : memref<32x128xf32, #tpu.memory_space<vmem>>, vector<1x128xf32>
    %c1_1102 = arith.constant 1 : index
    %c512_1103 = arith.constant 512 : index
    %717 = vector.load %arg12[%c1_1102, %c512_1103] : memref<128x1152xf32, #tpu.memory_space<vmem>>, vector<1x128xf32>
    tpu.vector_store %arg12[%c1_1102, %c512_1103], %716 {strides = array<i32>} : memref<128x1152xf32, #tpu.memory_space<vmem>>, vector<1x128xf32>,
    %c6_1104 = arith.constant 6 : index
    %c0_1105 = arith.constant 0 : index
    %718 = tpu.strided_load %arg11[%c6_1104, %c0_1105] {strides = array<i32: 2, 1>} : memref<32x128xf32, #tpu.memory_space<vmem>>, vector<1x128xf32>
    %c0_1106 = arith.constant 0 : index
    %c640_1107 = arith.constant 640 : index
    %719 = vector.load %arg12[%c0_1106, %c640_1107] : memref<128x1152xf32, #tpu.memory_space<vmem>>, vector<1x128xf32>
    tpu.vector_store %arg12[%c0_1106, %c640_1107], %718 {strides = array<i32>} : memref<128x1152xf32, #tpu.memory_space<vmem>>, vector<1x128xf32>,
    %c22_1108 = arith.constant 22 : index
    %c0_1109 = arith.constant 0 : index
    %720 = tpu.strided_load %arg11[%c22_1108, %c0_1109] {strides = array<i32: 2, 1>} : memref<32x128xf32, #tpu.memory_space<vmem>>, vector<1x128xf32>
    %c1_1110 = arith.constant 1 : index
    %c640_1111 = arith.constant 640 : index
    %721 = vector.load %arg12[%c1_1110, %c640_1111] : memref<128x1152xf32, #tpu.memory_space<vmem>>, vector<1x128xf32>
    tpu.vector_store %arg12[%c1_1110, %c640_1111], %720 {strides = array<i32>} : memref<128x1152xf32, #tpu.memory_space<vmem>>, vector<1x128xf32>,
    %c8_1112 = arith.constant 8 : index
    %c0_1113 = arith.constant 0 : index
    %722 = tpu.strided_load %arg11[%c8_1112, %c0_1113] {strides = array<i32: 2, 1>} : memref<32x128xf32, #tpu.memory_space<vmem>>, vector<1x128xf32>
    %c0_1114 = arith.constant 0 : index
    %c768_1115 = arith.constant 768 : index
    %723 = vector.load %arg12[%c0_1114, %c768_1115] : memref<128x1152xf32, #tpu.memory_space<vmem>>, vector<1x128xf32>
    tpu.vector_store %arg12[%c0_1114, %c768_1115], %722 {strides = array<i32>} : memref<128x1152xf32, #tpu.memory_space<vmem>>, vector<1x128xf32>,
    %c24_1116 = arith.constant 24 : index
    %c0_1117 = arith.constant 0 : index
    %724 = tpu.strided_load %arg11[%c24_1116, %c0_1117] {strides = array<i32: 2, 1>} : memref<32x128xf32, #tpu.memory_space<vmem>>, vector<1x128xf32>
    %c1_1118 = arith.constant 1 : index
    %c768_1119 = arith.constant 768 : index
    %725 = vector.load %arg12[%c1_1118, %c768_1119] : memref<128x1152xf32, #tpu.memory_space<vmem>>, vector<1x128xf32>
    tpu.vector_store %arg12[%c1_1118, %c768_1119], %724 {strides = array<i32>} : memref<128x1152xf32, #tpu.memory_space<vmem>>, vector<1x128xf32>,
    %c9_1120 = arith.constant 9 : index
    %c0_1121 = arith.constant 0 : index
    %726 = tpu.strided_load %arg11[%c9_1120, %c0_1121] {strides = array<i32: 2, 1>} : memref<32x128xf32, #tpu.memory_space<vmem>>, vector<1x128xf32>
    %c0_1122 = arith.constant 0 : index
    %c896_1123 = arith.constant 896 : index
    %727 = vector.load %arg12[%c0_1122, %c896_1123] : memref<128x1152xf32, #tpu.memory_space<vmem>>, vector<1x128xf32>
    tpu.vector_store %arg12[%c0_1122, %c896_1123], %726 {strides = array<i32>} : memref<128x1152xf32, #tpu.memory_space<vmem>>, vector<1x128xf32>,
    %c25_1124 = arith.constant 25 : index
    %c0_1125 = arith.constant 0 : index
    %728 = tpu.strided_load %arg11[%c25_1124, %c0_1125] {strides = array<i32: 2, 1>} : memref<32x128xf32, #tpu.memory_space<vmem>>, vector<1x128xf32>
    %c1_1126 = arith.constant 1 : index
    %c896_1127 = arith.constant 896 : index
    %729 = vector.load %arg12[%c1_1126, %c896_1127] : memref<128x1152xf32, #tpu.memory_space<vmem>>, vector<1x128xf32>
    tpu.vector_store %arg12[%c1_1126, %c896_1127], %728 {strides = array<i32>} : memref<128x1152xf32, #tpu.memory_space<vmem>>, vector<1x128xf32>,
    %c10_1128 = arith.constant 10 : index
    %c0_1129 = arith.constant 0 : index
    %730 = tpu.strided_load %arg11[%c10_1128, %c0_1129] {strides = array<i32: 2, 1>} : memref<32x128xf32, #tpu.memory_space<vmem>>, vector<1x128xf32>
    %c0_1130 = arith.constant 0 : index
    %c1024_1131 = arith.constant 1024 : index
    %731 = vector.load %arg12[%c0_1130, %c1024_1131] : memref<128x1152xf32, #tpu.memory_space<vmem>>, vector<1x128xf32>
    tpu.vector_store %arg12[%c0_1130, %c1024_1131], %730 {strides = array<i32>} : memref<128x1152xf32, #tpu.memory_space<vmem>>, vector<1x128xf32>,
    %c26_1132 = arith.constant 26 : index
    %c0_1133 = arith.constant 0 : index
    %732 = tpu.strided_load %arg11[%c26_1132, %c0_1133] {strides = array<i32: 2, 1>} : memref<32x128xf32, #tpu.memory_space<vmem>>, vector<1x128xf32>
    %c1_1134 = arith.constant 1 : index
    %c1024_1135 = arith.constant 1024 : index
    %733 = vector.load %arg12[%c1_1134, %c1024_1135] : memref<128x1152xf32, #tpu.memory_space<vmem>>, vector<1x128xf32>
    tpu.vector_store %arg12[%c1_1134, %c1024_1135], %732 {strides = array<i32>} : memref<128x1152xf32, #tpu.memory_space<vmem>>, vector<1x128xf32>,
    %c0_1136 = arith.constant 0 : index
    %c0_1137 = arith.constant 0 : index
    %734 = vector.load %arg12[%c0_1136, %c0_1137] : memref<128x1152xf32, #tpu.memory_space<vmem>>, vector<2x1152xf32>
    %735 = arith.truncf %734 : vector<2x1152xf32> to vector<2x1152xbf16>
    %c3 = arith.constant 3 : index
    %c0_1138 = arith.constant 0 : index
    %c0_1139 = arith.constant 0 : index
    %736 = vector.load %arg1[%c3, %c0_1138, %c0_1139] : memref<4x1152x128xbf16, #tpu.memory_space<vmem>>, vector<1x1152x128xbf16>
    %737 = vector.shape_cast %736 : vector<1x1152x128xbf16> to vector<1152x128xbf16>
    %cst_1140 = arith.constant dense<0.000000e+00> : vector<2x128xf32>
    %738 = tpu.matmul %735, %737, %cst_1140 {dimension_numbers = #tpu.dot_dimension_numbers<[1], [0], [0], [1], [0, 0, 1, 1], [], []>} : vector<2x1152xbf16>, vector<1152x128xbf16>, vector<2x128xf32> -> vector<2x128xf32>
    %c3_1141 = arith.constant 3 : index
    %c0_1142 = arith.constant 0 : index
    %c0_1143 = arith.constant 0 : index
    %739 = vector.load %arg2[%c3_1141, %c0_1142, %c0_1143] : memref<4x1x128xf32, #tpu.memory_space<vmem>>, vector<1x1x128xf32>
    %740 = vector.shape_cast %739 : vector<1x1x128xf32> to vector<1x128xf32>
    %741 = vector.broadcast %740 : vector<1x128xf32> to vector<2x128xf32>
    %742 = arith.addf %738, %741 : vector<2x128xf32>
    %cst_1144 = arith.constant 0.000000e+00 : f32
    %743 = vector.broadcast %cst_1144 : f32 to vector<2x128xf32>
    %744 = arith.cmpf ogt, %742, %743 : vector<2x128xf32>
    %cst_1145 = arith.constant 2.000000e-01 : f32
    %745 = vector.broadcast %cst_1145 : f32 to vector<2x128xf32>
    %746 = arith.mulf %745, %742 : vector<2x128xf32>
    %747 = arith.select %744, %742, %746 : vector<2x128xi1>, vector<2x128xf32>
    %c3_1146 = arith.constant 3 : index
    %c0_1147 = arith.constant 0 : index
    %c0_1148 = arith.constant 0 : index
    %748 = vector.load %arg3[%c3_1146, %c0_1147, %c0_1148] : memref<4x1x128xf32, #tpu.memory_space<vmem>>, vector<1x1x128xf32>
    %749 = vector.shape_cast %748 : vector<1x1x128xf32> to vector<1x128xf32>
    %750 = vector.broadcast %749 : vector<1x128xf32> to vector<2x128xf32>
    %751 = arith.mulf %747, %750 : vector<2x128xf32>
    %c3_1149 = arith.constant 3 : index
    %c0_1150 = arith.constant 0 : index
    %c0_1151 = arith.constant 0 : index
    %752 = vector.load %arg4[%c3_1149, %c0_1150, %c0_1151] : memref<4x1x128xf32, #tpu.memory_space<vmem>>, vector<1x1x128xf32>
    %753 = vector.shape_cast %752 : vector<1x1x128xf32> to vector<1x128xf32>
    %754 = vector.broadcast %753 : vector<1x128xf32> to vector<2x128xf32>
    %755 = arith.addf %751, %754 : vector<2x128xf32>
    %756 = arith.truncf %755 : vector<2x128xf32> to vector<2x128xbf16>
    %c0_1152 = arith.constant 0 : index
    %c0_1153 = arith.constant 0 : index
    %757 = vector.load %arg5[%c0_1152, %c0_1153] : memref<128x128xbf16, #tpu.memory_space<vmem>>, vector<128x128xbf16>
    %cst_1154 = arith.constant dense<0.000000e+00> : vector<2x128xf32>
    %758 = tpu.matmul %756, %757, %cst_1154 {dimension_numbers = #tpu.dot_dimension_numbers<[1], [0], [0], [1], [0, 0, 1, 1], [], []>} : vector<2x128xbf16>, vector<128x128xbf16>, vector<2x128xf32> -> vector<2x128xf32>
    %c0_1155 = arith.constant 0 : index
    %c0_1156 = arith.constant 0 : index
    %759 = vector.load %arg6[%c0_1155, %c0_1156] : memref<1x128xf32, #tpu.memory_space<vmem>>, vector<1x128xf32>
    %760 = vector.broadcast %759 : vector<1x128xf32> to vector<2x128xf32>
    %761 = arith.addf %758, %760 : vector<2x128xf32>
    %762 = tpu.iota {dimensions = array<i32: 1>} : vector<2x128xi32>
    %c1_i32 = arith.constant 1 : i32
    %763 = vector.broadcast %c1_i32 : i32 to vector<2x128xi32>
    %764 = arith.cmpi sge, %762, %763 : vector<2x128xi32>
    %c11_i32 = arith.constant 11 : i32
    %765 = vector.broadcast %c11_i32 : i32 to vector<2x128xi32>
    %766 = arith.cmpi slt, %762, %765 : vector<2x128xi32>
    %767 = arith.andi %764, %766 : vector<2x128xi1>
    %cst_1157 = arith.constant -1.000000e+30 : f32
    %768 = vector.broadcast %cst_1157 : f32 to vector<2x128xf32>
    %769 = arith.select %767, %761, %768 : vector<2x128xi1>, vector<2x128xf32>
    %cst_1158 = arith.constant dense<0xFF800000> : vector<2xf32>
    %770 = vector.multi_reduction <maximumf>, %769, %cst_1158 [1] : vector<2x128xf32> to vector<2xf32>
    %771 = vector.shape_cast %770 : vector<2xf32> to vector<2x1xf32>
    %772 = vector.broadcast %771 : vector<2x1xf32> to vector<2x128xf32>
    %773 = arith.subf %769, %772 : vector<2x128xf32>
    %774 = math.exp %773 : vector<2x128xf32>
    %cst_1159 = arith.constant dense<0.000000e+00> : vector<2xf32>
    %775 = vector.multi_reduction <add>, %774, %cst_1159 [1] : vector<2x128xf32> to vector<2xf32>
    %776 = vector.shape_cast %775 : vector<2xf32> to vector<2x1xf32>
    %777 = tpu.reciprocal %776 {approx = true} : vector<2x1xf32> -> vector<2x1xf32>
    %778 = vector.broadcast %777 : vector<2x1xf32> to vector<2x128xf32>
    %779 = arith.mulf %774, %778 : vector<2x128xf32>
    %780 = arith.select %767, %779, %761 : vector<2x128xi1>, vector<2x128xf32>
    %c0_1160 = arith.constant 0 : index
    %c0_1161 = arith.constant 0 : index
    %781 = vector.load %arg7[%c0_1160, %c0_1161] : memref<2x128xf32, #tpu.memory_space<vmem>>, vector<2x128xf32>
    tpu.vector_store %arg7[%c0_1160, %c0_1161], %780 {strides = array<i32>} : memref<2x128xf32, #tpu.memory_space<vmem>>, vector<2x128xf32>,
    return
  }
}

</mosaic_0001>

<llo_original>
// kernel: discriminator_forward.1
$region0: #{discriminator_forward.1}
  #allocation0 [shape = 'u32[]', space=smem, size = 0x4, offset = 0x4, fixed_abs, tag = 'smem constant byte address 0x4 - core index']
  #allocation1 [shape = 'u32[144,128]{1,0:T(1,128)}', space=vmem, size = 0x12000, scoped, tag = 'internal scratch']
  #allocation2 [shape = 'f32[648,128]{1,0:T(8,128)}', space=vmem, size = 0x51000, scoped, tag = 'scratch operand']
  #allocation3 [shape = 'f32[200,128]{1,0:T(8,128)}', space=vmem, size = 0x19000, scoped, tag = 'scratch operand']
  #allocation4 [shape = 'f32[72,128]{1,0:T(8,128)}', space=vmem, size = 0x9000, scoped, tag = 'scratch operand']
  #allocation5 [shape = 'f32[32,128]{1,0:T(8,128)}', space=vmem, size = 0x4000, scoped, tag = 'scratch operand']
  #allocation6 [shape = 'f32[128,1152]{1,0:T(8,128)}', space=vmem, size = 0x90000, scoped, tag = 'scratch operand']
  %s0 = inlined_call_operand.vmem [shape: f32[512,4], index: 0, kind: input, shape index: {}]
  %s1 = inlined_call_operand.hbm [shape: bf16[4,1152,128], index: 1, kind: input, shape index: {}]
  %s2 = inlined_call_operand.hbm [shape: f32[4,1,128], index: 2, kind: input, shape index: {}]
  %s3 = inlined_call_operand.hbm [shape: f32[4,1,128], index: 3, kind: input, shape index: {}]
  %s4 = inlined_call_operand.hbm [shape: f32[4,1,128], index: 4, kind: input, shape index: {}]
  %s5 = inlined_call_operand.hbm [shape: bf16[128,128], index: 5, kind: input, shape index: {}]
  %s6 = inlined_call_operand.hbm [shape: f32[1,128], index: 6, kind: input, shape index: {}]
  %s7 = inlined_call_operand.vmem [shape: f32[2,128], index: 7, kind: output, shape index: {}]
  %s8 = sld [smem:[#allocation0]]
  $region62: #{discriminator_forward.1} parent=0
    _
  %s10 = ssub.s32 1, %s8
  %s11 = scalar_select 0, %s10, %s8
  $region1: #{discriminator_forward.1} parent=0
    #allocation7 [shape = 'u8[1179648]{0}', space=vmem, size = 0x120000, scoped, tag = 'input window, operand 1, single buffered']
    #allocation8 [shape = 's32[1]{0}', space=sflag, size = 0x4, scoped, tag = 'scoped memory for discriminator_forward.1']
    #allocation9 [shape = 'u8[2048]{0}', space=vmem, size = 0x800, scoped, tag = 'input window, operand 2, single buffered']
    #allocation10 [shape = 's32[1]{0}', space=sflag, size = 0x4, scoped, tag = 'scoped memory for discriminator_forward.1']
    #allocation11 [shape = 'u8[2048]{0}', space=vmem, size = 0x800, scoped, tag = 'input window, operand 3, single buffered']
    #allocation12 [shape = 'u8[2048]{0}', space=vmem, size = 0x800, scoped, tag = 'input window, operand 4, single buffered']
    #allocation13 [shape = 's32[1]{0}', space=sflag, size = 0x4, scoped, tag = 'scoped memory for discriminator_forward.1']
    #allocation14 [shape = 'u8[32768]{0}', space=vmem, size = 0x8000, scoped, tag = 'input window, operand 5, single buffered']
    #allocation15 [shape = 'u8[512]{0}', space=vmem, size = 0x400, scoped, tag = 'input window, operand 6, single buffered']
    #allocation16 [shape = 's32[1]{0}', space=sflag, size = 0x4, scoped, tag = 'scoped memory for discriminator_forward.1']
    %12 = vsyncpa [#allocation8], 0
    %13 = vsyncpa [#allocation10], 0
    %14 = vsyncpa [#allocation13], 0
    %15 = vsyncpa [#allocation16], 0
    // Predicated region
    $region2: #{discriminator_forward.1} parent=1 // pred_check
      _
    $region3: #{discriminator_forward.1} parent=1 // pred_check_branch
      %17 = sbr.rel (0) target = $region5
    $region4: #{discriminator_forward.1} parent=1 // pred_region
      _
    $region5: #{discriminator_forward.1} parent=1 // pred_fallthru
      _
    // Predicated region
    $region6: #{discriminator_forward.1} parent=1 // pred_check
      _
    $region7: #{discriminator_forward.1} parent=1 // pred_check_branch
      %19 = sbr.rel (0) target = $region9
    $region8: #{discriminator_forward.1} parent=1 // pred_region
      %s21 = ssub.s32 36864, 36864
      %22 = vsyncadd [#allocation8], %s21
      %s23 = sshll.u32 [#allocation7], 4
      %s24 = int_to_ptr.vmem [resolvable:$true] %s23
      %29 = dma.hbm_to_vmem [thread:$0]  %s1, 36864, %s24, [#allocation8], 64, 64, 4
    $region9: #{discriminator_forward.1} parent=1 // pred_fallthru
      _
    // Predicated region
    $region10: #{discriminator_forward.1} parent=1 // pred_check
      _
    $region11: #{discriminator_forward.1} parent=1 // pred_check_branch
      %31 = sbr.rel (0) target = $region13
    $region12: #{discriminator_forward.1} parent=1 // pred_region
      %s33 = ssub.s32 64, 64
      %34 = vsyncadd [#allocation10], %s33
      %s35 = sshll.u32 [#allocation9], 4
      %s36 = int_to_ptr.vmem [resolvable:$true] %s35
      %41 = dma.hbm_to_vmem [thread:$0]  %s2, 64, %s36, [#allocation10], 16, 16, 1
    $region13: #{discriminator_forward.1} parent=1 // pred_fallthru
      _
    // Predicated region
    $region14: #{discriminator_forward.1} parent=1 // pred_check
      _
    $region15: #{discriminator_forward.1} parent=1 // pred_check_branch
      %43 = sbr.rel (0) target = $region17
    $region16: #{discriminator_forward.1} parent=1 // pred_region
      %s45 = ssub.s32 64, 64
      %46 = vsyncadd [#allocation10], %s45
      %s47 = sshll.u32 [#allocation11], 4
      %s48 = int_to_ptr.vmem [resolvable:$true] %s47
      %53 = dma.hbm_to_vmem [thread:$0]  %s3, 64, %s48, [#allocation10], 16, 16, 1
    $region17: #{discriminator_forward.1} parent=1 // pred_fallthru
      _
    // Predicated region
    $region18: #{discriminator_forward.1} parent=1 // pred_check
      _
    $region19: #{discriminator_forward.1} parent=1 // pred_check_branch
      %55 = sbr.rel (0) target = $region21
    $region20: #{discriminator_forward.1} parent=1 // pred_region
      %s57 = ssub.s32 64, 64
      %58 = vsyncadd [#allocation13], %s57
      %s59 = sshll.u32 [#allocation12], 4
      %s60 = int_to_ptr.vmem [resolvable:$true] %s59
      %65 = dma.hbm_to_vmem [thread:$0]  %s4, 64, %s60, [#allocation13], 16, 16, 1
    $region21: #{discriminator_forward.1} parent=1 // pred_fallthru
      _
    // Predicated region
    $region22: #{discriminator_forward.1} parent=1 // pred_check
      _
    $region23: #{discriminator_forward.1} parent=1 // pred_check_branch
      %67 = sbr.rel (0) target = $region25
    $region24: #{discriminator_forward.1} parent=1 // pred_region
      %s69 = ssub.s32 1024, 1024
      %70 = vsyncadd [#allocation13], %s69
      %s71 = sshll.u32 [#allocation14], 4
      %s72 = int_to_ptr.vmem [resolvable:$true] %s71
      %77 = dma.hbm_to_vmem [thread:$0]  %s5, 1024, %s72, [#allocation13], 64, 64, 4
    $region25: #{discriminator_forward.1} parent=1 // pred_fallthru
      _
    // Predicated region
    $region26: #{discriminator_forward.1} parent=1 // pred_check
      _
    $region27: #{discriminator_forward.1} parent=1 // pred_check_branch
      %79 = sbr.rel (0) target = $region29
    $region28: #{discriminator_forward.1} parent=1 // pred_region
      %s81 = ssub.s32 16, 16
      %82 = vsyncadd [#allocation16], %s81
      %s84 = sshll.u32 [#allocation15], 4
      %s85 = int_to_ptr.vmem [resolvable:$true] %s84
      %87 = dma.hbm_to_vmem [thread:$0]  %s6, 16, %s85, [#allocation16]
    $region29: #{discriminator_forward.1} parent=1 // pred_fallthru
      _
    // Predicated region
    $region30: #{discriminator_forward.1} parent=1 // pred_check
      _
    $region31: #{discriminator_forward.1} parent=1 // pred_check_branch
      %89 = sbr.rel (0) target = $region33
    $region32: #{discriminator_forward.1} parent=1 // pred_region
      %90 = dma.done [#allocation8], 36864
    $region33: #{discriminator_forward.1} parent=1 // pred_fallthru
      _
    // Predicated region
    $region34: #{discriminator_forward.1} parent=1 // pred_check
      _
    $region35: #{discriminator_forward.1} parent=1 // pred_check_branch
      %92 = sbr.rel (0) target = $region37
    $region36: #{discriminator_forward.1} parent=1 // pred_region
      %93 = dma.done [#allocation10], 64
    $region37: #{discriminator_forward.1} parent=1 // pred_fallthru
      _
    // Predicated region
    $region38: #{discriminator_forward.1} parent=1 // pred_check
      _
    $region39: #{discriminator_forward.1} parent=1 // pred_check_branch
      %95 = sbr.rel (0) target = $region41
    $region40: #{discriminator_forward.1} parent=1 // pred_region
      %96 = dma.done [#allocation10], 64
    $region41: #{discriminator_forward.1} parent=1 // pred_fallthru
      _
    // Predicated region
    $region42: #{discriminator_forward.1} parent=1 // pred_check
      _
    $region43: #{discriminator_forward.1} parent=1 // pred_check_branch
      %98 = sbr.rel (0) target = $region45
    $region44: #{discriminator_forward.1} parent=1 // pred_region
      %99 = dma.done [#allocation13], 64
    $region45: #{discriminator_forward.1} parent=1 // pred_fallthru
      _
    // Predicated region
    $region46: #{discriminator_forward.1} parent=1 // pred_check
      _
    $region47: #{discriminator_forward.1} parent=1 // pred_check_branch
      %101 = sbr.rel (0) target = $region49
    $region48: #{discriminator_forward.1} parent=1 // pred_region
      %102 = dma.done [#allocation13], 1024
    $region49: #{discriminator_forward.1} parent=1 // pred_fallthru
      _
    // Predicated region
    $region50: #{discriminator_forward.1} parent=1 // pred_check
      _
    $region51: #{discriminator_forward.1} parent=1 // pred_check_branch
      %104 = sbr.rel (0) target = $region53
    $region52: #{discriminator_forward.1} parent=1 // pred_region
      %105 = dma.done [#allocation16], 16
    $region53: #{discriminator_forward.1} parent=1 // pred_fallthru
      _
    %107 = vst [vmem:[#allocation2] sm:$0xff] 0.0
    %108 = vst [vmem:[#allocation2 + $0x8] sm:$0xff] 0.0
    %109 = vst [vmem:[#allocation2 + $0x10] sm:$0xff] 0.0
    %110 = vst [vmem:[#allocation2 + $0x18] sm:$0xff] 0.0
    %111 = vst [vmem:[#allocation2 + $0x20] sm:$0xff] 0.0
    %112 = vst [vmem:[#allocation2 + $0x28] sm:$0xff] 0.0
    %113 = vst [vmem:[#allocation2 + $0x30] sm:$0xff] 0.0
    %114 = vst [vmem:[#allocation2 + $0x38] sm:$0xff] 0.0
    %115 = vst [vmem:[#allocation2 + $0x40] sm:$0xff] 0.0
    %116 = vst [vmem:[#allocation2 + $0x48] sm:$0xff] 0.0
    %117 = vst [vmem:[#allocation2 + $0x50] sm:$0xff] 0.0
    %118 = vst [vmem:[#allocation2 + $0x58] sm:$0xff] 0.0
    %119 = vst [vmem:[#allocation2 + $0x60] sm:$0xff] 0.0
    %120 = vst [vmem:[#allocation2 + $0x68] sm:$0xff] 0.0
    %121 = vst [vmem:[#allocation2 + $0x70] sm:$0xff] 0.0
    %122 = vst [vmem:[#allocation2 + $0x78] sm:$0xff] 0.0
    %123 = vst [vmem:[#allocation2 + $0x80] sm:$0xff] 0.0
    %124 = vst [vmem:[#allocation2 + $0x88] sm:$0xff] 0.0
    %125 = vst [vmem:[#allocation2 + $0x90] sm:$0xff] 0.0
    %126 = vst [vmem:[#allocation2 + $0x98] sm:$0xff] 0.0
    %127 = vst [vmem:[#allocation2 + $0xa0] sm:$0xff] 0.0
    %128 = vst [vmem:[#allocation2 + $0xa8] sm:$0xff] 0.0
    %129 = vst [vmem:[#allocation2 + $0xb0] sm:$0xff] 0.0
    %130 = vst [vmem:[#allocation2 + $0xb8] sm:$0xff] 0.0
    %131 = vst [vmem:[#allocation2 + $0xc0] sm:$0xff] 0.0
    %132 = vst [vmem:[#allocation2 + $0xc8] sm:$0xff] 0.0
    %133 = vst [vmem:[#allocation2 + $0xd0] sm:$0xff] 0.0
    %134 = vst [vmem:[#allocation2 + $0xd8] sm:$0xff] 0.0
    %135 = vst [vmem:[#allocation2 + $0xe0] sm:$0xff] 0.0
    %136 = vst [vmem:[#allocation2 + $0xe8] sm:$0xff] 0.0
    %137 = vst [vmem:[#allocation2 + $0xf0] sm:$0xff] 0.0
    %138 = vst [vmem:[#allocation2 + $0xf8] sm:$0xff] 0.0
    %139 = vst [vmem:[#allocation2 + $0x100] sm:$0xff] 0.0
    %140 = vst [vmem:[#allocation2 + $0x108] sm:$0xff] 0.0
    %141 = vst [vmem:[#allocation2 + $0x110] sm:$0xff] 0.0
    %142 = vst [vmem:[#allocation2 + $0x118] sm:$0xff] 0.0
    %143 = vst [vmem:[#allocation2 + $0x120] sm:$0xff] 0.0
    %144 = vst [vmem:[#allocation2 + $0x128] sm:$0xff] 0.0
    %145 = vst [vmem:[#allocation2 + $0x130] sm:$0xff] 0.0
    %146 = vst [vmem:[#allocation2 + $0x138] sm:$0xff] 0.0
    %147 = vst [vmem:[#allocation2 + $0x140] sm:$0xff] 0.0
    %148 = vst [vmem:[#allocation2 + $0x148] sm:$0xff] 0.0
    %149 = vst [vmem:[#allocation2 + $0x150] sm:$0xff] 0.0
    %150 = vst [vmem:[#allocation2 + $0x158] sm:$0xff] 0.0
    %151 = vst [vmem:[#allocation2 + $0x160] sm:$0xff] 0.0
    %152 = vst [vmem:[#allocation2 + $0x168] sm:$0xff] 0.0
    %153 = vst [vmem:[#allocation2 + $0x170] sm:$0xff] 0.0
    %154 = vst [vmem:[#allocation2 + $0x178] sm:$0xff] 0.0
    %155 = vst [vmem:[#allocation2 + $0x180] sm:$0xff] 0.0
    %156 = vst [vmem:[#allocation2 + $0x188] sm:$0xff] 0.0
    %157 = vst [vmem:[#allocation2 + $0x190] sm:$0xff] 0.0
    %158 = vst [vmem:[#allocation2 + $0x198] sm:$0xff] 0.0
    %159 = vst [vmem:[#allocation2 + $0x1a0] sm:$0xff] 0.0
    %160 = vst [vmem:[#allocation2 + $0x1a8] sm:$0xff] 0.0
    %161 = vst [vmem:[#allocation2 + $0x1b0] sm:$0xff] 0.0
    %162 = vst [vmem:[#allocation2 + $0x1b8] sm:$0xff] 0.0
    %163 = vst [vmem:[#allocation2 + $0x1c0] sm:$0xff] 0.0
    %164 = vst [vmem:[#allocation2 + $0x1c8] sm:$0xff] 0.0
    %165 = vst [vmem:[#allocation2 + $0x1d0] sm:$0xff] 0.0
    %166 = vst [vmem:[#allocation2 + $0x1d8] sm:$0xff] 0.0
    %167 = vst [vmem:[#allocation2 + $0x1e0] sm:$0xff] 0.0
    %168 = vst [vmem:[#allocation2 + $0x1e8] sm:$0xff] 0.0
    %169 = vst [vmem:[#allocation2 + $0x1f0] sm:$0xff] 0.0
    %170 = vst [vmem:[#allocation2 + $0x1f8] sm:$0xff] 0.0
    %171 = vst [vmem:[#allocation2 + $0x200] sm:$0xff] 0.0
    %172 = vst [vmem:[#allocation2 + $0x208] sm:$0xff] 0.0
    %173 = vst [vmem:[#allocation2 + $0x210] sm:$0xff] 0.0
    %174 = vst [vmem:[#allocation2 + $0x218] sm:$0xff] 0.0
    %175 = vst [vmem:[#allocation2 + $0x220] sm:$0xff] 0.0
    %176 = vst [vmem:[#allocation2 + $0x228] sm:$0xff] 0.0
    %177 = vst [vmem:[#allocation2 + $0x230] sm:$0xff] 0.0
    %178 = vst [vmem:[#allocation2 + $0x238] sm:$0xff] 0.0
    %179 = vst [vmem:[#allocation2 + $0x240] sm:$0xff] 0.0
    %180 = vst [vmem:[#allocation2 + $0x248] sm:$0xff] 0.0
    %181 = vst [vmem:[#allocation2 + $0x250] sm:$0xff] 0.0
    %182 = vst [vmem:[#allocation2 + $0x258] sm:$0xff] 0.0
    %183 = vst [vmem:[#allocation2 + $0x260] sm:$0xff] 0.0
    %184 = vst [vmem:[#allocation2 + $0x268] sm:$0xff] 0.0
    %185 = vst [vmem:[#allocation2 + $0x270] sm:$0xff] 0.0
    %186 = vst [vmem:[#allocation2 + $0x278] sm:$0xff] 0.0
    %187 = vst [vmem:[#allocation2 + $0x280] sm:$0xff] 0.0
    %188 = vst [vmem:[#allocation3] sm:$0xff] 0.0
    %189 = vst [vmem:[#allocation3 + $0x8] sm:$0xff] 0.0
    %190 = vst [vmem:[#allocation3 + $0x10] sm:$0xff] 0.0
    %191 = vst [vmem:[#allocation3 + $0x18] sm:$0xff] 0.0
    %192 = vst [vmem:[#allocation3 + $0x20] sm:$0xff] 0.0
    %193 = vst [vmem:[#allocation3 + $0x28] sm:$0xff] 0.0
    %194 = vst [vmem:[#allocation3 + $0x30] sm:$0xff] 0.0
    %195 = vst [vmem:[#allocation3 + $0x38] sm:$0xff] 0.0
    %196 = vst [vmem:[#allocation3 + $0x40] sm:$0xff] 0.0
    %197 = vst [vmem:[#allocation3 + $0x48] sm:$0xff] 0.0
    %198 = vst [vmem:[#allocation3 + $0x50] sm:$0xff] 0.0
    %199 = vst [vmem:[#allocation3 + $0x58] sm:$0xff] 0.0
    %200 = vst [vmem:[#allocation3 + $0x60] sm:$0xff] 0.0
    %201 = vst [vmem:[#allocation3 + $0x68] sm:$0xff] 0.0
    %202 = vst [vmem:[#allocation3 + $0x70] sm:$0xff] 0.0
    %203 = vst [vmem:[#allocation3 + $0x78] sm:$0xff] 0.0
    %204 = vst [vmem:[#allocation3 + $0x80] sm:$0xff] 0.0
    %205 = vst [vmem:[#allocation3 + $0x88] sm:$0xff] 0.0
    %206 = vst [vmem:[#allocation3 + $0x90] sm:$0xff] 0.0
    %207 = vst [vmem:[#allocation3 + $0x98] sm:$0xff] 0.0
    %208 = vst [vmem:[#allocation3 + $0xa0] sm:$0xff] 0.0
    %209 = vst [vmem:[#allocation3 + $0xa8] sm:$0xff] 0.0
    %210 = vst [vmem:[#allocation3 + $0xb0] sm:$0xff] 0.0
    %211 = vst [vmem:[#allocation3 + $0xb8] sm:$0xff] 0.0
    %212 = vst [vmem:[#allocation3 + $0xc0] sm:$0xff] 0.0
    %213 = vst [vmem:[#allocation4] sm:$0xff] 0.0
    %214 = vst [vmem:[#allocation4 + $0x8] sm:$0xff] 0.0
    %215 = vst [vmem:[#allocation4 + $0x10] sm:$0xff] 0.0
    %216 = vst [vmem:[#allocation4 + $0x18] sm:$0xff] 0.0
    %217 = vst [vmem:[#allocation4 + $0x20] sm:$0xff] 0.0
    %218 = vst [vmem:[#allocation4 + $0x28] sm:$0xff] 0.0
    %219 = vst [vmem:[#allocation4 + $0x30] sm:$0xff] 0.0
    %220 = vst [vmem:[#allocation4 + $0x38] sm:$0xff] 0.0
    %221 = vst [vmem:[#allocation4 + $0x40] sm:$0xff] 0.0
    %222 = vst [vmem:[#allocation5] sm:$0xff] 0.0
    %223 = vst [vmem:[#allocation5 + $0x8] sm:$0xff] 0.0
    %224 = vst [vmem:[#allocation5 + $0x10] sm:$0xff] 0.0
    %225 = vst [vmem:[#allocation5 + $0x18] sm:$0xff] 0.0
    %v226 = vld [vmem:[%s0] sm:$0xff]
    %v227 = vld [vmem:[%s0 + $0x8] sm:$0xff]
    %vm228 = vcmask 31744
    %229 = vst.msk [vmem:[#allocation2 + $0x13] sm:$0xff] %vm228, %v226
    %230 = vst.msk [vmem:[#allocation2 + $0x1b] sm:$0xff] %vm228, %v227
    %v231 = vld [vmem:[%s0 + $0x10] sm:$0xff]
    %v232 = vld [vmem:[%s0 + $0x18] sm:$0xff]
    %233 = vst.msk [vmem:[#allocation2 + $0x25] sm:$0xff] %vm228, %v231
    %234 = vst.msk [vmem:[#allocation2 + $0x2d] sm:$0xff] %vm228, %v232
    %v235 = vld [vmem:[%s0 + $0x20] sm:$0xff]
    %v236 = vld [vmem:[%s0 + $0x28] sm:$0xff]
    %237 = vst.msk [vmem:[#allocation2 + $0x37] sm:$0xff] %vm228, %v235
    %238 = vst.msk [vmem:[#allocation2 + $0x3f] sm:$0xff] %vm228, %v236
    %v239 = vld [vmem:[%s0 + $0x30] sm:$0xff]
    %v240 = vld [vmem:[%s0 + $0x38] sm:$0xff]
    %241 = vst.msk [vmem:[#allocation2 + $0x49] sm:$0xff] %vm228, %v239
    %242 = vst.msk [vmem:[#allocation2 + $0x51] sm:$0xff] %vm228, %v240
    %v243 = vld [vmem:[%s0 + $0x40] sm:$0xff]
    %v244 = vld [vmem:[%s0 + $0x48] sm:$0xff]
    %245 = vst.msk [vmem:[#allocation2 + $0x5b] sm:$0xff] %vm228, %v243
    %246 = vst.msk [vmem:[#allocation2 + $0x63] sm:$0xff] %vm228, %v244
    %v247 = vld [vmem:[%s0 + $0x50] sm:$0xff]
    %v248 = vld [vmem:[%s0 + $0x58] sm:$0xff]
    %249 = vst.msk [vmem:[#allocation2 + $0x6d] sm:$0xff] %vm228, %v247
    %250 = vst.msk [vmem:[#allocation2 + $0x75] sm:$0xff] %vm228, %v248
    %v251 = vld [vmem:[%s0 + $0x60] sm:$0xff]
    %v252 = vld [vmem:[%s0 + $0x68] sm:$0xff]
    %253 = vst.msk [vmem:[#allocation2 + $0x7f] sm:$0xff] %vm228, %v251
    %254 = vst.msk [vmem:[#allocation2 + $0x87] sm:$0xff] %vm228, %v252
    %v255 = vld [vmem:[%s0 + $0x70] sm:$0xff]
    %v256 = vld [vmem:[%s0 + $0x78] sm:$0xff]
    %257 = vst.msk [vmem:[#allocation2 + $0x91] sm:$0xff] %vm228, %v255
    %258 = vst.msk [vmem:[#allocation2 + $0x99] sm:$0xff] %vm228, %v256
    %v259 = vld [vmem:[%s0 + $0x80] sm:$0xff]
    %v260 = vld [vmem:[%s0 + $0x88] sm:$0xff]
    %261 = vst.msk [vmem:[#allocation2 + $0xa3] sm:$0xff] %vm228, %v259
    %262 = vst.msk [vmem:[#allocation2 + $0xab] sm:$0xff] %vm228, %v260
    %v263 = vld [vmem:[%s0 + $0x90] sm:$0xff]
    %v264 = vld [vmem:[%s0 + $0x98] sm:$0xff]
    %265 = vst.msk [vmem:[#allocation2 + $0xb5] sm:$0xff] %vm228, %v263
    %266 = vst.msk [vmem:[#allocation2 + $0xbd] sm:$0xff] %vm228, %v264
    %v267 = vld [vmem:[%s0 + $0xa0] sm:$0xff]
    %v268 = vld [vmem:[%s0 + $0xa8] sm:$0xff]
    %269 = vst.msk [vmem:[#allocation2 + $0xc7] sm:$0xff] %vm228, %v267
    %270 = vst.msk [vmem:[#allocation2 + $0xcf] sm:$0xff] %vm228, %v268
    %v271 = vld [vmem:[%s0 + $0xb0] sm:$0xff]
    %v272 = vld [vmem:[%s0 + $0xb8] sm:$0xff]
    %273 = vst.msk [vmem:[#allocation2 + $0xd9] sm:$0xff] %vm228, %v271
    %274 = vst.msk [vmem:[#allocation2 + $0xe1] sm:$0xff] %vm228, %v272
    %v275 = vld [vmem:[%s0 + $0xc0] sm:$0xff]
    %v276 = vld [vmem:[%s0 + $0xc8] sm:$0xff]
    %277 = vst.msk [vmem:[#allocation2 + $0xeb] sm:$0xff] %vm228, %v275
    %278 = vst.msk [vmem:[#allocation2 + $0xf3] sm:$0xff] %vm228, %v276
    %v279 = vld [vmem:[%s0 + $0xd0] sm:$0xff]
    %v280 = vld [vmem:[%s0 + $0xd8] sm:$0xff]
    %281 = vst.msk [vmem:[#allocation2 + $0xfd] sm:$0xff] %vm228, %v279
    %282 = vst.msk [vmem:[#allocation2 + $0x105] sm:$0xff] %vm228, %v280
    %v283 = vld [vmem:[%s0 + $0xe0] sm:$0xff]
    %v284 = vld [vmem:[%s0 + $0xe8] sm:$0xff]
    %285 = vst.msk [vmem:[#allocation2 + $0x10f] sm:$0xff] %vm228, %v283
    %286 = vst.msk [vmem:[#allocation2 + $0x117] sm:$0xff] %vm228, %v284
    %v287 = vld [vmem:[%s0 + $0xf0] sm:$0xff]
    %v288 = vld [vmem:[%s0 + $0xf8] sm:$0xff]
    %289 = vst.msk [vmem:[#allocation2 + $0x121] sm:$0xff] %vm228, %v287
    %290 = vst.msk [vmem:[#allocation2 + $0x129] sm:$0xff] %vm228, %v288
    %v291 = vld [vmem:[%s0 + $0x100] sm:$0xff]
    %v292 = vld [vmem:[%s0 + $0x108] sm:$0xff]
    %293 = vst.msk [vmem:[#allocation2 + $0x157] sm:$0xff] %vm228, %v291
    %294 = vst.msk [vmem:[#allocation2 + $0x15f] sm:$0xff] %vm228, %v292
    %v295 = vld [vmem:[%s0 + $0x110] sm:$0xff]
    %v296 = vld [vmem:[%s0 + $0x118] sm:$0xff]
    %297 = vst.msk [vmem:[#allocation2 + $0x169] sm:$0xff] %vm228, %v295
    %298 = vst.msk [vmem:[#allocation2 + $0x171] sm:$0xff] %vm228, %v296
    %v299 = vld [vmem:[%s0 + $0x120] sm:$0xff]
    %v300 = vld [vmem:[%s0 + $0x128] sm:$0xff]
    %301 = vst.msk [vmem:[#allocation2 + $0x17b] sm:$0xff] %vm228, %v299
    %302 = vst.msk [vmem:[#allocation2 + $0x183] sm:$0xff] %vm228, %v300
    %v303 = vld [vmem:[%s0 + $0x130] sm:$0xff]
    %v304 = vld [vmem:[%s0 + $0x138] sm:$0xff]
    %305 = vst.msk [vmem:[#allocation2 + $0x18d] sm:$0xff] %vm228, %v303
    %306 = vst.msk [vmem:[#allocation2 + $0x195] sm:$0xff] %vm228, %v304
    %v307 = vld [vmem:[%s0 + $0x140] sm:$0xff]
    %v308 = vld [vmem:[%s0 + $0x148] sm:$0xff]
    %309 = vst.msk [vmem:[#allocation2 + $0x19f] sm:$0xff] %vm228, %v307
    %310 = vst.msk [vmem:[#allocation2 + $0x1a7] sm:$0xff] %vm228, %v308
    %v311 = vld [vmem:[%s0 + $0x150] sm:$0xff]
    %v312 = vld [vmem:[%s0 + $0x158] sm:$0xff]
    %313 = vst.msk [vmem:[#allocation2 + $0x1b1] sm:$0xff] %vm228, %v311
    %314 = vst.msk [vmem:[#allocation2 + $0x1b9] sm:$0xff] %vm228, %v312
    %v315 = vld [vmem:[%s0 + $0x160] sm:$0xff]
    %v316 = vld [vmem:[%s0 + $0x168] sm:$0xff]
    %317 = vst.msk [vmem:[#allocation2 + $0x1c3] sm:$0xff] %vm228, %v315
    %318 = vst.msk [vmem:[#allocation2 + $0x1cb] sm:$0xff] %vm228, %v316
    %v319 = vld [vmem:[%s0 + $0x170] sm:$0xff]
    %v320 = vld [vmem:[%s0 + $0x178] sm:$0xff]
    %321 = vst.msk [vmem:[#allocation2 + $0x1d5] sm:$0xff] %vm228, %v319
    %322 = vst.msk [vmem:[#allocation2 + $0x1dd] sm:$0xff] %vm228, %v320
    %v323 = vld [vmem:[%s0 + $0x180] sm:$0xff]
    %v324 = vld [vmem:[%s0 + $0x188] sm:$0xff]
    %325 = vst.msk [vmem:[#allocation2 + $0x1e7] sm:$0xff] %vm228, %v323
    %326 = vst.msk [vmem:[#allocation2 + $0x1ef] sm:$0xff] %vm228, %v324
    %v327 = vld [vmem:[%s0 + $0x190] sm:$0xff]
    %v328 = vld [vmem:[%s0 + $0x198] sm:$0xff]
    %329 = vst.msk [vmem:[#allocation2 + $0x1f9] sm:$0xff] %vm228, %v327
    %330 = vst.msk [vmem:[#allocation2 + $0x201] sm:$0xff] %vm228, %v328
    %v331 = vld [vmem:[%s0 + $0x1a0] sm:$0xff]
    %v332 = vld [vmem:[%s0 + $0x1a8] sm:$0xff]
    %333 = vst.msk [vmem:[#allocation2 + $0x20b] sm:$0xff] %vm228, %v331
    %334 = vst.msk [vmem:[#allocation2 + $0x213] sm:$0xff] %vm228, %v332
    %v335 = vld [vmem:[%s0 + $0x1b0] sm:$0xff]
    %v336 = vld [vmem:[%s0 + $0x1b8] sm:$0xff]
    %337 = vst.msk [vmem:[#allocation2 + $0x21d] sm:$0xff] %vm228, %v335
    %338 = vst.msk [vmem:[#allocation2 + $0x225] sm:$0xff] %vm228, %v336
    %v339 = vld [vmem:[%s0 + $0x1c0] sm:$0xff]
    %v340 = vld [vmem:[%s0 + $0x1c8] sm:$0xff]
    %341 = vst.msk [vmem:[#allocation2 + $0x22f] sm:$0xff] %vm228, %v339
    %342 = vst.msk [vmem:[#allocation2 + $0x237] sm:$0xff] %vm228, %v340
    %v343 = vld [vmem:[%s0 + $0x1d0] sm:$0xff]
    %v344 = vld [vmem:[%s0 + $0x1d8] sm:$0xff]
    %345 = vst.msk [vmem:[#allocation2 + $0x241] sm:$0xff] %vm228, %v343
    %346 = vst.msk [vmem:[#allocation2 + $0x249] sm:$0xff] %vm228, %v344
    %v347 = vld [vmem:[%s0 + $0x1e0] sm:$0xff]
    %v348 = vld [vmem:[%s0 + $0x1e8] sm:$0xff]
    %349 = vst.msk [vmem:[#allocation2 + $0x253] sm:$0xff] %vm228, %v347
    %350 = vst.msk [vmem:[#allocation2 + $0x25b] sm:$0xff] %vm228, %v348
    %v351 = vld [vmem:[%s0 + $0x1f0] sm:$0xff]
    %v352 = vld [vmem:[%s0 + $0x1f8] sm:$0xff]
    %353 = vst.msk [vmem:[#allocation2 + $0x265] sm:$0xff] %vm228, %v351
    %354 = vst.msk [vmem:[#allocation2 + $0x26d] sm:$0xff] %vm228, %v352
    %v355 = vld [vmem:[#allocation2] ss:$2 sm:$0xff]
    %356 = vst [vmem:[#allocation6] sm:$0xff] %v355
    %s357 = scalar_lea.vmem [#allocation2], 36
    %v358 = vld [vmem:[%s357] ss:$2 sm:$0xff]
    %359 = vst [vmem:[#allocation6 + $0x48] sm:$0xff] %v358
    %s360 = scalar_lea.vmem [#allocation2], 72
    %v361 = vld [vmem:[%s360] ss:$2 sm:$0xff]
    %362 = vst [vmem:[#allocation6 + $0x90] sm:$0xff] %v361
    %s363 = scalar_lea.vmem [#allocation2], 108
    %v364 = vld [vmem:[%s363] ss:$2 sm:$0xff]
    %365 = vst [vmem:[#allocation6 + $0xd8] sm:$0xff] %v364
    %s366 = scalar_lea.vmem [#allocation2], 144
    %v367 = vld [vmem:[%s366] ss:$2 sm:$0xff]
    %368 = vst [vmem:[#allocation6 + $0x120] sm:$0xff] %v367
    %s369 = scalar_lea.vmem [#allocation2], 180
    %v370 = vld [vmem:[%s369] ss:$2 sm:$0xff]
    %371 = vst [vmem:[#allocation6 + $0x168] sm:$0xff] %v370
    %s372 = scalar_lea.vmem [#allocation2], 216
    %v373 = vld [vmem:[%s372] ss:$2 sm:$0xff]
    %374 = vst [vmem:[#allocation6 + $0x1b0] sm:$0xff] %v373
    %s375 = scalar_lea.vmem [#allocation2], 252
    %v376 = vld [vmem:[%s375] ss:$2 sm:$0xff]
    %377 = vst [vmem:[#allocation6 + $0x1f8] sm:$0xff] %v376
    %s378 = scalar_lea.vmem [#allocation2], 324
    %v379 = vld [vmem:[%s378] ss:$2 sm:$0xff]
    %380 = vst [vmem:[#allocation6 + $0x240] sm:$0xff] %v379
    %s381 = scalar_lea.vmem [#allocation2], 360
    %v382 = vld [vmem:[%s381] ss:$2 sm:$0xff]
    %383 = vst [vmem:[#allocation6 + $0x288] sm:$0xff] %v382
    %s384 = scalar_lea.vmem [#allocation2], 396
    %v385 = vld [vmem:[%s384] ss:$2 sm:$0xff]
    %386 = vst [vmem:[#allocation6 + $0x2d0] sm:$0xff] %v385
    %s387 = scalar_lea.vmem [#allocation2], 432
    %v388 = vld [vmem:[%s387] ss:$2 sm:$0xff]
    %389 = vst [vmem:[#allocation6 + $0x318] sm:$0xff] %v388
    %s390 = scalar_lea.vmem [#allocation2], 468
    %v391 = vld [vmem:[%s390] ss:$2 sm:$0xff]
    %392 = vst [vmem:[#allocation6 + $0x360] sm:$0xff] %v391
    %s393 = scalar_lea.vmem [#allocation2], 504
    %v394 = vld [vmem:[%s393] ss:$2 sm:$0xff]
    %395 = vst [vmem:[#allocation6 + $0x3a8] sm:$0xff] %v394
    %s396 = scalar_lea.vmem [#allocation2], 540
    %v397 = vld [vmem:[%s396] ss:$2 sm:$0xff]
    %398 = vst [vmem:[#allocation6 + $0x3f0] sm:$0xff] %v397
    %s399 = scalar_lea.vmem [#allocation2], 576
    %v400 = vld [vmem:[%s399] ss:$2 sm:$0xff]
    %401 = vst [vmem:[#allocation6 + $0x438] sm:$0xff] %v400
    %s402 = scalar_lea.vmem [#allocation2], 1
    %v403 = vld [vmem:[%s402] ss:$2 sm:$0xff]
    %404 = vst [vmem:[#allocation6 + $0x8] sm:$0xff] %v403
    %s405 = scalar_lea.vmem [#allocation2], 37
    %v406 = vld [vmem:[%s405] ss:$2 sm:$0xff]
    %407 = vst [vmem:[#allocation6 + $0x50] sm:$0xff] %v406
    %s408 = scalar_lea.vmem [#allocation2], 73
    %v409 = vld [vmem:[%s408] ss:$2 sm:$0xff]
    %410 = vst [vmem:[#allocation6 + $0x98] sm:$0xff] %v409
    %s411 = scalar_lea.vmem [#allocation2], 109
    %v412 = vld [vmem:[%s411] ss:$2 sm:$0xff]
    %413 = vst [vmem:[#allocation6 + $0xe0] sm:$0xff] %v412
    %s414 = scalar_lea.vmem [#allocation2], 145
    %v415 = vld [vmem:[%s414] ss:$2 sm:$0xff]
    %416 = vst [vmem:[#allocation6 + $0x128] sm:$0xff] %v415
    %s417 = scalar_lea.vmem [#allocation2], 181
    %v418 = vld [vmem:[%s417] ss:$2 sm:$0xff]
    %419 = vst [vmem:[#allocation6 + $0x170] sm:$0xff] %v418
    %s420 = scalar_lea.vmem [#allocation2], 217
    %v421 = vld [vmem:[%s420] ss:$2 sm:$0xff]
    %422 = vst [vmem:[#allocation6 + $0x1b8] sm:$0xff] %v421
    %s423 = scalar_lea.vmem [#allocation2], 253
    %v424 = vld [vmem:[%s423] ss:$2 sm:$0xff]
    %425 = vst [vmem:[#allocation6 + $0x200] sm:$0xff] %v424
    %s426 = scalar_lea.vmem [#allocation2], 325
    %v427 = vld [vmem:[%s426] ss:$2 sm:$0xff]
    %428 = vst [vmem:[#allocation6 + $0x248] sm:$0xff] %v427
    %s429 = scalar_lea.vmem [#allocation2], 361
    %v430 = vld [vmem:[%s429] ss:$2 sm:$0xff]
    %431 = vst [vmem:[#allocation6 + $0x290] sm:$0xff] %v430
    %s432 = scalar_lea.vmem [#allocation2], 397
    %v433 = vld [vmem:[%s432] ss:$2 sm:$0xff]
    %434 = vst [vmem:[#allocation6 + $0x2d8] sm:$0xff] %v433
    %s435 = scalar_lea.vmem [#allocation2], 433
    %v436 = vld [vmem:[%s435] ss:$2 sm:$0xff]
    %437 = vst [vmem:[#allocation6 + $0x320] sm:$0xff] %v436
    %s438 = scalar_lea.vmem [#allocation2], 469
    %v439 = vld [vmem:[%s438] ss:$2 sm:$0xff]
    %440 = vst [vmem:[#allocation6 + $0x368] sm:$0xff] %v439
    %s441 = scalar_lea.vmem [#allocation2], 505
    %v442 = vld [vmem:[%s441] ss:$2 sm:$0xff]
    %443 = vst [vmem:[#allocation6 + $0x3b0] sm:$0xff] %v442
    %s444 = scalar_lea.vmem [#allocation2], 541
    %v445 = vld [vmem:[%s444] ss:$2 sm:$0xff]
    %446 = vst [vmem:[#allocation6 + $0x3f8] sm:$0xff] %v445
    %s447 = scalar_lea.vmem [#allocation2], 577
    %v448 = vld [vmem:[%s447] ss:$2 sm:$0xff]
    %449 = vst [vmem:[#allocation6 + $0x440] sm:$0xff] %v448
    %s450 = scalar_lea.vmem [#allocation2], 2
    %v451 = vld [vmem:[%s450] ss:$2 sm:$0xff]
    %452 = vst [vmem:[#allocation6 + $0x10] sm:$0xff] %v451
    %s453 = scalar_lea.vmem [#allocation2], 38
    %v454 = vld [vmem:[%s453] ss:$2 sm:$0xff]
    %455 = vst [vmem:[#allocation6 + $0x58] sm:$0xff] %v454
    %s456 = scalar_lea.vmem [#allocation2], 74
    %v457 = vld [vmem:[%s456] ss:$2 sm:$0xff]
    %458 = vst [vmem:[#allocation6 + $0xa0] sm:$0xff] %v457
    %s459 = scalar_lea.vmem [#allocation2], 110
    %v460 = vld [vmem:[%s459] ss:$2 sm:$0xff]
    %461 = vst [vmem:[#allocation6 + $0xe8] sm:$0xff] %v460
    %s462 = scalar_lea.vmem [#allocation2], 146
    %v463 = vld [vmem:[%s462] ss:$2 sm:$0xff]
    %464 = vst [vmem:[#allocation6 + $0x130] sm:$0xff] %v463
    %s465 = scalar_lea.vmem [#allocation2], 182
    %v466 = vld [vmem:[%s465] ss:$2 sm:$0xff]
    %467 = vst [vmem:[#allocation6 + $0x178] sm:$0xff] %v466
    %s468 = scalar_lea.vmem [#allocation2], 218
    %v469 = vld [vmem:[%s468] ss:$2 sm:$0xff]
    %470 = vst [vmem:[#allocation6 + $0x1c0] sm:$0xff] %v469
    %s471 = scalar_lea.vmem [#allocation2], 254
    %v472 = vld [vmem:[%s471] ss:$2 sm:$0xff]
    %473 = vst [vmem:[#allocation6 + $0x208] sm:$0xff] %v472
    %s474 = scalar_lea.vmem [#allocation2], 326
    %v475 = vld [vmem:[%s474] ss:$2 sm:$0xff]
    %476 = vst [vmem:[#allocation6 + $0x250] sm:$0xff] %v475
    %s477 = scalar_lea.vmem [#allocation2], 362
    %v478 = vld [vmem:[%s477] ss:$2 sm:$0xff]
    %479 = vst [vmem:[#allocation6 + $0x298] sm:$0xff] %v478
    %s480 = scalar_lea.vmem [#allocation2], 398
    %v481 = vld [vmem:[%s480] ss:$2 sm:$0xff]
    %482 = vst [vmem:[#allocation6 + $0x2e0] sm:$0xff] %v481
    %s483 = scalar_lea.vmem [#allocation2], 434
    %v484 = vld [vmem:[%s483] ss:$2 sm:$0xff]
    %485 = vst [vmem:[#allocation6 + $0x328] sm:$0xff] %v484
    %s486 = scalar_lea.vmem [#allocation2], 470
    %v487 = vld [vmem:[%s486] ss:$2 sm:$0xff]
    %488 = vst [vmem:[#allocation6 + $0x370] sm:$0xff] %v487
    %s489 = scalar_lea.vmem [#allocation2], 506
    %v490 = vld [vmem:[%s489] ss:$2 sm:$0xff]
    %491 = vst [vmem:[#allocation6 + $0x3b8] sm:$0xff] %v490
    %s492 = scalar_lea.vmem [#allocation2], 542
    %v493 = vld [vmem:[%s492] ss:$2 sm:$0xff]
    %494 = vst [vmem:[#allocation6 + $0x400] sm:$0xff] %v493
    %s495 = scalar_lea.vmem [#allocation2], 578
    %v496 = vld [vmem:[%s495] ss:$2 sm:$0xff]
    %497 = vst [vmem:[#allocation6 + $0x448] sm:$0xff] %v496
    %s498 = scalar_lea.vmem [#allocation2], 18
    %v499 = vld [vmem:[%s498] ss:$2 sm:$0xff]
    %500 = vst [vmem:[#allocation6 + $0x18] sm:$0xff] %v499
    %s501 = scalar_lea.vmem [#allocation2], 54
    %v502 = vld [vmem:[%s501] ss:$2 sm:$0xff]
    %503 = vst [vmem:[#allocation6 + $0x60] sm:$0xff] %v502
    %s504 = scalar_lea.vmem [#allocation2], 90
    %v505 = vld [vmem:[%s504] ss:$2 sm:$0xff]
    %506 = vst [vmem:[#allocation6 + $0xa8] sm:$0xff] %v505
    %s507 = scalar_lea.vmem [#allocation2], 126
    %v508 = vld [vmem:[%s507] ss:$2 sm:$0xff]
    %509 = vst [vmem:[#allocation6 + $0xf0] sm:$0xff] %v508
    %s510 = scalar_lea.vmem [#allocation2], 162
    %v511 = vld [vmem:[%s510] ss:$2 sm:$0xff]
    %512 = vst [vmem:[#allocation6 + $0x138] sm:$0xff] %v511
    %s513 = scalar_lea.vmem [#allocation2], 198
    %v514 = vld [vmem:[%s513] ss:$2 sm:$0xff]
    %515 = vst [vmem:[#allocation6 + $0x180] sm:$0xff] %v514
    %s516 = scalar_lea.vmem [#allocation2], 234
    %v517 = vld [vmem:[%s516] ss:$2 sm:$0xff]
    %518 = vst [vmem:[#allocation6 + $0x1c8] sm:$0xff] %v517
    %s519 = scalar_lea.vmem [#allocation2], 270
    %v520 = vld [vmem:[%s519] ss:$2 sm:$0xff]
    %521 = vst [vmem:[#allocation6 + $0x210] sm:$0xff] %v520
    %s522 = scalar_lea.vmem [#allocation2], 342
    %v523 = vld [vmem:[%s522] ss:$2 sm:$0xff]
    %524 = vst [vmem:[#allocation6 + $0x258] sm:$0xff] %v523
    %s525 = scalar_lea.vmem [#allocation2], 378
    %v526 = vld [vmem:[%s525] ss:$2 sm:$0xff]
    %527 = vst [vmem:[#allocation6 + $0x2a0] sm:$0xff] %v526
    %s528 = scalar_lea.vmem [#allocation2], 414
    %v529 = vld [vmem:[%s528] ss:$2 sm:$0xff]
    %530 = vst [vmem:[#allocation6 + $0x2e8] sm:$0xff] %v529
    %s531 = scalar_lea.vmem [#allocation2], 450
    %v532 = vld [vmem:[%s531] ss:$2 sm:$0xff]
    %533 = vst [vmem:[#allocation6 + $0x330] sm:$0xff] %v532
    %s534 = scalar_lea.vmem [#allocation2], 486
    %v535 = vld [vmem:[%s534] ss:$2 sm:$0xff]
    %536 = vst [vmem:[#allocation6 + $0x378] sm:$0xff] %v535
    %s537 = scalar_lea.vmem [#allocation2], 522
    %v538 = vld [vmem:[%s537] ss:$2 sm:$0xff]
    %539 = vst [vmem:[#allocation6 + $0x3c0] sm:$0xff] %v538
    %s540 = scalar_lea.vmem [#allocation2], 558
    %v541 = vld [vmem:[%s540] ss:$2 sm:$0xff]
    %542 = vst [vmem:[#allocation6 + $0x408] sm:$0xff] %v541
    %s543 = scalar_lea.vmem [#allocation2], 594
    %v544 = vld [vmem:[%s543] ss:$2 sm:$0xff]
    %545 = vst [vmem:[#allocation6 + $0x450] sm:$0xff] %v544
    %s546 = scalar_lea.vmem [#allocation2], 19
    %v547 = vld [vmem:[%s546] ss:$2 sm:$0xff]
    %548 = vst [vmem:[#allocation6 + $0x20] sm:$0xff] %v547
    %s549 = scalar_lea.vmem [#allocation2], 55
    %v550 = vld [vmem:[%s549] ss:$2 sm:$0xff]
    %551 = vst [vmem:[#allocation6 + $0x68] sm:$0xff] %v550
    %s552 = scalar_lea.vmem [#allocation2], 91
    %v553 = vld [vmem:[%s552] ss:$2 sm:$0xff]
    %554 = vst [vmem:[#allocation6 + $0xb0] sm:$0xff] %v553
    %s555 = scalar_lea.vmem [#allocation2], 127
    %v556 = vld [vmem:[%s555] ss:$2 sm:$0xff]
    %557 = vst [vmem:[#allocation6 + $0xf8] sm:$0xff] %v556
    %s558 = scalar_lea.vmem [#allocation2], 163
    %v559 = vld [vmem:[%s558] ss:$2 sm:$0xff]
    %560 = vst [vmem:[#allocation6 + $0x140] sm:$0xff] %v559
    %s561 = scalar_lea.vmem [#allocation2], 199
    %v562 = vld [vmem:[%s561] ss:$2 sm:$0xff]
    %563 = vst [vmem:[#allocation6 + $0x188] sm:$0xff] %v562
    %s564 = scalar_lea.vmem [#allocation2], 235
    %v565 = vld [vmem:[%s564] ss:$2 sm:$0xff]
    %566 = vst [vmem:[#allocation6 + $0x1d0] sm:$0xff] %v565
    %s567 = scalar_lea.vmem [#allocation2], 271
    %v568 = vld [vmem:[%s567] ss:$2 sm:$0xff]
    %569 = vst [vmem:[#allocation6 + $0x218] sm:$0xff] %v568
    %s570 = scalar_lea.vmem [#allocation2], 343
    %v571 = vld [vmem:[%s570] ss:$2 sm:$0xff]
    %572 = vst [vmem:[#allocation6 + $0x260] sm:$0xff] %v571
    %s573 = scalar_lea.vmem [#allocation2], 379
    %v574 = vld [vmem:[%s573] ss:$2 sm:$0xff]
    %575 = vst [vmem:[#allocation6 + $0x2a8] sm:$0xff] %v574
    %s576 = scalar_lea.vmem [#allocation2], 415
    %v577 = vld [vmem:[%s576] ss:$2 sm:$0xff]
    %578 = vst [vmem:[#allocation6 + $0x2f0] sm:$0xff] %v577
    %s579 = scalar_lea.vmem [#allocation2], 451
    %v580 = vld [vmem:[%s579] ss:$2 sm:$0xff]
    %581 = vst [vmem:[#allocation6 + $0x338] sm:$0xff] %v580
    %s582 = scalar_lea.vmem [#allocation2], 487
    %v583 = vld [vmem:[%s582] ss:$2 sm:$0xff]
    %584 = vst [vmem:[#allocation6 + $0x380] sm:$0xff] %v583
    %s585 = scalar_lea.vmem [#allocation2], 523
    %v586 = vld [vmem:[%s585] ss:$2 sm:$0xff]
    %587 = vst [vmem:[#allocation6 + $0x3c8] sm:$0xff] %v586
    %s588 = scalar_lea.vmem [#allocation2], 559
    %v589 = vld [vmem:[%s588] ss:$2 sm:$0xff]
    %590 = vst [vmem:[#allocation6 + $0x410] sm:$0xff] %v589
    %s591 = scalar_lea.vmem [#allocation2], 595
    %v592 = vld [vmem:[%s591] ss:$2 sm:$0xff]
    %593 = vst [vmem:[#allocation6 + $0x458] sm:$0xff] %v592
    %s594 = scalar_lea.vmem [#allocation2], 20
    %v595 = vld [vmem:[%s594] ss:$2 sm:$0xff]
    %596 = vst [vmem:[#allocation6 + $0x28] sm:$0xff] %v595
    %s597 = scalar_lea.vmem [#allocation2], 56
    %v598 = vld [vmem:[%s597] ss:$2 sm:$0xff]
    %599 = vst [vmem:[#allocation6 + $0x70] sm:$0xff] %v598
    %s600 = scalar_lea.vmem [#allocation2], 92
    %v601 = vld [vmem:[%s600] ss:$2 sm:$0xff]
    %602 = vst [vmem:[#allocation6 + $0xb8] sm:$0xff] %v601
    %s603 = scalar_lea.vmem [#allocation2], 128
    %v604 = vld [vmem:[%s603] ss:$2 sm:$0xff]
    %605 = vst [vmem:[#allocation6 + $0x100] sm:$0xff] %v604
    %s606 = scalar_lea.vmem [#allocation2], 164
    %v607 = vld [vmem:[%s606] ss:$2 sm:$0xff]
    %608 = vst [vmem:[#allocation6 + $0x148] sm:$0xff] %v607
    %s609 = scalar_lea.vmem [#allocation2], 200
    %v610 = vld [vmem:[%s609] ss:$2 sm:$0xff]
    %611 = vst [vmem:[#allocation6 + $0x190] sm:$0xff] %v610
    %s612 = scalar_lea.vmem [#allocation2], 236
    %v613 = vld [vmem:[%s612] ss:$2 sm:$0xff]
    %614 = vst [vmem:[#allocation6 + $0x1d8] sm:$0xff] %v613
    %s615 = scalar_lea.vmem [#allocation2], 272
    %v616 = vld [vmem:[%s615] ss:$2 sm:$0xff]
    %617 = vst [vmem:[#allocation6 + $0x220] sm:$0xff] %v616
    %s618 = scalar_lea.vmem [#allocation2], 344
    %v619 = vld [vmem:[%s618] ss:$2 sm:$0xff]
    %620 = vst [vmem:[#allocation6 + $0x268] sm:$0xff] %v619
    %s621 = scalar_lea.vmem [#allocation2], 380
    %v622 = vld [vmem:[%s621] ss:$2 sm:$0xff]
    %623 = vst [vmem:[#allocation6 + $0x2b0] sm:$0xff] %v622
    %s624 = scalar_lea.vmem [#allocation2], 416
    %v625 = vld [vmem:[%s624] ss:$2 sm:$0xff]
    %626 = vst [vmem:[#allocation6 + $0x2f8] sm:$0xff] %v625
    %s627 = scalar_lea.vmem [#allocation2], 452
    %v628 = vld [vmem:[%s627] ss:$2 sm:$0xff]
    %629 = vst [vmem:[#allocation6 + $0x340] sm:$0xff] %v628
    %s630 = scalar_lea.vmem [#allocation2], 488
    %v631 = vld [vmem:[%s630] ss:$2 sm:$0xff]
    %632 = vst [vmem:[#allocation6 + $0x388] sm:$0xff] %v631
    %s633 = scalar_lea.vmem [#allocation2], 524
    %v634 = vld [vmem:[%s633] ss:$2 sm:$0xff]
    %635 = vst [vmem:[#allocation6 + $0x3d0] sm:$0xff] %v634
    %s636 = scalar_lea.vmem [#allocation2], 560
    %v637 = vld [vmem:[%s636] ss:$2 sm:$0xff]
    %638 = vst [vmem:[#allocation6 + $0x418] sm:$0xff] %v637
    %s639 = scalar_lea.vmem [#allocation2], 596
    %v640 = vld [vmem:[%s639] ss:$2 sm:$0xff]
    %641 = vst [vmem:[#allocation6 + $0x460] sm:$0xff] %v640
    %v642 = vld [vmem:[%s357] ss:$2 sm:$0xff]
    %643 = vst [vmem:[#allocation6 + $0x30] sm:$0xff] %v642
    %v644 = vld [vmem:[%s360] ss:$2 sm:$0xff]
    %645 = vst [vmem:[#allocation6 + $0x78] sm:$0xff] %v644
    %v646 = vld [vmem:[%s363] ss:$2 sm:$0xff]
    %647 = vst [vmem:[#allocation6 + $0xc0] sm:$0xff] %v646
    %v648 = vld [vmem:[%s366] ss:$2 sm:$0xff]
    %649 = vst [vmem:[#allocation6 + $0x108] sm:$0xff] %v648
    %v650 = vld [vmem:[%s369] ss:$2 sm:$0xff]
    %651 = vst [vmem:[#allocation6 + $0x150] sm:$0xff] %v650
    %v652 = vld [vmem:[%s372] ss:$2 sm:$0xff]
    %653 = vst [vmem:[#allocation6 + $0x198] sm:$0xff] %v652
    %v654 = vld [vmem:[%s375] ss:$2 sm:$0xff]
    %655 = vst [vmem:[#allocation6 + $0x1e0] sm:$0xff] %v654
    %s656 = scalar_lea.vmem [#allocation2], 288
    %v657 = vld [vmem:[%s656] ss:$2 sm:$0xff]
    %658 = vst [vmem:[#allocation6 + $0x228] sm:$0xff] %v657
    %v659 = vld [vmem:[%s381] ss:$2 sm:$0xff]
    %660 = vst [vmem:[#allocation6 + $0x270] sm:$0xff] %v659
    %v661 = vld [vmem:[%s384] ss:$2 sm:$0xff]
    %662 = vst [vmem:[#allocation6 + $0x2b8] sm:$0xff] %v661
    %v663 = vld [vmem:[%s387] ss:$2 sm:$0xff]
    %664 = vst [vmem:[#allocation6 + $0x300] sm:$0xff] %v663
    %v665 = vld [vmem:[%s390] ss:$2 sm:$0xff]
    %666 = vst [vmem:[#allocation6 + $0x348] sm:$0xff] %v665
    %v667 = vld [vmem:[%s393] ss:$2 sm:$0xff]
    %668 = vst [vmem:[#allocation6 + $0x390] sm:$0xff] %v667
    %v669 = vld [vmem:[%s396] ss:$2 sm:$0xff]
    %670 = vst [vmem:[#allocation6 + $0x3d8] sm:$0xff] %v669
    %v671 = vld [vmem:[%s399] ss:$2 sm:$0xff]
    %672 = vst [vmem:[#allocation6 + $0x420] sm:$0xff] %v671
    %s673 = scalar_lea.vmem [#allocation2], 612
    %v674 = vld [vmem:[%s673] ss:$2 sm:$0xff]
    %675 = vst [vmem:[#allocation6 + $0x468] sm:$0xff] %v674
    %v676 = vld [vmem:[%s405] ss:$2 sm:$0xff]
    %677 = vst [vmem:[#allocation6 + $0x38] sm:$0xff] %v676
    %v678 = vld [vmem:[%s408] ss:$2 sm:$0xff]
    %679 = vst [vmem:[#allocation6 + $0x80] sm:$0xff] %v678
    %v680 = vld [vmem:[%s411] ss:$2 sm:$0xff]
    %681 = vst [vmem:[#allocation6 + $0xc8] sm:$0xff] %v680
    %v682 = vld [vmem:[%s414] ss:$2 sm:$0xff]
    %683 = vst [vmem:[#allocation6 + $0x110] sm:$0xff] %v682
    %v684 = vld [vmem:[%s417] ss:$2 sm:$0xff]
    %685 = vst [vmem:[#allocation6 + $0x158] sm:$0xff] %v684
    %v686 = vld [vmem:[%s420] ss:$2 sm:$0xff]
    %687 = vst [vmem:[#allocation6 + $0x1a0] sm:$0xff] %v686
    %v688 = vld [vmem:[%s423] ss:$2 sm:$0xff]
    %689 = vst [vmem:[#allocation6 + $0x1e8] sm:$0xff] %v688
    %s690 = scalar_lea.vmem [#allocation2], 289
    %v691 = vld [vmem:[%s690] ss:$2 sm:$0xff]
    %692 = vst [vmem:[#allocation6 + $0x230] sm:$0xff] %v691
    %v693 = vld [vmem:[%s429] ss:$2 sm:$0xff]
    %694 = vst [vmem:[#allocation6 + $0x278] sm:$0xff] %v693
    %v695 = vld [vmem:[%s432] ss:$2 sm:$0xff]
    %696 = vst [vmem:[#allocation6 + $0x2c0] sm:$0xff] %v695
    %v697 = vld [vmem:[%s435] ss:$2 sm:$0xff]
    %698 = vst [vmem:[#allocation6 + $0x308] sm:$0xff] %v697
    %v699 = vld [vmem:[%s438] ss:$2 sm:$0xff]
    %700 = vst [vmem:[#allocation6 + $0x350] sm:$0xff] %v699
    %v701 = vld [vmem:[%s441] ss:$2 sm:$0xff]
    %702 = vst [vmem:[#allocation6 + $0x398] sm:$0xff] %v701
    %v703 = vld [vmem:[%s444] ss:$2 sm:$0xff]
    %704 = vst [vmem:[#allocation6 + $0x3e0] sm:$0xff] %v703
    %v705 = vld [vmem:[%s447] ss:$2 sm:$0xff]
    %706 = vst [vmem:[#allocation6 + $0x428] sm:$0xff] %v705
    %s707 = scalar_lea.vmem [#allocation2], 613
    %v708 = vld [vmem:[%s707] ss:$2 sm:$0xff]
    %709 = vst [vmem:[#allocation6 + $0x470] sm:$0xff] %v708
    %v710 = vld [vmem:[%s453] ss:$2 sm:$0xff]
    %711 = vst [vmem:[#allocation6 + $0x40] sm:$0xff] %v710
    %v712 = vld [vmem:[%s456] ss:$2 sm:$0xff]
    %713 = vst [vmem:[#allocation6 + $0x88] sm:$0xff] %v712
    %v714 = vld [vmem:[%s459] ss:$2 sm:$0xff]
    %715 = vst [vmem:[#allocation6 + $0xd0] sm:$0xff] %v714
    %v716 = vld [vmem:[%s462] ss:$2 sm:$0xff]
    %717 = vst [vmem:[#allocation6 + $0x118] sm:$0xff] %v716
    %v718 = vld [vmem:[%s465] ss:$2 sm:$0xff]
    %719 = vst [vmem:[#allocation6 + $0x160] sm:$0xff] %v718
    %v720 = vld [vmem:[%s468] ss:$2 sm:$0xff]
    %721 = vst [vmem:[#allocation6 + $0x1a8] sm:$0xff] %v720
    %v722 = vld [vmem:[%s471] ss:$2 sm:$0xff]
    %723 = vst [vmem:[#allocation6 + $0x1f0] sm:$0xff] %v722
    %s724 = scalar_lea.vmem [#allocation2], 290
    %v725 = vld [vmem:[%s724] ss:$2 sm:$0xff]
    %726 = vst [vmem:[#allocation6 + $0x238] sm:$0xff] %v725
    %v727 = vld [vmem:[%s477] ss:$2 sm:$0xff]
    %728 = vst [vmem:[#allocation6 + $0x280] sm:$0xff] %v727
    %v729 = vld [vmem:[%s480] ss:$2 sm:$0xff]
    %730 = vst [vmem:[#allocation6 + $0x2c8] sm:$0xff] %v729
    %v731 = vld [vmem:[%s483] ss:$2 sm:$0xff]
    %732 = vst [vmem:[#allocation6 + $0x310] sm:$0xff] %v731
    %v733 = vld [vmem:[%s486] ss:$2 sm:$0xff]
    %734 = vst [vmem:[#allocation6 + $0x358] sm:$0xff] %v733
    %v735 = vld [vmem:[%s489] ss:$2 sm:$0xff]
    %736 = vst [vmem:[#allocation6 + $0x3a0] sm:$0xff] %v735
    %v737 = vld [vmem:[%s492] ss:$2 sm:$0xff]
    %738 = vst [vmem:[#allocation6 + $0x3e8] sm:$0xff] %v737
    %v739 = vld [vmem:[%s495] ss:$2 sm:$0xff]
    %740 = vst [vmem:[#allocation6 + $0x430] sm:$0xff] %v739
    %s741 = scalar_lea.vmem [#allocation2], 614
    %v742 = vld [vmem:[%s741] ss:$2 sm:$0xff]
    %743 = vst [vmem:[#allocation6 + $0x478] sm:$0xff] %v742
    %v744 = vld [vmem:[#allocation6] sm:$0xff]
    %v745 = vld [vmem:[#allocation6 + $0x8] sm:$0xff]
    %v746 = vld [vmem:[#allocation6 + $0x10] sm:$0xff]
    %v747 = vld [vmem:[#allocation6 + $0x18] sm:$0xff]
    %v748 = vld [vmem:[#allocation6 + $0x20] sm:$0xff]
    %v749 = vld [vmem:[#allocation6 + $0x28] sm:$0xff]
    %v750 = vld [vmem:[#allocation6 + $0x30] sm:$0xff]
    %v751 = vld [vmem:[#allocation6 + $0x38] sm:$0xff]
    %v752 = vld [vmem:[#allocation6 + $0x40] sm:$0xff]
    %v753 = vld [vmem:[#allocation6 + $0x48] sm:$0xff]
    %v754 = vld [vmem:[#allocation6 + $0x50] sm:$0xff]
    %v755 = vld [vmem:[#allocation6 + $0x58] sm:$0xff]
    %v756 = vld [vmem:[#allocation6 + $0x60] sm:$0xff]
    %v757 = vld [vmem:[#allocation6 + $0x68] sm:$0xff]
    %v758 = vld [vmem:[#allocation6 + $0x70] sm:$0xff]
    %v759 = vld [vmem:[#allocation6 + $0x78] sm:$0xff]
    %v760 = vld [vmem:[#allocation6 + $0x80] sm:$0xff]
    %v761 = vld [vmem:[#allocation6 + $0x88] sm:$0xff]
    %v762 = vld [vmem:[#allocation6 + $0x90] sm:$0xff]
    %v763 = vld [vmem:[#allocation6 + $0x98] sm:$0xff]
    %v764 = vld [vmem:[#allocation6 + $0xa0] sm:$0xff]
    %v765 = vld [vmem:[#allocation6 + $0xa8] sm:$0xff]
    %v766 = vld [vmem:[#allocation6 + $0xb0] sm:$0xff]
    %v767 = vld [vmem:[#allocation6 + $0xb8] sm:$0xff]
    %v768 = vld [vmem:[#allocation6 + $0xc0] sm:$0xff]
    %v769 = vld [vmem:[#allocation6 + $0xc8] sm:$0xff]
    %v770 = vld [vmem:[#allocation6 + $0xd0] sm:$0xff]
    %v771 = vld [vmem:[#allocation6 + $0xd8] sm:$0xff]
    %v772 = vld [vmem:[#allocation6 + $0xe0] sm:$0xff]
    %v773 = vld [vmem:[#allocation6 + $0xe8] sm:$0xff]
    %v774 = vld [vmem:[#allocation6 + $0xf0] sm:$0xff]
    %v775 = vld [vmem:[#allocation6 + $0xf8] sm:$0xff]
    %v776 = vld [vmem:[#allocation6 + $0x100] sm:$0xff]
    %v777 = vld [vmem:[#allocation6 + $0x108] sm:$0xff]
    %v778 = vld [vmem:[#allocation6 + $0x110] sm:$0xff]
    %v779 = vld [vmem:[#allocation6 + $0x118] sm:$0xff]
    %v780 = vld [vmem:[#allocation6 + $0x120] sm:$0xff]
    %v781 = vld [vmem:[#allocation6 + $0x128] sm:$0xff]
    %v782 = vld [vmem:[#allocation6 + $0x130] sm:$0xff]
    %v783 = vld [vmem:[#allocation6 + $0x138] sm:$0xff]
    %v784 = vld [vmem:[#allocation6 + $0x140] sm:$0xff]
    %v785 = vld [vmem:[#allocation6 + $0x148] sm:$0xff]
    %v786 = vld [vmem:[#allocation6 + $0x150] sm:$0xff]
    %v787 = vld [vmem:[#allocation6 + $0x158] sm:$0xff]
    %v788 = vld [vmem:[#allocation6 + $0x160] sm:$0xff]
    %v789 = vld [vmem:[#allocation6 + $0x168] sm:$0xff]
    %v790 = vld [vmem:[#allocation6 + $0x170] sm:$0xff]
    %v791 = vld [vmem:[#allocation6 + $0x178] sm:$0xff]
    %v792 = vld [vmem:[#allocation6 + $0x180] sm:$0xff]
    %v793 = vld [vmem:[#allocation6 + $0x188] sm:$0xff]
    %v794 = vld [vmem:[#allocation6 + $0x190] sm:$0xff]
    %v795 = vld [vmem:[#allocation6 + $0x198] sm:$0xff]
    %v796 = vld [vmem:[#allocation6 + $0x1a0] sm:$0xff]
    %v797 = vld [vmem:[#allocation6 + $0x1a8] sm:$0xff]
    %v798 = vld [vmem:[#allocation6 + $0x1b0] sm:$0xff]
    %v799 = vld [vmem:[#allocation6 + $0x1b8] sm:$0xff]
    %v800 = vld [vmem:[#allocation6 + $0x1c0] sm:$0xff]
    %v801 = vld [vmem:[#allocation6 + $0x1c8] sm:$0xff]
    %v802 = vld [vmem:[#allocation6 + $0x1d0] sm:$0xff]
    %v803 = vld [vmem:[#allocation6 + $0x1d8] sm:$0xff]
    %v804 = vld [vmem:[#allocation6 + $0x1e0] sm:$0xff]
    %v805 = vld [vmem:[#allocation6 + $0x1e8] sm:$0xff]
    %v806 = vld [vmem:[#allocation6 + $0x1f0] sm:$0xff]
    %v807 = vld [vmem:[#allocation6 + $0x1f8] sm:$0xff]
    %v808 = vld [vmem:[#allocation6 + $0x200] sm:$0xff]
    %v809 = vld [vmem:[#allocation6 + $0x208] sm:$0xff]
    %v810 = vld [vmem:[#allocation6 + $0x210] sm:$0xff]
    %v811 = vld [vmem:[#allocation6 + $0x218] sm:$0xff]
    %v812 = vld [vmem:[#allocation6 + $0x220] sm:$0xff]
    %v813 = vld [vmem:[#allocation6 + $0x228] sm:$0xff]
    %v814 = vld [vmem:[#allocation6 + $0x230] sm:$0xff]
    %v815 = vld [vmem:[#allocation6 + $0x238] sm:$0xff]
    %v816 = vld [vmem:[#allocation6 + $0x240] sm:$0xff]
    %v817 = vld [vmem:[#allocation6 + $0x248] sm:$0xff]
    %v818 = vld [vmem:[#allocation6 + $0x250] sm:$0xff]
    %v819 = vld [vmem:[#allocation6 + $0x258] sm:$0xff]
    %v820 = vld [vmem:[#allocation6 + $0x260] sm:$0xff]
    %v821 = vld [vmem:[#allocation6 + $0x268] sm:$0xff]
    %v822 = vld [vmem:[#allocation6 + $0x270] sm:$0xff]
    %v823 = vld [vmem:[#allocation6 + $0x278] sm:$0xff]
    %v824 = vld [vmem:[#allocation6 + $0x280] sm:$0xff]
    %v825 = vld [vmem:[#allocation6 + $0x288] sm:$0xff]
    %v826 = vld [vmem:[#allocation6 + $0x290] sm:$0xff]
    %v827 = vld [vmem:[#allocation6 + $0x298] sm:$0xff]
    %v828 = vld [vmem:[#allocation6 + $0x2a0] sm:$0xff]
    %v829 = vld [vmem:[#allocation6 + $0x2a8] sm:$0xff]
    %v830 = vld [vmem:[#allocation6 + $0x2b0] sm:$0xff]
    %v831 = vld [vmem:[#allocation6 + $0x2b8] sm:$0xff]
    %v832 = vld [vmem:[#allocation6 + $0x2c0] sm:$0xff]
    %v833 = vld [vmem:[#allocation6 + $0x2c8] sm:$0xff]
    %v834 = vld [vmem:[#allocation6 + $0x2d0] sm:$0xff]
    %v835 = vld [vmem:[#allocation6 + $0x2d8] sm:$0xff]
    %v836 = vld [vmem:[#allocation6 + $0x2e0] sm:$0xff]
    %v837 = vld [vmem:[#allocation6 + $0x2e8] sm:$0xff]
    %v838 = vld [vmem:[#allocation6 + $0x2f0] sm:$0xff]
    %v839 = vld [vmem:[#allocation6 + $0x2f8] sm:$0xff]
    %v840 = vld [vmem:[#allocation6 + $0x300] sm:$0xff]
    %v841 = vld [vmem:[#allocation6 + $0x308] sm:$0xff]
    %v842 = vld [vmem:[#allocation6 + $0x310] sm:$0xff]
    %v843 = vld [vmem:[#allocation6 + $0x318] sm:$0xff]
    %v844 = vld [vmem:[#allocation6 + $0x320] sm:$0xff]
    %v845 = vld [vmem:[#allocation6 + $0x328] sm:$0xff]
    %v846 = vld [vmem:[#allocation6 + $0x330] sm:$0xff]
    %v847 = vld [vmem:[#allocation6 + $0x338] sm:$0xff]
    %v848 = vld [vmem:[#allocation6 + $0x340] sm:$0xff]
    %v849 = vld [vmem:[#allocation6 + $0x348] sm:$0xff]
    %v850 = vld [vmem:[#allocation6 + $0x350] sm:$0xff]
    %v851 = vld [vmem:[#allocation6 + $0x358] sm:$0xff]
    %v852 = vld [vmem:[#allocation6 + $0x360] sm:$0xff]
    %v853 = vld [vmem:[#allocation6 + $0x368] sm:$0xff]
    %v854 = vld [vmem:[#allocation6 + $0x370] sm:$0xff]
    %v855 = vld [vmem:[#allocation6 + $0x378] sm:$0xff]
    %v856 = vld [vmem:[#allocation6 + $0x380] sm:$0xff]
    %v857 = vld [vmem:[#allocation6 + $0x388] sm:$0xff]
    %v858 = vld [vmem:[#allocation6 + $0x390] sm:$0xff]
    %v859 = vld [vmem:[#allocation6 + $0x398] sm:$0xff]
    %v860 = vld [vmem:[#allocation6 + $0x3a0] sm:$0xff]
    %v861 = vld [vmem:[#allocation6 + $0x3a8] sm:$0xff]
    %v862 = vld [vmem:[#allocation6 + $0x3b0] sm:$0xff]
    %v863 = vld [vmem:[#allocation6 + $0x3b8] sm:$0xff]
    %v864 = vld [vmem:[#allocation6 + $0x3c0] sm:$0xff]
    %v865 = vld [vmem:[#allocation6 + $0x3c8] sm:$0xff]
    %v866 = vld [vmem:[#allocation6 + $0x3d0] sm:$0xff]
    %v867 = vld [vmem:[#allocation6 + $0x3d8] sm:$0xff]
    %v868 = vld [vmem:[#allocation6 + $0x3e0] sm:$0xff]
    %v869 = vld [vmem:[#allocation6 + $0x3e8] sm:$0xff]
    %v870 = vld [vmem:[#allocation6 + $0x3f0] sm:$0xff]
    %v871 = vld [vmem:[#allocation6 + $0x3f8] sm:$0xff]
    %v872 = vld [vmem:[#allocation6 + $0x400] sm:$0xff]
    %v873 = vld [vmem:[#allocation6 + $0x408] sm:$0xff]
    %v874 = vld [vmem:[#allocation6 + $0x410] sm:$0xff]
    %v875 = vld [vmem:[#allocation6 + $0x418] sm:$0xff]
    %v876 = vld [vmem:[#allocation6 + $0x420] sm:$0xff]
    %v877 = vld [vmem:[#allocation6 + $0x428] sm:$0xff]
    %v878 = vld [vmem:[#allocation6 + $0x430] sm:$0xff]
    %v879 = vld [vmem:[#allocation6 + $0x438] sm:$0xff]
    %v880 = vld [vmem:[#allocation6 + $0x440] sm:$0xff]
    %v881 = vld [vmem:[#allocation6 + $0x448] sm:$0xff]
    %v882 = vld [vmem:[#allocation6 + $0x450] sm:$0xff]
    %v883 = vld [vmem:[#allocation6 + $0x458] sm:$0xff]
    %v884 = vld [vmem:[#allocation6 + $0x460] sm:$0xff]
    %v885 = vld [vmem:[#allocation6 + $0x468] sm:$0xff]
    %v886 = vld [vmem:[#allocation6 + $0x470] sm:$0xff]
    %v887 = vld [vmem:[#allocation6 + $0x478] sm:$0xff]
    %v888 = vpack.c.bf16 %v753, %v744
    %v889 = vpack.c.bf16 %v754, %v745
    %v890 = vpack.c.bf16 %v755, %v746
    %v891 = vpack.c.bf16 %v756, %v747
    %v892 = vpack.c.bf16 %v757, %v748
    %v893 = vpack.c.bf16 %v758, %v749
    %v894 = vpack.c.bf16 %v759, %v750
    %v895 = vpack.c.bf16 %v760, %v751
    %v896 = vpack.c.bf16 %v761, %v752
    %v897 = vpack.c.bf16 %v771, %v762
    %v898 = vpack.c.bf16 %v772, %v763
    %v899 = vpack.c.bf16 %v773, %v764
    %v900 = vpack.c.bf16 %v774, %v765
    %v901 = vpack.c.bf16 %v775, %v766
    %v902 = vpack.c.bf16 %v776, %v767
    %v903 = vpack.c.bf16 %v777, %v768
    %v904 = vpack.c.bf16 %v778, %v769
    %v905 = vpack.c.bf16 %v779, %v770
    %v906 = vpack.c.bf16 %v789, %v780
    %v907 = vpack.c.bf16 %v790, %v781
    %v908 = vpack.c.bf16 %v791, %v782
    %v909 = vpack.c.bf16 %v792, %v783
    %v910 = vpack.c.bf16 %v793, %v784
    %v911 = vpack.c.bf16 %v794, %v785
    %v912 = vpack.c.bf16 %v795, %v786
    %v913 = vpack.c.bf16 %v796, %v787
    %v914 = vpack.c.bf16 %v797, %v788
    %v915 = vpack.c.bf16 %v807, %v798
    %v916 = vpack.c.bf16 %v808, %v799
    %v917 = vpack.c.bf16 %v809, %v800
    %v918 = vpack.c.bf16 %v810, %v801
    %v919 = vpack.c.bf16 %v811, %v802
    %v920 = vpack.c.bf16 %v812, %v803
    %v921 = vpack.c.bf16 %v813, %v804
    %v922 = vpack.c.bf16 %v814, %v805
    %v923 = vpack.c.bf16 %v815, %v806
    %v924 = vpack.c.bf16 %v825, %v816
    %v925 = vpack.c.bf16 %v826, %v817
    %v926 = vpack.c.bf16 %v827, %v818
    %v927 = vpack.c.bf16 %v828, %v819
    %v928 = vpack.c.bf16 %v829, %v820
    %v929 = vpack.c.bf16 %v830, %v821
    %v930 = vpack.c.bf16 %v831, %v822
    %v931 = vpack.c.bf16 %v832, %v823
    %v932 = vpack.c.bf16 %v833, %v824
    %v933 = vpack.c.bf16 %v843, %v834
    %v934 = vpack.c.bf16 %v844, %v835
    %v935 = vpack.c.bf16 %v845, %v836
    %v936 = vpack.c.bf16 %v846, %v837
    %v937 = vpack.c.bf16 %v847, %v838
    %v938 = vpack.c.bf16 %v848, %v839
    %v939 = vpack.c.bf16 %v849, %v840
    %v940 = vpack.c.bf16 %v850, %v841
    %v941 = vpack.c.bf16 %v851, %v842
    %v942 = vpack.c.bf16 %v861, %v852
    %v943 = vpack.c.bf16 %v862, %v853
    %v944 = vpack.c.bf16 %v863, %v854
    %v945 = vpack.c.bf16 %v864, %v855
    %v946 = vpack.c.bf16 %v865, %v856
    %v947 = vpack.c.bf16 %v866, %v857
    %v948 = vpack.c.bf16 %v867, %v858
    %v949 = vpack.c.bf16 %v868, %v859
    %v950 = vpack.c.bf16 %v869, %v860
    %v951 = vpack.c.bf16 %v879, %v870
    %v952 = vpack.c.bf16 %v880, %v871
    %v953 = vpack.c.bf16 %v881, %v872
    %v954 = vpack.c.bf16 %v882, %v873
    %v955 = vpack.c.bf16 %v883, %v874
    %v956 = vpack.c.bf16 %v884, %v875
    %v957 = vpack.c.bf16 %v885, %v876
    %v958 = vpack.c.bf16 %v886, %v877
    %v959 = vpack.c.bf16 %v887, %v878
    %v960 = vld [vmem:[#allocation7] sm:$0xf]
    %v961 = vld [vmem:[#allocation7 + $0x4] sm:$0xf]
    %v962 = vld [vmem:[#allocation7 + $0x8] sm:$0xf]
    %v963 = vld [vmem:[#allocation7 + $0xc] sm:$0xf]
    %v964 = vld [vmem:[#allocation7 + $0x10] sm:$0xf]
    %v965 = vld [vmem:[#allocation7 + $0x14] sm:$0xf]
    %v966 = vld [vmem:[#allocation7 + $0x18] sm:$0xf]
    %v967 = vld [vmem:[#allocation7 + $0x1c] sm:$0xf]
    %v968 = vld [vmem:[#allocation7 + $0x20] sm:$0xf]
    %v969 = vld [vmem:[#allocation7 + $0x24] sm:$0xf]
    %v970 = vld [vmem:[#allocation7 + $0x28] sm:$0xf]
    %v971 = vld [vmem:[#allocation7 + $0x2c] sm:$0xf]
    %v972 = vld [vmem:[#allocation7 + $0x30] sm:$0xf]
    %v973 = vld [vmem:[#allocation7 + $0x34] sm:$0xf]
    %v974 = vld [vmem:[#allocation7 + $0x38] sm:$0xf]
    %v975 = vld [vmem:[#allocation7 + $0x3c] sm:$0xf]
    %v976 = vld [vmem:[#allocation7 + $0x40] sm:$0xf]
    %v977 = vld [vmem:[#allocation7 + $0x44] sm:$0xf]
    %v978 = vld [vmem:[#allocation7 + $0x48] sm:$0xf]
    %v979 = vld [vmem:[#allocation7 + $0x4c] sm:$0xf]
    %v980 = vld [vmem:[#allocation7 + $0x50] sm:$0xf]
    %v981 = vld [vmem:[#allocation7 + $0x54] sm:$0xf]
    %v982 = vld [vmem:[#allocation7 + $0x58] sm:$0xf]
    %v983 = vld [vmem:[#allocation7 + $0x5c] sm:$0xf]
    %v984 = vld [vmem:[#allocation7 + $0x60] sm:$0xf]
    %v985 = vld [vmem:[#allocation7 + $0x64] sm:$0xf]
    %v986 = vld [vmem:[#allocation7 + $0x68] sm:$0xf]
    %v987 = vld [vmem:[#allocation7 + $0x6c] sm:$0xf]
    %v988 = vld [vmem:[#allocation7 + $0x70] sm:$0xf]
    %v989 = vld [vmem:[#allocation7 + $0x74] sm:$0xf]
    %v990 = vld [vmem:[#allocation7 + $0x78] sm:$0xf]
    %v991 = vld [vmem:[#allocation7 + $0x7c] sm:$0xf]
    %v992 = vld [vmem:[#allocation7 + $0x80] sm:$0xf]
    %v993 = vld [vmem:[#allocation7 + $0x84] sm:$0xf]
    %v994 = vld [vmem:[#allocation7 + $0x88] sm:$0xf]
    %v995 = vld [vmem:[#allocation7 + $0x8c] sm:$0xf]
    %v996 = vld [vmem:[#allocation7 + $0x90] sm:$0xf]
    %v997 = vld [vmem:[#allocation7 + $0x94] sm:$0xf]
    %v998 = vld [vmem:[#allocation7 + $0x98] sm:$0xf]
    %v999 = vld [vmem:[#allocation7 + $0x9c] sm:$0xf]
    %v1000 = vld [vmem:[#allocation7 + $0xa0] sm:$0xf]
    %v1001 = vld [vmem:[#allocation7 + $0xa4] sm:$0xf]
    %v1002 = vld [vmem:[#allocation7 + $0xa8] sm:$0xf]
    %v1003 = vld [vmem:[#allocation7 + $0xac] sm:$0xf]
    %v1004 = vld [vmem:[#allocation7 + $0xb0] sm:$0xf]
    %v1005 = vld [vmem:[#allocation7 + $0xb4] sm:$0xf]
    %v1006 = vld [vmem:[#allocation7 + $0xb8] sm:$0xf]
    %v1007 = vld [vmem:[#allocation7 + $0xbc] sm:$0xf]
    %v1008 = vld [vmem:[#allocation7 + $0xc0] sm:$0xf]
    %v1009 = vld [vmem:[#allocation7 + $0xc4] sm:$0xf]
    %v1010 = vld [vmem:[#allocation7 + $0xc8] sm:$0xf]
    %v1011 = vld [vmem:[#allocation7 + $0xcc] sm:$0xf]
    %v1012 = vld [vmem:[#allocation7 + $0xd0] sm:$0xf]
    %v1013 = vld [vmem:[#allocation7 + $0xd4] sm:$0xf]
    %v1014 = vld [vmem:[#allocation7 + $0xd8] sm:$0xf]
    %v1015 = vld [vmem:[#allocation7 + $0xdc] sm:$0xf]
    %v1016 = vld [vmem:[#allocation7 + $0xe0] sm:$0xf]
    %v1017 = vld [vmem:[#allocation7 + $0xe4] sm:$0xf]
    %v1018 = vld [vmem:[#allocation7 + $0xe8] sm:$0xf]
    %v1019 = vld [vmem:[#allocation7 + $0xec] sm:$0xf]
    %v1020 = vld [vmem:[#allocation7 + $0xf0] sm:$0xf]
    %v1021 = vld [vmem:[#allocation7 + $0xf4] sm:$0xf]
    %v1022 = vld [vmem:[#allocation7 + $0xf8] sm:$0xf]
    %v1023 = vld [vmem:[#allocation7 + $0xfc] sm:$0xf]
    %v1024 = vld [vmem:[#allocation7 + $0x100] sm:$0xf]
    %v1025 = vld [vmem:[#allocation7 + $0x104] sm:$0xf]
    %v1026 = vld [vmem:[#allocation7 + $0x108] sm:$0xf]
    %v1027 = vld [vmem:[#allocation7 + $0x10c] sm:$0xf]
    %v1028 = vld [vmem:[#allocation7 + $0x110] sm:$0xf]
    %v1029 = vld [vmem:[#allocation7 + $0x114] sm:$0xf]
    %v1030 = vld [vmem:[#allocation7 + $0x118] sm:$0xf]
    %v1031 = vld [vmem:[#allocation7 + $0x11c] sm:$0xf]
    %v1032 = vld [vmem:[#allocation7 + $0x120] sm:$0xf]
    %v1033 = vld [vmem:[#allocation7 + $0x124] sm:$0xf]
    %v1034 = vld [vmem:[#allocation7 + $0x128] sm:$0xf]
    %v1035 = vld [vmem:[#allocation7 + $0x12c] sm:$0xf]
    %v1036 = vld [vmem:[#allocation7 + $0x130] sm:$0xf]
    %v1037 = vld [vmem:[#allocation7 + $0x134] sm:$0xf]
    %v1038 = vld [vmem:[#allocation7 + $0x138] sm:$0xf]
    %v1039 = vld [vmem:[#allocation7 + $0x13c] sm:$0xf]
    %v1040 = vld [vmem:[#allocation7 + $0x140] sm:$0xf]
    %v1041 = vld [vmem:[#allocation7 + $0x144] sm:$0xf]
    %v1042 = vld [vmem:[#allocation7 + $0x148] sm:$0xf]
    %v1043 = vld [vmem:[#allocation7 + $0x14c] sm:$0xf]
    %v1044 = vld [vmem:[#allocation7 + $0x150] sm:$0xf]
    %v1045 = vld [vmem:[#allocation7 + $0x154] sm:$0xf]
    %v1046 = vld [vmem:[#allocation7 + $0x158] sm:$0xf]
    %v1047 = vld [vmem:[#allocation7 + $0x15c] sm:$0xf]
    %v1048 = vld [vmem:[#allocation7 + $0x160] sm:$0xf]
    %v1049 = vld [vmem:[#allocation7 + $0x164] sm:$0xf]
    %v1050 = vld [vmem:[#allocation7 + $0x168] sm:$0xf]
    %v1051 = vld [vmem:[#allocation7 + $0x16c] sm:$0xf]
    %v1052 = vld [vmem:[#allocation7 + $0x170] sm:$0xf]
    %v1053 = vld [vmem:[#allocation7 + $0x174] sm:$0xf]
    %v1054 = vld [vmem:[#allocation7 + $0x178] sm:$0xf]
    %v1055 = vld [vmem:[#allocation7 + $0x17c] sm:$0xf]
    %v1056 = vld [vmem:[#allocation7 + $0x180] sm:$0xf]
    %v1057 = vld [vmem:[#allocation7 + $0x184] sm:$0xf]
    %v1058 = vld [vmem:[#allocation7 + $0x188] sm:$0xf]
    %v1059 = vld [vmem:[#allocation7 + $0x18c] sm:$0xf]
    %v1060 = vld [vmem:[#allocation7 + $0x190] sm:$0xf]
    %v1061 = vld [vmem:[#allocation7 + $0x194] sm:$0xf]
    %v1062 = vld [vmem:[#allocation7 + $0x198] sm:$0xf]
    %v1063 = vld [vmem:[#allocation7 + $0x19c] sm:$0xf]
    %v1064 = vld [vmem:[#allocation7 + $0x1a0] sm:$0xf]
    %v1065 = vld [vmem:[#allocation7 + $0x1a4] sm:$0xf]
    %v1066 = vld [vmem:[#allocation7 + $0x1a8] sm:$0xf]
    %v1067 = vld [vmem:[#allocation7 + $0x1ac] sm:$0xf]
    %v1068 = vld [vmem:[#allocation7 + $0x1b0] sm:$0xf]
    %v1069 = vld [vmem:[#allocation7 + $0x1b4] sm:$0xf]
    %v1070 = vld [vmem:[#allocation7 + $0x1b8] sm:$0xf]
    %v1071 = vld [vmem:[#allocation7 + $0x1bc] sm:$0xf]
    %v1072 = vld [vmem:[#allocation7 + $0x1c0] sm:$0xf]
    %v1073 = vld [vmem:[#allocation7 + $0x1c4] sm:$0xf]
    %v1074 = vld [vmem:[#allocation7 + $0x1c8] sm:$0xf]
    %v1075 = vld [vmem:[#allocation7 + $0x1cc] sm:$0xf]
    %v1076 = vld [vmem:[#allocation7 + $0x1d0] sm:$0xf]
    %v1077 = vld [vmem:[#allocation7 + $0x1d4] sm:$0xf]
    %v1078 = vld [vmem:[#allocation7 + $0x1d8] sm:$0xf]
    %v1079 = vld [vmem:[#allocation7 + $0x1dc] sm:$0xf]
    %v1080 = vld [vmem:[#allocation7 + $0x1e0] sm:$0xf]
    %v1081 = vld [vmem:[#allocation7 + $0x1e4] sm:$0xf]
    %v1082 = vld [vmem:[#allocation7 + $0x1e8] sm:$0xf]
    %v1083 = vld [vmem:[#allocation7 + $0x1ec] sm:$0xf]
    %v1084 = vld [vmem:[#allocation7 + $0x1f0] sm:$0xf]
    %v1085 = vld [vmem:[#allocation7 + $0x1f4] sm:$0xf]
    %v1086 = vld [vmem:[#allocation7 + $0x1f8] sm:$0xf]
    %v1087 = vld [vmem:[#allocation7 + $0x1fc] sm:$0xf]
    %v1088 = vld [vmem:[#allocation7 + $0x200] sm:$0xf]
    %v1089 = vld [vmem:[#allocation7 + $0x204] sm:$0xf]
    %v1090 = vld [vmem:[#allocation7 + $0x208] sm:$0xf]
    %v1091 = vld [vmem:[#allocation7 + $0x20c] sm:$0xf]
    %v1092 = vld [vmem:[#allocation7 + $0x210] sm:$0xf]
    %v1093 = vld [vmem:[#allocation7 + $0x214] sm:$0xf]
    %v1094 = vld [vmem:[#allocation7 + $0x218] sm:$0xf]
    %v1095 = vld [vmem:[#allocation7 + $0x21c] sm:$0xf]
    %v1096 = vld [vmem:[#allocation7 + $0x220] sm:$0xf]
    %v1097 = vld [vmem:[#allocation7 + $0x224] sm:$0xf]
    %v1098 = vld [vmem:[#allocation7 + $0x228] sm:$0xf]
    %v1099 = vld [vmem:[#allocation7 + $0x22c] sm:$0xf]
    %v1100 = vld [vmem:[#allocation7 + $0x230] sm:$0xf]
    %v1101 = vld [vmem:[#allocation7 + $0x234] sm:$0xf]
    %v1102 = vld [vmem:[#allocation7 + $0x238] sm:$0xf]
    %v1103 = vld [vmem:[#allocation7 + $0x23c] sm:$0xf]
    %v1104 = vld [vmem:[#allocation9] sm:$0x1]
    %v1106 = vlaneseq
    %v1107 = vshrl.u32 %v1106, 7
    %v1108 = vsub.s32 0, %v1107
    %v1109 = vrot.slane %v1104, %v1108
    %v1255 = vunpack.c.l.b16 %v960
    %v1256 = vunpack.c.l.b16 %v961
    %v1257 = vunpack.c.l.b16 %v962
    %v1258 = vunpack.c.l.b16 %v963
    %v1259 = vunpack.c.l.b16 %v964
    %v1260 = vunpack.c.l.b16 %v965
    %v1261 = vunpack.c.l.b16 %v966
    %v1262 = vunpack.c.l.b16 %v967
    %v1263 = vunpack.c.l.b16 %v968
    %v1264 = vunpack.c.l.b16 %v969
    %v1265 = vunpack.c.l.b16 %v970
    %v1266 = vunpack.c.l.b16 %v971
    %v1267 = vunpack.c.l.b16 %v972
    %v1268 = vunpack.c.l.b16 %v973
    %v1269 = vunpack.c.l.b16 %v974
    %v1270 = vunpack.c.l.b16 %v975
    %v1271 = vunpack.c.l.b16 %v976
    %v1272 = vunpack.c.l.b16 %v977
    %v1273 = vunpack.c.l.b16 %v978
    %v1274 = vunpack.c.l.b16 %v979
    %v1275 = vunpack.c.l.b16 %v980
    %v1276 = vunpack.c.l.b16 %v981
    %v1277 = vunpack.c.l.b16 %v982
    %v1278 = vunpack.c.l.b16 %v983
    %v1279 = vunpack.c.l.b16 %v984
    %v1280 = vunpack.c.l.b16 %v985
    %v1281 = vunpack.c.l.b16 %v986
    %v1282 = vunpack.c.l.b16 %v987
    %v1283 = vunpack.c.l.b16 %v988
    %v1284 = vunpack.c.l.b16 %v989
    %v1285 = vunpack.c.l.b16 %v990
    %v1286 = vunpack.c.l.b16 %v991
    %v1287 = vunpack.c.l.b16 %v992
    %v1288 = vunpack.c.l.b16 %v993
    %v1289 = vunpack.c.l.b16 %v994
    %v1290 = vunpack.c.l.b16 %v995
    %v1291 = vunpack.c.l.b16 %v996
    %v1292 = vunpack.c.l.b16 %v997
    %v1293 = vunpack.c.l.b16 %v998
    %v1294 = vunpack.c.l.b16 %v999
    %v1295 = vunpack.c.l.b16 %v1000
    %v1296 = vunpack.c.l.b16 %v1001
    %v1297 = vunpack.c.l.b16 %v1002
    %v1298 = vunpack.c.l.b16 %v1003
    %v1299 = vunpack.c.l.b16 %v1004
    %v1300 = vunpack.c.l.b16 %v1005
    %v1301 = vunpack.c.l.b16 %v1006
    %v1302 = vunpack.c.l.b16 %v1007
    %v1303 = vunpack.c.l.b16 %v1008
    %v1304 = vunpack.c.l.b16 %v1009
    %v1305 = vunpack.c.l.b16 %v1010
    %v1306 = vunpack.c.l.b16 %v1011
    %v1307 = vunpack.c.l.b16 %v1012
    %v1308 = vunpack.c.l.b16 %v1013
    %v1309 = vunpack.c.l.b16 %v1014
    %v1310 = vunpack.c.l.b16 %v1015
    %v1311 = vunpack.c.l.b16 %v1016
    %v1312 = vunpack.c.l.b16 %v1017
    %v1313 = vunpack.c.l.b16 %v1018
    %v1314 = vunpack.c.l.b16 %v1019
    %v1315 = vunpack.c.l.b16 %v1020
    %v1316 = vunpack.c.l.b16 %v1021
    %v1317 = vunpack.c.l.b16 %v1022
    %v1318 = vunpack.c.l.b16 %v1023
    %v1319 = vunpack.c.l.b16 %v1024
    %v1320 = vunpack.c.l.b16 %v1025
    %v1321 = vunpack.c.l.b16 %v1026
    %v1322 = vunpack.c.l.b16 %v1027
    %v1323 = vunpack.c.l.b16 %v1028
    %v1324 = vunpack.c.l.b16 %v1029
    %v1325 = vunpack.c.l.b16 %v1030
    %v1326 = vunpack.c.l.b16 %v1031
    %v1327 = vunpack.c.l.b16 %v1032
    %v1328 = vunpack.c.l.b16 %v1033
    %v1329 = vunpack.c.l.b16 %v1034
    %v1330 = vunpack.c.l.b16 %v1035
    %v1331 = vunpack.c.l.b16 %v1036
    %v1332 = vunpack.c.l.b16 %v1037
    %v1333 = vunpack.c.l.b16 %v1038
    %v1334 = vunpack.c.l.b16 %v1039
    %v1335 = vunpack.c.l.b16 %v1040
    %v1336 = vunpack.c.l.b16 %v1041
    %v1337 = vunpack.c.l.b16 %v1042
    %v1338 = vunpack.c.l.b16 %v1043
    %v1339 = vunpack.c.l.b16 %v1044
    %v1340 = vunpack.c.l.b16 %v1045
    %v1341 = vunpack.c.l.b16 %v1046
    %v1342 = vunpack.c.l.b16 %v1047
    %v1343 = vunpack.c.l.b16 %v1048
    %v1344 = vunpack.c.l.b16 %v1049
    %v1345 = vunpack.c.l.b16 %v1050
    %v1346 = vunpack.c.l.b16 %v1051
    %v1347 = vunpack.c.l.b16 %v1052
    %v1348 = vunpack.c.l.b16 %v1053
    %v1349 = vunpack.c.l.b16 %v1054
    %v1350 = vunpack.c.l.b16 %v1055
    %v1351 = vunpack.c.l.b16 %v1056
    %v1352 = vunpack.c.l.b16 %v1057
    %v1353 = vunpack.c.l.b16 %v1058
    %v1354 = vunpack.c.l.b16 %v1059
    %v1355 = vunpack.c.l.b16 %v1060
    %v1356 = vunpack.c.l.b16 %v1061
    %v1357 = vunpack.c.l.b16 %v1062
    %v1358 = vunpack.c.l.b16 %v1063
    %v1359 = vunpack.c.l.b16 %v1064
    %v1360 = vunpack.c.l.b16 %v1065
    %v1361 = vunpack.c.l.b16 %v1066
    %v1362 = vunpack.c.l.b16 %v1067
    %v1363 = vunpack.c.l.b16 %v1068
    %v1364 = vunpack.c.l.b16 %v1069
    %v1365 = vunpack.c.l.b16 %v1070
    %v1366 = vunpack.c.l.b16 %v1071
    %v1367 = vunpack.c.l.b16 %v1072
    %v1368 = vunpack.c.l.b16 %v1073
    %v1369 = vunpack.c.l.b16 %v1074
    %v1370 = vunpack.c.l.b16 %v1075
    %v1371 = vunpack.c.l.b16 %v1076
    %v1372 = vunpack.c.l.b16 %v1077
    %v1373 = vunpack.c.l.b16 %v1078
    %v1374 = vunpack.c.l.b16 %v1079
    %v1375 = vunpack.c.l.b16 %v1080
    %v1376 = vunpack.c.l.b16 %v1081
    %v1377 = vunpack.c.l.b16 %v1082
    %v1378 = vunpack.c.l.b16 %v1083
    %v1379 = vunpack.c.l.b16 %v1084
    %v1380 = vunpack.c.l.b16 %v1085
    %v1381 = vunpack.c.l.b16 %v1086
    %v1382 = vunpack.c.l.b16 %v1087
    %v1383 = vunpack.c.l.b16 %v1088
    %v1384 = vunpack.c.l.b16 %v1089
    %v1385 = vunpack.c.l.b16 %v1090
    %v1386 = vunpack.c.l.b16 %v1091
    %v1387 = vunpack.c.l.b16 %v1092
    %v1388 = vunpack.c.l.b16 %v1093
    %v1389 = vunpack.c.l.b16 %v1094
    %v1390 = vunpack.c.l.b16 %v1095
    %v1391 = vunpack.c.l.b16 %v1096
    %v1392 = vunpack.c.l.b16 %v1097
    %v1393 = vunpack.c.l.b16 %v1098
    %v1394 = vunpack.c.l.b16 %v1099
    %v1395 = vunpack.c.l.b16 %v1100
    %v1396 = vunpack.c.l.b16 %v1101
    %v1397 = vunpack.c.l.b16 %v1102
    %v1398 = vunpack.c.l.b16 %v1103
    %v1399 = vpack.c.b16 %v1256, %v1255
    %v1400 = vpack.c.b16 %v1258, %v1257
    %v1401 = vpack.c.b16 %v1260, %v1259
    %v1402 = vpack.c.b16 %v1262, %v1261
    %v1403 = vpack.c.b16 %v1264, %v1263
    %v1404 = vpack.c.b16 %v1266, %v1265
    %v1405 = vpack.c.b16 %v1268, %v1267
    %v1406 = vpack.c.b16 %v1270, %v1269
    %v1407 = vpack.c.b16 %v1272, %v1271
    %v1408 = vpack.c.b16 %v1274, %v1273
    %v1409 = vpack.c.b16 %v1276, %v1275
    %v1410 = vpack.c.b16 %v1278, %v1277
    %v1411 = vpack.c.b16 %v1280, %v1279
    %v1412 = vpack.c.b16 %v1282, %v1281
    %v1413 = vpack.c.b16 %v1284, %v1283
    %v1414 = vpack.c.b16 %v1286, %v1285
    %v1415 = vpack.c.b16 %v1288, %v1287
    %v1416 = vpack.c.b16 %v1290, %v1289
    %v1417 = vpack.c.b16 %v1292, %v1291
    %v1418 = vpack.c.b16 %v1294, %v1293
    %v1419 = vpack.c.b16 %v1296, %v1295
    %v1420 = vpack.c.b16 %v1298, %v1297
    %v1421 = vpack.c.b16 %v1300, %v1299
    %v1422 = vpack.c.b16 %v1302, %v1301
    %v1423 = vpack.c.b16 %v1304, %v1303
    %v1424 = vpack.c.b16 %v1306, %v1305
    %v1425 = vpack.c.b16 %v1308, %v1307
    %v1426 = vpack.c.b16 %v1310, %v1309
    %v1427 = vpack.c.b16 %v1312, %v1311
    %v1428 = vpack.c.b16 %v1314, %v1313
    %v1429 = vpack.c.b16 %v1316, %v1315
    %v1430 = vpack.c.b16 %v1318, %v1317
    %v1431 = vpack.c.b16 %v1320, %v1319
    %v1432 = vpack.c.b16 %v1322, %v1321
    %v1433 = vpack.c.b16 %v1324, %v1323
    %v1434 = vpack.c.b16 %v1326, %v1325
    %v1435 = vpack.c.b16 %v1328, %v1327
    %v1436 = vpack.c.b16 %v1330, %v1329
    %v1437 = vpack.c.b16 %v1332, %v1331
    %v1438 = vpack.c.b16 %v1334, %v1333
    %v1439 = vpack.c.b16 %v1336, %v1335
    %v1440 = vpack.c.b16 %v1338, %v1337
    %v1441 = vpack.c.b16 %v1340, %v1339
    %v1442 = vpack.c.b16 %v1342, %v1341
    %v1443 = vpack.c.b16 %v1344, %v1343
    %v1444 = vpack.c.b16 %v1346, %v1345
    %v1445 = vpack.c.b16 %v1348, %v1347
    %v1446 = vpack.c.b16 %v1350, %v1349
    %v1447 = vpack.c.b16 %v1352, %v1351
    %v1448 = vpack.c.b16 %v1354, %v1353
    %v1449 = vpack.c.b16 %v1356, %v1355
    %v1450 = vpack.c.b16 %v1358, %v1357
    %v1451 = vpack.c.b16 %v1360, %v1359
    %v1452 = vpack.c.b16 %v1362, %v1361
    %v1453 = vpack.c.b16 %v1364, %v1363
    %v1454 = vpack.c.b16 %v1366, %v1365
    %v1455 = vpack.c.b16 %v1368, %v1367
    %v1456 = vpack.c.b16 %v1370, %v1369
    %v1457 = vpack.c.b16 %v1372, %v1371
    %v1458 = vpack.c.b16 %v1374, %v1373
    %v1459 = vpack.c.b16 %v1376, %v1375
    %v1460 = vpack.c.b16 %v1378, %v1377
    %v1461 = vpack.c.b16 %v1380, %v1379
    %v1462 = vpack.c.b16 %v1382, %v1381
    %v1463 = vpack.c.b16 %v1384, %v1383
    %v1464 = vpack.c.b16 %v1386, %v1385
    %v1465 = vpack.c.b16 %v1388, %v1387
    %v1466 = vpack.c.b16 %v1390, %v1389
    %v1467 = vpack.c.b16 %v1392, %v1391
    %v1468 = vpack.c.b16 %v1394, %v1393
    %v1469 = vpack.c.b16 %v1396, %v1395
    %v1470 = vpack.c.b16 %v1398, %v1397
    %1543 = vmatprep.subr.bf16.mxu0 0
    %1544 = vmatpush1.bf16.msra.mxu0 %v1399
    %1545 = vmatprep.subr.bf16.mxu0 0
    %1546 = vmatpush1.bf16.msra.mxu0 %v1400
    %1547 = vmatprep.subr.bf16.mxu0 0
    %1548 = vmatpush1.bf16.msra.mxu0 %v1401
    %1549 = vmatprep.subr.bf16.mxu0 0
    %1550 = vmatpush1.bf16.msra.mxu0 %v1402
    %1551 = vmatprep.subr.bf16.mxu0 0
    %1552 = vmatpush1.bf16.msra.mxu0 %v1403
    %1553 = vmatprep.subr.bf16.mxu0 0
    %1554 = vmatpush1.bf16.msra.mxu0 %v1404
    %1555 = vmatprep.subr.bf16.mxu0 0
    %1556 = vmatpush1.bf16.msra.mxu0 %v1405
    %1557 = vmatprep.subr.bf16.mxu0 0
    %1558 = vmatpush1.bf16.msra.mxu0 %v1406
    %1559 = vmatprep.subr.bf16.mxu0 0
    %1560 = vmatpush1.bf16.msra.mxu0 %v1407
    %1561 = vmatprep.subr.bf16.mxu0 0
    %1562 = vmatpush1.bf16.msra.mxu0 %v1408
    %1563 = vmatprep.subr.bf16.mxu0 0
    %1564 = vmatpush1.bf16.msra.mxu0 %v1409
    %1565 = vmatprep.subr.bf16.mxu0 0
    %1566 = vmatpush1.bf16.msra.mxu0 %v1410
    %1567 = vmatprep.subr.bf16.mxu0 0
    %1568 = vmatpush1.bf16.msra.mxu0 %v1411
    %1569 = vmatprep.subr.bf16.mxu0 0
    %1570 = vmatpush1.bf16.msra.mxu0 %v1412
    %1571 = vmatprep.subr.bf16.mxu0 0
    %1572 = vmatpush1.bf16.msra.mxu0 %v1413
    %1573 = vmatprep.subr.bf16.mxu0 0
    %1574 = vmatpush1.bf16.msra.mxu0 %v1414
    %1575 = vmatprep.mubr.bf16.mxu0 %v889
    %1576 = vmatmul.mubr.bf16.gmra.mrb[0].mxu0 %v888
    %v1577 = vpop.f32.mrb[0].mxu0
    %v1578 = vadd.f32 %v1109, %v1577
    %v1579 = vpop.f32.mrb[0].mxu0
    %v1580 = vpop.f32.mrb[0].mxu0
    %v1581 = vadd.f32 %v1109, %v1580
    %v1582 = vpop.f32.mrb[0].mxu0
    %1583 = vmatprep.mubr.bf16.mxu0 %v898
    %1584 = vmatmul.mubr.bf16.gmra.mrb[0].mxu0 %v897
    %v1585 = vpop.f32.mrb[0].mxu0
    %v1586 = vadd.f32 %v1109, %v1585
    %v1587 = vpop.f32.mrb[0].mxu0
    %v1588 = vpop.f32.mrb[0].mxu0
    %v1589 = vadd.f32 %v1109, %v1588
    %v1590 = vpop.f32.mrb[0].mxu0
    %1591 = vmatprep.mubr.bf16.mxu0 %v907
    %1592 = vmatmul.mubr.bf16.gmra.mrb[0].mxu0 %v906
    %v1593 = vpop.f32.mrb[0].mxu0
    %v1594 = vadd.f32 %v1109, %v1593
    %v1595 = vpop.f32.mrb[0].mxu0
    %v1596 = vpop.f32.mrb[0].mxu0
    %v1597 = vadd.f32 %v1109, %v1596
    %v1598 = vpop.f32.mrb[0].mxu0
    %1599 = vmatprep.mubr.bf16.mxu0 %v916
    %1600 = vmatmul.mubr.bf16.gmra.mrb[0].mxu0 %v915
    %v1601 = vpop.f32.mrb[0].mxu0
    %v1602 = vadd.f32 %v1109, %v1601
    %v1603 = vpop.f32.mrb[0].mxu0
    %v1604 = vpop.f32.mrb[0].mxu0
    %v1605 = vadd.f32 %v1109, %v1604
    %v1606 = vpop.f32.mrb[0].mxu0
    %1607 = vmatprep.mubr.bf16.mxu0 %v925
    %1608 = vmatmul.mubr.bf16.gmra.mrb[0].mxu0 %v924
    %v1609 = vpop.f32.mrb[0].mxu0
    %v1610 = vadd.f32 %v1109, %v1609
    %v1611 = vpop.f32.mrb[0].mxu0
    %v1612 = vpop.f32.mrb[0].mxu0
    %v1613 = vadd.f32 %v1109, %v1612
    %v1614 = vpop.f32.mrb[0].mxu0
    %1615 = vmatprep.mubr.bf16.mxu0 %v934
    %1616 = vmatmul.mubr.bf16.gmra.mrb[0].mxu0 %v933
    %v1617 = vpop.f32.mrb[0].mxu0
    %v1618 = vadd.f32 %v1109, %v1617
    %v1619 = vpop.f32.mrb[0].mxu0
    %v1620 = vpop.f32.mrb[0].mxu0
    %v1621 = vadd.f32 %v1109, %v1620
    %v1622 = vpop.f32.mrb[0].mxu0
    %1623 = vmatprep.mubr.bf16.mxu0 %v943
    %1624 = vmatmul.mubr.bf16.gmra.mrb[0].mxu0 %v942
    %v1625 = vpop.f32.mrb[0].mxu0
    %v1626 = vadd.f32 %v1109, %v1625
    %v1627 = vpop.f32.mrb[0].mxu0
    %v1628 = vpop.f32.mrb[0].mxu0
    %v1629 = vadd.f32 %v1109, %v1628
    %v1630 = vpop.f32.mrb[0].mxu0
    %1631 = vmatprep.mubr.bf16.mxu0 %v952
    %1632 = vmatmul.mubr.bf16.gmra.mrb[0].mxu0 %v951
    %v1633 = vpop.f32.mrb[0].mxu0
    %v1634 = vadd.f32 %v1109, %v1633
    %v1635 = vpop.f32.mrb[0].mxu0
    %v1636 = vpop.f32.mrb[0].mxu0
    %v1637 = vadd.f32 %v1109, %v1636
    %v1638 = vpop.f32.mrb[0].mxu0
    %1639 = vdwg.mxu0
    %1640 = vmatprep.subr.bf16.mxu0 0
    %1641 = vmatpush1.bf16.msra.mxu0 %v1415
    %1642 = vmatprep.subr.bf16.mxu0 0
    %1643 = vmatpush1.bf16.msra.mxu0 %v1416
    %1644 = vmatprep.subr.bf16.mxu0 0
    %1645 = vmatpush1.bf16.msra.mxu0 %v1417
    %1646 = vmatprep.subr.bf16.mxu0 0
    %1647 = vmatpush1.bf16.msra.mxu0 %v1418
    %1648 = vmatprep.subr.bf16.mxu0 0
    %1649 = vmatpush1.bf16.msra.mxu0 %v1419
    %1650 = vmatprep.subr.bf16.mxu0 0
    %1651 = vmatpush1.bf16.msra.mxu0 %v1420
    %1652 = vmatprep.subr.bf16.mxu0 0
    %1653 = vmatpush1.bf16.msra.mxu0 %v1421
    %1654 = vmatprep.subr.bf16.mxu0 0
    %1655 = vmatpush1.bf16.msra.mxu0 %v1422
    %1656 = vmatprep.subr.bf16.mxu0 0
    %1657 = vmatpush1.bf16.msra.mxu0 %v1423
    %1658 = vmatprep.subr.bf16.mxu0 0
    %1659 = vmatpush1.bf16.msra.mxu0 %v1424
    %1660 = vmatprep.subr.bf16.mxu0 0
    %1661 = vmatpush1.bf16.msra.mxu0 %v1425
    %1662 = vmatprep.subr.bf16.mxu0 0
    %1663 = vmatpush1.bf16.msra.mxu0 %v1426
    %1664 = vmatprep.subr.bf16.mxu0 0
    %1665 = vmatpush1.bf16.msra.mxu0 %v1427
    %1666 = vmatprep.subr.bf16.mxu0 0
    %1667 = vmatpush1.bf16.msra.mxu0 %v1428
    %1668 = vmatprep.subr.bf16.mxu0 0
    %1669 = vmatpush1.bf16.msra.mxu0 %v1429
    %1670 = vmatprep.subr.bf16.mxu0 0
    %1671 = vmatpush1.bf16.msra.mxu0 %v1430
    %1672 = vmatprep.mubr.bf16.mxu0 %v891
    %1673 = vmatmul.mubr.bf16.gmra.mrb[0].mxu0 %v890
    %v1674 = vpop.f32.mrb[0].mxu0
    %v1675 = vadd.f32 %v1578, %v1674
    %v1676 = vpop.f32.mrb[0].mxu0
    %v1677 = vpop.f32.mrb[0].mxu0
    %v1678 = vadd.f32 %v1581, %v1677
    %v1679 = vpop.f32.mrb[0].mxu0
    %1680 = vmatprep.mubr.bf16.mxu0 %v900
    %1681 = vmatmul.mubr.bf16.gmra.mrb[0].mxu0 %v899
    %v1682 = vpop.f32.mrb[0].mxu0
    %v1683 = vadd.f32 %v1586, %v1682
    %v1684 = vpop.f32.mrb[0].mxu0
    %v1685 = vpop.f32.mrb[0].mxu0
    %v1686 = vadd.f32 %v1589, %v1685
    %v1687 = vpop.f32.mrb[0].mxu0
    %1688 = vmatprep.mubr.bf16.mxu0 %v909
    %1689 = vmatmul.mubr.bf16.gmra.mrb[0].mxu0 %v908
    %v1690 = vpop.f32.mrb[0].mxu0
    %v1691 = vadd.f32 %v1594, %v1690
    %v1692 = vpop.f32.mrb[0].mxu0
    %v1693 = vpop.f32.mrb[0].mxu0
    %v1694 = vadd.f32 %v1597, %v1693
    %v1695 = vpop.f32.mrb[0].mxu0
    %1696 = vmatprep.mubr.bf16.mxu0 %v918
    %1697 = vmatmul.mubr.bf16.gmra.mrb[0].mxu0 %v917
    %v1698 = vpop.f32.mrb[0].mxu0
    %v1699 = vadd.f32 %v1602, %v1698
    %v1700 = vpop.f32.mrb[0].mxu0
    %v1701 = vpop.f32.mrb[0].mxu0
    %v1702 = vadd.f32 %v1605, %v1701
    %v1703 = vpop.f32.mrb[0].mxu0
    %1704 = vmatprep.mubr.bf16.mxu0 %v927
    %1705 = vmatmul.mubr.bf16.gmra.mrb[0].mxu0 %v926
    %v1706 = vpop.f32.mrb[0].mxu0
    %v1707 = vadd.f32 %v1610, %v1706
    %v1708 = vpop.f32.mrb[0].mxu0
    %v1709 = vpop.f32.mrb[0].mxu0
    %v1710 = vadd.f32 %v1613, %v1709
    %v1711 = vpop.f32.mrb[0].mxu0
    %1712 = vmatprep.mubr.bf16.mxu0 %v936
    %1713 = vmatmul.mubr.bf16.gmra.mrb[0].mxu0 %v935
    %v1714 = vpop.f32.mrb[0].mxu0
    %v1715 = vadd.f32 %v1618, %v1714
    %v1716 = vpop.f32.mrb[0].mxu0
    %v1717 = vpop.f32.mrb[0].mxu0
    %v1718 = vadd.f32 %v1621, %v1717
    %v1719 = vpop.f32.mrb[0].mxu0
    %1720 = vmatprep.mubr.bf16.mxu0 %v945
    %1721 = vmatmul.mubr.bf16.gmra.mrb[0].mxu0 %v944
    %v1722 = vpop.f32.mrb[0].mxu0
    %v1723 = vadd.f32 %v1626, %v1722
    %v1724 = vpop.f32.mrb[0].mxu0
    %v1725 = vpop.f32.mrb[0].mxu0
    %v1726 = vadd.f32 %v1629, %v1725
    %v1727 = vpop.f32.mrb[0].mxu0
    %1728 = vmatprep.mubr.bf16.mxu0 %v954
    %1729 = vmatmul.mubr.bf16.gmra.mrb[0].mxu0 %v953
    %v1730 = vpop.f32.mrb[0].mxu0
    %v1731 = vadd.f32 %v1634, %v1730
    %v1732 = vpop.f32.mrb[0].mxu0
    %v1733 = vpop.f32.mrb[0].mxu0
    %v1734 = vadd.f32 %v1637, %v1733
    %v1735 = vpop.f32.mrb[0].mxu0
    %1736 = vdwg.mxu0
    %1737 = vmatprep.subr.bf16.mxu0 0
    %1738 = vmatpush1.bf16.msra.mxu0 %v1431
    %1739 = vmatprep.subr.bf16.mxu0 0
    %1740 = vmatpush1.bf16.msra.mxu0 %v1432
    %1741 = vmatprep.subr.bf16.mxu0 0
    %1742 = vmatpush1.bf16.msra.mxu0 %v1433
    %1743 = vmatprep.subr.bf16.mxu0 0
    %1744 = vmatpush1.bf16.msra.mxu0 %v1434
    %1745 = vmatprep.subr.bf16.mxu0 0
    %1746 = vmatpush1.bf16.msra.mxu0 %v1435
    %1747 = vmatprep.subr.bf16.mxu0 0
    %1748 = vmatpush1.bf16.msra.mxu0 %v1436
    %1749 = vmatprep.subr.bf16.mxu0 0
    %1750 = vmatpush1.bf16.msra.mxu0 %v1437
    %1751 = vmatprep.subr.bf16.mxu0 0
    %1752 = vmatpush1.bf16.msra.mxu0 %v1438
    %1753 = vmatprep.subr.bf16.mxu0 0
    %1754 = vmatpush1.bf16.msra.mxu0 %v1439
    %1755 = vmatprep.subr.bf16.mxu0 0
    %1756 = vmatpush1.bf16.msra.mxu0 %v1440
    %1757 = vmatprep.subr.bf16.mxu0 0
    %1758 = vmatpush1.bf16.msra.mxu0 %v1441
    %1759 = vmatprep.subr.bf16.mxu0 0
    %1760 = vmatpush1.bf16.msra.mxu0 %v1442
    %1761 = vmatprep.subr.bf16.mxu0 0
    %1762 = vmatpush1.bf16.msra.mxu0 %v1443
    %1763 = vmatprep.subr.bf16.mxu0 0
    %1764 = vmatpush1.bf16.msra.mxu0 %v1444
    %1765 = vmatprep.subr.bf16.mxu0 0
    %1766 = vmatpush1.bf16.msra.mxu0 %v1445
    %1767 = vmatprep.subr.bf16.mxu0 0
    %1768 = vmatpush1.bf16.msra.mxu0 %v1446
    %1769 = vmatprep.mubr.bf16.mxu0 %v893
    %1770 = vmatmul.mubr.bf16.gmra.mrb[0].mxu0 %v892
    %v1771 = vpop.f32.mrb[0].mxu0
    %v1772 = vadd.f32 %v1675, %v1771
    %v1773 = vpop.f32.mrb[0].mxu0
    %v1774 = vpop.f32.mrb[0].mxu0
    %v1775 = vadd.f32 %v1678, %v1774
    %v1776 = vpop.f32.mrb[0].mxu0
    %1777 = vmatprep.mubr.bf16.mxu0 %v902
    %1778 = vmatmul.mubr.bf16.gmra.mrb[0].mxu0 %v901
    %v1779 = vpop.f32.mrb[0].mxu0
    %v1780 = vadd.f32 %v1683, %v1779
    %v1781 = vpop.f32.mrb[0].mxu0
    %v1782 = vpop.f32.mrb[0].mxu0
    %v1783 = vadd.f32 %v1686, %v1782
    %v1784 = vpop.f32.mrb[0].mxu0
    %1785 = vmatprep.mubr.bf16.mxu0 %v911
    %1786 = vmatmul.mubr.bf16.gmra.mrb[0].mxu0 %v910
    %v1787 = vpop.f32.mrb[0].mxu0
    %v1788 = vadd.f32 %v1691, %v1787
    %v1789 = vpop.f32.mrb[0].mxu0
    %v1790 = vpop.f32.mrb[0].mxu0
    %v1791 = vadd.f32 %v1694, %v1790
    %v1792 = vpop.f32.mrb[0].mxu0
    %1793 = vmatprep.mubr.bf16.mxu0 %v920
    %1794 = vmatmul.mubr.bf16.gmra.mrb[0].mxu0 %v919
    %v1795 = vpop.f32.mrb[0].mxu0
    %v1796 = vadd.f32 %v1699, %v1795
    %v1797 = vpop.f32.mrb[0].mxu0
    %v1798 = vpop.f32.mrb[0].mxu0
    %v1799 = vadd.f32 %v1702, %v1798
    %v1800 = vpop.f32.mrb[0].mxu0
    %1801 = vmatprep.mubr.bf16.mxu0 %v929
    %1802 = vmatmul.mubr.bf16.gmra.mrb[0].mxu0 %v928
    %v1803 = vpop.f32.mrb[0].mxu0
    %v1804 = vadd.f32 %v1707, %v1803
    %v1805 = vpop.f32.mrb[0].mxu0
    %v1806 = vpop.f32.mrb[0].mxu0
    %v1807 = vadd.f32 %v1710, %v1806
    %v1808 = vpop.f32.mrb[0].mxu0
    %1809 = vmatprep.mubr.bf16.mxu0 %v938
    %1810 = vmatmul.mubr.bf16.gmra.mrb[0].mxu0 %v937
    %v1811 = vpop.f32.mrb[0].mxu0
    %v1812 = vadd.f32 %v1715, %v1811
    %v1813 = vpop.f32.mrb[0].mxu0
    %v1814 = vpop.f32.mrb[0].mxu0
    %v1815 = vadd.f32 %v1718, %v1814
    %v1816 = vpop.f32.mrb[0].mxu0
    %1817 = vmatprep.mubr.bf16.mxu0 %v947
    %1818 = vmatmul.mubr.bf16.gmra.mrb[0].mxu0 %v946
    %v1819 = vpop.f32.mrb[0].mxu0
    %v1820 = vadd.f32 %v1723, %v1819
    %v1821 = vpop.f32.mrb[0].mxu0
    %v1822 = vpop.f32.mrb[0].mxu0
    %v1823 = vadd.f32 %v1726, %v1822
    %v1824 = vpop.f32.mrb[0].mxu0
    %1825 = vmatprep.mubr.bf16.mxu0 %v956
    %1826 = vmatmul.mubr.bf16.gmra.mrb[0].mxu0 %v955
    %v1827 = vpop.f32.mrb[0].mxu0
    %v1828 = vadd.f32 %v1731, %v1827
    %v1829 = vpop.f32.mrb[0].mxu0
    %v1830 = vpop.f32.mrb[0].mxu0
    %v1831 = vadd.f32 %v1734, %v1830
    %v1832 = vpop.f32.mrb[0].mxu0
    %1833 = vdwg.mxu0
    %1834 = vmatprep.subr.bf16.mxu0 0
    %1835 = vmatpush1.bf16.msra.mxu0 %v1447
    %1836 = vmatprep.subr.bf16.mxu0 0
    %1837 = vmatpush1.bf16.msra.mxu0 %v1448
    %1838 = vmatprep.subr.bf16.mxu0 0
    %1839 = vmatpush1.bf16.msra.mxu0 %v1449
    %1840 = vmatprep.subr.bf16.mxu0 0
    %1841 = vmatpush1.bf16.msra.mxu0 %v1450
    %1842 = vmatprep.subr.bf16.mxu0 0
    %1843 = vmatpush1.bf16.msra.mxu0 %v1451
    %1844 = vmatprep.subr.bf16.mxu0 0
    %1845 = vmatpush1.bf16.msra.mxu0 %v1452
    %1846 = vmatprep.subr.bf16.mxu0 0
    %1847 = vmatpush1.bf16.msra.mxu0 %v1453
    %1848 = vmatprep.subr.bf16.mxu0 0
    %1849 = vmatpush1.bf16.msra.mxu0 %v1454
    %1850 = vmatprep.subr.bf16.mxu0 0
    %1851 = vmatpush1.bf16.msra.mxu0 %v1455
    %1852 = vmatprep.subr.bf16.mxu0 0
    %1853 = vmatpush1.bf16.msra.mxu0 %v1456
    %1854 = vmatprep.subr.bf16.mxu0 0
    %1855 = vmatpush1.bf16.msra.mxu0 %v1457
    %1856 = vmatprep.subr.bf16.mxu0 0
    %1857 = vmatpush1.bf16.msra.mxu0 %v1458
    %1858 = vmatprep.subr.bf16.mxu0 0
    %1859 = vmatpush1.bf16.msra.mxu0 %v1459
    %1860 = vmatprep.subr.bf16.mxu0 0
    %1861 = vmatpush1.bf16.msra.mxu0 %v1460
    %1862 = vmatprep.subr.bf16.mxu0 0
    %1863 = vmatpush1.bf16.msra.mxu0 %v1461
    %1864 = vmatprep.subr.bf16.mxu0 0
    %1865 = vmatpush1.bf16.msra.mxu0 %v1462
    %1866 = vmatprep.mubr.bf16.mxu0 %v895
    %1867 = vmatmul.mubr.bf16.gmra.mrb[0].mxu0 %v894
    %v1868 = vpop.f32.mrb[0].mxu0
    %v1869 = vadd.f32 %v1772, %v1868
    %v1870 = vpop.f32.mrb[0].mxu0
    %v1871 = vpop.f32.mrb[0].mxu0
    %v1872 = vadd.f32 %v1775, %v1871
    %v1873 = vpop.f32.mrb[0].mxu0
    %1874 = vmatprep.mubr.bf16.mxu0 %v904
    %1875 = vmatmul.mubr.bf16.gmra.mrb[0].mxu0 %v903
    %v1876 = vpop.f32.mrb[0].mxu0
    %v1877 = vadd.f32 %v1780, %v1876
    %v1878 = vpop.f32.mrb[0].mxu0
    %v1879 = vpop.f32.mrb[0].mxu0
    %v1880 = vadd.f32 %v1783, %v1879
    %v1881 = vpop.f32.mrb[0].mxu0
    %1882 = vmatprep.mubr.bf16.mxu0 %v913
    %1883 = vmatmul.mubr.bf16.gmra.mrb[0].mxu0 %v912
    %v1884 = vpop.f32.mrb[0].mxu0
    %v1885 = vadd.f32 %v1788, %v1884
    %v1886 = vpop.f32.mrb[0].mxu0
    %v1887 = vpop.f32.mrb[0].mxu0
    %v1888 = vadd.f32 %v1791, %v1887
    %v1889 = vpop.f32.mrb[0].mxu0
    %1890 = vmatprep.mubr.bf16.mxu0 %v922
    %1891 = vmatmul.mubr.bf16.gmra.mrb[0].mxu0 %v921
    %v1892 = vpop.f32.mrb[0].mxu0
    %v1893 = vadd.f32 %v1796, %v1892
    %v1894 = vpop.f32.mrb[0].mxu0
    %v1895 = vpop.f32.mrb[0].mxu0
    %v1896 = vadd.f32 %v1799, %v1895
    %v1897 = vpop.f32.mrb[0].mxu0
    %1898 = vmatprep.mubr.bf16.mxu0 %v931
    %1899 = vmatmul.mubr.bf16.gmra.mrb[0].mxu0 %v930
    %v1900 = vpop.f32.mrb[0].mxu0
    %v1901 = vadd.f32 %v1804, %v1900
    %v1902 = vpop.f32.mrb[0].mxu0
    %v1903 = vpop.f32.mrb[0].mxu0
    %v1904 = vadd.f32 %v1807, %v1903
    %v1905 = vpop.f32.mrb[0].mxu0
    %1906 = vmatprep.mubr.bf16.mxu0 %v940
    %1907 = vmatmul.mubr.bf16.gmra.mrb[0].mxu0 %v939
    %v1908 = vpop.f32.mrb[0].mxu0
    %v1909 = vadd.f32 %v1812, %v1908
    %v1910 = vpop.f32.mrb[0].mxu0
    %v1911 = vpop.f32.mrb[0].mxu0
    %v1912 = vadd.f32 %v1815, %v1911
    %v1913 = vpop.f32.mrb[0].mxu0
    %1914 = vmatprep.mubr.bf16.mxu0 %v949
    %1915 = vmatmul.mubr.bf16.gmra.mrb[0].mxu0 %v948
    %v1916 = vpop.f32.mrb[0].mxu0
    %v1917 = vadd.f32 %v1820, %v1916
    %v1918 = vpop.f32.mrb[0].mxu0
    %v1919 = vpop.f32.mrb[0].mxu0
    %v1920 = vadd.f32 %v1823, %v1919
    %v1921 = vpop.f32.mrb[0].mxu0
    %1922 = vmatprep.mubr.bf16.mxu0 %v958
    %1923 = vmatmul.mubr.bf16.gmra.mrb[0].mxu0 %v957
    %v1924 = vpop.f32.mrb[0].mxu0
    %v1925 = vadd.f32 %v1828, %v1924
    %v1926 = vpop.f32.mrb[0].mxu0
    %v1927 = vpop.f32.mrb[0].mxu0
    %v1928 = vadd.f32 %v1831, %v1927
    %v1929 = vpop.f32.mrb[0].mxu0
    %1930 = vdwg.mxu0
    %1931 = vmatprep.subr.bf16.mxu0 0
    %1932 = vmatpush1.bf16.msra.mxu0 %v1463
    %1933 = vmatprep.subr.bf16.mxu0 0
    %1934 = vmatpush1.bf16.msra.mxu0 %v1464
    %1935 = vmatprep.subr.bf16.mxu0 0
    %1936 = vmatpush1.bf16.msra.mxu0 %v1465
    %1937 = vmatprep.subr.bf16.mxu0 0
    %1938 = vmatpush1.bf16.msra.mxu0 %v1466
    %1939 = vmatprep.subr.bf16.mxu0 0
    %1940 = vmatpush1.bf16.msra.mxu0 %v1467
    %1941 = vmatprep.subr.bf16.mxu0 0
    %1942 = vmatpush1.bf16.msra.mxu0 %v1468
    %1943 = vmatprep.subr.bf16.mxu0 0
    %1944 = vmatpush1.bf16.msra.mxu0 %v1469
    %1945 = vmatprep.subr.bf16.mxu0 0
    %1946 = vmatpush1.bf16.msra.mxu0 %v1470
    %1947 = vmatprep.subr.bf16.mxu0 0
    %1948 = vmatpush1.bf16.msra.mxu0 0
    %1949 = vmatprep.subr.bf16.mxu0 0
    %1950 = vmatpush1.bf16.msra.mxu0 0
    %1951 = vmatprep.subr.bf16.mxu0 0
    %1952 = vmatpush1.bf16.msra.mxu0 0
    %1953 = vmatprep.subr.bf16.mxu0 0
    %1954 = vmatpush1.bf16.msra.mxu0 0
    %1955 = vmatprep.subr.bf16.mxu0 0
    %1956 = vmatpush1.bf16.msra.mxu0 0
    %1957 = vmatprep.subr.bf16.mxu0 0
    %1958 = vmatpush1.bf16.msra.mxu0 0
    %1959 = vmatprep.subr.bf16.mxu0 0
    %1960 = vmatpush1.bf16.msra.mxu0 0
    %1961 = vmatprep.subr.bf16.mxu0 0
    %1962 = vmatpush1.bf16.msra.mxu0 0
    %1963 = vmatprep.mubr.bf16.mxu0 0
    %1964 = vmatmul.mubr.bf16.gmra.mrb[0].mxu0 %v896
    %v1965 = vpop.f32.mrb[0].mxu0
    %v1966 = vadd.f32 %v1869, %v1965
    %v1967 = vpop.f32.mrb[0].mxu0
    %v1968 = vpop.f32.mrb[0].mxu0
    %v1969 = vadd.f32 %v1872, %v1968
    %v1970 = vpop.f32.mrb[0].mxu0
    %1971 = vmatprep.mubr.bf16.mxu0 0
    %1972 = vmatmul.mubr.bf16.gmra.mrb[0].mxu0 %v905
    %v1973 = vpop.f32.mrb[0].mxu0
    %v1974 = vadd.f32 %v1877, %v1973
    %v1975 = vpop.f32.mrb[0].mxu0
    %v1976 = vpop.f32.mrb[0].mxu0
    %v1977 = vadd.f32 %v1880, %v1976
    %v1978 = vpop.f32.mrb[0].mxu0
    %1979 = vmatprep.mubr.bf16.mxu0 0
    %1980 = vmatmul.mubr.bf16.gmra.mrb[0].mxu0 %v914
    %v1981 = vpop.f32.mrb[0].mxu0
    %v1982 = vadd.f32 %v1885, %v1981
    %v1983 = vpop.f32.mrb[0].mxu0
    %v1984 = vpop.f32.mrb[0].mxu0
    %v1985 = vadd.f32 %v1888, %v1984
    %v1986 = vpop.f32.mrb[0].mxu0
    %1987 = vmatprep.mubr.bf16.mxu0 0
    %1988 = vmatmul.mubr.bf16.gmra.mrb[0].mxu0 %v923
    %v1989 = vpop.f32.mrb[0].mxu0
    %v1990 = vadd.f32 %v1893, %v1989
    %v1991 = vpop.f32.mrb[0].mxu0
    %v1992 = vpop.f32.mrb[0].mxu0
    %v1993 = vadd.f32 %v1896, %v1992
    %v1994 = vpop.f32.mrb[0].mxu0
    %1995 = vmatprep.mubr.bf16.mxu0 0
    %1996 = vmatmul.mubr.bf16.gmra.mrb[0].mxu0 %v932
    %v1997 = vpop.f32.mrb[0].mxu0
    %v1998 = vadd.f32 %v1901, %v1997
    %v1999 = vpop.f32.mrb[0].mxu0
    %v2000 = vpop.f32.mrb[0].mxu0
    %v2001 = vadd.f32 %v1904, %v2000
    %v2002 = vpop.f32.mrb[0].mxu0
    %2003 = vmatprep.mubr.bf16.mxu0 0
    %2004 = vmatmul.mubr.bf16.gmra.mrb[0].mxu0 %v941
    %v2005 = vpop.f32.mrb[0].mxu0
    %v2006 = vadd.f32 %v1909, %v2005
    %v2007 = vpop.f32.mrb[0].mxu0
    %v2008 = vpop.f32.mrb[0].mxu0
    %v2009 = vadd.f32 %v1912, %v2008
    %v2010 = vpop.f32.mrb[0].mxu0
    %2011 = vmatprep.mubr.bf16.mxu0 0
    %2012 = vmatmul.mubr.bf16.gmra.mrb[0].mxu0 %v950
    %v2013 = vpop.f32.mrb[0].mxu0
    %v2014 = vadd.f32 %v1917, %v2013
    %v2015 = vpop.f32.mrb[0].mxu0
    %v2016 = vpop.f32.mrb[0].mxu0
    %v2017 = vadd.f32 %v1920, %v2016
    %v2018 = vpop.f32.mrb[0].mxu0
    %2019 = vmatprep.mubr.bf16.mxu0 0
    %2020 = vmatmul.mubr.bf16.gmra.mrb[0].mxu0 %v959
    %v2021 = vpop.f32.mrb[0].mxu0
    %v2022 = vadd.f32 %v1925, %v2021
    %v2023 = vpop.f32.mrb[0].mxu0
    %v2024 = vpop.f32.mrb[0].mxu0
    %v2025 = vadd.f32 %v1928, %v2024
    %v2026 = vpop.f32.mrb[0].mxu0
    %2027 = vdwg.mxu0
    %vm2028 = vcmp.gt.f32.partialorder %v1966, 0.0
    %vm2029 = vcmp.gt.f32.partialorder %v1969, 0.0
    %vm2030 = vcmp.gt.f32.partialorder %v1974, 0.0
    %vm2031 = vcmp.gt.f32.partialorder %v1977, 0.0
    %vm2032 = vcmp.gt.f32.partialorder %v1982, 0.0
    %vm2033 = vcmp.gt.f32.partialorder %v1985, 0.0
    %vm2034 = vcmp.gt.f32.partialorder %v1990, 0.0
    %vm2035 = vcmp.gt.f32.partialorder %v1993, 0.0
    %vm2036 = vcmp.gt.f32.partialorder %v1998, 0.0
    %vm2037 = vcmp.gt.f32.partialorder %v2001, 0.0
    %vm2038 = vcmp.gt.f32.partialorder %v2006, 0.0
    %vm2039 = vcmp.gt.f32.partialorder %v2009, 0.0
    %vm2040 = vcmp.gt.f32.partialorder %v2014, 0.0
    %vm2041 = vcmp.gt.f32.partialorder %v2017, 0.0
    %vm2042 = vcmp.gt.f32.partialorder %v2022, 0.0
    %vm2043 = vcmp.gt.f32.partialorder %v2025, 0.0
    %v2044 = vmul.f32 %v1966, 0.2
    %v2045 = vmul.f32 %v1969, 0.2
    %v2046 = vmul.f32 %v1974, 0.2
    %v2047 = vmul.f32 %v1977, 0.2
    %v2048 = vmul.f32 %v1982, 0.2
    %v2049 = vmul.f32 %v1985, 0.2
    %v2050 = vmul.f32 %v1990, 0.2
    %v2051 = vmul.f32 %v1993, 0.2
    %v2052 = vmul.f32 %v1998, 0.2
    %v2053 = vmul.f32 %v2001, 0.2
    %v2054 = vmul.f32 %v2006, 0.2
    %v2055 = vmul.f32 %v2009, 0.2
    %v2056 = vmul.f32 %v2014, 0.2
    %v2057 = vmul.f32 %v2017, 0.2
    %v2058 = vmul.f32 %v2022, 0.2
    %v2059 = vmul.f32 %v2025, 0.2
    %v2060 = vsel %vm2028, %v1966, %v2044
    %v2061 = vsel %vm2029, %v1969, %v2045
    %v2062 = vsel %vm2030, %v1974, %v2046
    %v2063 = vsel %vm2031, %v1977, %v2047
    %v2064 = vsel %vm2032, %v1982, %v2048
    %v2065 = vsel %vm2033, %v1985, %v2049
    %v2066 = vsel %vm2034, %v1990, %v2050
    %v2067 = vsel %vm2035, %v1993, %v2051
    %v2068 = vsel %vm2036, %v1998, %v2052
    %v2069 = vsel %vm2037, %v2001, %v2053
    %v2070 = vsel %vm2038, %v2006, %v2054
    %v2071 = vsel %vm2039, %v2009, %v2055
    %v2072 = vsel %vm2040, %v2014, %v2056
    %v2073 = vsel %vm2041, %v2017, %v2057
    %v2074 = vsel %vm2042, %v2022, %v2058
    %v2075 = vsel %vm2043, %v2025, %v2059
    %v2076 = vld [vmem:[#allocation11] sm:$0x1]
    %v2078 = vlaneseq
    %v2079 = vshrl.u32 %v2078, 7
    %v2080 = vsub.s32 0, %v2079
    %v2081 = vrot.slane %v2076, %v2080
    %v2083 = vmul.f32 %v2060, %v2081
    %v2084 = vmul.f32 %v2061, %v2081
    %v2085 = vmul.f32 %v2062, %v2081
    %v2086 = vmul.f32 %v2063, %v2081
    %v2087 = vmul.f32 %v2064, %v2081
    %v2088 = vmul.f32 %v2065, %v2081
    %v2089 = vmul.f32 %v2066, %v2081
    %v2090 = vmul.f32 %v2067, %v2081
    %v2091 = vmul.f32 %v2068, %v2081
    %v2092 = vmul.f32 %v2069, %v2081
    %v2093 = vmul.f32 %v2070, %v2081
    %v2094 = vmul.f32 %v2071, %v2081
    %v2095 = vmul.f32 %v2072, %v2081
    %v2096 = vmul.f32 %v2073, %v2081
    %v2097 = vmul.f32 %v2074, %v2081
    %v2098 = vmul.f32 %v2075, %v2081
    %v2099 = vld [vmem:[#allocation12] sm:$0x1]
    %v2101 = vlaneseq
    %v2102 = vshrl.u32 %v2101, 7
    %v2103 = vsub.s32 0, %v2102
    %v2104 = vrot.slane %v2099, %v2103
    %v2106 = vadd.f32 %v2083, %v2104
    %v2107 = vadd.f32 %v2084, %v2104
    %v2108 = vadd.f32 %v2085, %v2104
    %v2109 = vadd.f32 %v2086, %v2104
    %v2110 = vadd.f32 %v2087, %v2104
    %v2111 = vadd.f32 %v2088, %v2104
    %v2112 = vadd.f32 %v2089, %v2104
    %v2113 = vadd.f32 %v2090, %v2104
    %v2114 = vadd.f32 %v2091, %v2104
    %v2115 = vadd.f32 %v2092, %v2104
    %v2116 = vadd.f32 %v2093, %v2104
    %v2117 = vadd.f32 %v2094, %v2104
    %v2118 = vadd.f32 %v2095, %v2104
    %v2119 = vadd.f32 %v2096, %v2104
    %v2120 = vadd.f32 %v2097, %v2104
    %v2121 = vadd.f32 %v2098, %v2104
    %2122 = vst [vmem:[#allocation3 + $0xb] sm:$0xff] %v2106
    %2123 = vst [vmem:[#allocation3 + $0x15] sm:$0xff] %v2107
    %2124 = vst [vmem:[#allocation3 + $0x1f] sm:$0xff] %v2108
    %2125 = vst [vmem:[#allocation3 + $0x29] sm:$0xff] %v2109
    %2126 = vst [vmem:[#allocation3 + $0x33] sm:$0xff] %v2110
    %2127 = vst [vmem:[#allocation3 + $0x3d] sm:$0xff] %v2111
    %2128 = vst [vmem:[#allocation3 + $0x47] sm:$0xff] %v2112
    %2129 = vst [vmem:[#allocation3 + $0x51] sm:$0xff] %v2113
    %2130 = vst [vmem:[#allocation3 + $0x6f] sm:$0xff] %v2114
    %2131 = vst [vmem:[#allocation3 + $0x79] sm:$0xff] %v2115
    %2132 = vst [vmem:[#allocation3 + $0x83] sm:$0xff] %v2116
    %2133 = vst [vmem:[#allocation3 + $0x8d] sm:$0xff] %v2117
    %2134 = vst [vmem:[#allocation3 + $0x97] sm:$0xff] %v2118
    %2135 = vst [vmem:[#allocation3 + $0xa1] sm:$0xff] %v2119
    %2136 = vst [vmem:[#allocation3 + $0xab] sm:$0xff] %v2120
    %2137 = vst [vmem:[#allocation3 + $0xb5] sm:$0xff] %v2121
    %v2138 = vld [vmem:[#allocation3] ss:$2 sm:$0xf]
    %2139 = vst [vmem:[#allocation6] sm:$0xf] %v2138
    %s2140 = scalar_lea.vmem [#allocation3], 20
    %v2141 = vld [vmem:[%s2140] ss:$2 sm:$0xf]
    %v2143 = vrot.slane %v2141, 4
    %2145 = vst [vmem:[#allocation6] sm:$0xf0] %v2143
    %s2146 = scalar_lea.vmem [#allocation3], 40
    %v2147 = vld [vmem:[%s2146] ss:$2 sm:$0xf]
    %2148 = vst [vmem:[#allocation6 + $0x48] sm:$0xf] %v2147
    %s2149 = scalar_lea.vmem [#allocation3], 60
    %v2150 = vld [vmem:[%s2149] ss:$2 sm:$0xf]
    %v2152 = vrot.slane %v2150, 4
    %2154 = vst [vmem:[#allocation6 + $0x48] sm:$0xf0] %v2152
    %s2155 = scalar_lea.vmem [#allocation3], 100
    %v2156 = vld [vmem:[%s2155] ss:$2 sm:$0xf]
    %2157 = vst [vmem:[#allocation6 + $0x90] sm:$0xf] %v2156
    %s2158 = scalar_lea.vmem [#allocation3], 120
    %v2159 = vld [vmem:[%s2158] ss:$2 sm:$0xf]
    %v2161 = vrot.slane %v2159, 4
    %2163 = vst [vmem:[#allocation6 + $0x90] sm:$0xf0] %v2161
    %s2164 = scalar_lea.vmem [#allocation3], 140
    %v2165 = vld [vmem:[%s2164] ss:$2 sm:$0xf]
    %2166 = vst [vmem:[#allocation6 + $0xd8] sm:$0xf] %v2165
    %s2167 = scalar_lea.vmem [#allocation3], 160
    %v2168 = vld [vmem:[%s2167] ss:$2 sm:$0xf]
    %v2170 = vrot.slane %v2168, 4
    %2172 = vst [vmem:[#allocation6 + $0xd8] sm:$0xf0] %v2170
    %s2173 = scalar_lea.vmem [#allocation3], 1
    %v2174 = vld [vmem:[%s2173] ss:$2 sm:$0xf]
    %2175 = vst [vmem:[#allocation6 + $0x8] sm:$0xf] %v2174
    %s2176 = scalar_lea.vmem [#allocation3], 21
    %v2177 = vld [vmem:[%s2176] ss:$2 sm:$0xf]
    %v2179 = vrot.slane %v2177, 4
    %2181 = vst [vmem:[#allocation6 + $0x8] sm:$0xf0] %v2179
    %s2182 = scalar_lea.vmem [#allocation3], 41
    %v2183 = vld [vmem:[%s2182] ss:$2 sm:$0xf]
    %2184 = vst [vmem:[#allocation6 + $0x50] sm:$0xf] %v2183
    %s2185 = scalar_lea.vmem [#allocation3], 61
    %v2186 = vld [vmem:[%s2185] ss:$2 sm:$0xf]
    %v2188 = vrot.slane %v2186, 4
    %2190 = vst [vmem:[#allocation6 + $0x50] sm:$0xf0] %v2188
    %s2191 = scalar_lea.vmem [#allocation3], 101
    %v2192 = vld [vmem:[%s2191] ss:$2 sm:$0xf]
    %2193 = vst [vmem:[#allocation6 + $0x98] sm:$0xf] %v2192
    %s2194 = scalar_lea.vmem [#allocation3], 121
    %v2195 = vld [vmem:[%s2194] ss:$2 sm:$0xf]
    %v2197 = vrot.slane %v2195, 4
    %2199 = vst [vmem:[#allocation6 + $0x98] sm:$0xf0] %v2197
    %s2200 = scalar_lea.vmem [#allocation3], 141
    %v2201 = vld [vmem:[%s2200] ss:$2 sm:$0xf]
    %2202 = vst [vmem:[#allocation6 + $0xe0] sm:$0xf] %v2201
    %s2203 = scalar_lea.vmem [#allocation3], 161
    %v2204 = vld [vmem:[%s2203] ss:$2 sm:$0xf]
    %v2206 = vrot.slane %v2204, 4
    %2208 = vst [vmem:[#allocation6 + $0xe0] sm:$0xf0] %v2206
    %s2209 = scalar_lea.vmem [#allocation3], 2
    %v2210 = vld [vmem:[%s2209] ss:$2 sm:$0xf]
    %2211 = vst [vmem:[#allocation6 + $0x10] sm:$0xf] %v2210
    %s2212 = scalar_lea.vmem [#allocation3], 22
    %v2213 = vld [vmem:[%s2212] ss:$2 sm:$0xf]
    %v2215 = vrot.slane %v2213, 4
    %2217 = vst [vmem:[#allocation6 + $0x10] sm:$0xf0] %v2215
    %s2218 = scalar_lea.vmem [#allocation3], 42
    %v2219 = vld [vmem:[%s2218] ss:$2 sm:$0xf]
    %2220 = vst [vmem:[#allocation6 + $0x58] sm:$0xf] %v2219
    %s2221 = scalar_lea.vmem [#allocation3], 62
    %v2222 = vld [vmem:[%s2221] ss:$2 sm:$0xf]
    %v2224 = vrot.slane %v2222, 4
    %2226 = vst [vmem:[#allocation6 + $0x58] sm:$0xf0] %v2224
    %s2227 = scalar_lea.vmem [#allocation3], 102
    %v2228 = vld [vmem:[%s2227] ss:$2 sm:$0xf]
    %2229 = vst [vmem:[#allocation6 + $0xa0] sm:$0xf] %v2228
    %s2230 = scalar_lea.vmem [#allocation3], 122
    %v2231 = vld [vmem:[%s2230] ss:$2 sm:$0xf]
    %v2233 = vrot.slane %v2231, 4
    %2235 = vst [vmem:[#allocation6 + $0xa0] sm:$0xf0] %v2233
    %s2236 = scalar_lea.vmem [#allocation3], 142
    %v2237 = vld [vmem:[%s2236] ss:$2 sm:$0xf]
    %2238 = vst [vmem:[#allocation6 + $0xe8] sm:$0xf] %v2237
    %s2239 = scalar_lea.vmem [#allocation3], 162
    %v2240 = vld [vmem:[%s2239] ss:$2 sm:$0xf]
    %v2242 = vrot.slane %v2240, 4
    %2244 = vst [vmem:[#allocation6 + $0xe8] sm:$0xf0] %v2242
    %s2245 = scalar_lea.vmem [#allocation3], 10
    %v2246 = vld [vmem:[%s2245] ss:$2 sm:$0xf]
    %2247 = vst [vmem:[#allocation6 + $0x18] sm:$0xf] %v2246
    %s2248 = scalar_lea.vmem [#allocation3], 30
    %v2249 = vld [vmem:[%s2248] ss:$2 sm:$0xf]
    %v2251 = vrot.slane %v2249, 4
    %2253 = vst [vmem:[#allocation6 + $0x18] sm:$0xf0] %v2251
    %s2254 = scalar_lea.vmem [#allocation3], 50
    %v2255 = vld [vmem:[%s2254] ss:$2 sm:$0xf]
    %2256 = vst [vmem:[#allocation6 + $0x60] sm:$0xf] %v2255
    %s2257 = scalar_lea.vmem [#allocation3], 70
    %v2258 = vld [vmem:[%s2257] ss:$2 sm:$0xf]
    %v2260 = vrot.slane %v2258, 4
    %2262 = vst [vmem:[#allocation6 + $0x60] sm:$0xf0] %v2260
    %s2263 = scalar_lea.vmem [#allocation3], 110
    %v2264 = vld [vmem:[%s2263] ss:$2 sm:$0xf]
    %2265 = vst [vmem:[#allocation6 + $0xa8] sm:$0xf] %v2264
    %s2266 = scalar_lea.vmem [#allocation3], 130
    %v2267 = vld [vmem:[%s2266] ss:$2 sm:$0xf]
    %v2269 = vrot.slane %v2267, 4
    %2271 = vst [vmem:[#allocation6 + $0xa8] sm:$0xf0] %v2269
    %s2272 = scalar_lea.vmem [#allocation3], 150
    %v2273 = vld [vmem:[%s2272] ss:$2 sm:$0xf]
    %2274 = vst [vmem:[#allocation6 + $0xf0] sm:$0xf] %v2273
    %s2275 = scalar_lea.vmem [#allocation3], 170
    %v2276 = vld [vmem:[%s2275] ss:$2 sm:$0xf]
    %v2278 = vrot.slane %v2276, 4
    %2280 = vst [vmem:[#allocation6 + $0xf0] sm:$0xf0] %v2278
    %s2281 = scalar_lea.vmem [#allocation3], 11
    %v2282 = vld [vmem:[%s2281] ss:$2 sm:$0xf]
    %2283 = vst [vmem:[#allocation6 + $0x20] sm:$0xf] %v2282
    %s2284 = scalar_lea.vmem [#allocation3], 31
    %v2285 = vld [vmem:[%s2284] ss:$2 sm:$0xf]
    %v2287 = vrot.slane %v2285, 4
    %2289 = vst [vmem:[#allocation6 + $0x20] sm:$0xf0] %v2287
    %s2290 = scalar_lea.vmem [#allocation3], 51
    %v2291 = vld [vmem:[%s2290] ss:$2 sm:$0xf]
    %2292 = vst [vmem:[#allocation6 + $0x68] sm:$0xf] %v2291
    %s2293 = scalar_lea.vmem [#allocation3], 71
    %v2294 = vld [vmem:[%s2293] ss:$2 sm:$0xf]
    %v2296 = vrot.slane %v2294, 4
    %2298 = vst [vmem:[#allocation6 + $0x68] sm:$0xf0] %v2296
    %s2299 = scalar_lea.vmem [#allocation3], 111
    %v2300 = vld [vmem:[%s2299] ss:$2 sm:$0xf]
    %2301 = vst [vmem:[#allocation6 + $0xb0] sm:$0xf] %v2300
    %s2302 = scalar_lea.vmem [#allocation3], 131
    %v2303 = vld [vmem:[%s2302] ss:$2 sm:$0xf]
    %v2305 = vrot.slane %v2303, 4
    %2307 = vst [vmem:[#allocation6 + $0xb0] sm:$0xf0] %v2305
    %s2308 = scalar_lea.vmem [#allocation3], 151
    %v2309 = vld [vmem:[%s2308] ss:$2 sm:$0xf]
    %2310 = vst [vmem:[#allocation6 + $0xf8] sm:$0xf] %v2309
    %s2311 = scalar_lea.vmem [#allocation3], 171
    %v2312 = vld [vmem:[%s2311] ss:$2 sm:$0xf]
    %v2314 = vrot.slane %v2312, 4
    %2316 = vst [vmem:[#allocation6 + $0xf8] sm:$0xf0] %v2314
    %s2317 = scalar_lea.vmem [#allocation3], 12
    %v2318 = vld [vmem:[%s2317] ss:$2 sm:$0xf]
    %2319 = vst [vmem:[#allocation6 + $0x28] sm:$0xf] %v2318
    %s2320 = scalar_lea.vmem [#allocation3], 32
    %v2321 = vld [vmem:[%s2320] ss:$2 sm:$0xf]
    %v2323 = vrot.slane %v2321, 4
    %2325 = vst [vmem:[#allocation6 + $0x28] sm:$0xf0] %v2323
    %s2326 = scalar_lea.vmem [#allocation3], 52
    %v2327 = vld [vmem:[%s2326] ss:$2 sm:$0xf]
    %2328 = vst [vmem:[#allocation6 + $0x70] sm:$0xf] %v2327
    %s2329 = scalar_lea.vmem [#allocation3], 72
    %v2330 = vld [vmem:[%s2329] ss:$2 sm:$0xf]
    %v2332 = vrot.slane %v2330, 4
    %2334 = vst [vmem:[#allocation6 + $0x70] sm:$0xf0] %v2332
    %s2335 = scalar_lea.vmem [#allocation3], 112
    %v2336 = vld [vmem:[%s2335] ss:$2 sm:$0xf]
    %2337 = vst [vmem:[#allocation6 + $0xb8] sm:$0xf] %v2336
    %s2338 = scalar_lea.vmem [#allocation3], 132
    %v2339 = vld [vmem:[%s2338] ss:$2 sm:$0xf]
    %v2341 = vrot.slane %v2339, 4
    %2343 = vst [vmem:[#allocation6 + $0xb8] sm:$0xf0] %v2341
    %s2344 = scalar_lea.vmem [#allocation3], 152
    %v2345 = vld [vmem:[%s2344] ss:$2 sm:$0xf]
    %2346 = vst [vmem:[#allocation6 + $0x100] sm:$0xf] %v2345
    %s2347 = scalar_lea.vmem [#allocation3], 172
    %v2348 = vld [vmem:[%s2347] ss:$2 sm:$0xf]
    %v2350 = vrot.slane %v2348, 4
    %2352 = vst [vmem:[#allocation6 + $0x100] sm:$0xf0] %v2350
    %v2353 = vld [vmem:[%s2140] ss:$2 sm:$0xf]
    %2354 = vst [vmem:[#allocation6 + $0x30] sm:$0xf] %v2353
    %v2355 = vld [vmem:[%s2146] ss:$2 sm:$0xf]
    %v2357 = vrot.slane %v2355, 4
    %2359 = vst [vmem:[#allocation6 + $0x30] sm:$0xf0] %v2357
    %v2360 = vld [vmem:[%s2149] ss:$2 sm:$0xf]
    %2361 = vst [vmem:[#allocation6 + $0x78] sm:$0xf] %v2360
    %s2362 = scalar_lea.vmem [#allocation3], 80
    %v2363 = vld [vmem:[%s2362] ss:$2 sm:$0xf]
    %v2365 = vrot.slane %v2363, 4
    %2367 = vst [vmem:[#allocation6 + $0x78] sm:$0xf0] %v2365
    %v2368 = vld [vmem:[%s2158] ss:$2 sm:$0xf]
    %2369 = vst [vmem:[#allocation6 + $0xc0] sm:$0xf] %v2368
    %v2370 = vld [vmem:[%s2164] ss:$2 sm:$0xf]
    %v2372 = vrot.slane %v2370, 4
    %2374 = vst [vmem:[#allocation6 + $0xc0] sm:$0xf0] %v2372
    %v2375 = vld [vmem:[%s2167] ss:$2 sm:$0xf]
    %2376 = vst [vmem:[#allocation6 + $0x108] sm:$0xf] %v2375
    %s2377 = scalar_lea.vmem [#allocation3], 180
    %v2378 = vld [vmem:[%s2377] ss:$2 sm:$0xf]
    %v2380 = vrot.slane %v2378, 4
    %2382 = vst [vmem:[#allocation6 + $0x108] sm:$0xf0] %v2380
    %v2383 = vld [vmem:[%s2176] ss:$2 sm:$0xf]
    %2384 = vst [vmem:[#allocation6 + $0x38] sm:$0xf] %v2383
    %v2385 = vld [vmem:[%s2182] ss:$2 sm:$0xf]
    %v2387 = vrot.slane %v2385, 4
    %2389 = vst [vmem:[#allocation6 + $0x38] sm:$0xf0] %v2387
    %v2390 = vld [vmem:[%s2185] ss:$2 sm:$0xf]
    %2391 = vst [vmem:[#allocation6 + $0x80] sm:$0xf] %v2390
    %s2392 = scalar_lea.vmem [#allocation3], 81
    %v2393 = vld [vmem:[%s2392] ss:$2 sm:$0xf]
    %v2395 = vrot.slane %v2393, 4
    %2397 = vst [vmem:[#allocation6 + $0x80] sm:$0xf0] %v2395
    %v2398 = vld [vmem:[%s2194] ss:$2 sm:$0xf]
    %2399 = vst [vmem:[#allocation6 + $0xc8] sm:$0xf] %v2398
    %v2400 = vld [vmem:[%s2200] ss:$2 sm:$0xf]
    %v2402 = vrot.slane %v2400, 4
    %2404 = vst [vmem:[#allocation6 + $0xc8] sm:$0xf0] %v2402
    %v2405 = vld [vmem:[%s2203] ss:$2 sm:$0xf]
    %2406 = vst [vmem:[#allocation6 + $0x110] sm:$0xf] %v2405
    %s2407 = scalar_lea.vmem [#allocation3], 181
    %v2408 = vld [vmem:[%s2407] ss:$2 sm:$0xf]
    %v2410 = vrot.slane %v2408, 4
    %2412 = vst [vmem:[#allocation6 + $0x110] sm:$0xf0] %v2410
    %v2413 = vld [vmem:[%s2212] ss:$2 sm:$0xf]
    %2414 = vst [vmem:[#allocation6 + $0x40] sm:$0xf] %v2413
    %v2415 = vld [vmem:[%s2218] ss:$2 sm:$0xf]
    %v2417 = vrot.slane %v2415, 4
    %2419 = vst [vmem:[#allocation6 + $0x40] sm:$0xf0] %v2417
    %v2420 = vld [vmem:[%s2221] ss:$2 sm:$0xf]
    %2421 = vst [vmem:[#allocation6 + $0x88] sm:$0xf] %v2420
    %s2422 = scalar_lea.vmem [#allocation3], 82
    %v2423 = vld [vmem:[%s2422] ss:$2 sm:$0xf]
    %v2425 = vrot.slane %v2423, 4
    %2427 = vst [vmem:[#allocation6 + $0x88] sm:$0xf0] %v2425
    %v2428 = vld [vmem:[%s2230] ss:$2 sm:$0xf]
    %2429 = vst [vmem:[#allocation6 + $0xd0] sm:$0xf] %v2428
    %v2430 = vld [vmem:[%s2236] ss:$2 sm:$0xf]
    %v2432 = vrot.slane %v2430, 4
    %2434 = vst [vmem:[#allocation6 + $0xd0] sm:$0xf0] %v2432
    %v2435 = vld [vmem:[%s2239] ss:$2 sm:$0xf]
    %2436 = vst [vmem:[#allocation6 + $0x118] sm:$0xf] %v2435
    %s2437 = scalar_lea.vmem [#allocation3], 182
    %v2438 = vld [vmem:[%s2437] ss:$2 sm:$0xf]
    %v2440 = vrot.slane %v2438, 4
    %2442 = vst [vmem:[#allocation6 + $0x118] sm:$0xf0] %v2440
    %v2443 = vld [vmem:[#allocation6] sm:$0xff]
    %v2444 = vld [vmem:[#allocation6 + $0x8] sm:$0xff]
    %v2445 = vld [vmem:[#allocation6 + $0x10] sm:$0xff]
    %v2446 = vld [vmem:[#allocation6 + $0x18] sm:$0xff]
    %v2447 = vld [vmem:[#allocation6 + $0x20] sm:$0xff]
    %v2448 = vld [vmem:[#allocation6 + $0x28] sm:$0xff]
    %v2449 = vld [vmem:[#allocation6 + $0x30] sm:$0xff]
    %v2450 = vld [vmem:[#allocation6 + $0x38] sm:$0xff]
    %v2451 = vld [vmem:[#allocation6 + $0x40] sm:$0xff]
    %v2452 = vld [vmem:[#allocation6 + $0x48] sm:$0xff]
    %v2453 = vld [vmem:[#allocation6 + $0x50] sm:$0xff]
    %v2454 = vld [vmem:[#allocation6 + $0x58] sm:$0xff]
    %v2455 = vld [vmem:[#allocation6 + $0x60] sm:$0xff]
    %v2456 = vld [vmem:[#allocation6 + $0x68] sm:$0xff]
    %v2457 = vld [vmem:[#allocation6 + $0x70] sm:$0xff]
    %v2458 = vld [vmem:[#allocation6 + $0x78] sm:$0xff]
    %v2459 = vld [vmem:[#allocation6 + $0x80] sm:$0xff]
    %v2460 = vld [vmem:[#allocation6 + $0x88] sm:$0xff]
    %v2461 = vld [vmem:[#allocation6 + $0x90] sm:$0xff]
    %v2462 = vld [vmem:[#allocation6 + $0x98] sm:$0xff]
    %v2463 = vld [vmem:[#allocation6 + $0xa0] sm:$0xff]
    %v2464 = vld [vmem:[#allocation6 + $0xa8] sm:$0xff]
    %v2465 = vld [vmem:[#allocation6 + $0xb0] sm:$0xff]
    %v2466 = vld [vmem:[#allocation6 + $0xb8] sm:$0xff]
    %v2467 = vld [vmem:[#allocation6 + $0xc0] sm:$0xff]
    %v2468 = vld [vmem:[#allocation6 + $0xc8] sm:$0xff]
    %v2469 = vld [vmem:[#allocation6 + $0xd0] sm:$0xff]
    %v2470 = vld [vmem:[#allocation6 + $0xd8] sm:$0xff]
    %v2471 = vld [vmem:[#allocation6 + $0xe0] sm:$0xff]
    %v2472 = vld [vmem:[#allocation6 + $0xe8] sm:$0xff]
    %v2473 = vld [vmem:[#allocation6 + $0xf0] sm:$0xff]
    %v2474 = vld [vmem:[#allocation6 + $0xf8] sm:$0xff]
    %v2475 = vld [vmem:[#allocation6 + $0x100] sm:$0xff]
    %v2476 = vld [vmem:[#allocation6 + $0x108] sm:$0xff]
    %v2477 = vld [vmem:[#allocation6 + $0x110] sm:$0xff]
    %v2478 = vld [vmem:[#allocation6 + $0x118] sm:$0xff]
    %v2479 = vpack.c.bf16 %v2452, %v2443
    %v2480 = vpack.c.bf16 %v2453, %v2444
    %v2481 = vpack.c.bf16 %v2454, %v2445
    %v2482 = vpack.c.bf16 %v2455, %v2446
    %v2483 = vpack.c.bf16 %v2456, %v2447
    %v2484 = vpack.c.bf16 %v2457, %v2448
    %v2485 = vpack.c.bf16 %v2458, %v2449
    %v2486 = vpack.c.bf16 %v2459, %v2450
    %v2487 = vpack.c.bf16 %v2460, %v2451
    %v2488 = vpack.c.bf16 %v2470, %v2461
    %v2489 = vpack.c.bf16 %v2471, %v2462
    %v2490 = vpack.c.bf16 %v2472, %v2463
    %v2491 = vpack.c.bf16 %v2473, %v2464
    %v2492 = vpack.c.bf16 %v2474, %v2465
    %v2493 = vpack.c.bf16 %v2475, %v2466
    %v2494 = vpack.c.bf16 %v2476, %v2467
    %v2495 = vpack.c.bf16 %v2477, %v2468
    %v2496 = vpack.c.bf16 %v2478, %v2469
    %s2497 = scalar_lea.vmem [#allocation7], 576
    %v2498 = vld [vmem:[%s2497] sm:$0xf]
    %v2499 = vld [vmem:[%s2497 + $0x4] sm:$0xf]
    %v2500 = vld [vmem:[%s2497 + $0x8] sm:$0xf]
    %v2501 = vld [vmem:[%s2497 + $0xc] sm:$0xf]
    %v2502 = vld [vmem:[%s2497 + $0x10] sm:$0xf]
    %v2503 = vld [vmem:[%s2497 + $0x14] sm:$0xf]
    %v2504 = vld [vmem:[%s2497 + $0x18] sm:$0xf]
    %v2505 = vld [vmem:[%s2497 + $0x1c] sm:$0xf]
    %v2506 = vld [vmem:[%s2497 + $0x20] sm:$0xf]
    %v2507 = vld [vmem:[%s2497 + $0x24] sm:$0xf]
    %v2508 = vld [vmem:[%s2497 + $0x28] sm:$0xf]
    %v2509 = vld [vmem:[%s2497 + $0x2c] sm:$0xf]
    %v2510 = vld [vmem:[%s2497 + $0x30] sm:$0xf]
    %v2511 = vld [vmem:[%s2497 + $0x34] sm:$0xf]
    %v2512 = vld [vmem:[%s2497 + $0x38] sm:$0xf]
    %v2513 = vld [vmem:[%s2497 + $0x3c] sm:$0xf]
    %v2514 = vld [vmem:[%s2497 + $0x40] sm:$0xf]
    %v2515 = vld [vmem:[%s2497 + $0x44] sm:$0xf]
    %v2516 = vld [vmem:[%s2497 + $0x48] sm:$0xf]
    %v2517 = vld [vmem:[%s2497 + $0x4c] sm:$0xf]
    %v2518 = vld [vmem:[%s2497 + $0x50] sm:$0xf]
    %v2519 = vld [vmem:[%s2497 + $0x54] sm:$0xf]
    %v2520 = vld [vmem:[%s2497 + $0x58] sm:$0xf]
    %v2521 = vld [vmem:[%s2497 + $0x5c] sm:$0xf]
    %v2522 = vld [vmem:[%s2497 + $0x60] sm:$0xf]
    %v2523 = vld [vmem:[%s2497 + $0x64] sm:$0xf]
    %v2524 = vld [vmem:[%s2497 + $0x68] sm:$0xf]
    %v2525 = vld [vmem:[%s2497 + $0x6c] sm:$0xf]
    %v2526 = vld [vmem:[%s2497 + $0x70] sm:$0xf]
    %v2527 = vld [vmem:[%s2497 + $0x74] sm:$0xf]
    %v2528 = vld [vmem:[%s2497 + $0x78] sm:$0xf]
    %v2529 = vld [vmem:[%s2497 + $0x7c] sm:$0xf]
    %v2530 = vld [vmem:[%s2497 + $0x80] sm:$0xf]
    %v2531 = vld [vmem:[%s2497 + $0x84] sm:$0xf]
    %v2532 = vld [vmem:[%s2497 + $0x88] sm:$0xf]
    %v2533 = vld [vmem:[%s2497 + $0x8c] sm:$0xf]
    %v2534 = vld [vmem:[%s2497 + $0x90] sm:$0xf]
    %v2535 = vld [vmem:[%s2497 + $0x94] sm:$0xf]
    %v2536 = vld [vmem:[%s2497 + $0x98] sm:$0xf]
    %v2537 = vld [vmem:[%s2497 + $0x9c] sm:$0xf]
    %v2538 = vld [vmem:[%s2497 + $0xa0] sm:$0xf]
    %v2539 = vld [vmem:[%s2497 + $0xa4] sm:$0xf]
    %v2540 = vld [vmem:[%s2497 + $0xa8] sm:$0xf]
    %v2541 = vld [vmem:[%s2497 + $0xac] sm:$0xf]
    %v2542 = vld [vmem:[%s2497 + $0xb0] sm:$0xf]
    %v2543 = vld [vmem:[%s2497 + $0xb4] sm:$0xf]
    %v2544 = vld [vmem:[%s2497 + $0xb8] sm:$0xf]
    %v2545 = vld [vmem:[%s2497 + $0xbc] sm:$0xf]
    %v2546 = vld [vmem:[%s2497 + $0xc0] sm:$0xf]
    %v2547 = vld [vmem:[%s2497 + $0xc4] sm:$0xf]
    %v2548 = vld [vmem:[%s2497 + $0xc8] sm:$0xf]
    %v2549 = vld [vmem:[%s2497 + $0xcc] sm:$0xf]
    %v2550 = vld [vmem:[%s2497 + $0xd0] sm:$0xf]
    %v2551 = vld [vmem:[%s2497 + $0xd4] sm:$0xf]
    %v2552 = vld [vmem:[%s2497 + $0xd8] sm:$0xf]
    %v2553 = vld [vmem:[%s2497 + $0xdc] sm:$0xf]
    %v2554 = vld [vmem:[%s2497 + $0xe0] sm:$0xf]
    %v2555 = vld [vmem:[%s2497 + $0xe4] sm:$0xf]
    %v2556 = vld [vmem:[%s2497 + $0xe8] sm:$0xf]
    %v2557 = vld [vmem:[%s2497 + $0xec] sm:$0xf]
    %v2558 = vld [vmem:[%s2497 + $0xf0] sm:$0xf]
    %v2559 = vld [vmem:[%s2497 + $0xf4] sm:$0xf]
    %v2560 = vld [vmem:[%s2497 + $0xf8] sm:$0xf]
    %v2561 = vld [vmem:[%s2497 + $0xfc] sm:$0xf]
    %v2562 = vld [vmem:[%s2497 + $0x100] sm:$0xf]
    %v2563 = vld [vmem:[%s2497 + $0x104] sm:$0xf]
    %v2564 = vld [vmem:[%s2497 + $0x108] sm:$0xf]
    %v2565 = vld [vmem:[%s2497 + $0x10c] sm:$0xf]
    %v2566 = vld [vmem:[%s2497 + $0x110] sm:$0xf]
    %v2567 = vld [vmem:[%s2497 + $0x114] sm:$0xf]
    %v2568 = vld [vmem:[%s2497 + $0x118] sm:$0xf]
    %v2569 = vld [vmem:[%s2497 + $0x11c] sm:$0xf]
    %v2570 = vld [vmem:[%s2497 + $0x120] sm:$0xf]
    %v2571 = vld [vmem:[%s2497 + $0x124] sm:$0xf]
    %v2572 = vld [vmem:[%s2497 + $0x128] sm:$0xf]
    %v2573 = vld [vmem:[%s2497 + $0x12c] sm:$0xf]
    %v2574 = vld [vmem:[%s2497 + $0x130] sm:$0xf]
    %v2575 = vld [vmem:[%s2497 + $0x134] sm:$0xf]
    %v2576 = vld [vmem:[%s2497 + $0x138] sm:$0xf]
    %v2577 = vld [vmem:[%s2497 + $0x13c] sm:$0xf]
    %v2578 = vld [vmem:[%s2497 + $0x140] sm:$0xf]
    %v2579 = vld [vmem:[%s2497 + $0x144] sm:$0xf]
    %v2580 = vld [vmem:[%s2497 + $0x148] sm:$0xf]
    %v2581 = vld [vmem:[%s2497 + $0x14c] sm:$0xf]
    %v2582 = vld [vmem:[%s2497 + $0x150] sm:$0xf]
    %v2583 = vld [vmem:[%s2497 + $0x154] sm:$0xf]
    %v2584 = vld [vmem:[%s2497 + $0x158] sm:$0xf]
    %v2585 = vld [vmem:[%s2497 + $0x15c] sm:$0xf]
    %v2586 = vld [vmem:[%s2497 + $0x160] sm:$0xf]
    %v2587 = vld [vmem:[%s2497 + $0x164] sm:$0xf]
    %v2588 = vld [vmem:[%s2497 + $0x168] sm:$0xf]
    %v2589 = vld [vmem:[%s2497 + $0x16c] sm:$0xf]
    %v2590 = vld [vmem:[%s2497 + $0x170] sm:$0xf]
    %v2591 = vld [vmem:[%s2497 + $0x174] sm:$0xf]
    %v2592 = vld [vmem:[%s2497 + $0x178] sm:$0xf]
    %v2593 = vld [vmem:[%s2497 + $0x17c] sm:$0xf]
    %v2594 = vld [vmem:[%s2497 + $0x180] sm:$0xf]
    %v2595 = vld [vmem:[%s2497 + $0x184] sm:$0xf]
    %v2596 = vld [vmem:[%s2497 + $0x188] sm:$0xf]
    %v2597 = vld [vmem:[%s2497 + $0x18c] sm:$0xf]
    %v2598 = vld [vmem:[%s2497 + $0x190] sm:$0xf]
    %v2599 = vld [vmem:[%s2497 + $0x194] sm:$0xf]
    %v2600 = vld [vmem:[%s2497 + $0x198] sm:$0xf]
    %v2601 = vld [vmem:[%s2497 + $0x19c] sm:$0xf]
    %v2602 = vld [vmem:[%s2497 + $0x1a0] sm:$0xf]
    %v2603 = vld [vmem:[%s2497 + $0x1a4] sm:$0xf]
    %v2604 = vld [vmem:[%s2497 + $0x1a8] sm:$0xf]
    %v2605 = vld [vmem:[%s2497 + $0x1ac] sm:$0xf]
    %v2606 = vld [vmem:[%s2497 + $0x1b0] sm:$0xf]
    %v2607 = vld [vmem:[%s2497 + $0x1b4] sm:$0xf]
    %v2608 = vld [vmem:[%s2497 + $0x1b8] sm:$0xf]
    %v2609 = vld [vmem:[%s2497 + $0x1bc] sm:$0xf]
    %v2610 = vld [vmem:[%s2497 + $0x1c0] sm:$0xf]
    %v2611 = vld [vmem:[%s2497 + $0x1c4] sm:$0xf]
    %v2612 = vld [vmem:[%s2497 + $0x1c8] sm:$0xf]
    %v2613 = vld [vmem:[%s2497 + $0x1cc] sm:$0xf]
    %v2614 = vld [vmem:[%s2497 + $0x1d0] sm:$0xf]
    %v2615 = vld [vmem:[%s2497 + $0x1d4] sm:$0xf]
    %v2616 = vld [vmem:[%s2497 + $0x1d8] sm:$0xf]
    %v2617 = vld [vmem:[%s2497 + $0x1dc] sm:$0xf]
    %v2618 = vld [vmem:[%s2497 + $0x1e0] sm:$0xf]
    %v2619 = vld [vmem:[%s2497 + $0x1e4] sm:$0xf]
    %v2620 = vld [vmem:[%s2497 + $0x1e8] sm:$0xf]
    %v2621 = vld [vmem:[%s2497 + $0x1ec] sm:$0xf]
    %v2622 = vld [vmem:[%s2497 + $0x1f0] sm:$0xf]
    %v2623 = vld [vmem:[%s2497 + $0x1f4] sm:$0xf]
    %v2624 = vld [vmem:[%s2497 + $0x1f8] sm:$0xf]
    %v2625 = vld [vmem:[%s2497 + $0x1fc] sm:$0xf]
    %v2626 = vld [vmem:[%s2497 + $0x200] sm:$0xf]
    %v2627 = vld [vmem:[%s2497 + $0x204] sm:$0xf]
    %v2628 = vld [vmem:[%s2497 + $0x208] sm:$0xf]
    %v2629 = vld [vmem:[%s2497 + $0x20c] sm:$0xf]
    %v2630 = vld [vmem:[%s2497 + $0x210] sm:$0xf]
    %v2631 = vld [vmem:[%s2497 + $0x214] sm:$0xf]
    %v2632 = vld [vmem:[%s2497 + $0x218] sm:$0xf]
    %v2633 = vld [vmem:[%s2497 + $0x21c] sm:$0xf]
    %v2634 = vld [vmem:[%s2497 + $0x220] sm:$0xf]
    %v2635 = vld [vmem:[%s2497 + $0x224] sm:$0xf]
    %v2636 = vld [vmem:[%s2497 + $0x228] sm:$0xf]
    %v2637 = vld [vmem:[%s2497 + $0x22c] sm:$0xf]
    %v2638 = vld [vmem:[%s2497 + $0x230] sm:$0xf]
    %v2639 = vld [vmem:[%s2497 + $0x234] sm:$0xf]
    %v2640 = vld [vmem:[%s2497 + $0x238] sm:$0xf]
    %v2641 = vld [vmem:[%s2497 + $0x23c] sm:$0xf]
    %s2642 = scalar_lea.vmem [#allocation9], 1
    %v2643 = vld [vmem:[%s2642] sm:$0x1]
    %v2645 = vlaneseq
    %v2646 = vshrl.u32 %v2645, 7
    %v2647 = vsub.s32 0, %v2646
    %v2648 = vrot.slane %v2643, %v2647
    %v2794 = vunpack.c.l.b16 %v2498
    %v2795 = vunpack.c.l.b16 %v2499
    %v2796 = vunpack.c.l.b16 %v2500
    %v2797 = vunpack.c.l.b16 %v2501
    %v2798 = vunpack.c.l.b16 %v2502
    %v2799 = vunpack.c.l.b16 %v2503
    %v2800 = vunpack.c.l.b16 %v2504
    %v2801 = vunpack.c.l.b16 %v2505
    %v2802 = vunpack.c.l.b16 %v2506
    %v2803 = vunpack.c.l.b16 %v2507
    %v2804 = vunpack.c.l.b16 %v2508
    %v2805 = vunpack.c.l.b16 %v2509
    %v2806 = vunpack.c.l.b16 %v2510
    %v2807 = vunpack.c.l.b16 %v2511
    %v2808 = vunpack.c.l.b16 %v2512
    %v2809 = vunpack.c.l.b16 %v2513
    %v2810 = vunpack.c.l.b16 %v2514
    %v2811 = vunpack.c.l.b16 %v2515
    %v2812 = vunpack.c.l.b16 %v2516
    %v2813 = vunpack.c.l.b16 %v2517
    %v2814 = vunpack.c.l.b16 %v2518
    %v2815 = vunpack.c.l.b16 %v2519
    %v2816 = vunpack.c.l.b16 %v2520
    %v2817 = vunpack.c.l.b16 %v2521
    %v2818 = vunpack.c.l.b16 %v2522
    %v2819 = vunpack.c.l.b16 %v2523
    %v2820 = vunpack.c.l.b16 %v2524
    %v2821 = vunpack.c.l.b16 %v2525
    %v2822 = vunpack.c.l.b16 %v2526
    %v2823 = vunpack.c.l.b16 %v2527
    %v2824 = vunpack.c.l.b16 %v2528
    %v2825 = vunpack.c.l.b16 %v2529
    %v2826 = vunpack.c.l.b16 %v2530
    %v2827 = vunpack.c.l.b16 %v2531
    %v2828 = vunpack.c.l.b16 %v2532
    %v2829 = vunpack.c.l.b16 %v2533
    %v2830 = vunpack.c.l.b16 %v2534
    %v2831 = vunpack.c.l.b16 %v2535
    %v2832 = vunpack.c.l.b16 %v2536
    %v2833 = vunpack.c.l.b16 %v2537
    %v2834 = vunpack.c.l.b16 %v2538
    %v2835 = vunpack.c.l.b16 %v2539
    %v2836 = vunpack.c.l.b16 %v2540
    %v2837 = vunpack.c.l.b16 %v2541
    %v2838 = vunpack.c.l.b16 %v2542
    %v2839 = vunpack.c.l.b16 %v2543
    %v2840 = vunpack.c.l.b16 %v2544
    %v2841 = vunpack.c.l.b16 %v2545
    %v2842 = vunpack.c.l.b16 %v2546
    %v2843 = vunpack.c.l.b16 %v2547
    %v2844 = vunpack.c.l.b16 %v2548
    %v2845 = vunpack.c.l.b16 %v2549
    %v2846 = vunpack.c.l.b16 %v2550
    %v2847 = vunpack.c.l.b16 %v2551
    %v2848 = vunpack.c.l.b16 %v2552
    %v2849 = vunpack.c.l.b16 %v2553
    %v2850 = vunpack.c.l.b16 %v2554
    %v2851 = vunpack.c.l.b16 %v2555
    %v2852 = vunpack.c.l.b16 %v2556
    %v2853 = vunpack.c.l.b16 %v2557
    %v2854 = vunpack.c.l.b16 %v2558
    %v2855 = vunpack.c.l.b16 %v2559
    %v2856 = vunpack.c.l.b16 %v2560
    %v2857 = vunpack.c.l.b16 %v2561
    %v2858 = vunpack.c.l.b16 %v2562
    %v2859 = vunpack.c.l.b16 %v2563
    %v2860 = vunpack.c.l.b16 %v2564
    %v2861 = vunpack.c.l.b16 %v2565
    %v2862 = vunpack.c.l.b16 %v2566
    %v2863 = vunpack.c.l.b16 %v2567
    %v2864 = vunpack.c.l.b16 %v2568
    %v2865 = vunpack.c.l.b16 %v2569
    %v2866 = vunpack.c.l.b16 %v2570
    %v2867 = vunpack.c.l.b16 %v2571
    %v2868 = vunpack.c.l.b16 %v2572
    %v2869 = vunpack.c.l.b16 %v2573
    %v2870 = vunpack.c.l.b16 %v2574
    %v2871 = vunpack.c.l.b16 %v2575
    %v2872 = vunpack.c.l.b16 %v2576
    %v2873 = vunpack.c.l.b16 %v2577
    %v2874 = vunpack.c.l.b16 %v2578
    %v2875 = vunpack.c.l.b16 %v2579
    %v2876 = vunpack.c.l.b16 %v2580
    %v2877 = vunpack.c.l.b16 %v2581
    %v2878 = vunpack.c.l.b16 %v2582
    %v2879 = vunpack.c.l.b16 %v2583
    %v2880 = vunpack.c.l.b16 %v2584
    %v2881 = vunpack.c.l.b16 %v2585
    %v2882 = vunpack.c.l.b16 %v2586
    %v2883 = vunpack.c.l.b16 %v2587
    %v2884 = vunpack.c.l.b16 %v2588
    %v2885 = vunpack.c.l.b16 %v2589
    %v2886 = vunpack.c.l.b16 %v2590
    %v2887 = vunpack.c.l.b16 %v2591
    %v2888 = vunpack.c.l.b16 %v2592
    %v2889 = vunpack.c.l.b16 %v2593
    %v2890 = vunpack.c.l.b16 %v2594
    %v2891 = vunpack.c.l.b16 %v2595
    %v2892 = vunpack.c.l.b16 %v2596
    %v2893 = vunpack.c.l.b16 %v2597
    %v2894 = vunpack.c.l.b16 %v2598
    %v2895 = vunpack.c.l.b16 %v2599
    %v2896 = vunpack.c.l.b16 %v2600
    %v2897 = vunpack.c.l.b16 %v2601
    %v2898 = vunpack.c.l.b16 %v2602
    %v2899 = vunpack.c.l.b16 %v2603
    %v2900 = vunpack.c.l.b16 %v2604
    %v2901 = vunpack.c.l.b16 %v2605
    %v2902 = vunpack.c.l.b16 %v2606
    %v2903 = vunpack.c.l.b16 %v2607
    %v2904 = vunpack.c.l.b16 %v2608
    %v2905 = vunpack.c.l.b16 %v2609
    %v2906 = vunpack.c.l.b16 %v2610
    %v2907 = vunpack.c.l.b16 %v2611
    %v2908 = vunpack.c.l.b16 %v2612
    %v2909 = vunpack.c.l.b16 %v2613
    %v2910 = vunpack.c.l.b16 %v2614
    %v2911 = vunpack.c.l.b16 %v2615
    %v2912 = vunpack.c.l.b16 %v2616
    %v2913 = vunpack.c.l.b16 %v2617
    %v2914 = vunpack.c.l.b16 %v2618
    %v2915 = vunpack.c.l.b16 %v2619
    %v2916 = vunpack.c.l.b16 %v2620
    %v2917 = vunpack.c.l.b16 %v2621
    %v2918 = vunpack.c.l.b16 %v2622
    %v2919 = vunpack.c.l.b16 %v2623
    %v2920 = vunpack.c.l.b16 %v2624
    %v2921 = vunpack.c.l.b16 %v2625
    %v2922 = vunpack.c.l.b16 %v2626
    %v2923 = vunpack.c.l.b16 %v2627
    %v2924 = vunpack.c.l.b16 %v2628
    %v2925 = vunpack.c.l.b16 %v2629
    %v2926 = vunpack.c.l.b16 %v2630
    %v2927 = vunpack.c.l.b16 %v2631
    %v2928 = vunpack.c.l.b16 %v2632
    %v2929 = vunpack.c.l.b16 %v2633
    %v2930 = vunpack.c.l.b16 %v2634
    %v2931 = vunpack.c.l.b16 %v2635
    %v2932 = vunpack.c.l.b16 %v2636
    %v2933 = vunpack.c.l.b16 %v2637
    %v2934 = vunpack.c.l.b16 %v2638
    %v2935 = vunpack.c.l.b16 %v2639
    %v2936 = vunpack.c.l.b16 %v2640
    %v2937 = vunpack.c.l.b16 %v2641
    %v2938 = vpack.c.b16 %v2795, %v2794
    %v2939 = vpack.c.b16 %v2797, %v2796
    %v2940 = vpack.c.b16 %v2799, %v2798
    %v2941 = vpack.c.b16 %v2801, %v2800
    %v2942 = vpack.c.b16 %v2803, %v2802
    %v2943 = vpack.c.b16 %v2805, %v2804
    %v2944 = vpack.c.b16 %v2807, %v2806
    %v2945 = vpack.c.b16 %v2809, %v2808
    %v2946 = vpack.c.b16 %v2811, %v2810
    %v2947 = vpack.c.b16 %v2813, %v2812
    %v2948 = vpack.c.b16 %v2815, %v2814
    %v2949 = vpack.c.b16 %v2817, %v2816
    %v2950 = vpack.c.b16 %v2819, %v2818
    %v2951 = vpack.c.b16 %v2821, %v2820
    %v2952 = vpack.c.b16 %v2823, %v2822
    %v2953 = vpack.c.b16 %v2825, %v2824
    %v2954 = vpack.c.b16 %v2827, %v2826
    %v2955 = vpack.c.b16 %v2829, %v2828
    %v2956 = vpack.c.b16 %v2831, %v2830
    %v2957 = vpack.c.b16 %v2833, %v2832
    %v2958 = vpack.c.b16 %v2835, %v2834
    %v2959 = vpack.c.b16 %v2837, %v2836
    %v2960 = vpack.c.b16 %v2839, %v2838
    %v2961 = vpack.c.b16 %v2841, %v2840
    %v2962 = vpack.c.b16 %v2843, %v2842
    %v2963 = vpack.c.b16 %v2845, %v2844
    %v2964 = vpack.c.b16 %v2847, %v2846
    %v2965 = vpack.c.b16 %v2849, %v2848
    %v2966 = vpack.c.b16 %v2851, %v2850
    %v2967 = vpack.c.b16 %v2853, %v2852
    %v2968 = vpack.c.b16 %v2855, %v2854
    %v2969 = vpack.c.b16 %v2857, %v2856
    %v2970 = vpack.c.b16 %v2859, %v2858
    %v2971 = vpack.c.b16 %v2861, %v2860
    %v2972 = vpack.c.b16 %v2863, %v2862
    %v2973 = vpack.c.b16 %v2865, %v2864
    %v2974 = vpack.c.b16 %v2867, %v2866
    %v2975 = vpack.c.b16 %v2869, %v2868
    %v2976 = vpack.c.b16 %v2871, %v2870
    %v2977 = vpack.c.b16 %v2873, %v2872
    %v2978 = vpack.c.b16 %v2875, %v2874
    %v2979 = vpack.c.b16 %v2877, %v2876
    %v2980 = vpack.c.b16 %v2879, %v2878
    %v2981 = vpack.c.b16 %v2881, %v2880
    %v2982 = vpack.c.b16 %v2883, %v2882
    %v2983 = vpack.c.b16 %v2885, %v2884
    %v2984 = vpack.c.b16 %v2887, %v2886
    %v2985 = vpack.c.b16 %v2889, %v2888
    %v2986 = vpack.c.b16 %v2891, %v2890
    %v2987 = vpack.c.b16 %v2893, %v2892
    %v2988 = vpack.c.b16 %v2895, %v2894
    %v2989 = vpack.c.b16 %v2897, %v2896
    %v2990 = vpack.c.b16 %v2899, %v2898
    %v2991 = vpack.c.b16 %v2901, %v2900
    %v2992 = vpack.c.b16 %v2903, %v2902
    %v2993 = vpack.c.b16 %v2905, %v2904
    %v2994 = vpack.c.b16 %v2907, %v2906
    %v2995 = vpack.c.b16 %v2909, %v2908
    %v2996 = vpack.c.b16 %v2911, %v2910
    %v2997 = vpack.c.b16 %v2913, %v2912
    %v2998 = vpack.c.b16 %v2915, %v2914
    %v2999 = vpack.c.b16 %v2917, %v2916
    %v3000 = vpack.c.b16 %v2919, %v2918
    %v3001 = vpack.c.b16 %v2921, %v2920
    %v3002 = vpack.c.b16 %v2923, %v2922
    %v3003 = vpack.c.b16 %v2925, %v2924
    %v3004 = vpack.c.b16 %v2927, %v2926
    %v3005 = vpack.c.b16 %v2929, %v2928
    %v3006 = vpack.c.b16 %v2931, %v2930
    %v3007 = vpack.c.b16 %v2933, %v2932
    %v3008 = vpack.c.b16 %v2935, %v2934
    %v3009 = vpack.c.b16 %v2937, %v2936
    %3082 = vmatprep.subr.bf16.mxu0 0
    %3083 = vmatpush1.bf16.msra.mxu0 %v2938
    %3084 = vmatprep.subr.bf16.mxu0 0
    %3085 = vmatpush1.bf16.msra.mxu0 %v2939
    %3086 = vmatprep.subr.bf16.mxu0 0
    %3087 = vmatpush1.bf16.msra.mxu0 %v2940
    %3088 = vmatprep.subr.bf16.mxu0 0
    %3089 = vmatpush1.bf16.msra.mxu0 %v2941
    %3090 = vmatprep.subr.bf16.mxu0 0
    %3091 = vmatpush1.bf16.msra.mxu0 %v2942
    %3092 = vmatprep.subr.bf16.mxu0 0
    %3093 = vmatpush1.bf16.msra.mxu0 %v2943
    %3094 = vmatprep.subr.bf16.mxu0 0
    %3095 = vmatpush1.bf16.msra.mxu0 %v2944
    %3096 = vmatprep.subr.bf16.mxu0 0
    %3097 = vmatpush1.bf16.msra.mxu0 %v2945
    %3098 = vmatprep.subr.bf16.mxu0 0
    %3099 = vmatpush1.bf16.msra.mxu0 %v2946
    %3100 = vmatprep.subr.bf16.mxu0 0
    %3101 = vmatpush1.bf16.msra.mxu0 %v2947
    %3102 = vmatprep.subr.bf16.mxu0 0
    %3103 = vmatpush1.bf16.msra.mxu0 %v2948
    %3104 = vmatprep.subr.bf16.mxu0 0
    %3105 = vmatpush1.bf16.msra.mxu0 %v2949
    %3106 = vmatprep.subr.bf16.mxu0 0
    %3107 = vmatpush1.bf16.msra.mxu0 %v2950
    %3108 = vmatprep.subr.bf16.mxu0 0
    %3109 = vmatpush1.bf16.msra.mxu0 %v2951
    %3110 = vmatprep.subr.bf16.mxu0 0
    %3111 = vmatpush1.bf16.msra.mxu0 %v2952
    %3112 = vmatprep.subr.bf16.mxu0 0
    %3113 = vmatpush1.bf16.msra.mxu0 %v2953
    %3114 = vmatprep.mubr.bf16.mxu0 %v2480
    %3115 = vmatmul.mubr.bf16.gmra.mrb[0].mxu0 %v2479
    %v3116 = vpop.f32.mrb[0].mxu0
    %v3117 = vadd.f32 %v2648, %v3116
    %v3118 = vpop.f32.mrb[0].mxu0
    %v3119 = vpop.f32.mrb[0].mxu0
    %v3120 = vadd.f32 %v2648, %v3119
    %v3121 = vpop.f32.mrb[0].mxu0
    %3122 = vmatprep.mubr.bf16.mxu0 %v2489
    %3123 = vmatmul.mubr.bf16.gmra.mrb[0].mxu0 %v2488
    %v3124 = vpop.f32.mrb[0].mxu0
    %v3125 = vadd.f32 %v2648, %v3124
    %v3126 = vpop.f32.mrb[0].mxu0
    %v3127 = vpop.f32.mrb[0].mxu0
    %v3128 = vadd.f32 %v2648, %v3127
    %v3129 = vpop.f32.mrb[0].mxu0
    %3130 = vdwg.mxu0
    %3131 = vmatprep.subr.bf16.mxu0 0
    %3132 = vmatpush1.bf16.msra.mxu0 %v2954
    %3133 = vmatprep.subr.bf16.mxu0 0
    %3134 = vmatpush1.bf16.msra.mxu0 %v2955
    %3135 = vmatprep.subr.bf16.mxu0 0
    %3136 = vmatpush1.bf16.msra.mxu0 %v2956
    %3137 = vmatprep.subr.bf16.mxu0 0
    %3138 = vmatpush1.bf16.msra.mxu0 %v2957
    %3139 = vmatprep.subr.bf16.mxu0 0
    %3140 = vmatpush1.bf16.msra.mxu0 %v2958
    %3141 = vmatprep.subr.bf16.mxu0 0
    %3142 = vmatpush1.bf16.msra.mxu0 %v2959
    %3143 = vmatprep.subr.bf16.mxu0 0
    %3144 = vmatpush1.bf16.msra.mxu0 %v2960
    %3145 = vmatprep.subr.bf16.mxu0 0
    %3146 = vmatpush1.bf16.msra.mxu0 %v2961
    %3147 = vmatprep.subr.bf16.mxu0 0
    %3148 = vmatpush1.bf16.msra.mxu0 %v2962
    %3149 = vmatprep.subr.bf16.mxu0 0
    %3150 = vmatpush1.bf16.msra.mxu0 %v2963
    %3151 = vmatprep.subr.bf16.mxu0 0
    %3152 = vmatpush1.bf16.msra.mxu0 %v2964
    %3153 = vmatprep.subr.bf16.mxu0 0
    %3154 = vmatpush1.bf16.msra.mxu0 %v2965
    %3155 = vmatprep.subr.bf16.mxu0 0
    %3156 = vmatpush1.bf16.msra.mxu0 %v2966
    %3157 = vmatprep.subr.bf16.mxu0 0
    %3158 = vmatpush1.bf16.msra.mxu0 %v2967
    %3159 = vmatprep.subr.bf16.mxu0 0
    %3160 = vmatpush1.bf16.msra.mxu0 %v2968
    %3161 = vmatprep.subr.bf16.mxu0 0
    %3162 = vmatpush1.bf16.msra.mxu0 %v2969
    %3163 = vmatprep.mubr.bf16.mxu0 %v2482
    %3164 = vmatmul.mubr.bf16.gmra.mrb[0].mxu0 %v2481
    %v3165 = vpop.f32.mrb[0].mxu0
    %v3166 = vadd.f32 %v3117, %v3165
    %v3167 = vpop.f32.mrb[0].mxu0
    %v3168 = vpop.f32.mrb[0].mxu0
    %v3169 = vadd.f32 %v3120, %v3168
    %v3170 = vpop.f32.mrb[0].mxu0
    %3171 = vmatprep.mubr.bf16.mxu0 %v2491
    %3172 = vmatmul.mubr.bf16.gmra.mrb[0].mxu0 %v2490
    %v3173 = vpop.f32.mrb[0].mxu0
    %v3174 = vadd.f32 %v3125, %v3173
    %v3175 = vpop.f32.mrb[0].mxu0
    %v3176 = vpop.f32.mrb[0].mxu0
    %v3177 = vadd.f32 %v3128, %v3176
    %v3178 = vpop.f32.mrb[0].mxu0
    %3179 = vdwg.mxu0
    %3180 = vmatprep.subr.bf16.mxu0 0
    %3181 = vmatpush1.bf16.msra.mxu0 %v2970
    %3182 = vmatprep.subr.bf16.mxu0 0
    %3183 = vmatpush1.bf16.msra.mxu0 %v2971
    %3184 = vmatprep.subr.bf16.mxu0 0
    %3185 = vmatpush1.bf16.msra.mxu0 %v2972
    %3186 = vmatprep.subr.bf16.mxu0 0
    %3187 = vmatpush1.bf16.msra.mxu0 %v2973
    %3188 = vmatprep.subr.bf16.mxu0 0
    %3189 = vmatpush1.bf16.msra.mxu0 %v2974
    %3190 = vmatprep.subr.bf16.mxu0 0
    %3191 = vmatpush1.bf16.msra.mxu0 %v2975
    %3192 = vmatprep.subr.bf16.mxu0 0
    %3193 = vmatpush1.bf16.msra.mxu0 %v2976
    %3194 = vmatprep.subr.bf16.mxu0 0
    %3195 = vmatpush1.bf16.msra.mxu0 %v2977
    %3196 = vmatprep.subr.bf16.mxu0 0
    %3197 = vmatpush1.bf16.msra.mxu0 %v2978
    %3198 = vmatprep.subr.bf16.mxu0 0
    %3199 = vmatpush1.bf16.msra.mxu0 %v2979
    %3200 = vmatprep.subr.bf16.mxu0 0
    %3201 = vmatpush1.bf16.msra.mxu0 %v2980
    %3202 = vmatprep.subr.bf16.mxu0 0
    %3203 = vmatpush1.bf16.msra.mxu0 %v2981
    %3204 = vmatprep.subr.bf16.mxu0 0
    %3205 = vmatpush1.bf16.msra.mxu0 %v2982
    %3206 = vmatprep.subr.bf16.mxu0 0
    %3207 = vmatpush1.bf16.msra.mxu0 %v2983
    %3208 = vmatprep.subr.bf16.mxu0 0
    %3209 = vmatpush1.bf16.msra.mxu0 %v2984
    %3210 = vmatprep.subr.bf16.mxu0 0
    %3211 = vmatpush1.bf16.msra.mxu0 %v2985
    %3212 = vmatprep.mubr.bf16.mxu0 %v2484
    %3213 = vmatmul.mubr.bf16.gmra.mrb[0].mxu0 %v2483
    %v3214 = vpop.f32.mrb[0].mxu0
    %v3215 = vadd.f32 %v3166, %v3214
    %v3216 = vpop.f32.mrb[0].mxu0
    %v3217 = vpop.f32.mrb[0].mxu0
    %v3218 = vadd.f32 %v3169, %v3217
    %v3219 = vpop.f32.mrb[0].mxu0
    %3220 = vmatprep.mubr.bf16.mxu0 %v2493
    %3221 = vmatmul.mubr.bf16.gmra.mrb[0].mxu0 %v2492
    %v3222 = vpop.f32.mrb[0].mxu0
    %v3223 = vadd.f32 %v3174, %v3222
    %v3224 = vpop.f32.mrb[0].mxu0
    %v3225 = vpop.f32.mrb[0].mxu0
    %v3226 = vadd.f32 %v3177, %v3225
    %v3227 = vpop.f32.mrb[0].mxu0
    %3228 = vdwg.mxu0
    %3229 = vmatprep.subr.bf16.mxu0 0
    %3230 = vmatpush1.bf16.msra.mxu0 %v2986
    %3231 = vmatprep.subr.bf16.mxu0 0
    %3232 = vmatpush1.bf16.msra.mxu0 %v2987
    %3233 = vmatprep.subr.bf16.mxu0 0
    %3234 = vmatpush1.bf16.msra.mxu0 %v2988
    %3235 = vmatprep.subr.bf16.mxu0 0
    %3236 = vmatpush1.bf16.msra.mxu0 %v2989
    %3237 = vmatprep.subr.bf16.mxu0 0
    %3238 = vmatpush1.bf16.msra.mxu0 %v2990
    %3239 = vmatprep.subr.bf16.mxu0 0
    %3240 = vmatpush1.bf16.msra.mxu0 %v2991
    %3241 = vmatprep.subr.bf16.mxu0 0
    %3242 = vmatpush1.bf16.msra.mxu0 %v2992
    %3243 = vmatprep.subr.bf16.mxu0 0
    %3244 = vmatpush1.bf16.msra.mxu0 %v2993
    %3245 = vmatprep.subr.bf16.mxu0 0
    %3246 = vmatpush1.bf16.msra.mxu0 %v2994
    %3247 = vmatprep.subr.bf16.mxu0 0
    %3248 = vmatpush1.bf16.msra.mxu0 %v2995
    %3249 = vmatprep.subr.bf16.mxu0 0
    %3250 = vmatpush1.bf16.msra.mxu0 %v2996
    %3251 = vmatprep.subr.bf16.mxu0 0
    %3252 = vmatpush1.bf16.msra.mxu0 %v2997
    %3253 = vmatprep.subr.bf16.mxu0 0
    %3254 = vmatpush1.bf16.msra.mxu0 %v2998
    %3255 = vmatprep.subr.bf16.mxu0 0
    %3256 = vmatpush1.bf16.msra.mxu0 %v2999
    %3257 = vmatprep.subr.bf16.mxu0 0
    %3258 = vmatpush1.bf16.msra.mxu0 %v3000
    %3259 = vmatprep.subr.bf16.mxu0 0
    %3260 = vmatpush1.bf16.msra.mxu0 %v3001
    %3261 = vmatprep.mubr.bf16.mxu0 %v2486
    %3262 = vmatmul.mubr.bf16.gmra.mrb[0].mxu0 %v2485
    %v3263 = vpop.f32.mrb[0].mxu0
    %v3264 = vadd.f32 %v3215, %v3263
    %v3265 = vpop.f32.mrb[0].mxu0
    %v3266 = vpop.f32.mrb[0].mxu0
    %v3267 = vadd.f32 %v3218, %v3266
    %v3268 = vpop.f32.mrb[0].mxu0
    %3269 = vmatprep.mubr.bf16.mxu0 %v2495
    %3270 = vmatmul.mubr.bf16.gmra.mrb[0].mxu0 %v2494
    %v3271 = vpop.f32.mrb[0].mxu0
    %v3272 = vadd.f32 %v3223, %v3271
    %v3273 = vpop.f32.mrb[0].mxu0
    %v3274 = vpop.f32.mrb[0].mxu0
    %v3275 = vadd.f32 %v3226, %v3274
    %v3276 = vpop.f32.mrb[0].mxu0
    %3277 = vdwg.mxu0
    %3278 = vmatprep.subr.bf16.mxu0 0
    %3279 = vmatpush1.bf16.msra.mxu0 %v3002
    %3280 = vmatprep.subr.bf16.mxu0 0
    %3281 = vmatpush1.bf16.msra.mxu0 %v3003
    %3282 = vmatprep.subr.bf16.mxu0 0
    %3283 = vmatpush1.bf16.msra.mxu0 %v3004
    %3284 = vmatprep.subr.bf16.mxu0 0
    %3285 = vmatpush1.bf16.msra.mxu0 %v3005
    %3286 = vmatprep.subr.bf16.mxu0 0
    %3287 = vmatpush1.bf16.msra.mxu0 %v3006
    %3288 = vmatprep.subr.bf16.mxu0 0
    %3289 = vmatpush1.bf16.msra.mxu0 %v3007
    %3290 = vmatprep.subr.bf16.mxu0 0
    %3291 = vmatpush1.bf16.msra.mxu0 %v3008
    %3292 = vmatprep.subr.bf16.mxu0 0
    %3293 = vmatpush1.bf16.msra.mxu0 %v3009
    %3294 = vmatprep.subr.bf16.mxu0 0
    %3295 = vmatpush1.bf16.msra.mxu0 0
    %3296 = vmatprep.subr.bf16.mxu0 0
    %3297 = vmatpush1.bf16.msra.mxu0 0
    %3298 = vmatprep.subr.bf16.mxu0 0
    %3299 = vmatpush1.bf16.msra.mxu0 0
    %3300 = vmatprep.subr.bf16.mxu0 0
    %3301 = vmatpush1.bf16.msra.mxu0 0
    %3302 = vmatprep.subr.bf16.mxu0 0
    %3303 = vmatpush1.bf16.msra.mxu0 0
    %3304 = vmatprep.subr.bf16.mxu0 0
    %3305 = vmatpush1.bf16.msra.mxu0 0
    %3306 = vmatprep.subr.bf16.mxu0 0
    %3307 = vmatpush1.bf16.msra.mxu0 0
    %3308 = vmatprep.subr.bf16.mxu0 0
    %3309 = vmatpush1.bf16.msra.mxu0 0
    %3310 = vmatprep.mubr.bf16.mxu0 0
    %3311 = vmatmul.mubr.bf16.gmra.mrb[0].mxu0 %v2487
    %v3312 = vpop.f32.mrb[0].mxu0
    %v3313 = vadd.f32 %v3264, %v3312
    %v3314 = vpop.f32.mrb[0].mxu0
    %v3315 = vpop.f32.mrb[0].mxu0
    %v3316 = vadd.f32 %v3267, %v3315
    %v3317 = vpop.f32.mrb[0].mxu0
    %3318 = vmatprep.mubr.bf16.mxu0 0
    %3319 = vmatmul.mubr.bf16.gmra.mrb[0].mxu0 %v2496
    %v3320 = vpop.f32.mrb[0].mxu0
    %v3321 = vadd.f32 %v3272, %v3320
    %v3322 = vpop.f32.mrb[0].mxu0
    %v3323 = vpop.f32.mrb[0].mxu0
    %v3324 = vadd.f32 %v3275, %v3323
    %v3325 = vpop.f32.mrb[0].mxu0
    %3326 = vdwg.mxu0
    %vm3327 = vcmp.gt.f32.partialorder %v3313, 0.0
    %vm3328 = vcmp.gt.f32.partialorder %v3316, 0.0
    %vm3329 = vcmp.gt.f32.partialorder %v3321, 0.0
    %vm3330 = vcmp.gt.f32.partialorder %v3324, 0.0
    %v3331 = vmul.f32 %v3313, 0.2
    %v3332 = vmul.f32 %v3316, 0.2
    %v3333 = vmul.f32 %v3321, 0.2
    %v3334 = vmul.f32 %v3324, 0.2
    %v3335 = vsel %vm3327, %v3313, %v3331
    %v3336 = vsel %vm3328, %v3316, %v3332
    %v3337 = vsel %vm3329, %v3321, %v3333
    %v3338 = vsel %vm3330, %v3324, %v3334
    %s3339 = scalar_lea.vmem [#allocation11], 1
    %v3340 = vld [vmem:[%s3339] sm:$0x1]
    %v3342 = vlaneseq
    %v3343 = vshrl.u32 %v3342, 7
    %v3344 = vsub.s32 0, %v3343
    %v3345 = vrot.slane %v3340, %v3344
    %v3347 = vmul.f32 %v3335, %v3345
    %v3348 = vmul.f32 %v3336, %v3345
    %v3349 = vmul.f32 %v3337, %v3345
    %v3350 = vmul.f32 %v3338, %v3345
    %s3351 = scalar_lea.vmem [#allocation12], 1
    %v3352 = vld [vmem:[%s3351] sm:$0x1]
    %v3354 = vlaneseq
    %v3355 = vshrl.u32 %v3354, 7
    %v3356 = vsub.s32 0, %v3355
    %v3357 = vrot.slane %v3352, %v3356
    %v3359 = vadd.f32 %v3347, %v3357
    %v3360 = vadd.f32 %v3348, %v3357
    %v3361 = vadd.f32 %v3349, %v3357
    %v3362 = vadd.f32 %v3350, %v3357
    %3363 = vst [vmem:[#allocation4 + $0x7] sm:$0xf] %v3359
    %3364 = vst [vmem:[#allocation4 + $0x9] sm:$0xf0] %v3359
    %3365 = vst [vmem:[#allocation4 + $0x13] sm:$0xf] %v3360
    %3366 = vst [vmem:[#allocation4 + $0x15] sm:$0xf0] %v3360
    %3367 = vst [vmem:[#allocation4 + $0x2b] sm:$0xf] %v3361
    %3368 = vst [vmem:[#allocation4 + $0x2d] sm:$0xf0] %v3361
    %3369 = vst [vmem:[#allocation4 + $0x37] sm:$0xf] %v3362
    %3370 = vst [vmem:[#allocation4 + $0x39] sm:$0xf0] %v3362
    %v3371 = vld [vmem:[#allocation4] ss:$2 sm:$0x3]
    %3372 = vst [vmem:[#allocation6] sm:$0x3] %v3371
    %s3373 = scalar_lea.vmem [#allocation4], 12
    %v3374 = vld [vmem:[%s3373] ss:$2 sm:$0x3]
    %v3376 = vrot.slane %v3374, 6
    %3378 = vst [vmem:[#allocation6] sm:$0xc] %v3376
    %s3379 = scalar_lea.vmem [#allocation4], 36
    %v3380 = vld [vmem:[%s3379] ss:$2 sm:$0x3]
    %v3382 = vrot.slane %v3380, 4
    %3384 = vst [vmem:[#allocation6] sm:$0x30] %v3382
    %s3385 = scalar_lea.vmem [#allocation4], 48
    %v3386 = vld [vmem:[%s3385] ss:$2 sm:$0x3]
    %v3388 = vrot.slane %v3386, 2
    %3390 = vst [vmem:[#allocation6] sm:$0xc0] %v3388
    %s3391 = scalar_lea.vmem [#allocation4], 1
    %v3392 = vld [vmem:[%s3391] ss:$2 sm:$0x3]
    %3393 = vst [vmem:[#allocation6 + $0x8] sm:$0x3] %v3392
    %s3394 = scalar_lea.vmem [#allocation4], 13
    %v3395 = vld [vmem:[%s3394] ss:$2 sm:$0x3]
    %v3397 = vrot.slane %v3395, 6
    %3399 = vst [vmem:[#allocation6 + $0x8] sm:$0xc] %v3397
    %s3400 = scalar_lea.vmem [#allocation4], 37
    %v3401 = vld [vmem:[%s3400] ss:$2 sm:$0x3]
    %v3403 = vrot.slane %v3401, 4
    %3405 = vst [vmem:[#allocation6 + $0x8] sm:$0x30] %v3403
    %s3406 = scalar_lea.vmem [#allocation4], 49
    %v3407 = vld [vmem:[%s3406] ss:$2 sm:$0x3]
    %v3409 = vrot.slane %v3407, 2
    %3411 = vst [vmem:[#allocation6 + $0x8] sm:$0xc0] %v3409
    %s3412 = scalar_lea.vmem [#allocation4], 2
    %v3413 = vld [vmem:[%s3412] ss:$2 sm:$0x3]
    %3414 = vst [vmem:[#allocation6 + $0x10] sm:$0x3] %v3413
    %s3415 = scalar_lea.vmem [#allocation4], 14
    %v3416 = vld [vmem:[%s3415] ss:$2 sm:$0x3]
    %v3418 = vrot.slane %v3416, 6
    %3420 = vst [vmem:[#allocation6 + $0x10] sm:$0xc] %v3418
    %s3421 = scalar_lea.vmem [#allocation4], 38
    %v3422 = vld [vmem:[%s3421] ss:$2 sm:$0x3]
    %v3424 = vrot.slane %v3422, 4
    %3426 = vst [vmem:[#allocation6 + $0x10] sm:$0x30] %v3424
    %s3427 = scalar_lea.vmem [#allocation4], 50
    %v3428 = vld [vmem:[%s3427] ss:$2 sm:$0x3]
    %v3430 = vrot.slane %v3428, 2
    %3432 = vst [vmem:[#allocation6 + $0x10] sm:$0xc0] %v3430
    %s3433 = scalar_lea.vmem [#allocation4], 6
    %v3434 = vld [vmem:[%s3433] ss:$2 sm:$0x3]
    %3435 = vst [vmem:[#allocation6 + $0x18] sm:$0x3] %v3434
    %s3436 = scalar_lea.vmem [#allocation4], 18
    %v3437 = vld [vmem:[%s3436] ss:$2 sm:$0x3]
    %v3439 = vrot.slane %v3437, 6
    %3441 = vst [vmem:[#allocation6 + $0x18] sm:$0xc] %v3439
    %s3442 = scalar_lea.vmem [#allocation4], 42
    %v3443 = vld [vmem:[%s3442] ss:$2 sm:$0x3]
    %v3445 = vrot.slane %v3443, 4
    %3447 = vst [vmem:[#allocation6 + $0x18] sm:$0x30] %v3445
    %s3448 = scalar_lea.vmem [#allocation4], 54
    %v3449 = vld [vmem:[%s3448] ss:$2 sm:$0x3]
    %v3451 = vrot.slane %v3449, 2
    %3453 = vst [vmem:[#allocation6 + $0x18] sm:$0xc0] %v3451
    %s3454 = scalar_lea.vmem [#allocation4], 7
    %v3455 = vld [vmem:[%s3454] ss:$2 sm:$0x3]
    %3456 = vst [vmem:[#allocation6 + $0x20] sm:$0x3] %v3455
    %s3457 = scalar_lea.vmem [#allocation4], 19
    %v3458 = vld [vmem:[%s3457] ss:$2 sm:$0x3]
    %v3460 = vrot.slane %v3458, 6
    %3462 = vst [vmem:[#allocation6 + $0x20] sm:$0xc] %v3460
    %s3463 = scalar_lea.vmem [#allocation4], 43
    %v3464 = vld [vmem:[%s3463] ss:$2 sm:$0x3]
    %v3466 = vrot.slane %v3464, 4
    %3468 = vst [vmem:[#allocation6 + $0x20] sm:$0x30] %v3466
    %s3469 = scalar_lea.vmem [#allocation4], 55
    %v3470 = vld [vmem:[%s3469] ss:$2 sm:$0x3]
    %v3472 = vrot.slane %v3470, 2
    %3474 = vst [vmem:[#allocation6 + $0x20] sm:$0xc0] %v3472
    %s3475 = scalar_lea.vmem [#allocation4], 8
    %v3476 = vld [vmem:[%s3475] ss:$2 sm:$0x3]
    %3477 = vst [vmem:[#allocation6 + $0x28] sm:$0x3] %v3476
    %s3478 = scalar_lea.vmem [#allocation4], 20
    %v3479 = vld [vmem:[%s3478] ss:$2 sm:$0x3]
    %v3481 = vrot.slane %v3479, 6
    %3483 = vst [vmem:[#allocation6 + $0x28] sm:$0xc] %v3481
    %s3484 = scalar_lea.vmem [#allocation4], 44
    %v3485 = vld [vmem:[%s3484] ss:$2 sm:$0x3]
    %v3487 = vrot.slane %v3485, 4
    %3489 = vst [vmem:[#allocation6 + $0x28] sm:$0x30] %v3487
    %s3490 = scalar_lea.vmem [#allocation4], 56
    %v3491 = vld [vmem:[%s3490] ss:$2 sm:$0x3]
    %v3493 = vrot.slane %v3491, 2
    %3495 = vst [vmem:[#allocation6 + $0x28] sm:$0xc0] %v3493
    %v3496 = vld [vmem:[%s3373] ss:$2 sm:$0x3]
    %3497 = vst [vmem:[#allocation6 + $0x30] sm:$0x3] %v3496
    %s3498 = scalar_lea.vmem [#allocation4], 24
    %v3499 = vld [vmem:[%s3498] ss:$2 sm:$0x3]
    %v3501 = vrot.slane %v3499, 6
    %3503 = vst [vmem:[#allocation6 + $0x30] sm:$0xc] %v3501
    %v3504 = vld [vmem:[%s3385] ss:$2 sm:$0x3]
    %v3506 = vrot.slane %v3504, 4
    %3508 = vst [vmem:[#allocation6 + $0x30] sm:$0x30] %v3506
    %s3509 = scalar_lea.vmem [#allocation4], 60
    %v3510 = vld [vmem:[%s3509] ss:$2 sm:$0x3]
    %v3512 = vrot.slane %v3510, 2
    %3514 = vst [vmem:[#allocation6 + $0x30] sm:$0xc0] %v3512
    %v3515 = vld [vmem:[%s3394] ss:$2 sm:$0x3]
    %3516 = vst [vmem:[#allocation6 + $0x38] sm:$0x3] %v3515
    %s3517 = scalar_lea.vmem [#allocation4], 25
    %v3518 = vld [vmem:[%s3517] ss:$2 sm:$0x3]
    %v3520 = vrot.slane %v3518, 6
    %3522 = vst [vmem:[#allocation6 + $0x38] sm:$0xc] %v3520
    %v3523 = vld [vmem:[%s3406] ss:$2 sm:$0x3]
    %v3525 = vrot.slane %v3523, 4
    %3527 = vst [vmem:[#allocation6 + $0x38] sm:$0x30] %v3525
    %s3528 = scalar_lea.vmem [#allocation4], 61
    %v3529 = vld [vmem:[%s3528] ss:$2 sm:$0x3]
    %v3531 = vrot.slane %v3529, 2
    %3533 = vst [vmem:[#allocation6 + $0x38] sm:$0xc0] %v3531
    %v3534 = vld [vmem:[%s3415] ss:$2 sm:$0x3]
    %3535 = vst [vmem:[#allocation6 + $0x40] sm:$0x3] %v3534
    %s3536 = scalar_lea.vmem [#allocation4], 26
    %v3537 = vld [vmem:[%s3536] ss:$2 sm:$0x3]
    %v3539 = vrot.slane %v3537, 6
    %3541 = vst [vmem:[#allocation6 + $0x40] sm:$0xc] %v3539
    %v3542 = vld [vmem:[%s3427] ss:$2 sm:$0x3]
    %v3544 = vrot.slane %v3542, 4
    %3546 = vst [vmem:[#allocation6 + $0x40] sm:$0x30] %v3544
    %s3547 = scalar_lea.vmem [#allocation4], 62
    %v3548 = vld [vmem:[%s3547] ss:$2 sm:$0x3]
    %v3550 = vrot.slane %v3548, 2
    %3552 = vst [vmem:[#allocation6 + $0x40] sm:$0xc0] %v3550
    %v3553 = vld [vmem:[#allocation6] sm:$0xff]
    %v3554 = vld [vmem:[#allocation6 + $0x8] sm:$0xff]
    %v3555 = vld [vmem:[#allocation6 + $0x10] sm:$0xff]
    %v3556 = vld [vmem:[#allocation6 + $0x18] sm:$0xff]
    %v3557 = vld [vmem:[#allocation6 + $0x20] sm:$0xff]
    %v3558 = vld [vmem:[#allocation6 + $0x28] sm:$0xff]
    %v3559 = vld [vmem:[#allocation6 + $0x30] sm:$0xff]
    %v3560 = vld [vmem:[#allocation6 + $0x38] sm:$0xff]
    %v3561 = vld [vmem:[#allocation6 + $0x40] sm:$0xff]
    %v3562 = vpack.c.bf16 %v3553, %v3553
    %v3563 = vpack.c.bf16 %v3554, %v3554
    %v3564 = vpack.c.bf16 %v3555, %v3555
    %v3565 = vpack.c.bf16 %v3556, %v3556
    %v3566 = vpack.c.bf16 %v3557, %v3557
    %v3567 = vpack.c.bf16 %v3558, %v3558
    %v3568 = vpack.c.bf16 %v3559, %v3559
    %v3569 = vpack.c.bf16 %v3560, %v3560
    %v3570 = vpack.c.bf16 %v3561, %v3561
    %s3571 = scalar_lea.vmem [#allocation7], 1152
    %v3572 = vld [vmem:[%s3571] sm:$0xf]
    %v3573 = vld [vmem:[%s3571 + $0x4] sm:$0xf]
    %v3574 = vld [vmem:[%s3571 + $0x8] sm:$0xf]
    %v3575 = vld [vmem:[%s3571 + $0xc] sm:$0xf]
    %v3576 = vld [vmem:[%s3571 + $0x10] sm:$0xf]
    %v3577 = vld [vmem:[%s3571 + $0x14] sm:$0xf]
    %v3578 = vld [vmem:[%s3571 + $0x18] sm:$0xf]
    %v3579 = vld [vmem:[%s3571 + $0x1c] sm:$0xf]
    %v3580 = vld [vmem:[%s3571 + $0x20] sm:$0xf]
    %v3581 = vld [vmem:[%s3571 + $0x24] sm:$0xf]
    %v3582 = vld [vmem:[%s3571 + $0x28] sm:$0xf]
    %v3583 = vld [vmem:[%s3571 + $0x2c] sm:$0xf]
    %v3584 = vld [vmem:[%s3571 + $0x30] sm:$0xf]
    %v3585 = vld [vmem:[%s3571 + $0x34] sm:$0xf]
    %v3586 = vld [vmem:[%s3571 + $0x38] sm:$0xf]
    %v3587 = vld [vmem:[%s3571 + $0x3c] sm:$0xf]
    %v3588 = vld [vmem:[%s3571 + $0x40] sm:$0xf]
    %v3589 = vld [vmem:[%s3571 + $0x44] sm:$0xf]
    %v3590 = vld [vmem:[%s3571 + $0x48] sm:$0xf]
    %v3591 = vld [vmem:[%s3571 + $0x4c] sm:$0xf]
    %v3592 = vld [vmem:[%s3571 + $0x50] sm:$0xf]
    %v3593 = vld [vmem:[%s3571 + $0x54] sm:$0xf]
    %v3594 = vld [vmem:[%s3571 + $0x58] sm:$0xf]
    %v3595 = vld [vmem:[%s3571 + $0x5c] sm:$0xf]
    %v3596 = vld [vmem:[%s3571 + $0x60] sm:$0xf]
    %v3597 = vld [vmem:[%s3571 + $0x64] sm:$0xf]
    %v3598 = vld [vmem:[%s3571 + $0x68] sm:$0xf]
    %v3599 = vld [vmem:[%s3571 + $0x6c] sm:$0xf]
    %v3600 = vld [vmem:[%s3571 + $0x70] sm:$0xf]
    %v3601 = vld [vmem:[%s3571 + $0x74] sm:$0xf]
    %v3602 = vld [vmem:[%s3571 + $0x78] sm:$0xf]
    %v3603 = vld [vmem:[%s3571 + $0x7c] sm:$0xf]
    %v3604 = vld [vmem:[%s3571 + $0x80] sm:$0xf]
    %v3605 = vld [vmem:[%s3571 + $0x84] sm:$0xf]
    %v3606 = vld [vmem:[%s3571 + $0x88] sm:$0xf]
    %v3607 = vld [vmem:[%s3571 + $0x8c] sm:$0xf]
    %v3608 = vld [vmem:[%s3571 + $0x90] sm:$0xf]
    %v3609 = vld [vmem:[%s3571 + $0x94] sm:$0xf]
    %v3610 = vld [vmem:[%s3571 + $0x98] sm:$0xf]
    %v3611 = vld [vmem:[%s3571 + $0x9c] sm:$0xf]
    %v3612 = vld [vmem:[%s3571 + $0xa0] sm:$0xf]
    %v3613 = vld [vmem:[%s3571 + $0xa4] sm:$0xf]
    %v3614 = vld [vmem:[%s3571 + $0xa8] sm:$0xf]
    %v3615 = vld [vmem:[%s3571 + $0xac] sm:$0xf]
    %v3616 = vld [vmem:[%s3571 + $0xb0] sm:$0xf]
    %v3617 = vld [vmem:[%s3571 + $0xb4] sm:$0xf]
    %v3618 = vld [vmem:[%s3571 + $0xb8] sm:$0xf]
    %v3619 = vld [vmem:[%s3571 + $0xbc] sm:$0xf]
    %v3620 = vld [vmem:[%s3571 + $0xc0] sm:$0xf]
    %v3621 = vld [vmem:[%s3571 + $0xc4] sm:$0xf]
    %v3622 = vld [vmem:[%s3571 + $0xc8] sm:$0xf]
    %v3623 = vld [vmem:[%s3571 + $0xcc] sm:$0xf]
    %v3624 = vld [vmem:[%s3571 + $0xd0] sm:$0xf]
    %v3625 = vld [vmem:[%s3571 + $0xd4] sm:$0xf]
    %v3626 = vld [vmem:[%s3571 + $0xd8] sm:$0xf]
    %v3627 = vld [vmem:[%s3571 + $0xdc] sm:$0xf]
    %v3628 = vld [vmem:[%s3571 + $0xe0] sm:$0xf]
    %v3629 = vld [vmem:[%s3571 + $0xe4] sm:$0xf]
    %v3630 = vld [vmem:[%s3571 + $0xe8] sm:$0xf]
    %v3631 = vld [vmem:[%s3571 + $0xec] sm:$0xf]
    %v3632 = vld [vmem:[%s3571 + $0xf0] sm:$0xf]
    %v3633 = vld [vmem:[%s3571 + $0xf4] sm:$0xf]
    %v3634 = vld [vmem:[%s3571 + $0xf8] sm:$0xf]
    %v3635 = vld [vmem:[%s3571 + $0xfc] sm:$0xf]
    %v3636 = vld [vmem:[%s3571 + $0x100] sm:$0xf]
    %v3637 = vld [vmem:[%s3571 + $0x104] sm:$0xf]
    %v3638 = vld [vmem:[%s3571 + $0x108] sm:$0xf]
    %v3639 = vld [vmem:[%s3571 + $0x10c] sm:$0xf]
    %v3640 = vld [vmem:[%s3571 + $0x110] sm:$0xf]
    %v3641 = vld [vmem:[%s3571 + $0x114] sm:$0xf]
    %v3642 = vld [vmem:[%s3571 + $0x118] sm:$0xf]
    %v3643 = vld [vmem:[%s3571 + $0x11c] sm:$0xf]
    %v3644 = vld [vmem:[%s3571 + $0x120] sm:$0xf]
    %v3645 = vld [vmem:[%s3571 + $0x124] sm:$0xf]
    %v3646 = vld [vmem:[%s3571 + $0x128] sm:$0xf]
    %v3647 = vld [vmem:[%s3571 + $0x12c] sm:$0xf]
    %v3648 = vld [vmem:[%s3571 + $0x130] sm:$0xf]
    %v3649 = vld [vmem:[%s3571 + $0x134] sm:$0xf]
    %v3650 = vld [vmem:[%s3571 + $0x138] sm:$0xf]
    %v3651 = vld [vmem:[%s3571 + $0x13c] sm:$0xf]
    %v3652 = vld [vmem:[%s3571 + $0x140] sm:$0xf]
    %v3653 = vld [vmem:[%s3571 + $0x144] sm:$0xf]
    %v3654 = vld [vmem:[%s3571 + $0x148] sm:$0xf]
    %v3655 = vld [vmem:[%s3571 + $0x14c] sm:$0xf]
    %v3656 = vld [vmem:[%s3571 + $0x150] sm:$0xf]
    %v3657 = vld [vmem:[%s3571 + $0x154] sm:$0xf]
    %v3658 = vld [vmem:[%s3571 + $0x158] sm:$0xf]
    %v3659 = vld [vmem:[%s3571 + $0x15c] sm:$0xf]
    %v3660 = vld [vmem:[%s3571 + $0x160] sm:$0xf]
    %v3661 = vld [vmem:[%s3571 + $0x164] sm:$0xf]
    %v3662 = vld [vmem:[%s3571 + $0x168] sm:$0xf]
    %v3663 = vld [vmem:[%s3571 + $0x16c] sm:$0xf]
    %v3664 = vld [vmem:[%s3571 + $0x170] sm:$0xf]
    %v3665 = vld [vmem:[%s3571 + $0x174] sm:$0xf]
    %v3666 = vld [vmem:[%s3571 + $0x178] sm:$0xf]
    %v3667 = vld [vmem:[%s3571 + $0x17c] sm:$0xf]
    %v3668 = vld [vmem:[%s3571 + $0x180] sm:$0xf]
    %v3669 = vld [vmem:[%s3571 + $0x184] sm:$0xf]
    %v3670 = vld [vmem:[%s3571 + $0x188] sm:$0xf]
    %v3671 = vld [vmem:[%s3571 + $0x18c] sm:$0xf]
    %v3672 = vld [vmem:[%s3571 + $0x190] sm:$0xf]
    %v3673 = vld [vmem:[%s3571 + $0x194] sm:$0xf]
    %v3674 = vld [vmem:[%s3571 + $0x198] sm:$0xf]
    %v3675 = vld [vmem:[%s3571 + $0x19c] sm:$0xf]
    %v3676 = vld [vmem:[%s3571 + $0x1a0] sm:$0xf]
    %v3677 = vld [vmem:[%s3571 + $0x1a4] sm:$0xf]
    %v3678 = vld [vmem:[%s3571 + $0x1a8] sm:$0xf]
    %v3679 = vld [vmem:[%s3571 + $0x1ac] sm:$0xf]
    %v3680 = vld [vmem:[%s3571 + $0x1b0] sm:$0xf]
    %v3681 = vld [vmem:[%s3571 + $0x1b4] sm:$0xf]
    %v3682 = vld [vmem:[%s3571 + $0x1b8] sm:$0xf]
    %v3683 = vld [vmem:[%s3571 + $0x1bc] sm:$0xf]
    %v3684 = vld [vmem:[%s3571 + $0x1c0] sm:$0xf]
    %v3685 = vld [vmem:[%s3571 + $0x1c4] sm:$0xf]
    %v3686 = vld [vmem:[%s3571 + $0x1c8] sm:$0xf]
    %v3687 = vld [vmem:[%s3571 + $0x1cc] sm:$0xf]
    %v3688 = vld [vmem:[%s3571 + $0x1d0] sm:$0xf]
    %v3689 = vld [vmem:[%s3571 + $0x1d4] sm:$0xf]
    %v3690 = vld [vmem:[%s3571 + $0x1d8] sm:$0xf]
    %v3691 = vld [vmem:[%s3571 + $0x1dc] sm:$0xf]
    %v3692 = vld [vmem:[%s3571 + $0x1e0] sm:$0xf]
    %v3693 = vld [vmem:[%s3571 + $0x1e4] sm:$0xf]
    %v3694 = vld [vmem:[%s3571 + $0x1e8] sm:$0xf]
    %v3695 = vld [vmem:[%s3571 + $0x1ec] sm:$0xf]
    %v3696 = vld [vmem:[%s3571 + $0x1f0] sm:$0xf]
    %v3697 = vld [vmem:[%s3571 + $0x1f4] sm:$0xf]
    %v3698 = vld [vmem:[%s3571 + $0x1f8] sm:$0xf]
    %v3699 = vld [vmem:[%s3571 + $0x1fc] sm:$0xf]
    %v3700 = vld [vmem:[%s3571 + $0x200] sm:$0xf]
    %v3701 = vld [vmem:[%s3571 + $0x204] sm:$0xf]
    %v3702 = vld [vmem:[%s3571 + $0x208] sm:$0xf]
    %v3703 = vld [vmem:[%s3571 + $0x20c] sm:$0xf]
    %v3704 = vld [vmem:[%s3571 + $0x210] sm:$0xf]
    %v3705 = vld [vmem:[%s3571 + $0x214] sm:$0xf]
    %v3706 = vld [vmem:[%s3571 + $0x218] sm:$0xf]
    %v3707 = vld [vmem:[%s3571 + $0x21c] sm:$0xf]
    %v3708 = vld [vmem:[%s3571 + $0x220] sm:$0xf]
    %v3709 = vld [vmem:[%s3571 + $0x224] sm:$0xf]
    %v3710 = vld [vmem:[%s3571 + $0x228] sm:$0xf]
    %v3711 = vld [vmem:[%s3571 + $0x22c] sm:$0xf]
    %v3712 = vld [vmem:[%s3571 + $0x230] sm:$0xf]
    %v3713 = vld [vmem:[%s3571 + $0x234] sm:$0xf]
    %v3714 = vld [vmem:[%s3571 + $0x238] sm:$0xf]
    %v3715 = vld [vmem:[%s3571 + $0x23c] sm:$0xf]
    %s3716 = scalar_lea.vmem [#allocation9], 2
    %v3717 = vld [vmem:[%s3716] sm:$0x1]
    %v3719 = vlaneseq
    %v3720 = vshrl.u32 %v3719, 7
    %v3721 = vsub.s32 0, %v3720
    %v3722 = vrot.slane %v3717, %v3721
    %v3868 = vunpack.c.l.b16 %v3572
    %v3869 = vunpack.c.l.b16 %v3573
    %v3870 = vunpack.c.l.b16 %v3574
    %v3871 = vunpack.c.l.b16 %v3575
    %v3872 = vunpack.c.l.b16 %v3576
    %v3873 = vunpack.c.l.b16 %v3577
    %v3874 = vunpack.c.l.b16 %v3578
    %v3875 = vunpack.c.l.b16 %v3579
    %v3876 = vunpack.c.l.b16 %v3580
    %v3877 = vunpack.c.l.b16 %v3581
    %v3878 = vunpack.c.l.b16 %v3582
    %v3879 = vunpack.c.l.b16 %v3583
    %v3880 = vunpack.c.l.b16 %v3584
    %v3881 = vunpack.c.l.b16 %v3585
    %v3882 = vunpack.c.l.b16 %v3586
    %v3883 = vunpack.c.l.b16 %v3587
    %v3884 = vunpack.c.l.b16 %v3588
    %v3885 = vunpack.c.l.b16 %v3589
    %v3886 = vunpack.c.l.b16 %v3590
    %v3887 = vunpack.c.l.b16 %v3591
    %v3888 = vunpack.c.l.b16 %v3592
    %v3889 = vunpack.c.l.b16 %v3593
    %v3890 = vunpack.c.l.b16 %v3594
    %v3891 = vunpack.c.l.b16 %v3595
    %v3892 = vunpack.c.l.b16 %v3596
    %v3893 = vunpack.c.l.b16 %v3597
    %v3894 = vunpack.c.l.b16 %v3598
    %v3895 = vunpack.c.l.b16 %v3599
    %v3896 = vunpack.c.l.b16 %v3600
    %v3897 = vunpack.c.l.b16 %v3601
    %v3898 = vunpack.c.l.b16 %v3602
    %v3899 = vunpack.c.l.b16 %v3603
    %v3900 = vunpack.c.l.b16 %v3604
    %v3901 = vunpack.c.l.b16 %v3605
    %v3902 = vunpack.c.l.b16 %v3606
    %v3903 = vunpack.c.l.b16 %v3607
    %v3904 = vunpack.c.l.b16 %v3608
    %v3905 = vunpack.c.l.b16 %v3609
    %v3906 = vunpack.c.l.b16 %v3610
    %v3907 = vunpack.c.l.b16 %v3611
    %v3908 = vunpack.c.l.b16 %v3612
    %v3909 = vunpack.c.l.b16 %v3613
    %v3910 = vunpack.c.l.b16 %v3614
    %v3911 = vunpack.c.l.b16 %v3615
    %v3912 = vunpack.c.l.b16 %v3616
    %v3913 = vunpack.c.l.b16 %v3617
    %v3914 = vunpack.c.l.b16 %v3618
    %v3915 = vunpack.c.l.b16 %v3619
    %v3916 = vunpack.c.l.b16 %v3620
    %v3917 = vunpack.c.l.b16 %v3621
    %v3918 = vunpack.c.l.b16 %v3622
    %v3919 = vunpack.c.l.b16 %v3623
    %v3920 = vunpack.c.l.b16 %v3624
    %v3921 = vunpack.c.l.b16 %v3625
    %v3922 = vunpack.c.l.b16 %v3626
    %v3923 = vunpack.c.l.b16 %v3627
    %v3924 = vunpack.c.l.b16 %v3628
    %v3925 = vunpack.c.l.b16 %v3629
    %v3926 = vunpack.c.l.b16 %v3630
    %v3927 = vunpack.c.l.b16 %v3631
    %v3928 = vunpack.c.l.b16 %v3632
    %v3929 = vunpack.c.l.b16 %v3633
    %v3930 = vunpack.c.l.b16 %v3634
    %v3931 = vunpack.c.l.b16 %v3635
    %v3932 = vunpack.c.l.b16 %v3636
    %v3933 = vunpack.c.l.b16 %v3637
    %v3934 = vunpack.c.l.b16 %v3638
    %v3935 = vunpack.c.l.b16 %v3639
    %v3936 = vunpack.c.l.b16 %v3640
    %v3937 = vunpack.c.l.b16 %v3641
    %v3938 = vunpack.c.l.b16 %v3642
    %v3939 = vunpack.c.l.b16 %v3643
    %v3940 = vunpack.c.l.b16 %v3644
    %v3941 = vunpack.c.l.b16 %v3645
    %v3942 = vunpack.c.l.b16 %v3646
    %v3943 = vunpack.c.l.b16 %v3647
    %v3944 = vunpack.c.l.b16 %v3648
    %v3945 = vunpack.c.l.b16 %v3649
    %v3946 = vunpack.c.l.b16 %v3650
    %v3947 = vunpack.c.l.b16 %v3651
    %v3948 = vunpack.c.l.b16 %v3652
    %v3949 = vunpack.c.l.b16 %v3653
    %v3950 = vunpack.c.l.b16 %v3654
    %v3951 = vunpack.c.l.b16 %v3655
    %v3952 = vunpack.c.l.b16 %v3656
    %v3953 = vunpack.c.l.b16 %v3657
    %v3954 = vunpack.c.l.b16 %v3658
    %v3955 = vunpack.c.l.b16 %v3659
    %v3956 = vunpack.c.l.b16 %v3660
    %v3957 = vunpack.c.l.b16 %v3661
    %v3958 = vunpack.c.l.b16 %v3662
    %v3959 = vunpack.c.l.b16 %v3663
    %v3960 = vunpack.c.l.b16 %v3664
    %v3961 = vunpack.c.l.b16 %v3665
    %v3962 = vunpack.c.l.b16 %v3666
    %v3963 = vunpack.c.l.b16 %v3667
    %v3964 = vunpack.c.l.b16 %v3668
    %v3965 = vunpack.c.l.b16 %v3669
    %v3966 = vunpack.c.l.b16 %v3670
    %v3967 = vunpack.c.l.b16 %v3671
    %v3968 = vunpack.c.l.b16 %v3672
    %v3969 = vunpack.c.l.b16 %v3673
    %v3970 = vunpack.c.l.b16 %v3674
    %v3971 = vunpack.c.l.b16 %v3675
    %v3972 = vunpack.c.l.b16 %v3676
    %v3973 = vunpack.c.l.b16 %v3677
    %v3974 = vunpack.c.l.b16 %v3678
    %v3975 = vunpack.c.l.b16 %v3679
    %v3976 = vunpack.c.l.b16 %v3680
    %v3977 = vunpack.c.l.b16 %v3681
    %v3978 = vunpack.c.l.b16 %v3682
    %v3979 = vunpack.c.l.b16 %v3683
    %v3980 = vunpack.c.l.b16 %v3684
    %v3981 = vunpack.c.l.b16 %v3685
    %v3982 = vunpack.c.l.b16 %v3686
    %v3983 = vunpack.c.l.b16 %v3687
    %v3984 = vunpack.c.l.b16 %v3688
    %v3985 = vunpack.c.l.b16 %v3689
    %v3986 = vunpack.c.l.b16 %v3690
    %v3987 = vunpack.c.l.b16 %v3691
    %v3988 = vunpack.c.l.b16 %v3692
    %v3989 = vunpack.c.l.b16 %v3693
    %v3990 = vunpack.c.l.b16 %v3694
    %v3991 = vunpack.c.l.b16 %v3695
    %v3992 = vunpack.c.l.b16 %v3696
    %v3993 = vunpack.c.l.b16 %v3697
    %v3994 = vunpack.c.l.b16 %v3698
    %v3995 = vunpack.c.l.b16 %v3699
    %v3996 = vunpack.c.l.b16 %v3700
    %v3997 = vunpack.c.l.b16 %v3701
    %v3998 = vunpack.c.l.b16 %v3702
    %v3999 = vunpack.c.l.b16 %v3703
    %v4000 = vunpack.c.l.b16 %v3704
    %v4001 = vunpack.c.l.b16 %v3705
    %v4002 = vunpack.c.l.b16 %v3706
    %v4003 = vunpack.c.l.b16 %v3707
    %v4004 = vunpack.c.l.b16 %v3708
    %v4005 = vunpack.c.l.b16 %v3709
    %v4006 = vunpack.c.l.b16 %v3710
    %v4007 = vunpack.c.l.b16 %v3711
    %v4008 = vunpack.c.l.b16 %v3712
    %v4009 = vunpack.c.l.b16 %v3713
    %v4010 = vunpack.c.l.b16 %v3714
    %v4011 = vunpack.c.l.b16 %v3715
    %v4012 = vpack.c.b16 %v3869, %v3868
    %v4013 = vpack.c.b16 %v3871, %v3870
    %v4014 = vpack.c.b16 %v3873, %v3872
    %v4015 = vpack.c.b16 %v3875, %v3874
    %v4016 = vpack.c.b16 %v3877, %v3876
    %v4017 = vpack.c.b16 %v3879, %v3878
    %v4018 = vpack.c.b16 %v3881, %v3880
    %v4019 = vpack.c.b16 %v3883, %v3882
    %v4020 = vpack.c.b16 %v3885, %v3884
    %v4021 = vpack.c.b16 %v3887, %v3886
    %v4022 = vpack.c.b16 %v3889, %v3888
    %v4023 = vpack.c.b16 %v3891, %v3890
    %v4024 = vpack.c.b16 %v3893, %v3892
    %v4025 = vpack.c.b16 %v3895, %v3894
    %v4026 = vpack.c.b16 %v3897, %v3896
    %v4027 = vpack.c.b16 %v3899, %v3898
    %v4028 = vpack.c.b16 %v3901, %v3900
    %v4029 = vpack.c.b16 %v3903, %v3902
    %v4030 = vpack.c.b16 %v3905, %v3904
    %v4031 = vpack.c.b16 %v3907, %v3906
    %v4032 = vpack.c.b16 %v3909, %v3908
    %v4033 = vpack.c.b16 %v3911, %v3910
    %v4034 = vpack.c.b16 %v3913, %v3912
    %v4035 = vpack.c.b16 %v3915, %v3914
    %v4036 = vpack.c.b16 %v3917, %v3916
    %v4037 = vpack.c.b16 %v3919, %v3918
    %v4038 = vpack.c.b16 %v3921, %v3920
    %v4039 = vpack.c.b16 %v3923, %v3922
    %v4040 = vpack.c.b16 %v3925, %v3924
    %v4041 = vpack.c.b16 %v3927, %v3926
    %v4042 = vpack.c.b16 %v3929, %v3928
    %v4043 = vpack.c.b16 %v3931, %v3930
    %v4044 = vpack.c.b16 %v3933, %v3932
    %v4045 = vpack.c.b16 %v3935, %v3934
    %v4046 = vpack.c.b16 %v3937, %v3936
    %v4047 = vpack.c.b16 %v3939, %v3938
    %v4048 = vpack.c.b16 %v3941, %v3940
    %v4049 = vpack.c.b16 %v3943, %v3942
    %v4050 = vpack.c.b16 %v3945, %v3944
    %v4051 = vpack.c.b16 %v3947, %v3946
    %v4052 = vpack.c.b16 %v3949, %v3948
    %v4053 = vpack.c.b16 %v3951, %v3950
    %v4054 = vpack.c.b16 %v3953, %v3952
    %v4055 = vpack.c.b16 %v3955, %v3954
    %v4056 = vpack.c.b16 %v3957, %v3956
    %v4057 = vpack.c.b16 %v3959, %v3958
    %v4058 = vpack.c.b16 %v3961, %v3960
    %v4059 = vpack.c.b16 %v3963, %v3962
    %v4060 = vpack.c.b16 %v3965, %v3964
    %v4061 = vpack.c.b16 %v3967, %v3966
    %v4062 = vpack.c.b16 %v3969, %v3968
    %v4063 = vpack.c.b16 %v3971, %v3970
    %v4064 = vpack.c.b16 %v3973, %v3972
    %v4065 = vpack.c.b16 %v3975, %v3974
    %v4066 = vpack.c.b16 %v3977, %v3976
    %v4067 = vpack.c.b16 %v3979, %v3978
    %v4068 = vpack.c.b16 %v3981, %v3980
    %v4069 = vpack.c.b16 %v3983, %v3982
    %v4070 = vpack.c.b16 %v3985, %v3984
    %v4071 = vpack.c.b16 %v3987, %v3986
    %v4072 = vpack.c.b16 %v3989, %v3988
    %v4073 = vpack.c.b16 %v3991, %v3990
    %v4074 = vpack.c.b16 %v3993, %v3992
    %v4075 = vpack.c.b16 %v3995, %v3994
    %v4076 = vpack.c.b16 %v3997, %v3996
    %v4077 = vpack.c.b16 %v3999, %v3998
    %v4078 = vpack.c.b16 %v4001, %v4000
    %v4079 = vpack.c.b16 %v4003, %v4002
    %v4080 = vpack.c.b16 %v4005, %v4004
    %v4081 = vpack.c.b16 %v4007, %v4006
    %v4082 = vpack.c.b16 %v4009, %v4008
    %v4083 = vpack.c.b16 %v4011, %v4010
    %4156 = vmatprep.subr.bf16.mxu0 0
    %4157 = vmatpush1.bf16.msra.mxu0 %v4012
    %4158 = vmatprep.subr.bf16.mxu0 0
    %4159 = vmatpush1.bf16.msra.mxu0 %v4013
    %4160 = vmatprep.subr.bf16.mxu0 0
    %4161 = vmatpush1.bf16.msra.mxu0 %v4014
    %4162 = vmatprep.subr.bf16.mxu0 0
    %4163 = vmatpush1.bf16.msra.mxu0 %v4015
    %4164 = vmatprep.subr.bf16.mxu0 0
    %4165 = vmatpush1.bf16.msra.mxu0 %v4016
    %4166 = vmatprep.subr.bf16.mxu0 0
    %4167 = vmatpush1.bf16.msra.mxu0 %v4017
    %4168 = vmatprep.subr.bf16.mxu0 0
    %4169 = vmatpush1.bf16.msra.mxu0 %v4018
    %4170 = vmatprep.subr.bf16.mxu0 0
    %4171 = vmatpush1.bf16.msra.mxu0 %v4019
    %4172 = vmatprep.subr.bf16.mxu0 0
    %4173 = vmatpush1.bf16.msra.mxu0 %v4020
    %4174 = vmatprep.subr.bf16.mxu0 0
    %4175 = vmatpush1.bf16.msra.mxu0 %v4021
    %4176 = vmatprep.subr.bf16.mxu0 0
    %4177 = vmatpush1.bf16.msra.mxu0 %v4022
    %4178 = vmatprep.subr.bf16.mxu0 0
    %4179 = vmatpush1.bf16.msra.mxu0 %v4023
    %4180 = vmatprep.subr.bf16.mxu0 0
    %4181 = vmatpush1.bf16.msra.mxu0 %v4024
    %4182 = vmatprep.subr.bf16.mxu0 0
    %4183 = vmatpush1.bf16.msra.mxu0 %v4025
    %4184 = vmatprep.subr.bf16.mxu0 0
    %4185 = vmatpush1.bf16.msra.mxu0 %v4026
    %4186 = vmatprep.subr.bf16.mxu0 0
    %4187 = vmatpush1.bf16.msra.mxu0 %v4027
    %4188 = vmatprep.mubr.bf16.mxu0 %v3563
    %4189 = vmatmul.mubr.bf16.gmra.mrb[0].mxu0 %v3562
    %v4190 = vpop.f32.mrb[0].mxu0
    %v4191 = vadd.f32 %v3722, %v4190
    %v4192 = vpop.f32.mrb[0].mxu0
    %v4193 = vpop.f32.mrb[0].mxu0
    %v4194 = vpop.f32.mrb[0].mxu0
    %4195 = vdwg.mxu0
    %4196 = vmatprep.subr.bf16.mxu0 0
    %4197 = vmatpush1.bf16.msra.mxu0 %v4028
    %4198 = vmatprep.subr.bf16.mxu0 0
    %4199 = vmatpush1.bf16.msra.mxu0 %v4029
    %4200 = vmatprep.subr.bf16.mxu0 0
    %4201 = vmatpush1.bf16.msra.mxu0 %v4030
    %4202 = vmatprep.subr.bf16.mxu0 0
    %4203 = vmatpush1.bf16.msra.mxu0 %v4031
    %4204 = vmatprep.subr.bf16.mxu0 0
    %4205 = vmatpush1.bf16.msra.mxu0 %v4032
    %4206 = vmatprep.subr.bf16.mxu0 0
    %4207 = vmatpush1.bf16.msra.mxu0 %v4033
    %4208 = vmatprep.subr.bf16.mxu0 0
    %4209 = vmatpush1.bf16.msra.mxu0 %v4034
    %4210 = vmatprep.subr.bf16.mxu0 0
    %4211 = vmatpush1.bf16.msra.mxu0 %v4035
    %4212 = vmatprep.subr.bf16.mxu0 0
    %4213 = vmatpush1.bf16.msra.mxu0 %v4036
    %4214 = vmatprep.subr.bf16.mxu0 0
    %4215 = vmatpush1.bf16.msra.mxu0 %v4037
    %4216 = vmatprep.subr.bf16.mxu0 0
    %4217 = vmatpush1.bf16.msra.mxu0 %v4038
    %4218 = vmatprep.subr.bf16.mxu0 0
    %4219 = vmatpush1.bf16.msra.mxu0 %v4039
    %4220 = vmatprep.subr.bf16.mxu0 0
    %4221 = vmatpush1.bf16.msra.mxu0 %v4040
    %4222 = vmatprep.subr.bf16.mxu0 0
    %4223 = vmatpush1.bf16.msra.mxu0 %v4041
    %4224 = vmatprep.subr.bf16.mxu0 0
    %4225 = vmatpush1.bf16.msra.mxu0 %v4042
    %4226 = vmatprep.subr.bf16.mxu0 0
    %4227 = vmatpush1.bf16.msra.mxu0 %v4043
    %4228 = vmatprep.mubr.bf16.mxu0 %v3565
    %4229 = vmatmul.mubr.bf16.gmra.mrb[0].mxu0 %v3564
    %v4230 = vpop.f32.mrb[0].mxu0
    %v4231 = vadd.f32 %v4191, %v4230
    %v4232 = vpop.f32.mrb[0].mxu0
    %v4233 = vpop.f32.mrb[0].mxu0
    %v4234 = vpop.f32.mrb[0].mxu0
    %4235 = vdwg.mxu0
    %4236 = vmatprep.subr.bf16.mxu0 0
    %4237 = vmatpush1.bf16.msra.mxu0 %v4044
    %4238 = vmatprep.subr.bf16.mxu0 0
    %4239 = vmatpush1.bf16.msra.mxu0 %v4045
    %4240 = vmatprep.subr.bf16.mxu0 0
    %4241 = vmatpush1.bf16.msra.mxu0 %v4046
    %4242 = vmatprep.subr.bf16.mxu0 0
    %4243 = vmatpush1.bf16.msra.mxu0 %v4047
    %4244 = vmatprep.subr.bf16.mxu0 0
    %4245 = vmatpush1.bf16.msra.mxu0 %v4048
    %4246 = vmatprep.subr.bf16.mxu0 0
    %4247 = vmatpush1.bf16.msra.mxu0 %v4049
    %4248 = vmatprep.subr.bf16.mxu0 0
    %4249 = vmatpush1.bf16.msra.mxu0 %v4050
    %4250 = vmatprep.subr.bf16.mxu0 0
    %4251 = vmatpush1.bf16.msra.mxu0 %v4051
    %4252 = vmatprep.subr.bf16.mxu0 0
    %4253 = vmatpush1.bf16.msra.mxu0 %v4052
    %4254 = vmatprep.subr.bf16.mxu0 0
    %4255 = vmatpush1.bf16.msra.mxu0 %v4053
    %4256 = vmatprep.subr.bf16.mxu0 0
    %4257 = vmatpush1.bf16.msra.mxu0 %v4054
    %4258 = vmatprep.subr.bf16.mxu0 0
    %4259 = vmatpush1.bf16.msra.mxu0 %v4055
    %4260 = vmatprep.subr.bf16.mxu0 0
    %4261 = vmatpush1.bf16.msra.mxu0 %v4056
    %4262 = vmatprep.subr.bf16.mxu0 0
    %4263 = vmatpush1.bf16.msra.mxu0 %v4057
    %4264 = vmatprep.subr.bf16.mxu0 0
    %4265 = vmatpush1.bf16.msra.mxu0 %v4058
    %4266 = vmatprep.subr.bf16.mxu0 0
    %4267 = vmatpush1.bf16.msra.mxu0 %v4059
    %4268 = vmatprep.mubr.bf16.mxu0 %v3567
    %4269 = vmatmul.mubr.bf16.gmra.mrb[0].mxu0 %v3566
    %v4270 = vpop.f32.mrb[0].mxu0
    %v4271 = vadd.f32 %v4231, %v4270
    %v4272 = vpop.f32.mrb[0].mxu0
    %v4273 = vpop.f32.mrb[0].mxu0
    %v4274 = vpop.f32.mrb[0].mxu0
    %4275 = vdwg.mxu0
    %4276 = vmatprep.subr.bf16.mxu0 0
    %4277 = vmatpush1.bf16.msra.mxu0 %v4060
    %4278 = vmatprep.subr.bf16.mxu0 0
    %4279 = vmatpush1.bf16.msra.mxu0 %v4061
    %4280 = vmatprep.subr.bf16.mxu0 0
    %4281 = vmatpush1.bf16.msra.mxu0 %v4062
    %4282 = vmatprep.subr.bf16.mxu0 0
    %4283 = vmatpush1.bf16.msra.mxu0 %v4063
    %4284 = vmatprep.subr.bf16.mxu0 0
    %4285 = vmatpush1.bf16.msra.mxu0 %v4064
    %4286 = vmatprep.subr.bf16.mxu0 0
    %4287 = vmatpush1.bf16.msra.mxu0 %v4065
    %4288 = vmatprep.subr.bf16.mxu0 0
    %4289 = vmatpush1.bf16.msra.mxu0 %v4066
    %4290 = vmatprep.subr.bf16.mxu0 0
    %4291 = vmatpush1.bf16.msra.mxu0 %v4067
    %4292 = vmatprep.subr.bf16.mxu0 0
    %4293 = vmatpush1.bf16.msra.mxu0 %v4068
    %4294 = vmatprep.subr.bf16.mxu0 0
    %4295 = vmatpush1.bf16.msra.mxu0 %v4069
    %4296 = vmatprep.subr.bf16.mxu0 0
    %4297 = vmatpush1.bf16.msra.mxu0 %v4070
    %4298 = vmatprep.subr.bf16.mxu0 0
    %4299 = vmatpush1.bf16.msra.mxu0 %v4071
    %4300 = vmatprep.subr.bf16.mxu0 0
    %4301 = vmatpush1.bf16.msra.mxu0 %v4072
    %4302 = vmatprep.subr.bf16.mxu0 0
    %4303 = vmatpush1.bf16.msra.mxu0 %v4073
    %4304 = vmatprep.subr.bf16.mxu0 0
    %4305 = vmatpush1.bf16.msra.mxu0 %v4074
    %4306 = vmatprep.subr.bf16.mxu0 0
    %4307 = vmatpush1.bf16.msra.mxu0 %v4075
    %4308 = vmatprep.mubr.bf16.mxu0 %v3569
    %4309 = vmatmul.mubr.bf16.gmra.mrb[0].mxu0 %v3568
    %v4310 = vpop.f32.mrb[0].mxu0
    %v4311 = vadd.f32 %v4271, %v4310
    %v4312 = vpop.f32.mrb[0].mxu0
    %v4313 = vpop.f32.mrb[0].mxu0
    %v4314 = vpop.f32.mrb[0].mxu0
    %4315 = vdwg.mxu0
    %4316 = vmatprep.subr.bf16.mxu0 0
    %4317 = vmatpush1.bf16.msra.mxu0 %v4076
    %4318 = vmatprep.subr.bf16.mxu0 0
    %4319 = vmatpush1.bf16.msra.mxu0 %v4077
    %4320 = vmatprep.subr.bf16.mxu0 0
    %4321 = vmatpush1.bf16.msra.mxu0 %v4078
    %4322 = vmatprep.subr.bf16.mxu0 0
    %4323 = vmatpush1.bf16.msra.mxu0 %v4079
    %4324 = vmatprep.subr.bf16.mxu0 0
    %4325 = vmatpush1.bf16.msra.mxu0 %v4080
    %4326 = vmatprep.subr.bf16.mxu0 0
    %4327 = vmatpush1.bf16.msra.mxu0 %v4081
    %4328 = vmatprep.subr.bf16.mxu0 0
    %4329 = vmatpush1.bf16.msra.mxu0 %v4082
    %4330 = vmatprep.subr.bf16.mxu0 0
    %4331 = vmatpush1.bf16.msra.mxu0 %v4083
    %4332 = vmatprep.subr.bf16.mxu0 0
    %4333 = vmatpush1.bf16.msra.mxu0 0
    %4334 = vmatprep.subr.bf16.mxu0 0
    %4335 = vmatpush1.bf16.msra.mxu0 0
    %4336 = vmatprep.subr.bf16.mxu0 0
    %4337 = vmatpush1.bf16.msra.mxu0 0
    %4338 = vmatprep.subr.bf16.mxu0 0
    %4339 = vmatpush1.bf16.msra.mxu0 0
    %4340 = vmatprep.subr.bf16.mxu0 0
    %4341 = vmatpush1.bf16.msra.mxu0 0
    %4342 = vmatprep.subr.bf16.mxu0 0
    %4343 = vmatpush1.bf16.msra.mxu0 0
    %4344 = vmatprep.subr.bf16.mxu0 0
    %4345 = vmatpush1.bf16.msra.mxu0 0
    %4346 = vmatprep.subr.bf16.mxu0 0
    %4347 = vmatpush1.bf16.msra.mxu0 0
    %4348 = vmatprep.mubr.bf16.mxu0 0
    %4349 = vmatmul.mubr.bf16.gmra.mrb[0].mxu0 %v3570
    %v4350 = vpop.f32.mrb[0].mxu0
    %v4351 = vadd.f32 %v4311, %v4350
    %v4352 = vpop.f32.mrb[0].mxu0
    %v4353 = vpop.f32.mrb[0].mxu0
    %v4354 = vpop.f32.mrb[0].mxu0
    %4355 = vdwg.mxu0
    %vm4356 = vcmp.gt.f32.partialorder %v4351, 0.0
    %v4357 = vmul.f32 %v4351, 0.2
    %v4358 = vsel %vm4356, %v4351, %v4357
    %s4359 = scalar_lea.vmem [#allocation11], 2
    %v4360 = vld [vmem:[%s4359] sm:$0x1]
    %v4362 = vlaneseq
    %v4363 = vshrl.u32 %v4362, 7
    %v4364 = vsub.s32 0, %v4363
    %v4365 = vrot.slane %v4360, %v4364
    %v4367 = vmul.f32 %v4358, %v4365
    %s4368 = scalar_lea.vmem [#allocation12], 2
    %v4369 = vld [vmem:[%s4368] sm:$0x1]
    %v4371 = vlaneseq
    %v4372 = vshrl.u32 %v4371, 7
    %v4373 = vsub.s32 0, %v4372
    %v4374 = vrot.slane %v4369, %v4373
    %v4376 = vadd.f32 %v4367, %v4374
    %4377 = vst [vmem:[#allocation5 + $0x5] sm:$0x3] %v4376
    %4378 = vst [vmem:[#allocation5 + $0x7] sm:$0xc] %v4376
    %4379 = vst [vmem:[#allocation5 + $0x11] sm:$0x30] %v4376
    %4380 = vst [vmem:[#allocation5 + $0x13] sm:$0xc0] %v4376
    %v4381 = vld [vmem:[#allocation5] ss:$2 sm:$0x1]
    %4382 = vst [vmem:[#allocation6] sm:$0x1] %v4381
    %s4383 = scalar_lea.vmem [#allocation5], 16
    %v4384 = vld [vmem:[%s4383] ss:$2 sm:$0x1]
    %4385 = vst [vmem:[#allocation6 + $0x1] sm:$0x1] %v4384
    %s4386 = scalar_lea.vmem [#allocation5], 1
    %v4387 = vld [vmem:[%s4386] ss:$2 sm:$0x1]
    %4388 = vst [vmem:[#allocation6 + $0x8] sm:$0x1] %v4387
    %s4389 = scalar_lea.vmem [#allocation5], 17
    %v4390 = vld [vmem:[%s4389] ss:$2 sm:$0x1]
    %4391 = vst [vmem:[#allocation6 + $0x9] sm:$0x1] %v4390
    %s4392 = scalar_lea.vmem [#allocation5], 2
    %v4393 = vld [vmem:[%s4392] ss:$2 sm:$0x1]
    %4394 = vst [vmem:[#allocation6 + $0x10] sm:$0x1] %v4393
    %s4395 = scalar_lea.vmem [#allocation5], 18
    %v4396 = vld [vmem:[%s4395] ss:$2 sm:$0x1]
    %4397 = vst [vmem:[#allocation6 + $0x11] sm:$0x1] %v4396
    %s4398 = scalar_lea.vmem [#allocation5], 4
    %v4399 = vld [vmem:[%s4398] ss:$2 sm:$0x1]
    %4400 = vst [vmem:[#allocation6 + $0x18] sm:$0x1] %v4399
    %s4401 = scalar_lea.vmem [#allocation5], 20
    %v4402 = vld [vmem:[%s4401] ss:$2 sm:$0x1]
    %4403 = vst [vmem:[#allocation6 + $0x19] sm:$0x1] %v4402
    %s4404 = scalar_lea.vmem [#allocation5], 5
    %v4405 = vld [vmem:[%s4404] ss:$2 sm:$0x1]
    %4406 = vst [vmem:[#allocation6 + $0x20] sm:$0x1] %v4405
    %s4407 = scalar_lea.vmem [#allocation5], 21
    %v4408 = vld [vmem:[%s4407] ss:$2 sm:$0x1]
    %4409 = vst [vmem:[#allocation6 + $0x21] sm:$0x1] %v4408
    %s4410 = scalar_lea.vmem [#allocation5], 6
    %v4411 = vld [vmem:[%s4410] ss:$2 sm:$0x1]
    %4412 = vst [vmem:[#allocation6 + $0x28] sm:$0x1] %v4411
    %s4413 = scalar_lea.vmem [#allocation5], 22
    %v4414 = vld [vmem:[%s4413] ss:$2 sm:$0x1]
    %4415 = vst [vmem:[#allocation6 + $0x29] sm:$0x1] %v4414
    %s4416 = scalar_lea.vmem [#allocation5], 8
    %v4417 = vld [vmem:[%s4416] ss:$2 sm:$0x1]
    %4418 = vst [vmem:[#allocation6 + $0x30] sm:$0x1] %v4417
    %s4419 = scalar_lea.vmem [#allocation5], 24
    %v4420 = vld [vmem:[%s4419] ss:$2 sm:$0x1]
    %4421 = vst [vmem:[#allocation6 + $0x31] sm:$0x1] %v4420
    %s4422 = scalar_lea.vmem [#allocation5], 9
    %v4423 = vld [vmem:[%s4422] ss:$2 sm:$0x1]
    %4424 = vst [vmem:[#allocation6 + $0x38] sm:$0x1] %v4423
    %s4425 = scalar_lea.vmem [#allocation5], 25
    %v4426 = vld [vmem:[%s4425] ss:$2 sm:$0x1]
    %4427 = vst [vmem:[#allocation6 + $0x39] sm:$0x1] %v4426
    %s4428 = scalar_lea.vmem [#allocation5], 10
    %v4429 = vld [vmem:[%s4428] ss:$2 sm:$0x1]
    %4430 = vst [vmem:[#allocation6 + $0x40] sm:$0x1] %v4429
    %s4431 = scalar_lea.vmem [#allocation5], 26
    %v4432 = vld [vmem:[%s4431] ss:$2 sm:$0x1]
    %4433 = vst [vmem:[#allocation6 + $0x41] sm:$0x1] %v4432
    %v4434 = vld [vmem:[#allocation6] sm:$0x3]
    %v4435 = vld [vmem:[#allocation6 + $0x8] sm:$0x3]
    %v4436 = vld [vmem:[#allocation6 + $0x10] sm:$0x3]
    %v4437 = vld [vmem:[#allocation6 + $0x18] sm:$0x3]
    %v4438 = vld [vmem:[#allocation6 + $0x20] sm:$0x3]
    %v4439 = vld [vmem:[#allocation6 + $0x28] sm:$0x3]
    %v4440 = vld [vmem:[#allocation6 + $0x30] sm:$0x3]
    %v4441 = vld [vmem:[#allocation6 + $0x38] sm:$0x3]
    %v4442 = vld [vmem:[#allocation6 + $0x40] sm:$0x3]
    %v4443 = vpack.c.bf16 %v4434, %v4434
    %v4444 = vpack.c.bf16 %v4435, %v4435
    %v4445 = vpack.c.bf16 %v4436, %v4436
    %v4446 = vpack.c.bf16 %v4437, %v4437
    %v4447 = vpack.c.bf16 %v4438, %v4438
    %v4448 = vpack.c.bf16 %v4439, %v4439
    %v4449 = vpack.c.bf16 %v4440, %v4440
    %v4450 = vpack.c.bf16 %v4441, %v4441
    %v4451 = vpack.c.bf16 %v4442, %v4442
    %s4452 = scalar_lea.vmem [#allocation7], 1728
    %v4453 = vld [vmem:[%s4452] sm:$0xf]
    %v4454 = vld [vmem:[%s4452 + $0x4] sm:$0xf]
    %v4455 = vld [vmem:[%s4452 + $0x8] sm:$0xf]
    %v4456 = vld [vmem:[%s4452 + $0xc] sm:$0xf]
    %v4457 = vld [vmem:[%s4452 + $0x10] sm:$0xf]
    %v4458 = vld [vmem:[%s4452 + $0x14] sm:$0xf]
    %v4459 = vld [vmem:[%s4452 + $0x18] sm:$0xf]
    %v4460 = vld [vmem:[%s4452 + $0x1c] sm:$0xf]
    %v4461 = vld [vmem:[%s4452 + $0x20] sm:$0xf]
    %v4462 = vld [vmem:[%s4452 + $0x24] sm:$0xf]
    %v4463 = vld [vmem:[%s4452 + $0x28] sm:$0xf]
    %v4464 = vld [vmem:[%s4452 + $0x2c] sm:$0xf]
    %v4465 = vld [vmem:[%s4452 + $0x30] sm:$0xf]
    %v4466 = vld [vmem:[%s4452 + $0x34] sm:$0xf]
    %v4467 = vld [vmem:[%s4452 + $0x38] sm:$0xf]
    %v4468 = vld [vmem:[%s4452 + $0x3c] sm:$0xf]
    %v4469 = vld [vmem:[%s4452 + $0x40] sm:$0xf]
    %v4470 = vld [vmem:[%s4452 + $0x44] sm:$0xf]
    %v4471 = vld [vmem:[%s4452 + $0x48] sm:$0xf]
    %v4472 = vld [vmem:[%s4452 + $0x4c] sm:$0xf]
    %v4473 = vld [vmem:[%s4452 + $0x50] sm:$0xf]
    %v4474 = vld [vmem:[%s4452 + $0x54] sm:$0xf]
    %v4475 = vld [vmem:[%s4452 + $0x58] sm:$0xf]
    %v4476 = vld [vmem:[%s4452 + $0x5c] sm:$0xf]
    %v4477 = vld [vmem:[%s4452 + $0x60] sm:$0xf]
    %v4478 = vld [vmem:[%s4452 + $0x64] sm:$0xf]
    %v4479 = vld [vmem:[%s4452 + $0x68] sm:$0xf]
    %v4480 = vld [vmem:[%s4452 + $0x6c] sm:$0xf]
    %v4481 = vld [vmem:[%s4452 + $0x70] sm:$0xf]
    %v4482 = vld [vmem:[%s4452 + $0x74] sm:$0xf]
    %v4483 = vld [vmem:[%s4452 + $0x78] sm:$0xf]
    %v4484 = vld [vmem:[%s4452 + $0x7c] sm:$0xf]
    %v4485 = vld [vmem:[%s4452 + $0x80] sm:$0xf]
    %v4486 = vld [vmem:[%s4452 + $0x84] sm:$0xf]
    %v4487 = vld [vmem:[%s4452 + $0x88] sm:$0xf]
    %v4488 = vld [vmem:[%s4452 + $0x8c] sm:$0xf]
    %v4489 = vld [vmem:[%s4452 + $0x90] sm:$0xf]
    %v4490 = vld [vmem:[%s4452 + $0x94] sm:$0xf]
    %v4491 = vld [vmem:[%s4452 + $0x98] sm:$0xf]
    %v4492 = vld [vmem:[%s4452 + $0x9c] sm:$0xf]
    %v4493 = vld [vmem:[%s4452 + $0xa0] sm:$0xf]
    %v4494 = vld [vmem:[%s4452 + $0xa4] sm:$0xf]
    %v4495 = vld [vmem:[%s4452 + $0xa8] sm:$0xf]
    %v4496 = vld [vmem:[%s4452 + $0xac] sm:$0xf]
    %v4497 = vld [vmem:[%s4452 + $0xb0] sm:$0xf]
    %v4498 = vld [vmem:[%s4452 + $0xb4] sm:$0xf]
    %v4499 = vld [vmem:[%s4452 + $0xb8] sm:$0xf]
    %v4500 = vld [vmem:[%s4452 + $0xbc] sm:$0xf]
    %v4501 = vld [vmem:[%s4452 + $0xc0] sm:$0xf]
    %v4502 = vld [vmem:[%s4452 + $0xc4] sm:$0xf]
    %v4503 = vld [vmem:[%s4452 + $0xc8] sm:$0xf]
    %v4504 = vld [vmem:[%s4452 + $0xcc] sm:$0xf]
    %v4505 = vld [vmem:[%s4452 + $0xd0] sm:$0xf]
    %v4506 = vld [vmem:[%s4452 + $0xd4] sm:$0xf]
    %v4507 = vld [vmem:[%s4452 + $0xd8] sm:$0xf]
    %v4508 = vld [vmem:[%s4452 + $0xdc] sm:$0xf]
    %v4509 = vld [vmem:[%s4452 + $0xe0] sm:$0xf]
    %v4510 = vld [vmem:[%s4452 + $0xe4] sm:$0xf]
    %v4511 = vld [vmem:[%s4452 + $0xe8] sm:$0xf]
    %v4512 = vld [vmem:[%s4452 + $0xec] sm:$0xf]
    %v4513 = vld [vmem:[%s4452 + $0xf0] sm:$0xf]
    %v4514 = vld [vmem:[%s4452 + $0xf4] sm:$0xf]
    %v4515 = vld [vmem:[%s4452 + $0xf8] sm:$0xf]
    %v4516 = vld [vmem:[%s4452 + $0xfc] sm:$0xf]
    %v4517 = vld [vmem:[%s4452 + $0x100] sm:$0xf]
    %v4518 = vld [vmem:[%s4452 + $0x104] sm:$0xf]
    %v4519 = vld [vmem:[%s4452 + $0x108] sm:$0xf]
    %v4520 = vld [vmem:[%s4452 + $0x10c] sm:$0xf]
    %v4521 = vld [vmem:[%s4452 + $0x110] sm:$0xf]
    %v4522 = vld [vmem:[%s4452 + $0x114] sm:$0xf]
    %v4523 = vld [vmem:[%s4452 + $0x118] sm:$0xf]
    %v4524 = vld [vmem:[%s4452 + $0x11c] sm:$0xf]
    %v4525 = vld [vmem:[%s4452 + $0x120] sm:$0xf]
    %v4526 = vld [vmem:[%s4452 + $0x124] sm:$0xf]
    %v4527 = vld [vmem:[%s4452 + $0x128] sm:$0xf]
    %v4528 = vld [vmem:[%s4452 + $0x12c] sm:$0xf]
    %v4529 = vld [vmem:[%s4452 + $0x130] sm:$0xf]
    %v4530 = vld [vmem:[%s4452 + $0x134] sm:$0xf]
    %v4531 = vld [vmem:[%s4452 + $0x138] sm:$0xf]
    %v4532 = vld [vmem:[%s4452 + $0x13c] sm:$0xf]
    %v4533 = vld [vmem:[%s4452 + $0x140] sm:$0xf]
    %v4534 = vld [vmem:[%s4452 + $0x144] sm:$0xf]
    %v4535 = vld [vmem:[%s4452 + $0x148] sm:$0xf]
    %v4536 = vld [vmem:[%s4452 + $0x14c] sm:$0xf]
    %v4537 = vld [vmem:[%s4452 + $0x150] sm:$0xf]
    %v4538 = vld [vmem:[%s4452 + $0x154] sm:$0xf]
    %v4539 = vld [vmem:[%s4452 + $0x158] sm:$0xf]
    %v4540 = vld [vmem:[%s4452 + $0x15c] sm:$0xf]
    %v4541 = vld [vmem:[%s4452 + $0x160] sm:$0xf]
    %v4542 = vld [vmem:[%s4452 + $0x164] sm:$0xf]
    %v4543 = vld [vmem:[%s4452 + $0x168] sm:$0xf]
    %v4544 = vld [vmem:[%s4452 + $0x16c] sm:$0xf]
    %v4545 = vld [vmem:[%s4452 + $0x170] sm:$0xf]
    %v4546 = vld [vmem:[%s4452 + $0x174] sm:$0xf]
    %v4547 = vld [vmem:[%s4452 + $0x178] sm:$0xf]
    %v4548 = vld [vmem:[%s4452 + $0x17c] sm:$0xf]
    %v4549 = vld [vmem:[%s4452 + $0x180] sm:$0xf]
    %v4550 = vld [vmem:[%s4452 + $0x184] sm:$0xf]
    %v4551 = vld [vmem:[%s4452 + $0x188] sm:$0xf]
    %v4552 = vld [vmem:[%s4452 + $0x18c] sm:$0xf]
    %v4553 = vld [vmem:[%s4452 + $0x190] sm:$0xf]
    %v4554 = vld [vmem:[%s4452 + $0x194] sm:$0xf]
    %v4555 = vld [vmem:[%s4452 + $0x198] sm:$0xf]
    %v4556 = vld [vmem:[%s4452 + $0x19c] sm:$0xf]
    %v4557 = vld [vmem:[%s4452 + $0x1a0] sm:$0xf]
    %v4558 = vld [vmem:[%s4452 + $0x1a4] sm:$0xf]
    %v4559 = vld [vmem:[%s4452 + $0x1a8] sm:$0xf]
    %v4560 = vld [vmem:[%s4452 + $0x1ac] sm:$0xf]
    %v4561 = vld [vmem:[%s4452 + $0x1b0] sm:$0xf]
    %v4562 = vld [vmem:[%s4452 + $0x1b4] sm:$0xf]
    %v4563 = vld [vmem:[%s4452 + $0x1b8] sm:$0xf]
    %v4564 = vld [vmem:[%s4452 + $0x1bc] sm:$0xf]
    %v4565 = vld [vmem:[%s4452 + $0x1c0] sm:$0xf]
    %v4566 = vld [vmem:[%s4452 + $0x1c4] sm:$0xf]
    %v4567 = vld [vmem:[%s4452 + $0x1c8] sm:$0xf]
    %v4568 = vld [vmem:[%s4452 + $0x1cc] sm:$0xf]
    %v4569 = vld [vmem:[%s4452 + $0x1d0] sm:$0xf]
    %v4570 = vld [vmem:[%s4452 + $0x1d4] sm:$0xf]
    %v4571 = vld [vmem:[%s4452 + $0x1d8] sm:$0xf]
    %v4572 = vld [vmem:[%s4452 + $0x1dc] sm:$0xf]
    %v4573 = vld [vmem:[%s4452 + $0x1e0] sm:$0xf]
    %v4574 = vld [vmem:[%s4452 + $0x1e4] sm:$0xf]
    %v4575 = vld [vmem:[%s4452 + $0x1e8] sm:$0xf]
    %v4576 = vld [vmem:[%s4452 + $0x1ec] sm:$0xf]
    %v4577 = vld [vmem:[%s4452 + $0x1f0] sm:$0xf]
    %v4578 = vld [vmem:[%s4452 + $0x1f4] sm:$0xf]
    %v4579 = vld [vmem:[%s4452 + $0x1f8] sm:$0xf]
    %v4580 = vld [vmem:[%s4452 + $0x1fc] sm:$0xf]
    %v4581 = vld [vmem:[%s4452 + $0x200] sm:$0xf]
    %v4582 = vld [vmem:[%s4452 + $0x204] sm:$0xf]
    %v4583 = vld [vmem:[%s4452 + $0x208] sm:$0xf]
    %v4584 = vld [vmem:[%s4452 + $0x20c] sm:$0xf]
    %v4585 = vld [vmem:[%s4452 + $0x210] sm:$0xf]
    %v4586 = vld [vmem:[%s4452 + $0x214] sm:$0xf]
    %v4587 = vld [vmem:[%s4452 + $0x218] sm:$0xf]
    %v4588 = vld [vmem:[%s4452 + $0x21c] sm:$0xf]
    %v4589 = vld [vmem:[%s4452 + $0x220] sm:$0xf]
    %v4590 = vld [vmem:[%s4452 + $0x224] sm:$0xf]
    %v4591 = vld [vmem:[%s4452 + $0x228] sm:$0xf]
    %v4592 = vld [vmem:[%s4452 + $0x22c] sm:$0xf]
    %v4593 = vld [vmem:[%s4452 + $0x230] sm:$0xf]
    %v4594 = vld [vmem:[%s4452 + $0x234] sm:$0xf]
    %v4595 = vld [vmem:[%s4452 + $0x238] sm:$0xf]
    %v4596 = vld [vmem:[%s4452 + $0x23c] sm:$0xf]
    %s4597 = scalar_lea.vmem [#allocation9], 3
    %v4598 = vld [vmem:[%s4597] sm:$0x1]
    %v4600 = vlaneseq
    %v4601 = vshrl.u32 %v4600, 7
    %v4602 = vsub.s32 0, %v4601
    %v4603 = vrot.slane %v4598, %v4602
    %v4749 = vunpack.c.l.b16 %v4453
    %v4750 = vunpack.c.l.b16 %v4454
    %v4751 = vunpack.c.l.b16 %v4455
    %v4752 = vunpack.c.l.b16 %v4456
    %v4753 = vunpack.c.l.b16 %v4457
    %v4754 = vunpack.c.l.b16 %v4458
    %v4755 = vunpack.c.l.b16 %v4459
    %v4756 = vunpack.c.l.b16 %v4460
    %v4757 = vunpack.c.l.b16 %v4461
    %v4758 = vunpack.c.l.b16 %v4462
    %v4759 = vunpack.c.l.b16 %v4463
    %v4760 = vunpack.c.l.b16 %v4464
    %v4761 = vunpack.c.l.b16 %v4465
    %v4762 = vunpack.c.l.b16 %v4466
    %v4763 = vunpack.c.l.b16 %v4467
    %v4764 = vunpack.c.l.b16 %v4468
    %v4765 = vunpack.c.l.b16 %v4469
    %v4766 = vunpack.c.l.b16 %v4470
    %v4767 = vunpack.c.l.b16 %v4471
    %v4768 = vunpack.c.l.b16 %v4472
    %v4769 = vunpack.c.l.b16 %v4473
    %v4770 = vunpack.c.l.b16 %v4474
    %v4771 = vunpack.c.l.b16 %v4475
    %v4772 = vunpack.c.l.b16 %v4476
    %v4773 = vunpack.c.l.b16 %v4477
    %v4774 = vunpack.c.l.b16 %v4478
    %v4775 = vunpack.c.l.b16 %v4479
    %v4776 = vunpack.c.l.b16 %v4480
    %v4777 = vunpack.c.l.b16 %v4481
    %v4778 = vunpack.c.l.b16 %v4482
    %v4779 = vunpack.c.l.b16 %v4483
    %v4780 = vunpack.c.l.b16 %v4484
    %v4781 = vunpack.c.l.b16 %v4485
    %v4782 = vunpack.c.l.b16 %v4486
    %v4783 = vunpack.c.l.b16 %v4487
    %v4784 = vunpack.c.l.b16 %v4488
    %v4785 = vunpack.c.l.b16 %v4489
    %v4786 = vunpack.c.l.b16 %v4490
    %v4787 = vunpack.c.l.b16 %v4491
    %v4788 = vunpack.c.l.b16 %v4492
    %v4789 = vunpack.c.l.b16 %v4493
    %v4790 = vunpack.c.l.b16 %v4494
    %v4791 = vunpack.c.l.b16 %v4495
    %v4792 = vunpack.c.l.b16 %v4496
    %v4793 = vunpack.c.l.b16 %v4497
    %v4794 = vunpack.c.l.b16 %v4498
    %v4795 = vunpack.c.l.b16 %v4499
    %v4796 = vunpack.c.l.b16 %v4500
    %v4797 = vunpack.c.l.b16 %v4501
    %v4798 = vunpack.c.l.b16 %v4502
    %v4799 = vunpack.c.l.b16 %v4503
    %v4800 = vunpack.c.l.b16 %v4504
    %v4801 = vunpack.c.l.b16 %v4505
    %v4802 = vunpack.c.l.b16 %v4506
    %v4803 = vunpack.c.l.b16 %v4507
    %v4804 = vunpack.c.l.b16 %v4508
    %v4805 = vunpack.c.l.b16 %v4509
    %v4806 = vunpack.c.l.b16 %v4510
    %v4807 = vunpack.c.l.b16 %v4511
    %v4808 = vunpack.c.l.b16 %v4512
    %v4809 = vunpack.c.l.b16 %v4513
    %v4810 = vunpack.c.l.b16 %v4514
    %v4811 = vunpack.c.l.b16 %v4515
    %v4812 = vunpack.c.l.b16 %v4516
    %v4813 = vunpack.c.l.b16 %v4517
    %v4814 = vunpack.c.l.b16 %v4518
    %v4815 = vunpack.c.l.b16 %v4519
    %v4816 = vunpack.c.l.b16 %v4520
    %v4817 = vunpack.c.l.b16 %v4521
    %v4818 = vunpack.c.l.b16 %v4522
    %v4819 = vunpack.c.l.b16 %v4523
    %v4820 = vunpack.c.l.b16 %v4524
    %v4821 = vunpack.c.l.b16 %v4525
    %v4822 = vunpack.c.l.b16 %v4526
    %v4823 = vunpack.c.l.b16 %v4527
    %v4824 = vunpack.c.l.b16 %v4528
    %v4825 = vunpack.c.l.b16 %v4529
    %v4826 = vunpack.c.l.b16 %v4530
    %v4827 = vunpack.c.l.b16 %v4531
    %v4828 = vunpack.c.l.b16 %v4532
    %v4829 = vunpack.c.l.b16 %v4533
    %v4830 = vunpack.c.l.b16 %v4534
    %v4831 = vunpack.c.l.b16 %v4535
    %v4832 = vunpack.c.l.b16 %v4536
    %v4833 = vunpack.c.l.b16 %v4537
    %v4834 = vunpack.c.l.b16 %v4538
    %v4835 = vunpack.c.l.b16 %v4539
    %v4836 = vunpack.c.l.b16 %v4540
    %v4837 = vunpack.c.l.b16 %v4541
    %v4838 = vunpack.c.l.b16 %v4542
    %v4839 = vunpack.c.l.b16 %v4543
    %v4840 = vunpack.c.l.b16 %v4544
    %v4841 = vunpack.c.l.b16 %v4545
    %v4842 = vunpack.c.l.b16 %v4546
    %v4843 = vunpack.c.l.b16 %v4547
    %v4844 = vunpack.c.l.b16 %v4548
    %v4845 = vunpack.c.l.b16 %v4549
    %v4846 = vunpack.c.l.b16 %v4550
    %v4847 = vunpack.c.l.b16 %v4551
    %v4848 = vunpack.c.l.b16 %v4552
    %v4849 = vunpack.c.l.b16 %v4553
    %v4850 = vunpack.c.l.b16 %v4554
    %v4851 = vunpack.c.l.b16 %v4555
    %v4852 = vunpack.c.l.b16 %v4556
    %v4853 = vunpack.c.l.b16 %v4557
    %v4854 = vunpack.c.l.b16 %v4558
    %v4855 = vunpack.c.l.b16 %v4559
    %v4856 = vunpack.c.l.b16 %v4560
    %v4857 = vunpack.c.l.b16 %v4561
    %v4858 = vunpack.c.l.b16 %v4562
    %v4859 = vunpack.c.l.b16 %v4563
    %v4860 = vunpack.c.l.b16 %v4564
    %v4861 = vunpack.c.l.b16 %v4565
    %v4862 = vunpack.c.l.b16 %v4566
    %v4863 = vunpack.c.l.b16 %v4567
    %v4864 = vunpack.c.l.b16 %v4568
    %v4865 = vunpack.c.l.b16 %v4569
    %v4866 = vunpack.c.l.b16 %v4570
    %v4867 = vunpack.c.l.b16 %v4571
    %v4868 = vunpack.c.l.b16 %v4572
    %v4869 = vunpack.c.l.b16 %v4573
    %v4870 = vunpack.c.l.b16 %v4574
    %v4871 = vunpack.c.l.b16 %v4575
    %v4872 = vunpack.c.l.b16 %v4576
    %v4873 = vunpack.c.l.b16 %v4577
    %v4874 = vunpack.c.l.b16 %v4578
    %v4875 = vunpack.c.l.b16 %v4579
    %v4876 = vunpack.c.l.b16 %v4580
    %v4877 = vunpack.c.l.b16 %v4581
    %v4878 = vunpack.c.l.b16 %v4582
    %v4879 = vunpack.c.l.b16 %v4583
    %v4880 = vunpack.c.l.b16 %v4584
    %v4881 = vunpack.c.l.b16 %v4585
    %v4882 = vunpack.c.l.b16 %v4586
    %v4883 = vunpack.c.l.b16 %v4587
    %v4884 = vunpack.c.l.b16 %v4588
    %v4885 = vunpack.c.l.b16 %v4589
    %v4886 = vunpack.c.l.b16 %v4590
    %v4887 = vunpack.c.l.b16 %v4591
    %v4888 = vunpack.c.l.b16 %v4592
    %v4889 = vunpack.c.l.b16 %v4593
    %v4890 = vunpack.c.l.b16 %v4594
    %v4891 = vunpack.c.l.b16 %v4595
    %v4892 = vunpack.c.l.b16 %v4596
    %v4893 = vpack.c.b16 %v4750, %v4749
    %v4894 = vpack.c.b16 %v4752, %v4751
    %v4895 = vpack.c.b16 %v4754, %v4753
    %v4896 = vpack.c.b16 %v4756, %v4755
    %v4897 = vpack.c.b16 %v4758, %v4757
    %v4898 = vpack.c.b16 %v4760, %v4759
    %v4899 = vpack.c.b16 %v4762, %v4761
    %v4900 = vpack.c.b16 %v4764, %v4763
    %v4901 = vpack.c.b16 %v4766, %v4765
    %v4902 = vpack.c.b16 %v4768, %v4767
    %v4903 = vpack.c.b16 %v4770, %v4769
    %v4904 = vpack.c.b16 %v4772, %v4771
    %v4905 = vpack.c.b16 %v4774, %v4773
    %v4906 = vpack.c.b16 %v4776, %v4775
    %v4907 = vpack.c.b16 %v4778, %v4777
    %v4908 = vpack.c.b16 %v4780, %v4779
    %v4909 = vpack.c.b16 %v4782, %v4781
    %v4910 = vpack.c.b16 %v4784, %v4783
    %v4911 = vpack.c.b16 %v4786, %v4785
    %v4912 = vpack.c.b16 %v4788, %v4787
    %v4913 = vpack.c.b16 %v4790, %v4789
    %v4914 = vpack.c.b16 %v4792, %v4791
    %v4915 = vpack.c.b16 %v4794, %v4793
    %v4916 = vpack.c.b16 %v4796, %v4795
    %v4917 = vpack.c.b16 %v4798, %v4797
    %v4918 = vpack.c.b16 %v4800, %v4799
    %v4919 = vpack.c.b16 %v4802, %v4801
    %v4920 = vpack.c.b16 %v4804, %v4803
    %v4921 = vpack.c.b16 %v4806, %v4805
    %v4922 = vpack.c.b16 %v4808, %v4807
    %v4923 = vpack.c.b16 %v4810, %v4809
    %v4924 = vpack.c.b16 %v4812, %v4811
    %v4925 = vpack.c.b16 %v4814, %v4813
    %v4926 = vpack.c.b16 %v4816, %v4815
    %v4927 = vpack.c.b16 %v4818, %v4817
    %v4928 = vpack.c.b16 %v4820, %v4819
    %v4929 = vpack.c.b16 %v4822, %v4821
    %v4930 = vpack.c.b16 %v4824, %v4823
    %v4931 = vpack.c.b16 %v4826, %v4825
    %v4932 = vpack.c.b16 %v4828, %v4827
    %v4933 = vpack.c.b16 %v4830, %v4829
    %v4934 = vpack.c.b16 %v4832, %v4831
    %v4935 = vpack.c.b16 %v4834, %v4833
    %v4936 = vpack.c.b16 %v4836, %v4835
    %v4937 = vpack.c.b16 %v4838, %v4837
    %v4938 = vpack.c.b16 %v4840, %v4839
    %v4939 = vpack.c.b16 %v4842, %v4841
    %v4940 = vpack.c.b16 %v4844, %v4843
    %v4941 = vpack.c.b16 %v4846, %v4845
    %v4942 = vpack.c.b16 %v4848, %v4847
    %v4943 = vpack.c.b16 %v4850, %v4849
    %v4944 = vpack.c.b16 %v4852, %v4851
    %v4945 = vpack.c.b16 %v4854, %v4853
    %v4946 = vpack.c.b16 %v4856, %v4855
    %v4947 = vpack.c.b16 %v4858, %v4857
    %v4948 = vpack.c.b16 %v4860, %v4859
    %v4949 = vpack.c.b16 %v4862, %v4861
    %v4950 = vpack.c.b16 %v4864, %v4863
    %v4951 = vpack.c.b16 %v4866, %v4865
    %v4952 = vpack.c.b16 %v4868, %v4867
    %v4953 = vpack.c.b16 %v4870, %v4869
    %v4954 = vpack.c.b16 %v4872, %v4871
    %v4955 = vpack.c.b16 %v4874, %v4873
    %v4956 = vpack.c.b16 %v4876, %v4875
    %v4957 = vpack.c.b16 %v4878, %v4877
    %v4958 = vpack.c.b16 %v4880, %v4879
    %v4959 = vpack.c.b16 %v4882, %v4881
    %v4960 = vpack.c.b16 %v4884, %v4883
    %v4961 = vpack.c.b16 %v4886, %v4885
    %v4962 = vpack.c.b16 %v4888, %v4887
    %v4963 = vpack.c.b16 %v4890, %v4889
    %v4964 = vpack.c.b16 %v4892, %v4891
    %5037 = vmatprep.subr.bf16.mxu0 0
    %5038 = vmatpush1.bf16.msra.mxu0 %v4893
    %5039 = vmatprep.subr.bf16.mxu0 0
    %5040 = vmatpush1.bf16.msra.mxu0 %v4894
    %5041 = vmatprep.subr.bf16.mxu0 0
    %5042 = vmatpush1.bf16.msra.mxu0 %v4895
    %5043 = vmatprep.subr.bf16.mxu0 0
    %5044 = vmatpush1.bf16.msra.mxu0 %v4896
    %5045 = vmatprep.subr.bf16.mxu0 0
    %5046 = vmatpush1.bf16.msra.mxu0 %v4897
    %5047 = vmatprep.subr.bf16.mxu0 0
    %5048 = vmatpush1.bf16.msra.mxu0 %v4898
    %5049 = vmatprep.subr.bf16.mxu0 0
    %5050 = vmatpush1.bf16.msra.mxu0 %v4899
    %5051 = vmatprep.subr.bf16.mxu0 0
    %5052 = vmatpush1.bf16.msra.mxu0 %v4900
    %5053 = vmatprep.subr.bf16.mxu0 0
    %5054 = vmatpush1.bf16.msra.mxu0 %v4901
    %5055 = vmatprep.subr.bf16.mxu0 0
    %5056 = vmatpush1.bf16.msra.mxu0 %v4902
    %5057 = vmatprep.subr.bf16.mxu0 0
    %5058 = vmatpush1.bf16.msra.mxu0 %v4903
    %5059 = vmatprep.subr.bf16.mxu0 0
    %5060 = vmatpush1.bf16.msra.mxu0 %v4904
    %5061 = vmatprep.subr.bf16.mxu0 0
    %5062 = vmatpush1.bf16.msra.mxu0 %v4905
    %5063 = vmatprep.subr.bf16.mxu0 0
    %5064 = vmatpush1.bf16.msra.mxu0 %v4906
    %5065 = vmatprep.subr.bf16.mxu0 0
    %5066 = vmatpush1.bf16.msra.mxu0 %v4907
    %5067 = vmatprep.subr.bf16.mxu0 0
    %5068 = vmatpush1.bf16.msra.mxu0 %v4908
    %5069 = vmatprep.mubr.bf16.mxu0 %v4444
    %5070 = vmatmul.mubr.bf16.gmra.mrb[0].mxu0 %v4443
    %v5071 = vpop.f32.mrb[0].mxu0
    %v5072 = vadd.f32 %v4603, %v5071
    %v5073 = vpop.f32.mrb[0].mxu0
    %v5074 = vpop.f32.mrb[0].mxu0
    %v5075 = vpop.f32.mrb[0].mxu0
    %5076 = vdwg.mxu0
    %5077 = vmatprep.subr.bf16.mxu0 0
    %5078 = vmatpush1.bf16.msra.mxu0 %v4909
    %5079 = vmatprep.subr.bf16.mxu0 0
    %5080 = vmatpush1.bf16.msra.mxu0 %v4910
    %5081 = vmatprep.subr.bf16.mxu0 0
    %5082 = vmatpush1.bf16.msra.mxu0 %v4911
    %5083 = vmatprep.subr.bf16.mxu0 0
    %5084 = vmatpush1.bf16.msra.mxu0 %v4912
    %5085 = vmatprep.subr.bf16.mxu0 0
    %5086 = vmatpush1.bf16.msra.mxu0 %v4913
    %5087 = vmatprep.subr.bf16.mxu0 0
    %5088 = vmatpush1.bf16.msra.mxu0 %v4914
    %5089 = vmatprep.subr.bf16.mxu0 0
    %5090 = vmatpush1.bf16.msra.mxu0 %v4915
    %5091 = vmatprep.subr.bf16.mxu0 0
    %5092 = vmatpush1.bf16.msra.mxu0 %v4916
    %5093 = vmatprep.subr.bf16.mxu0 0
    %5094 = vmatpush1.bf16.msra.mxu0 %v4917
    %5095 = vmatprep.subr.bf16.mxu0 0
    %5096 = vmatpush1.bf16.msra.mxu0 %v4918
    %5097 = vmatprep.subr.bf16.mxu0 0
    %5098 = vmatpush1.bf16.msra.mxu0 %v4919
    %5099 = vmatprep.subr.bf16.mxu0 0
    %5100 = vmatpush1.bf16.msra.mxu0 %v4920
    %5101 = vmatprep.subr.bf16.mxu0 0
    %5102 = vmatpush1.bf16.msra.mxu0 %v4921
    %5103 = vmatprep.subr.bf16.mxu0 0
    %5104 = vmatpush1.bf16.msra.mxu0 %v4922
    %5105 = vmatprep.subr.bf16.mxu0 0
    %5106 = vmatpush1.bf16.msra.mxu0 %v4923
    %5107 = vmatprep.subr.bf16.mxu0 0
    %5108 = vmatpush1.bf16.msra.mxu0 %v4924
    %5109 = vmatprep.mubr.bf16.mxu0 %v4446
    %5110 = vmatmul.mubr.bf16.gmra.mrb[0].mxu0 %v4445
    %v5111 = vpop.f32.mrb[0].mxu0
    %v5112 = vadd.f32 %v5072, %v5111
    %v5113 = vpop.f32.mrb[0].mxu0
    %v5114 = vpop.f32.mrb[0].mxu0
    %v5115 = vpop.f32.mrb[0].mxu0
    %5116 = vdwg.mxu0
    %5117 = vmatprep.subr.bf16.mxu0 0
    %5118 = vmatpush1.bf16.msra.mxu0 %v4925
    %5119 = vmatprep.subr.bf16.mxu0 0
    %5120 = vmatpush1.bf16.msra.mxu0 %v4926
    %5121 = vmatprep.subr.bf16.mxu0 0
    %5122 = vmatpush1.bf16.msra.mxu0 %v4927
    %5123 = vmatprep.subr.bf16.mxu0 0
    %5124 = vmatpush1.bf16.msra.mxu0 %v4928
    %5125 = vmatprep.subr.bf16.mxu0 0
    %5126 = vmatpush1.bf16.msra.mxu0 %v4929
    %5127 = vmatprep.subr.bf16.mxu0 0
    %5128 = vmatpush1.bf16.msra.mxu0 %v4930
    %5129 = vmatprep.subr.bf16.mxu0 0
    %5130 = vmatpush1.bf16.msra.mxu0 %v4931
    %5131 = vmatprep.subr.bf16.mxu0 0
    %5132 = vmatpush1.bf16.msra.mxu0 %v4932
    %5133 = vmatprep.subr.bf16.mxu0 0
    %5134 = vmatpush1.bf16.msra.mxu0 %v4933
    %5135 = vmatprep.subr.bf16.mxu0 0
    %5136 = vmatpush1.bf16.msra.mxu0 %v4934
    %5137 = vmatprep.subr.bf16.mxu0 0
    %5138 = vmatpush1.bf16.msra.mxu0 %v4935
    %5139 = vmatprep.subr.bf16.mxu0 0
    %5140 = vmatpush1.bf16.msra.mxu0 %v4936
    %5141 = vmatprep.subr.bf16.mxu0 0
    %5142 = vmatpush1.bf16.msra.mxu0 %v4937
    %5143 = vmatprep.subr.bf16.mxu0 0
    %5144 = vmatpush1.bf16.msra.mxu0 %v4938
    %5145 = vmatprep.subr.bf16.mxu0 0
    %5146 = vmatpush1.bf16.msra.mxu0 %v4939
    %5147 = vmatprep.subr.bf16.mxu0 0
    %5148 = vmatpush1.bf16.msra.mxu0 %v4940
    %5149 = vmatprep.mubr.bf16.mxu0 %v4448
    %5150 = vmatmul.mubr.bf16.gmra.mrb[0].mxu0 %v4447
    %v5151 = vpop.f32.mrb[0].mxu0
    %v5152 = vadd.f32 %v5112, %v5151
    %v5153 = vpop.f32.mrb[0].mxu0
    %v5154 = vpop.f32.mrb[0].mxu0
    %v5155 = vpop.f32.mrb[0].mxu0
    %5156 = vdwg.mxu0
    %5157 = vmatprep.subr.bf16.mxu0 0
    %5158 = vmatpush1.bf16.msra.mxu0 %v4941
    %5159 = vmatprep.subr.bf16.mxu0 0
    %5160 = vmatpush1.bf16.msra.mxu0 %v4942
    %5161 = vmatprep.subr.bf16.mxu0 0
    %5162 = vmatpush1.bf16.msra.mxu0 %v4943
    %5163 = vmatprep.subr.bf16.mxu0 0
    %5164 = vmatpush1.bf16.msra.mxu0 %v4944
    %5165 = vmatprep.subr.bf16.mxu0 0
    %5166 = vmatpush1.bf16.msra.mxu0 %v4945
    %5167 = vmatprep.subr.bf16.mxu0 0
    %5168 = vmatpush1.bf16.msra.mxu0 %v4946
    %5169 = vmatprep.subr.bf16.mxu0 0
    %5170 = vmatpush1.bf16.msra.mxu0 %v4947
    %5171 = vmatprep.subr.bf16.mxu0 0
    %5172 = vmatpush1.bf16.msra.mxu0 %v4948
    %5173 = vmatprep.subr.bf16.mxu0 0
    %5174 = vmatpush1.bf16.msra.mxu0 %v4949
    %5175 = vmatprep.subr.bf16.mxu0 0
    %5176 = vmatpush1.bf16.msra.mxu0 %v4950
    %5177 = vmatprep.subr.bf16.mxu0 0
    %5178 = vmatpush1.bf16.msra.mxu0 %v4951
    %5179 = vmatprep.subr.bf16.mxu0 0
    %5180 = vmatpush1.bf16.msra.mxu0 %v4952
    %5181 = vmatprep.subr.bf16.mxu0 0
    %5182 = vmatpush1.bf16.msra.mxu0 %v4953
    %5183 = vmatprep.subr.bf16.mxu0 0
    %5184 = vmatpush1.bf16.msra.mxu0 %v4954
    %5185 = vmatprep.subr.bf16.mxu0 0
    %5186 = vmatpush1.bf16.msra.mxu0 %v4955
    %5187 = vmatprep.subr.bf16.mxu0 0
    %5188 = vmatpush1.bf16.msra.mxu0 %v4956
    %5189 = vmatprep.mubr.bf16.mxu0 %v4450
    %5190 = vmatmul.mubr.bf16.gmra.mrb[0].mxu0 %v4449
    %v5191 = vpop.f32.mrb[0].mxu0
    %v5192 = vadd.f32 %v5152, %v5191
    %v5193 = vpop.f32.mrb[0].mxu0
    %v5194 = vpop.f32.mrb[0].mxu0
    %v5195 = vpop.f32.mrb[0].mxu0
    %5196 = vdwg.mxu0
    %5197 = vmatprep.subr.bf16.mxu0 0
    %5198 = vmatpush1.bf16.msra.mxu0 %v4957
    %5199 = vmatprep.subr.bf16.mxu0 0
    %5200 = vmatpush1.bf16.msra.mxu0 %v4958
    %5201 = vmatprep.subr.bf16.mxu0 0
    %5202 = vmatpush1.bf16.msra.mxu0 %v4959
    %5203 = vmatprep.subr.bf16.mxu0 0
    %5204 = vmatpush1.bf16.msra.mxu0 %v4960
    %5205 = vmatprep.subr.bf16.mxu0 0
    %5206 = vmatpush1.bf16.msra.mxu0 %v4961
    %5207 = vmatprep.subr.bf16.mxu0 0
    %5208 = vmatpush1.bf16.msra.mxu0 %v4962
    %5209 = vmatprep.subr.bf16.mxu0 0
    %5210 = vmatpush1.bf16.msra.mxu0 %v4963
    %5211 = vmatprep.subr.bf16.mxu0 0
    %5212 = vmatpush1.bf16.msra.mxu0 %v4964
    %5213 = vmatprep.subr.bf16.mxu0 0
    %5214 = vmatpush1.bf16.msra.mxu0 0
    %5215 = vmatprep.subr.bf16.mxu0 0
    %5216 = vmatpush1.bf16.msra.mxu0 0
    %5217 = vmatprep.subr.bf16.mxu0 0
    %5218 = vmatpush1.bf16.msra.mxu0 0
    %5219 = vmatprep.subr.bf16.mxu0 0
    %5220 = vmatpush1.bf16.msra.mxu0 0
    %5221 = vmatprep.subr.bf16.mxu0 0
    %5222 = vmatpush1.bf16.msra.mxu0 0
    %5223 = vmatprep.subr.bf16.mxu0 0
    %5224 = vmatpush1.bf16.msra.mxu0 0
    %5225 = vmatprep.subr.bf16.mxu0 0
    %5226 = vmatpush1.bf16.msra.mxu0 0
    %5227 = vmatprep.subr.bf16.mxu0 0
    %5228 = vmatpush1.bf16.msra.mxu0 0
    %5229 = vmatprep.mubr.bf16.mxu0 0
    %5230 = vmatmul.mubr.bf16.gmra.mrb[0].mxu0 %v4451
    %v5231 = vpop.f32.mrb[0].mxu0
    %v5232 = vadd.f32 %v5192, %v5231
    %v5233 = vpop.f32.mrb[0].mxu0
    %v5234 = vpop.f32.mrb[0].mxu0
    %v5235 = vpop.f32.mrb[0].mxu0
    %5236 = vdwg.mxu0
    %vm5237 = vcmp.gt.f32.partialorder %v5232, 0.0
    %v5238 = vmul.f32 %v5232, 0.2
    %v5239 = vsel %vm5237, %v5232, %v5238
    %s5240 = scalar_lea.vmem [#allocation11], 3
    %v5241 = vld [vmem:[%s5240] sm:$0x1]
    %v5243 = vlaneseq
    %v5244 = vshrl.u32 %v5243, 7
    %v5245 = vsub.s32 0, %v5244
    %v5246 = vrot.slane %v5241, %v5245
    %v5248 = vmul.f32 %v5239, %v5246
    %s5249 = scalar_lea.vmem [#allocation12], 3
    %v5250 = vld [vmem:[%s5249] sm:$0x1]
    %v5252 = vlaneseq
    %v5253 = vshrl.u32 %v5252, 7
    %v5254 = vsub.s32 0, %v5253
    %v5255 = vrot.slane %v5250, %v5254
    %v5257 = vadd.f32 %v5248, %v5255
    %v5258 = vpack.c.bf16 %v5257, %v5257
    %v5259 = vld [vmem:[#allocation14] sm:$0xf]
    %v5260 = vld [vmem:[#allocation14 + $0x4] sm:$0xf]
    %v5261 = vld [vmem:[#allocation14 + $0x8] sm:$0xf]
    %v5262 = vld [vmem:[#allocation14 + $0xc] sm:$0xf]
    %v5263 = vld [vmem:[#allocation14 + $0x10] sm:$0xf]
    %v5264 = vld [vmem:[#allocation14 + $0x14] sm:$0xf]
    %v5265 = vld [vmem:[#allocation14 + $0x18] sm:$0xf]
    %v5266 = vld [vmem:[#allocation14 + $0x1c] sm:$0xf]
    %v5267 = vld [vmem:[#allocation14 + $0x20] sm:$0xf]
    %v5268 = vld [vmem:[#allocation14 + $0x24] sm:$0xf]
    %v5269 = vld [vmem:[#allocation14 + $0x28] sm:$0xf]
    %v5270 = vld [vmem:[#allocation14 + $0x2c] sm:$0xf]
    %v5271 = vld [vmem:[#allocation14 + $0x30] sm:$0xf]
    %v5272 = vld [vmem:[#allocation14 + $0x34] sm:$0xf]
    %v5273 = vld [vmem:[#allocation14 + $0x38] sm:$0xf]
    %v5274 = vld [vmem:[#allocation14 + $0x3c] sm:$0xf]
    %v5275 = vld [vmem:[#allocation15] sm:$0x1]
    %v5277 = vlaneseq
    %v5278 = vshrl.u32 %v5277, 7
    %v5279 = vsub.s32 0, %v5278
    %v5280 = vrot.slane %v5275, %v5279
    %v5298 = vunpack.c.l.b16 %v5259
    %v5299 = vunpack.c.l.b16 %v5260
    %v5300 = vunpack.c.l.b16 %v5261
    %v5301 = vunpack.c.l.b16 %v5262
    %v5302 = vunpack.c.l.b16 %v5263
    %v5303 = vunpack.c.l.b16 %v5264
    %v5304 = vunpack.c.l.b16 %v5265
    %v5305 = vunpack.c.l.b16 %v5266
    %v5306 = vunpack.c.l.b16 %v5267
    %v5307 = vunpack.c.l.b16 %v5268
    %v5308 = vunpack.c.l.b16 %v5269
    %v5309 = vunpack.c.l.b16 %v5270
    %v5310 = vunpack.c.l.b16 %v5271
    %v5311 = vunpack.c.l.b16 %v5272
    %v5312 = vunpack.c.l.b16 %v5273
    %v5313 = vunpack.c.l.b16 %v5274
    %v5314 = vpack.c.b16 %v5299, %v5298
    %v5315 = vpack.c.b16 %v5301, %v5300
    %v5316 = vpack.c.b16 %v5303, %v5302
    %v5317 = vpack.c.b16 %v5305, %v5304
    %v5318 = vpack.c.b16 %v5307, %v5306
    %v5319 = vpack.c.b16 %v5309, %v5308
    %v5320 = vpack.c.b16 %v5311, %v5310
    %v5321 = vpack.c.b16 %v5313, %v5312
    %5330 = vmatprep.subr.bf16.mxu0 0
    %5331 = vmatpush1.bf16.msra.mxu0 %v5314
    %5332 = vmatprep.subr.bf16.mxu0 0
    %5333 = vmatpush1.bf16.msra.mxu0 %v5315
    %5334 = vmatprep.subr.bf16.mxu0 0
    %5335 = vmatpush1.bf16.msra.mxu0 %v5316
    %5336 = vmatprep.subr.bf16.mxu0 0
    %5337 = vmatpush1.bf16.msra.mxu0 %v5317
    %5338 = vmatprep.subr.bf16.mxu0 0
    %5339 = vmatpush1.bf16.msra.mxu0 %v5318
    %5340 = vmatprep.subr.bf16.mxu0 0
    %5341 = vmatpush1.bf16.msra.mxu0 %v5319
    %5342 = vmatprep.subr.bf16.mxu0 0
    %5343 = vmatpush1.bf16.msra.mxu0 %v5320
    %5344 = vmatprep.subr.bf16.mxu0 0
    %5345 = vmatpush1.bf16.msra.mxu0 %v5321
    %5346 = vmatprep.subr.bf16.mxu0 0
    %5347 = vmatpush1.bf16.msra.mxu0 0
    %5348 = vmatprep.subr.bf16.mxu0 0
    %5349 = vmatpush1.bf16.msra.mxu0 0
    %5350 = vmatprep.subr.bf16.mxu0 0
    %5351 = vmatpush1.bf16.msra.mxu0 0
    %5352 = vmatprep.subr.bf16.mxu0 0
    %5353 = vmatpush1.bf16.msra.mxu0 0
    %5354 = vmatprep.subr.bf16.mxu0 0
    %5355 = vmatpush1.bf16.msra.mxu0 0
    %5356 = vmatprep.subr.bf16.mxu0 0
    %5357 = vmatpush1.bf16.msra.mxu0 0
    %5358 = vmatprep.subr.bf16.mxu0 0
    %5359 = vmatpush1.bf16.msra.mxu0 0
    %5360 = vmatprep.subr.bf16.mxu0 0
    %5361 = vmatpush1.bf16.msra.mxu0 0
    %5362 = vmatprep.mubr.bf16.mxu0 0
    %5363 = vmatmul.mubr.bf16.gmra.mrb[0].mxu0 %v5258
    %v5364 = vpop.f32.mrb[0].mxu0
    %v5365 = vadd.f32 %v5280, %v5364
    %v5366 = vpop.f32.mrb[0].mxu0
    %v5367 = vpop.f32.mrb[0].mxu0
    %v5368 = vpop.f32.mrb[0].mxu0
    %5369 = vdwg.mxu0
    %v5370 = vlaneseq
    %v5371 = vand.u32 %v5370, 127
    %vm5372 = vcmp.ge.s32.totalorder %v5371, 1
    %vm5373 = vcmp.lt.s32.totalorder %v5371, 11
    %vm5374 = vmand %vm5372, %vm5373
    %v5375 = vsel %vm5374, %v5365, -1e+30
    %vm5376 = vcmask 1041408
    %v5377 = vsel %vm5376, %v5375, -inf
    %5378 = vmax.xlane.f32.xlu0 %v5377
    %v5379 = vpop.xlane.xlu0 %5378
    %v5380 = vsub.f32 %v5375, %v5379
    %v5381 = vmul.f32 %v5380, 1.442695
    %v5382 = vpow.pop %v5381
    %v5383 = vsel %vm5376, %v5382, 0.0
    %5384 = vadd.xlane.f32.xlu0 %v5383
    %v5385 = vpop.xlane.xlu0 %5384
    %v5386 = vrcp.pop %v5385
    %v5387 = vmul.f32 %v5382, %v5386
    %v5388 = vsel %vm5374, %v5387, %v5365
    %5389 = vst [vmem:[%s7] sm:$0x3] %v5388
    // Predicated region
    $region54: #{discriminator_forward.1} parent=1 // pred_check
      _
    $region55: #{discriminator_forward.1} parent=1 // pred_check_branch
      %5391 = sbr.rel (0) target = $region57
    $region56: #{discriminator_forward.1} parent=1 // pred_region
      _
    $region57: #{discriminator_forward.1} parent=1 // pred_fallthru
      _
    // Predicated region
    $region58: #{discriminator_forward.1} parent=1 // pred_check
      _
    $region59: #{discriminator_forward.1} parent=1 // pred_check_branch
      %5393 = sbr.rel (0) target = $region61
    $region60: #{discriminator_forward.1} parent=1 // pred_region
      _
    $region61: #{discriminator_forward.1} parent=1 // pred_fallthru
      _
    %5394 = vsyncpa [#allocation8], 1
    %5395 = vsyncpa [#allocation10], 1
    %5396 = vsyncpa [#allocation13], 1
    %5397 = vsyncpa [#allocation16], 1

</llo_original>
